<compile_context>
chip_gen: v7x
topology: tpu7x:2x2x1
jax: 0.10.0
libtpu: 0.0.40
codegen_flags: <defaults>
</compile_context>

<pallas_src>
import functools
import math

import jax
import jax.numpy as jnp
from jax.experimental import pallas as pl
from jax.experimental.pallas import tpu as pltpu


def _backbone_kernel(x_ref, w1_ref, b1_ref, w2_ref, b2_ref, w3_ref, b3_ref,
                     w4_ref, b4_ref, o_ref, p1, p2, p3, work, *, H, W, C):
    """Fused 4-block backbone for one image (one grid step).

    Activations live in flattened zero-halo padded buffers of shape
    ((Hl+2)*(Wl+2) + 2, Cl).  Conv output row a = y*Wp + x (x < Wl valid,
    x >= Wl garbage) reads input rows a + dy*Wp + dx, so each tap is a single
    contiguous row slice.  The 2 slack rows keep the dy=dx=2 tap in bounds
    (they only ever feed garbage columns, which are never read).
    """

    def conv3x3(read_tap, w_ref, b_ref, Hl, Wp, relu):
        # 3x3 conv as 9 contiguous-slice bf16 matmuls with f32 accumulation.
        M = Hl * Wp
        Cout = w_ref.shape[-1]
        acc = jnp.zeros((M, Cout), jnp.float32)
        for t in range(9):
            dy, dx = divmod(t, 3)
            acc = acc + jnp.dot(read_tap(dy * Wp + dx, M), w_ref[t],
                                preferred_element_type=jnp.float32)
        acc = acc + b_ref[...]          # folded conv-bias + BN shift
        if relu:
            acc = jnp.maximum(acc, 0.0)
        return acc

    def pool_into(src_ref, dst_ref, Hl, Wl, Wp, Wpn):
        # 2x2 / stride-2 maxpool folded into strided row reads; writes the
        # pooled rows into the interior of the next zero-halo padded buffer.
        Ho, Wo = Hl // 2, Wl // 2
        for yo in range(Ho):
            base = 2 * yo * Wp
            r00 = src_ref[pl.ds(base,          Wo, stride=2), :]
            r01 = src_ref[pl.ds(base + 1,      Wo, stride=2), :]
            r10 = src_ref[pl.ds(base + Wp,     Wo, stride=2), :]
            r11 = src_ref[pl.ds(base + Wp + 1, Wo, stride=2), :]
            pooled = jnp.maximum(jnp.maximum(r00, r01), jnp.maximum(r10, r11))
            dst_ref[pl.ds((yo + 1) * Wpn + 1, Wo), :] = pooled.astype(dst_ref.dtype)

    # Zero the padded buffers (halo + slack rows must be zero every step).
    p1[...] = jnp.zeros_like(p1)
    p2[...] = jnp.zeros_like(p2)
    p3[...] = jnp.zeros_like(p3)

    # ---- block 1: (H, W, 3) -> conv+BN -> ReLU -> pool -> p1 interior ----
    H1, W1, Wp1 = H, W, W + 2
    acc = conv3x3(lambda off, M: x_ref[pl.ds(off, M), :], w1_ref, b1_ref,
                  H1, Wp1, relu=True)
    work[0:H1 * Wp1, :] = acc
    pool_into(work, p1, H1, W1, Wp1, W1 // 2 + 2)

    # ---- block 2 ----
    H2, W2, Wp2 = H // 2, W // 2, W // 2 + 2
    acc = conv3x3(lambda off, M: p1[pl.ds(off, M), :], w2_ref, b2_ref,
                  H2, Wp2, relu=True)
    work[0:H2 * Wp2, :] = acc
    pool_into(work, p2, H2, W2, Wp2, W2 // 2 + 2)

    # ---- block 3 ----
    H3, W3, Wp3 = H // 4, W // 4, W // 4 + 2
    acc = conv3x3(lambda off, M: p2[pl.ds(off, M), :], w3_ref, b3_ref,
                  H3, Wp3, relu=True)
    work[0:H3 * Wp3, :] = acc
    pool_into(work, p3, H3, W3, Wp3, W3 // 2 + 2)

    # ---- block 4: conv+BN only (no ReLU, no pool; matches the PyTorch spec) ----
    H4, W4, Wp4 = H // 8, W // 8, W // 8 + 2
    acc = conv3x3(lambda off, M: p3[pl.ds(off, M), :], w4_ref, b4_ref,
                  H4, Wp4, relu=False)

    # Lane-dense output slab: gather the valid (y, x) rows and concat on lanes.
    pieces = []
    for y in range(H4):
        for x in range(W4):
            a = y * Wp4 + x
            pieces.append(acc[a:a + 1, :])                 # (1, C)
    o_ref[0] = jnp.concatenate(pieces, axis=1).astype(o_ref.dtype)   # (1, H4*W4*C)


def init_backbone_params(key, num_channel):
    """Deterministic parameters; BN (eval mode) folded into conv weight/bias."""
    eps = 1e-5
    chans = [(3, num_channel)] + [(num_channel, num_channel)] * 3
    params = []
    for cin, cout in chans:
        key, k1, k2, k3, k4 = jax.random.split(key, 5)
        w = jax.random.normal(k1, (3, 3, cin, cout), jnp.float32) / math.sqrt(9 * cin)
        b = 0.1 * jax.random.normal(k2, (cout,), jnp.float32)
        gamma = 1.0 + 0.1 * jax.random.normal(k3, (cout,), jnp.float32)
        beta = 0.1 * jax.random.normal(k4, (cout,), jnp.float32)
        running_mean = jnp.zeros((cout,), jnp.float32)
        running_var = jnp.ones((cout,), jnp.float32)
        scale = gamma / jnp.sqrt(running_var + eps)
        w_folded = w * scale[None, None, None, :]
        b_folded = (b - running_mean) * scale + beta
        params.append((w_folded, b_folded))
    return params


@jax.jit
def backbone_forward(x_nchw, params):
    N, Cin, H, W = x_nchw.shape
    C = params[0][0].shape[-1]
    assert Cin == 3 and H % 8 == 0 and W % 8 == 0, (Cin, H, W)

    # NCHW (PyTorch) -> NHWC; pad the 3-channel network input ONCE (no per-layer
    # pads), flatten to zero-halo rows (+2 slack rows), cast to bf16 for the MXU.
    x = jnp.transpose(x_nchw, (0, 2, 3, 1)).astype(jnp.float32)
    xp = jnp.pad(x, ((0, 0), (1, 1), (1, 1), (0, 0)))
    rows_x = (H + 2) * (W + 2) + 2
    xf = jnp.pad(xp.reshape(N, (H + 2) * (W + 2), Cin),
                 ((0, 0), (0, 2), (0, 0))).astype(jnp.bfloat16)

    # (3,3,Cin,Cout) folded weights -> (9,Cin,Cout) bf16; biases f32 (1,Cout).
    ws = [w.reshape(9, w.shape[2], w.shape[3]).astype(jnp.bfloat16) for w, _ in params]
    bs = [b.reshape(1, C).astype(jnp.float32) for _, b in params]

    Ho, Wo = H // 8, W // 8
    ohwc = Ho * Wo * C
    rows_p1 = (H // 2 + 2) * (W // 2 + 2) + 2
    rows_p2 = (H // 4 + 2) * (W // 4 + 2) + 2
    rows_p3 = (H // 8 + 2) * (W // 8 + 2) + 2
    rows_wk = H * (W + 2)

    kernel = functools.partial(_backbone_kernel, H=H, W=W, C=C)

    def wspec(cin):
        return pl.BlockSpec((9, cin, C), lambda n: (0, 0, 0))

    bspec = pl.BlockSpec((1, C), lambda n: (0, 0))

    out_flat = pl.pallas_call(
        kernel,
        out_shape=jax.ShapeDtypeStruct((N, 1, ohwc), jnp.float32),
        grid_spec=pltpu.PrefetchScalarGridSpec(
            num_scalar_prefetch=0,
            grid=(N,),
            in_specs=[
                pl.BlockSpec((None, rows_x, Cin), lambda n: (n, 0, 0)),
                wspec(3), bspec,
                wspec(C), bspec,
                wspec(C), bspec,
                wspec(C), bspec,
            ],
            out_specs=pl.BlockSpec((1, 1, ohwc), lambda n: (n, 0, 0)),
            scratch_shapes=[
                pltpu.VMEM((rows_p1, C), jnp.bfloat16),   # padded input, block 2
                pltpu.VMEM((rows_p2, C), jnp.bfloat16),   # padded input, block 3
                pltpu.VMEM((rows_p3, C), jnp.bfloat16),   # padded input, block 4
                pltpu.VMEM((rows_wk, C), jnp.float32),    # conv output (pool source)
            ],
        ),
        compiler_params=pltpu.CompilerParams(
            dimension_semantics=("parallel",),
            vmem_limit_bytes=32 * 1024 * 1024,
        ),
    )(xf, ws[0], bs[0], ws[1], bs[1], ws[2], bs[2], ws[3], bs[3])

    out = out_flat.reshape(N, Ho, Wo, C)
    return jnp.transpose(out, (0, 3, 1, 2))   # back to NCHW


@jax.jit
def reference_forward(x_nchw, params):
    """Pure-JAX reference with matching bf16-input / f32-accumulate precision."""
    x = jnp.transpose(x_nchw, (0, 2, 3, 1)).astype(jnp.float32)
    for i, (w, b) in enumerate(params):
        y = jax.lax.conv_general_dilated(
            x.astype(jnp.bfloat16), w.astype(jnp.bfloat16),
            window_strides=(1, 1), padding="SAME",
            dimension_numbers=("NHWC", "HWIO", "NHWC"),
            preferred_element_type=jnp.float32)
        y = y + b[None, None, None, :].astype(jnp.float32)
        if i < 3:
            y = jnp.maximum(y, 0.0)
            n, hh, ww, cc = y.shape
            y = y.reshape(n, hh // 2, 2, ww // 2, 2, cc).max(axis=(2, 4))
        x = y
    return jnp.transpose(x, (0, 3, 1, 2))


if __name__ == "__main__":
    num_channel = 64            # module default
    N, Cin, H, W = 2, 3, 16, 16

    key = jax.random.PRNGKey(0)
    key, kx = jax.random.split(key)
    x = jax.random.normal(kx, (N, Cin, H, W), jnp.float32)
    params = init_backbone_params(key, num_channel)

    out = jax.block_until_ready(backbone_forward(x, params))

    expected = (N, num_channel, H // 8, W // 8)   # 3 maxpools of stride 2
    assert out.shape == expected, (out.shape, expected)

    ref = jax.block_until_ready(reference_forward(x, params))
    err = float(jnp.max(jnp.abs(out - ref)))
    assert err < 5e-2, f"max abs err vs reference: {err}"

    print("KERNEL_OK")
</pallas_src>

<mosaic_0001>
module attributes {stable_mosaic.version = 11 : i64} {
  func.func @_backbone_kernel(%arg0: i32, %arg1: memref<1x326x3xbf16, #tpu.memory_space<vmem>>, %arg2: memref<9x3x64xbf16, #tpu.memory_space<vmem>>, %arg3: memref<1x64xf32, #tpu.memory_space<vmem>>, %arg4: memref<9x64x64xbf16, #tpu.memory_space<vmem>>, %arg5: memref<1x64xf32, #tpu.memory_space<vmem>>, %arg6: memref<9x64x64xbf16, #tpu.memory_space<vmem>>, %arg7: memref<1x64xf32, #tpu.memory_space<vmem>>, %arg8: memref<9x64x64xbf16, #tpu.memory_space<vmem>>, %arg9: memref<1x64xf32, #tpu.memory_space<vmem>>, %arg10: memref<1x1x256xf32, #tpu.memory_space<vmem>>, %arg11: memref<102x64xbf16, #tpu.memory_space<vmem>>, %arg12: memref<38x64xbf16, #tpu.memory_space<vmem>>, %arg13: memref<18x64xbf16, #tpu.memory_space<vmem>>, %arg14: memref<288x64xf32, #tpu.memory_space<vmem>>) attributes {dimension_semantics = [#tpu.dimension_semantics<parallel>], iteration_bounds = array<i64: 2>, scalar_prefetch = 0 : i64, scratch_operands = 4 : i64, tpu.core_type = #tpu.core_type<tc>, window_params = [{transform_indices = @transform_0, window_bounds = array<i64: 1, 326, 3>}, {pipeline_mode = #tpu.pipeline_mode<synchronous>, transform_indices = @transform_1, window_bounds = array<i64: 9, 3, 64>}, {pipeline_mode = #tpu.pipeline_mode<synchronous>, transform_indices = @transform_2, window_bounds = array<i64: 1, 64>}, {pipeline_mode = #tpu.pipeline_mode<synchronous>, transform_indices = @transform_3, window_bounds = array<i64: 9, 64, 64>}, {pipeline_mode = #tpu.pipeline_mode<synchronous>, transform_indices = @transform_4, window_bounds = array<i64: 1, 64>}, {pipeline_mode = #tpu.pipeline_mode<synchronous>, transform_indices = @transform_5, window_bounds = array<i64: 9, 64, 64>}, {pipeline_mode = #tpu.pipeline_mode<synchronous>, transform_indices = @transform_6, window_bounds = array<i64: 1, 64>}, {pipeline_mode = #tpu.pipeline_mode<synchronous>, transform_indices = @transform_7, window_bounds = array<i64: 9, 64, 64>}, {pipeline_mode = #tpu.pipeline_mode<synchronous>, transform_indices = @transform_8, window_bounds = array<i64: 1, 64>}, {transform_indices = @transform_9, window_bounds = array<i64: 1, 1, 256>}]} {
    %cst = arith.constant 0.000000e+00 : bf16
    %0 = vector.broadcast %cst : bf16 to vector<102x64xbf16>
    %c0 = arith.constant 0 : index
    %c0_0 = arith.constant 0 : index
    %1 = vector.load %arg11[%c0, %c0_0] : memref<102x64xbf16, #tpu.memory_space<vmem>>, vector<102x64xbf16>
    tpu.vector_store %arg11[%c0, %c0_0], %0 {strides = array<i32>} : memref<102x64xbf16, #tpu.memory_space<vmem>>, vector<102x64xbf16>,
    %cst_1 = arith.constant 0.000000e+00 : bf16
    %2 = vector.broadcast %cst_1 : bf16 to vector<38x64xbf16>
    %c0_2 = arith.constant 0 : index
    %c0_3 = arith.constant 0 : index
    %3 = vector.load %arg12[%c0_2, %c0_3] : memref<38x64xbf16, #tpu.memory_space<vmem>>, vector<38x64xbf16>
    tpu.vector_store %arg12[%c0_2, %c0_3], %2 {strides = array<i32>} : memref<38x64xbf16, #tpu.memory_space<vmem>>, vector<38x64xbf16>,
    %cst_4 = arith.constant 0.000000e+00 : bf16
    %4 = vector.broadcast %cst_4 : bf16 to vector<18x64xbf16>
    %c0_5 = arith.constant 0 : index
    %c0_6 = arith.constant 0 : index
    %5 = vector.load %arg13[%c0_5, %c0_6] : memref<18x64xbf16, #tpu.memory_space<vmem>>, vector<18x64xbf16>
    tpu.vector_store %arg13[%c0_5, %c0_6], %4 {strides = array<i32>} : memref<18x64xbf16, #tpu.memory_space<vmem>>, vector<18x64xbf16>,
    %cst_7 = arith.constant 0.000000e+00 : f32
    %6 = vector.broadcast %cst_7 : f32 to vector<288x64xf32>
    %c0_8 = arith.constant 0 : index
    %c0_9 = arith.constant 0 : index
    %c0_10 = arith.constant 0 : index
    %7 = vector.load %arg1[%c0_8, %c0_9, %c0_10] : memref<1x326x3xbf16, #tpu.memory_space<vmem>>, vector<1x288x3xbf16>
    %8 = vector.shape_cast %7 : vector<1x288x3xbf16> to vector<288x3xbf16>
    %c0_11 = arith.constant 0 : index
    %c0_12 = arith.constant 0 : index
    %c0_13 = arith.constant 0 : index
    %9 = vector.load %arg2[%c0_11, %c0_12, %c0_13] : memref<9x3x64xbf16, #tpu.memory_space<vmem>>, vector<1x3x64xbf16>
    %10 = vector.shape_cast %9 : vector<1x3x64xbf16> to vector<3x64xbf16>
    %cst_14 = arith.constant dense<0.000000e+00> : vector<288x64xf32>
    %11 = tpu.matmul %8, %10, %cst_14 {dimension_numbers = #tpu.dot_dimension_numbers<[1], [0], [0], [1], [0, 0, 1, 1], [], []>} : vector<288x3xbf16>, vector<3x64xbf16>, vector<288x64xf32> -> vector<288x64xf32>
    %12 = arith.addf %6, %11 : vector<288x64xf32>
    %c0_15 = arith.constant 0 : index
    %c1 = arith.constant 1 : index
    %c0_16 = arith.constant 0 : index
    %13 = vector.load %arg1[%c0_15, %c1, %c0_16] : memref<1x326x3xbf16, #tpu.memory_space<vmem>>, vector<1x288x3xbf16>
    %14 = vector.shape_cast %13 : vector<1x288x3xbf16> to vector<288x3xbf16>
    %c1_17 = arith.constant 1 : index
    %c0_18 = arith.constant 0 : index
    %c0_19 = arith.constant 0 : index
    %15 = vector.load %arg2[%c1_17, %c0_18, %c0_19] : memref<9x3x64xbf16, #tpu.memory_space<vmem>>, vector<1x3x64xbf16>
    %16 = vector.shape_cast %15 : vector<1x3x64xbf16> to vector<3x64xbf16>
    %cst_20 = arith.constant dense<0.000000e+00> : vector<288x64xf32>
    %17 = tpu.matmul %14, %16, %cst_20 {dimension_numbers = #tpu.dot_dimension_numbers<[1], [0], [0], [1], [0, 0, 1, 1], [], []>} : vector<288x3xbf16>, vector<3x64xbf16>, vector<288x64xf32> -> vector<288x64xf32>
    %18 = arith.addf %12, %17 : vector<288x64xf32>
    %c0_21 = arith.constant 0 : index
    %c2 = arith.constant 2 : index
    %c0_22 = arith.constant 0 : index
    %19 = vector.load %arg1[%c0_21, %c2, %c0_22] : memref<1x326x3xbf16, #tpu.memory_space<vmem>>, vector<1x288x3xbf16>
    %20 = vector.shape_cast %19 : vector<1x288x3xbf16> to vector<288x3xbf16>
    %c2_23 = arith.constant 2 : index
    %c0_24 = arith.constant 0 : index
    %c0_25 = arith.constant 0 : index
    %21 = vector.load %arg2[%c2_23, %c0_24, %c0_25] : memref<9x3x64xbf16, #tpu.memory_space<vmem>>, vector<1x3x64xbf16>
    %22 = vector.shape_cast %21 : vector<1x3x64xbf16> to vector<3x64xbf16>
    %cst_26 = arith.constant dense<0.000000e+00> : vector<288x64xf32>
    %23 = tpu.matmul %20, %22, %cst_26 {dimension_numbers = #tpu.dot_dimension_numbers<[1], [0], [0], [1], [0, 0, 1, 1], [], []>} : vector<288x3xbf16>, vector<3x64xbf16>, vector<288x64xf32> -> vector<288x64xf32>
    %24 = arith.addf %18, %23 : vector<288x64xf32>
    %c0_27 = arith.constant 0 : index
    %c18 = arith.constant 18 : index
    %c0_28 = arith.constant 0 : index
    %25 = vector.load %arg1[%c0_27, %c18, %c0_28] : memref<1x326x3xbf16, #tpu.memory_space<vmem>>, vector<1x288x3xbf16>
    %26 = vector.shape_cast %25 : vector<1x288x3xbf16> to vector<288x3xbf16>
    %c3 = arith.constant 3 : index
    %c0_29 = arith.constant 0 : index
    %c0_30 = arith.constant 0 : index
    %27 = vector.load %arg2[%c3, %c0_29, %c0_30] : memref<9x3x64xbf16, #tpu.memory_space<vmem>>, vector<1x3x64xbf16>
    %28 = vector.shape_cast %27 : vector<1x3x64xbf16> to vector<3x64xbf16>
    %cst_31 = arith.constant dense<0.000000e+00> : vector<288x64xf32>
    %29 = tpu.matmul %26, %28, %cst_31 {dimension_numbers = #tpu.dot_dimension_numbers<[1], [0], [0], [1], [0, 0, 1, 1], [], []>} : vector<288x3xbf16>, vector<3x64xbf16>, vector<288x64xf32> -> vector<288x64xf32>
    %30 = arith.addf %24, %29 : vector<288x64xf32>
    %c0_32 = arith.constant 0 : index
    %c19 = arith.constant 19 : index
    %c0_33 = arith.constant 0 : index
    %31 = vector.load %arg1[%c0_32, %c19, %c0_33] : memref<1x326x3xbf16, #tpu.memory_space<vmem>>, vector<1x288x3xbf16>
    %32 = vector.shape_cast %31 : vector<1x288x3xbf16> to vector<288x3xbf16>
    %c4 = arith.constant 4 : index
    %c0_34 = arith.constant 0 : index
    %c0_35 = arith.constant 0 : index
    %33 = vector.load %arg2[%c4, %c0_34, %c0_35] : memref<9x3x64xbf16, #tpu.memory_space<vmem>>, vector<1x3x64xbf16>
    %34 = vector.shape_cast %33 : vector<1x3x64xbf16> to vector<3x64xbf16>
    %cst_36 = arith.constant dense<0.000000e+00> : vector<288x64xf32>
    %35 = tpu.matmul %32, %34, %cst_36 {dimension_numbers = #tpu.dot_dimension_numbers<[1], [0], [0], [1], [0, 0, 1, 1], [], []>} : vector<288x3xbf16>, vector<3x64xbf16>, vector<288x64xf32> -> vector<288x64xf32>
    %36 = arith.addf %30, %35 : vector<288x64xf32>
    %c0_37 = arith.constant 0 : index
    %c20 = arith.constant 20 : index
    %c0_38 = arith.constant 0 : index
    %37 = vector.load %arg1[%c0_37, %c20, %c0_38] : memref<1x326x3xbf16, #tpu.memory_space<vmem>>, vector<1x288x3xbf16>
    %38 = vector.shape_cast %37 : vector<1x288x3xbf16> to vector<288x3xbf16>
    %c5 = arith.constant 5 : index
    %c0_39 = arith.constant 0 : index
    %c0_40 = arith.constant 0 : index
    %39 = vector.load %arg2[%c5, %c0_39, %c0_40] : memref<9x3x64xbf16, #tpu.memory_space<vmem>>, vector<1x3x64xbf16>
    %40 = vector.shape_cast %39 : vector<1x3x64xbf16> to vector<3x64xbf16>
    %cst_41 = arith.constant dense<0.000000e+00> : vector<288x64xf32>
    %41 = tpu.matmul %38, %40, %cst_41 {dimension_numbers = #tpu.dot_dimension_numbers<[1], [0], [0], [1], [0, 0, 1, 1], [], []>} : vector<288x3xbf16>, vector<3x64xbf16>, vector<288x64xf32> -> vector<288x64xf32>
    %42 = arith.addf %36, %41 : vector<288x64xf32>
    %c0_42 = arith.constant 0 : index
    %c36 = arith.constant 36 : index
    %c0_43 = arith.constant 0 : index
    %43 = vector.load %arg1[%c0_42, %c36, %c0_43] : memref<1x326x3xbf16, #tpu.memory_space<vmem>>, vector<1x288x3xbf16>
    %44 = vector.shape_cast %43 : vector<1x288x3xbf16> to vector<288x3xbf16>
    %c6 = arith.constant 6 : index
    %c0_44 = arith.constant 0 : index
    %c0_45 = arith.constant 0 : index
    %45 = vector.load %arg2[%c6, %c0_44, %c0_45] : memref<9x3x64xbf16, #tpu.memory_space<vmem>>, vector<1x3x64xbf16>
    %46 = vector.shape_cast %45 : vector<1x3x64xbf16> to vector<3x64xbf16>
    %cst_46 = arith.constant dense<0.000000e+00> : vector<288x64xf32>
    %47 = tpu.matmul %44, %46, %cst_46 {dimension_numbers = #tpu.dot_dimension_numbers<[1], [0], [0], [1], [0, 0, 1, 1], [], []>} : vector<288x3xbf16>, vector<3x64xbf16>, vector<288x64xf32> -> vector<288x64xf32>
    %48 = arith.addf %42, %47 : vector<288x64xf32>
    %c0_47 = arith.constant 0 : index
    %c37 = arith.constant 37 : index
    %c0_48 = arith.constant 0 : index
    %49 = vector.load %arg1[%c0_47, %c37, %c0_48] : memref<1x326x3xbf16, #tpu.memory_space<vmem>>, vector<1x288x3xbf16>
    %50 = vector.shape_cast %49 : vector<1x288x3xbf16> to vector<288x3xbf16>
    %c7 = arith.constant 7 : index
    %c0_49 = arith.constant 0 : index
    %c0_50 = arith.constant 0 : index
    %51 = vector.load %arg2[%c7, %c0_49, %c0_50] : memref<9x3x64xbf16, #tpu.memory_space<vmem>>, vector<1x3x64xbf16>
    %52 = vector.shape_cast %51 : vector<1x3x64xbf16> to vector<3x64xbf16>
    %cst_51 = arith.constant dense<0.000000e+00> : vector<288x64xf32>
    %53 = tpu.matmul %50, %52, %cst_51 {dimension_numbers = #tpu.dot_dimension_numbers<[1], [0], [0], [1], [0, 0, 1, 1], [], []>} : vector<288x3xbf16>, vector<3x64xbf16>, vector<288x64xf32> -> vector<288x64xf32>
    %54 = arith.addf %48, %53 : vector<288x64xf32>
    %c0_52 = arith.constant 0 : index
    %c38 = arith.constant 38 : index
    %c0_53 = arith.constant 0 : index
    %55 = vector.load %arg1[%c0_52, %c38, %c0_53] : memref<1x326x3xbf16, #tpu.memory_space<vmem>>, vector<1x288x3xbf16>
    %56 = vector.shape_cast %55 : vector<1x288x3xbf16> to vector<288x3xbf16>
    %c8 = arith.constant 8 : index
    %c0_54 = arith.constant 0 : index
    %c0_55 = arith.constant 0 : index
    %57 = vector.load %arg2[%c8, %c0_54, %c0_55] : memref<9x3x64xbf16, #tpu.memory_space<vmem>>, vector<1x3x64xbf16>
    %58 = vector.shape_cast %57 : vector<1x3x64xbf16> to vector<3x64xbf16>
    %cst_56 = arith.constant dense<0.000000e+00> : vector<288x64xf32>
    %59 = tpu.matmul %56, %58, %cst_56 {dimension_numbers = #tpu.dot_dimension_numbers<[1], [0], [0], [1], [0, 0, 1, 1], [], []>} : vector<288x3xbf16>, vector<3x64xbf16>, vector<288x64xf32> -> vector<288x64xf32>
    %60 = arith.addf %54, %59 : vector<288x64xf32>
    %c0_57 = arith.constant 0 : index
    %c0_58 = arith.constant 0 : index
    %61 = vector.load %arg3[%c0_57, %c0_58] : memref<1x64xf32, #tpu.memory_space<vmem>>, vector<1x64xf32>
    %62 = vector.broadcast %61 : vector<1x64xf32> to vector<288x64xf32>
    %63 = arith.addf %60, %62 : vector<288x64xf32>
    %cst_59 = arith.constant 0.000000e+00 : f32
    %64 = vector.broadcast %cst_59 : f32 to vector<288x64xf32>
    %65 = arith.maximumf %63, %64 : vector<288x64xf32>
    %c0_60 = arith.constant 0 : index
    %c0_61 = arith.constant 0 : index
    %66 = vector.load %arg14[%c0_60, %c0_61] : memref<288x64xf32, #tpu.memory_space<vmem>>, vector<288x64xf32>
    tpu.vector_store %arg14[%c0_60, %c0_61], %65 {strides = array<i32>} : memref<288x64xf32, #tpu.memory_space<vmem>>, vector<288x64xf32>,
    %c0_62 = arith.constant 0 : index
    %c0_63 = arith.constant 0 : index
    %67 = tpu.strided_load %arg14[%c0_62, %c0_63] {strides = array<i32: 2, 1>} : memref<288x64xf32, #tpu.memory_space<vmem>>, vector<8x64xf32>
    %c1_64 = arith.constant 1 : index
    %c0_65 = arith.constant 0 : index
    %68 = tpu.strided_load %arg14[%c1_64, %c0_65] {strides = array<i32: 2, 1>} : memref<288x64xf32, #tpu.memory_space<vmem>>, vector<8x64xf32>
    %c18_66 = arith.constant 18 : index
    %c0_67 = arith.constant 0 : index
    %69 = tpu.strided_load %arg14[%c18_66, %c0_67] {strides = array<i32: 2, 1>} : memref<288x64xf32, #tpu.memory_space<vmem>>, vector<8x64xf32>
    %c19_68 = arith.constant 19 : index
    %c0_69 = arith.constant 0 : index
    %70 = tpu.strided_load %arg14[%c19_68, %c0_69] {strides = array<i32: 2, 1>} : memref<288x64xf32, #tpu.memory_space<vmem>>, vector<8x64xf32>
    %71 = arith.maximumf %67, %68 : vector<8x64xf32>
    %72 = arith.maximumf %69, %70 : vector<8x64xf32>
    %73 = arith.maximumf %71, %72 : vector<8x64xf32>
    %74 = arith.truncf %73 : vector<8x64xf32> to vector<8x64xbf16>
    %c11 = arith.constant 11 : index
    %c0_70 = arith.constant 0 : index
    %75 = vector.load %arg11[%c11, %c0_70] : memref<102x64xbf16, #tpu.memory_space<vmem>>, vector<8x64xbf16>
    tpu.vector_store %arg11[%c11, %c0_70], %74 {strides = array<i32>} : memref<102x64xbf16, #tpu.memory_space<vmem>>, vector<8x64xbf16>,
    %c36_71 = arith.constant 36 : index
    %c0_72 = arith.constant 0 : index
    %76 = tpu.strided_load %arg14[%c36_71, %c0_72] {strides = array<i32: 2, 1>} : memref<288x64xf32, #tpu.memory_space<vmem>>, vector<8x64xf32>
    %c37_73 = arith.constant 37 : index
    %c0_74 = arith.constant 0 : index
    %77 = tpu.strided_load %arg14[%c37_73, %c0_74] {strides = array<i32: 2, 1>} : memref<288x64xf32, #tpu.memory_space<vmem>>, vector<8x64xf32>
    %c54 = arith.constant 54 : index
    %c0_75 = arith.constant 0 : index
    %78 = tpu.strided_load %arg14[%c54, %c0_75] {strides = array<i32: 2, 1>} : memref<288x64xf32, #tpu.memory_space<vmem>>, vector<8x64xf32>
    %c55 = arith.constant 55 : index
    %c0_76 = arith.constant 0 : index
    %79 = tpu.strided_load %arg14[%c55, %c0_76] {strides = array<i32: 2, 1>} : memref<288x64xf32, #tpu.memory_space<vmem>>, vector<8x64xf32>
    %80 = arith.maximumf %76, %77 : vector<8x64xf32>
    %81 = arith.maximumf %78, %79 : vector<8x64xf32>
    %82 = arith.maximumf %80, %81 : vector<8x64xf32>
    %83 = arith.truncf %82 : vector<8x64xf32> to vector<8x64xbf16>
    %c21 = arith.constant 21 : index
    %c0_77 = arith.constant 0 : index
    %84 = vector.load %arg11[%c21, %c0_77] : memref<102x64xbf16, #tpu.memory_space<vmem>>, vector<8x64xbf16>
    tpu.vector_store %arg11[%c21, %c0_77], %83 {strides = array<i32>} : memref<102x64xbf16, #tpu.memory_space<vmem>>, vector<8x64xbf16>,
    %c72 = arith.constant 72 : index
    %c0_78 = arith.constant 0 : index
    %85 = tpu.strided_load %arg14[%c72, %c0_78] {strides = array<i32: 2, 1>} : memref<288x64xf32, #tpu.memory_space<vmem>>, vector<8x64xf32>
    %c73 = arith.constant 73 : index
    %c0_79 = arith.constant 0 : index
    %86 = tpu.strided_load %arg14[%c73, %c0_79] {strides = array<i32: 2, 1>} : memref<288x64xf32, #tpu.memory_space<vmem>>, vector<8x64xf32>
    %c90 = arith.constant 90 : index
    %c0_80 = arith.constant 0 : index
    %87 = tpu.strided_load %arg14[%c90, %c0_80] {strides = array<i32: 2, 1>} : memref<288x64xf32, #tpu.memory_space<vmem>>, vector<8x64xf32>
    %c91 = arith.constant 91 : index
    %c0_81 = arith.constant 0 : index
    %88 = tpu.strided_load %arg14[%c91, %c0_81] {strides = array<i32: 2, 1>} : memref<288x64xf32, #tpu.memory_space<vmem>>, vector<8x64xf32>
    %89 = arith.maximumf %85, %86 : vector<8x64xf32>
    %90 = arith.maximumf %87, %88 : vector<8x64xf32>
    %91 = arith.maximumf %89, %90 : vector<8x64xf32>
    %92 = arith.truncf %91 : vector<8x64xf32> to vector<8x64xbf16>
    %c31 = arith.constant 31 : index
    %c0_82 = arith.constant 0 : index
    %93 = vector.load %arg11[%c31, %c0_82] : memref<102x64xbf16, #tpu.memory_space<vmem>>, vector<8x64xbf16>
    tpu.vector_store %arg11[%c31, %c0_82], %92 {strides = array<i32>} : memref<102x64xbf16, #tpu.memory_space<vmem>>, vector<8x64xbf16>,
    %c108 = arith.constant 108 : index
    %c0_83 = arith.constant 0 : index
    %94 = tpu.strided_load %arg14[%c108, %c0_83] {strides = array<i32: 2, 1>} : memref<288x64xf32, #tpu.memory_space<vmem>>, vector<8x64xf32>
    %c109 = arith.constant 109 : index
    %c0_84 = arith.constant 0 : index
    %95 = tpu.strided_load %arg14[%c109, %c0_84] {strides = array<i32: 2, 1>} : memref<288x64xf32, #tpu.memory_space<vmem>>, vector<8x64xf32>
    %c126 = arith.constant 126 : index
    %c0_85 = arith.constant 0 : index
    %96 = tpu.strided_load %arg14[%c126, %c0_85] {strides = array<i32: 2, 1>} : memref<288x64xf32, #tpu.memory_space<vmem>>, vector<8x64xf32>
    %c127 = arith.constant 127 : index
    %c0_86 = arith.constant 0 : index
    %97 = tpu.strided_load %arg14[%c127, %c0_86] {strides = array<i32: 2, 1>} : memref<288x64xf32, #tpu.memory_space<vmem>>, vector<8x64xf32>
    %98 = arith.maximumf %94, %95 : vector<8x64xf32>
    %99 = arith.maximumf %96, %97 : vector<8x64xf32>
    %100 = arith.maximumf %98, %99 : vector<8x64xf32>
    %101 = arith.truncf %100 : vector<8x64xf32> to vector<8x64xbf16>
    %c41 = arith.constant 41 : index
    %c0_87 = arith.constant 0 : index
    %102 = vector.load %arg11[%c41, %c0_87] : memref<102x64xbf16, #tpu.memory_space<vmem>>, vector<8x64xbf16>
    tpu.vector_store %arg11[%c41, %c0_87], %101 {strides = array<i32>} : memref<102x64xbf16, #tpu.memory_space<vmem>>, vector<8x64xbf16>,
    %c144 = arith.constant 144 : index
    %c0_88 = arith.constant 0 : index
    %103 = tpu.strided_load %arg14[%c144, %c0_88] {strides = array<i32: 2, 1>} : memref<288x64xf32, #tpu.memory_space<vmem>>, vector<8x64xf32>
    %c145 = arith.constant 145 : index
    %c0_89 = arith.constant 0 : index
    %104 = tpu.strided_load %arg14[%c145, %c0_89] {strides = array<i32: 2, 1>} : memref<288x64xf32, #tpu.memory_space<vmem>>, vector<8x64xf32>
    %c162 = arith.constant 162 : index
    %c0_90 = arith.constant 0 : index
    %105 = tpu.strided_load %arg14[%c162, %c0_90] {strides = array<i32: 2, 1>} : memref<288x64xf32, #tpu.memory_space<vmem>>, vector<8x64xf32>
    %c163 = arith.constant 163 : index
    %c0_91 = arith.constant 0 : index
    %106 = tpu.strided_load %arg14[%c163, %c0_91] {strides = array<i32: 2, 1>} : memref<288x64xf32, #tpu.memory_space<vmem>>, vector<8x64xf32>
    %107 = arith.maximumf %103, %104 : vector<8x64xf32>
    %108 = arith.maximumf %105, %106 : vector<8x64xf32>
    %109 = arith.maximumf %107, %108 : vector<8x64xf32>
    %110 = arith.truncf %109 : vector<8x64xf32> to vector<8x64xbf16>
    %c51 = arith.constant 51 : index
    %c0_92 = arith.constant 0 : index
    %111 = vector.load %arg11[%c51, %c0_92] : memref<102x64xbf16, #tpu.memory_space<vmem>>, vector<8x64xbf16>
    tpu.vector_store %arg11[%c51, %c0_92], %110 {strides = array<i32>} : memref<102x64xbf16, #tpu.memory_space<vmem>>, vector<8x64xbf16>,
    %c180 = arith.constant 180 : index
    %c0_93 = arith.constant 0 : index
    %112 = tpu.strided_load %arg14[%c180, %c0_93] {strides = array<i32: 2, 1>} : memref<288x64xf32, #tpu.memory_space<vmem>>, vector<8x64xf32>
    %c181 = arith.constant 181 : index
    %c0_94 = arith.constant 0 : index
    %113 = tpu.strided_load %arg14[%c181, %c0_94] {strides = array<i32: 2, 1>} : memref<288x64xf32, #tpu.memory_space<vmem>>, vector<8x64xf32>
    %c198 = arith.constant 198 : index
    %c0_95 = arith.constant 0 : index
    %114 = tpu.strided_load %arg14[%c198, %c0_95] {strides = array<i32: 2, 1>} : memref<288x64xf32, #tpu.memory_space<vmem>>, vector<8x64xf32>
    %c199 = arith.constant 199 : index
    %c0_96 = arith.constant 0 : index
    %115 = tpu.strided_load %arg14[%c199, %c0_96] {strides = array<i32: 2, 1>} : memref<288x64xf32, #tpu.memory_space<vmem>>, vector<8x64xf32>
    %116 = arith.maximumf %112, %113 : vector<8x64xf32>
    %117 = arith.maximumf %114, %115 : vector<8x64xf32>
    %118 = arith.maximumf %116, %117 : vector<8x64xf32>
    %119 = arith.truncf %118 : vector<8x64xf32> to vector<8x64xbf16>
    %c61 = arith.constant 61 : index
    %c0_97 = arith.constant 0 : index
    %120 = vector.load %arg11[%c61, %c0_97] : memref<102x64xbf16, #tpu.memory_space<vmem>>, vector<8x64xbf16>
    tpu.vector_store %arg11[%c61, %c0_97], %119 {strides = array<i32>} : memref<102x64xbf16, #tpu.memory_space<vmem>>, vector<8x64xbf16>,
    %c216 = arith.constant 216 : index
    %c0_98 = arith.constant 0 : index
    %121 = tpu.strided_load %arg14[%c216, %c0_98] {strides = array<i32: 2, 1>} : memref<288x64xf32, #tpu.memory_space<vmem>>, vector<8x64xf32>
    %c217 = arith.constant 217 : index
    %c0_99 = arith.constant 0 : index
    %122 = tpu.strided_load %arg14[%c217, %c0_99] {strides = array<i32: 2, 1>} : memref<288x64xf32, #tpu.memory_space<vmem>>, vector<8x64xf32>
    %c234 = arith.constant 234 : index
    %c0_100 = arith.constant 0 : index
    %123 = tpu.strided_load %arg14[%c234, %c0_100] {strides = array<i32: 2, 1>} : memref<288x64xf32, #tpu.memory_space<vmem>>, vector<8x64xf32>
    %c235 = arith.constant 235 : index
    %c0_101 = arith.constant 0 : index
    %124 = tpu.strided_load %arg14[%c235, %c0_101] {strides = array<i32: 2, 1>} : memref<288x64xf32, #tpu.memory_space<vmem>>, vector<8x64xf32>
    %125 = arith.maximumf %121, %122 : vector<8x64xf32>
    %126 = arith.maximumf %123, %124 : vector<8x64xf32>
    %127 = arith.maximumf %125, %126 : vector<8x64xf32>
    %128 = arith.truncf %127 : vector<8x64xf32> to vector<8x64xbf16>
    %c71 = arith.constant 71 : index
    %c0_102 = arith.constant 0 : index
    %129 = vector.load %arg11[%c71, %c0_102] : memref<102x64xbf16, #tpu.memory_space<vmem>>, vector<8x64xbf16>
    tpu.vector_store %arg11[%c71, %c0_102], %128 {strides = array<i32>} : memref<102x64xbf16, #tpu.memory_space<vmem>>, vector<8x64xbf16>,
    %c252 = arith.constant 252 : index
    %c0_103 = arith.constant 0 : index
    %130 = tpu.strided_load %arg14[%c252, %c0_103] {strides = array<i32: 2, 1>} : memref<288x64xf32, #tpu.memory_space<vmem>>, vector<8x64xf32>
    %c253 = arith.constant 253 : index
    %c0_104 = arith.constant 0 : index
    %131 = tpu.strided_load %arg14[%c253, %c0_104] {strides = array<i32: 2, 1>} : memref<288x64xf32, #tpu.memory_space<vmem>>, vector<8x64xf32>
    %c270 = arith.constant 270 : index
    %c0_105 = arith.constant 0 : index
    %132 = tpu.strided_load %arg14[%c270, %c0_105] {strides = array<i32: 2, 1>} : memref<288x64xf32, #tpu.memory_space<vmem>>, vector<8x64xf32>
    %c271 = arith.constant 271 : index
    %c0_106 = arith.constant 0 : index
    %133 = tpu.strided_load %arg14[%c271, %c0_106] {strides = array<i32: 2, 1>} : memref<288x64xf32, #tpu.memory_space<vmem>>, vector<8x64xf32>
    %134 = arith.maximumf %130, %131 : vector<8x64xf32>
    %135 = arith.maximumf %132, %133 : vector<8x64xf32>
    %136 = arith.maximumf %134, %135 : vector<8x64xf32>
    %137 = arith.truncf %136 : vector<8x64xf32> to vector<8x64xbf16>
    %c81 = arith.constant 81 : index
    %c0_107 = arith.constant 0 : index
    %138 = vector.load %arg11[%c81, %c0_107] : memref<102x64xbf16, #tpu.memory_space<vmem>>, vector<8x64xbf16>
    tpu.vector_store %arg11[%c81, %c0_107], %137 {strides = array<i32>} : memref<102x64xbf16, #tpu.memory_space<vmem>>, vector<8x64xbf16>,
    %cst_108 = arith.constant 0.000000e+00 : f32
    %139 = vector.broadcast %cst_108 : f32 to vector<80x64xf32>
    %c0_109 = arith.constant 0 : index
    %c0_110 = arith.constant 0 : index
    %140 = vector.load %arg11[%c0_109, %c0_110] : memref<102x64xbf16, #tpu.memory_space<vmem>>, vector<80x64xbf16>
    %c0_111 = arith.constant 0 : index
    %c0_112 = arith.constant 0 : index
    %c0_113 = arith.constant 0 : index
    %141 = vector.load %arg4[%c0_111, %c0_112, %c0_113] : memref<9x64x64xbf16, #tpu.memory_space<vmem>>, vector<1x64x64xbf16>
    %142 = vector.shape_cast %141 : vector<1x64x64xbf16> to vector<64x64xbf16>
    %cst_114 = arith.constant dense<0.000000e+00> : vector<80x64xf32>
    %143 = tpu.matmul %140, %142, %cst_114 {dimension_numbers = #tpu.dot_dimension_numbers<[1], [0], [0], [1], [0, 0, 1, 1], [], []>} : vector<80x64xbf16>, vector<64x64xbf16>, vector<80x64xf32> -> vector<80x64xf32>
    %144 = arith.addf %139, %143 : vector<80x64xf32>
    %c1_115 = arith.constant 1 : index
    %c0_116 = arith.constant 0 : index
    %145 = vector.load %arg11[%c1_115, %c0_116] : memref<102x64xbf16, #tpu.memory_space<vmem>>, vector<80x64xbf16>
    %c1_117 = arith.constant 1 : index
    %c0_118 = arith.constant 0 : index
    %c0_119 = arith.constant 0 : index
    %146 = vector.load %arg4[%c1_117, %c0_118, %c0_119] : memref<9x64x64xbf16, #tpu.memory_space<vmem>>, vector<1x64x64xbf16>
    %147 = vector.shape_cast %146 : vector<1x64x64xbf16> to vector<64x64xbf16>
    %cst_120 = arith.constant dense<0.000000e+00> : vector<80x64xf32>
    %148 = tpu.matmul %145, %147, %cst_120 {dimension_numbers = #tpu.dot_dimension_numbers<[1], [0], [0], [1], [0, 0, 1, 1], [], []>} : vector<80x64xbf16>, vector<64x64xbf16>, vector<80x64xf32> -> vector<80x64xf32>
    %149 = arith.addf %144, %148 : vector<80x64xf32>
    %c2_121 = arith.constant 2 : index
    %c0_122 = arith.constant 0 : index
    %150 = vector.load %arg11[%c2_121, %c0_122] : memref<102x64xbf16, #tpu.memory_space<vmem>>, vector<80x64xbf16>
    %c2_123 = arith.constant 2 : index
    %c0_124 = arith.constant 0 : index
    %c0_125 = arith.constant 0 : index
    %151 = vector.load %arg4[%c2_123, %c0_124, %c0_125] : memref<9x64x64xbf16, #tpu.memory_space<vmem>>, vector<1x64x64xbf16>
    %152 = vector.shape_cast %151 : vector<1x64x64xbf16> to vector<64x64xbf16>
    %cst_126 = arith.constant dense<0.000000e+00> : vector<80x64xf32>
    %153 = tpu.matmul %150, %152, %cst_126 {dimension_numbers = #tpu.dot_dimension_numbers<[1], [0], [0], [1], [0, 0, 1, 1], [], []>} : vector<80x64xbf16>, vector<64x64xbf16>, vector<80x64xf32> -> vector<80x64xf32>
    %154 = arith.addf %149, %153 : vector<80x64xf32>
    %c10 = arith.constant 10 : index
    %c0_127 = arith.constant 0 : index
    %155 = vector.load %arg11[%c10, %c0_127] : memref<102x64xbf16, #tpu.memory_space<vmem>>, vector<80x64xbf16>
    %c3_128 = arith.constant 3 : index
    %c0_129 = arith.constant 0 : index
    %c0_130 = arith.constant 0 : index
    %156 = vector.load %arg4[%c3_128, %c0_129, %c0_130] : memref<9x64x64xbf16, #tpu.memory_space<vmem>>, vector<1x64x64xbf16>
    %157 = vector.shape_cast %156 : vector<1x64x64xbf16> to vector<64x64xbf16>
    %cst_131 = arith.constant dense<0.000000e+00> : vector<80x64xf32>
    %158 = tpu.matmul %155, %157, %cst_131 {dimension_numbers = #tpu.dot_dimension_numbers<[1], [0], [0], [1], [0, 0, 1, 1], [], []>} : vector<80x64xbf16>, vector<64x64xbf16>, vector<80x64xf32> -> vector<80x64xf32>
    %159 = arith.addf %154, %158 : vector<80x64xf32>
    %c11_132 = arith.constant 11 : index
    %c0_133 = arith.constant 0 : index
    %160 = vector.load %arg11[%c11_132, %c0_133] : memref<102x64xbf16, #tpu.memory_space<vmem>>, vector<80x64xbf16>
    %c4_134 = arith.constant 4 : index
    %c0_135 = arith.constant 0 : index
    %c0_136 = arith.constant 0 : index
    %161 = vector.load %arg4[%c4_134, %c0_135, %c0_136] : memref<9x64x64xbf16, #tpu.memory_space<vmem>>, vector<1x64x64xbf16>
    %162 = vector.shape_cast %161 : vector<1x64x64xbf16> to vector<64x64xbf16>
    %cst_137 = arith.constant dense<0.000000e+00> : vector<80x64xf32>
    %163 = tpu.matmul %160, %162, %cst_137 {dimension_numbers = #tpu.dot_dimension_numbers<[1], [0], [0], [1], [0, 0, 1, 1], [], []>} : vector<80x64xbf16>, vector<64x64xbf16>, vector<80x64xf32> -> vector<80x64xf32>
    %164 = arith.addf %159, %163 : vector<80x64xf32>
    %c12 = arith.constant 12 : index
    %c0_138 = arith.constant 0 : index
    %165 = vector.load %arg11[%c12, %c0_138] : memref<102x64xbf16, #tpu.memory_space<vmem>>, vector<80x64xbf16>
    %c5_139 = arith.constant 5 : index
    %c0_140 = arith.constant 0 : index
    %c0_141 = arith.constant 0 : index
    %166 = vector.load %arg4[%c5_139, %c0_140, %c0_141] : memref<9x64x64xbf16, #tpu.memory_space<vmem>>, vector<1x64x64xbf16>
    %167 = vector.shape_cast %166 : vector<1x64x64xbf16> to vector<64x64xbf16>
    %cst_142 = arith.constant dense<0.000000e+00> : vector<80x64xf32>
    %168 = tpu.matmul %165, %167, %cst_142 {dimension_numbers = #tpu.dot_dimension_numbers<[1], [0], [0], [1], [0, 0, 1, 1], [], []>} : vector<80x64xbf16>, vector<64x64xbf16>, vector<80x64xf32> -> vector<80x64xf32>
    %169 = arith.addf %164, %168 : vector<80x64xf32>
    %c20_143 = arith.constant 20 : index
    %c0_144 = arith.constant 0 : index
    %170 = vector.load %arg11[%c20_143, %c0_144] : memref<102x64xbf16, #tpu.memory_space<vmem>>, vector<80x64xbf16>
    %c6_145 = arith.constant 6 : index
    %c0_146 = arith.constant 0 : index
    %c0_147 = arith.constant 0 : index
    %171 = vector.load %arg4[%c6_145, %c0_146, %c0_147] : memref<9x64x64xbf16, #tpu.memory_space<vmem>>, vector<1x64x64xbf16>
    %172 = vector.shape_cast %171 : vector<1x64x64xbf16> to vector<64x64xbf16>
    %cst_148 = arith.constant dense<0.000000e+00> : vector<80x64xf32>
    %173 = tpu.matmul %170, %172, %cst_148 {dimension_numbers = #tpu.dot_dimension_numbers<[1], [0], [0], [1], [0, 0, 1, 1], [], []>} : vector<80x64xbf16>, vector<64x64xbf16>, vector<80x64xf32> -> vector<80x64xf32>
    %174 = arith.addf %169, %173 : vector<80x64xf32>
    %c21_149 = arith.constant 21 : index
    %c0_150 = arith.constant 0 : index
    %175 = vector.load %arg11[%c21_149, %c0_150] : memref<102x64xbf16, #tpu.memory_space<vmem>>, vector<80x64xbf16>
    %c7_151 = arith.constant 7 : index
    %c0_152 = arith.constant 0 : index
    %c0_153 = arith.constant 0 : index
    %176 = vector.load %arg4[%c7_151, %c0_152, %c0_153] : memref<9x64x64xbf16, #tpu.memory_space<vmem>>, vector<1x64x64xbf16>
    %177 = vector.shape_cast %176 : vector<1x64x64xbf16> to vector<64x64xbf16>
    %cst_154 = arith.constant dense<0.000000e+00> : vector<80x64xf32>
    %178 = tpu.matmul %175, %177, %cst_154 {dimension_numbers = #tpu.dot_dimension_numbers<[1], [0], [0], [1], [0, 0, 1, 1], [], []>} : vector<80x64xbf16>, vector<64x64xbf16>, vector<80x64xf32> -> vector<80x64xf32>
    %179 = arith.addf %174, %178 : vector<80x64xf32>
    %c22 = arith.constant 22 : index
    %c0_155 = arith.constant 0 : index
    %180 = vector.load %arg11[%c22, %c0_155] : memref<102x64xbf16, #tpu.memory_space<vmem>>, vector<80x64xbf16>
    %c8_156 = arith.constant 8 : index
    %c0_157 = arith.constant 0 : index
    %c0_158 = arith.constant 0 : index
    %181 = vector.load %arg4[%c8_156, %c0_157, %c0_158] : memref<9x64x64xbf16, #tpu.memory_space<vmem>>, vector<1x64x64xbf16>
    %182 = vector.shape_cast %181 : vector<1x64x64xbf16> to vector<64x64xbf16>
    %cst_159 = arith.constant dense<0.000000e+00> : vector<80x64xf32>
    %183 = tpu.matmul %180, %182, %cst_159 {dimension_numbers = #tpu.dot_dimension_numbers<[1], [0], [0], [1], [0, 0, 1, 1], [], []>} : vector<80x64xbf16>, vector<64x64xbf16>, vector<80x64xf32> -> vector<80x64xf32>
    %184 = arith.addf %179, %183 : vector<80x64xf32>
    %c0_160 = arith.constant 0 : index
    %c0_161 = arith.constant 0 : index
    %185 = vector.load %arg5[%c0_160, %c0_161] : memref<1x64xf32, #tpu.memory_space<vmem>>, vector<1x64xf32>
    %186 = vector.broadcast %185 : vector<1x64xf32> to vector<80x64xf32>
    %187 = arith.addf %184, %186 : vector<80x64xf32>
    %cst_162 = arith.constant 0.000000e+00 : f32
    %188 = vector.broadcast %cst_162 : f32 to vector<80x64xf32>
    %189 = arith.maximumf %187, %188 : vector<80x64xf32>
    %c0_163 = arith.constant 0 : index
    %c0_164 = arith.constant 0 : index
    %190 = vector.load %arg14[%c0_163, %c0_164] : memref<288x64xf32, #tpu.memory_space<vmem>>, vector<80x64xf32>
    tpu.vector_store %arg14[%c0_163, %c0_164], %189 {strides = array<i32>} : memref<288x64xf32, #tpu.memory_space<vmem>>, vector<80x64xf32>,
    %c0_165 = arith.constant 0 : index
    %c0_166 = arith.constant 0 : index
    %191 = tpu.strided_load %arg14[%c0_165, %c0_166] {strides = array<i32: 2, 1>} : memref<288x64xf32, #tpu.memory_space<vmem>>, vector<4x64xf32>
    %c1_167 = arith.constant 1 : index
    %c0_168 = arith.constant 0 : index
    %192 = tpu.strided_load %arg14[%c1_167, %c0_168] {strides = array<i32: 2, 1>} : memref<288x64xf32, #tpu.memory_space<vmem>>, vector<4x64xf32>
    %c10_169 = arith.constant 10 : index
    %c0_170 = arith.constant 0 : index
    %193 = tpu.strided_load %arg14[%c10_169, %c0_170] {strides = array<i32: 2, 1>} : memref<288x64xf32, #tpu.memory_space<vmem>>, vector<4x64xf32>
    %c11_171 = arith.constant 11 : index
    %c0_172 = arith.constant 0 : index
    %194 = tpu.strided_load %arg14[%c11_171, %c0_172] {strides = array<i32: 2, 1>} : memref<288x64xf32, #tpu.memory_space<vmem>>, vector<4x64xf32>
    %195 = arith.maximumf %191, %192 : vector<4x64xf32>
    %196 = arith.maximumf %193, %194 : vector<4x64xf32>
    %197 = arith.maximumf %195, %196 : vector<4x64xf32>
    %198 = arith.truncf %197 : vector<4x64xf32> to vector<4x64xbf16>
    %c7_173 = arith.constant 7 : index
    %c0_174 = arith.constant 0 : index
    %199 = vector.load %arg12[%c7_173, %c0_174] : memref<38x64xbf16, #tpu.memory_space<vmem>>, vector<4x64xbf16>
    tpu.vector_store %arg12[%c7_173, %c0_174], %198 {strides = array<i32>} : memref<38x64xbf16, #tpu.memory_space<vmem>>, vector<4x64xbf16>,
    %c20_175 = arith.constant 20 : index
    %c0_176 = arith.constant 0 : index
    %200 = tpu.strided_load %arg14[%c20_175, %c0_176] {strides = array<i32: 2, 1>} : memref<288x64xf32, #tpu.memory_space<vmem>>, vector<4x64xf32>
    %c21_177 = arith.constant 21 : index
    %c0_178 = arith.constant 0 : index
    %201 = tpu.strided_load %arg14[%c21_177, %c0_178] {strides = array<i32: 2, 1>} : memref<288x64xf32, #tpu.memory_space<vmem>>, vector<4x64xf32>
    %c30 = arith.constant 30 : index
    %c0_179 = arith.constant 0 : index
    %202 = tpu.strided_load %arg14[%c30, %c0_179] {strides = array<i32: 2, 1>} : memref<288x64xf32, #tpu.memory_space<vmem>>, vector<4x64xf32>
    %c31_180 = arith.constant 31 : index
    %c0_181 = arith.constant 0 : index
    %203 = tpu.strided_load %arg14[%c31_180, %c0_181] {strides = array<i32: 2, 1>} : memref<288x64xf32, #tpu.memory_space<vmem>>, vector<4x64xf32>
    %204 = arith.maximumf %200, %201 : vector<4x64xf32>
    %205 = arith.maximumf %202, %203 : vector<4x64xf32>
    %206 = arith.maximumf %204, %205 : vector<4x64xf32>
    %207 = arith.truncf %206 : vector<4x64xf32> to vector<4x64xbf16>
    %c13 = arith.constant 13 : index
    %c0_182 = arith.constant 0 : index
    %208 = vector.load %arg12[%c13, %c0_182] : memref<38x64xbf16, #tpu.memory_space<vmem>>, vector<4x64xbf16>
    tpu.vector_store %arg12[%c13, %c0_182], %207 {strides = array<i32>} : memref<38x64xbf16, #tpu.memory_space<vmem>>, vector<4x64xbf16>,
    %c40 = arith.constant 40 : index
    %c0_183 = arith.constant 0 : index
    %209 = tpu.strided_load %arg14[%c40, %c0_183] {strides = array<i32: 2, 1>} : memref<288x64xf32, #tpu.memory_space<vmem>>, vector<4x64xf32>
    %c41_184 = arith.constant 41 : index
    %c0_185 = arith.constant 0 : index
    %210 = tpu.strided_load %arg14[%c41_184, %c0_185] {strides = array<i32: 2, 1>} : memref<288x64xf32, #tpu.memory_space<vmem>>, vector<4x64xf32>
    %c50 = arith.constant 50 : index
    %c0_186 = arith.constant 0 : index
    %211 = tpu.strided_load %arg14[%c50, %c0_186] {strides = array<i32: 2, 1>} : memref<288x64xf32, #tpu.memory_space<vmem>>, vector<4x64xf32>
    %c51_187 = arith.constant 51 : index
    %c0_188 = arith.constant 0 : index
    %212 = tpu.strided_load %arg14[%c51_187, %c0_188] {strides = array<i32: 2, 1>} : memref<288x64xf32, #tpu.memory_space<vmem>>, vector<4x64xf32>
    %213 = arith.maximumf %209, %210 : vector<4x64xf32>
    %214 = arith.maximumf %211, %212 : vector<4x64xf32>
    %215 = arith.maximumf %213, %214 : vector<4x64xf32>
    %216 = arith.truncf %215 : vector<4x64xf32> to vector<4x64xbf16>
    %c19_189 = arith.constant 19 : index
    %c0_190 = arith.constant 0 : index
    %217 = vector.load %arg12[%c19_189, %c0_190] : memref<38x64xbf16, #tpu.memory_space<vmem>>, vector<4x64xbf16>
    tpu.vector_store %arg12[%c19_189, %c0_190], %216 {strides = array<i32>} : memref<38x64xbf16, #tpu.memory_space<vmem>>, vector<4x64xbf16>,
    %c60 = arith.constant 60 : index
    %c0_191 = arith.constant 0 : index
    %218 = tpu.strided_load %arg14[%c60, %c0_191] {strides = array<i32: 2, 1>} : memref<288x64xf32, #tpu.memory_space<vmem>>, vector<4x64xf32>
    %c61_192 = arith.constant 61 : index
    %c0_193 = arith.constant 0 : index
    %219 = tpu.strided_load %arg14[%c61_192, %c0_193] {strides = array<i32: 2, 1>} : memref<288x64xf32, #tpu.memory_space<vmem>>, vector<4x64xf32>
    %c70 = arith.constant 70 : index
    %c0_194 = arith.constant 0 : index
    %220 = tpu.strided_load %arg14[%c70, %c0_194] {strides = array<i32: 2, 1>} : memref<288x64xf32, #tpu.memory_space<vmem>>, vector<4x64xf32>
    %c71_195 = arith.constant 71 : index
    %c0_196 = arith.constant 0 : index
    %221 = tpu.strided_load %arg14[%c71_195, %c0_196] {strides = array<i32: 2, 1>} : memref<288x64xf32, #tpu.memory_space<vmem>>, vector<4x64xf32>
    %222 = arith.maximumf %218, %219 : vector<4x64xf32>
    %223 = arith.maximumf %220, %221 : vector<4x64xf32>
    %224 = arith.maximumf %222, %223 : vector<4x64xf32>
    %225 = arith.truncf %224 : vector<4x64xf32> to vector<4x64xbf16>
    %c25 = arith.constant 25 : index
    %c0_197 = arith.constant 0 : index
    %226 = vector.load %arg12[%c25, %c0_197] : memref<38x64xbf16, #tpu.memory_space<vmem>>, vector<4x64xbf16>
    tpu.vector_store %arg12[%c25, %c0_197], %225 {strides = array<i32>} : memref<38x64xbf16, #tpu.memory_space<vmem>>, vector<4x64xbf16>,
    %cst_198 = arith.constant 0.000000e+00 : f32
    %227 = vector.broadcast %cst_198 : f32 to vector<24x64xf32>
    %c0_199 = arith.constant 0 : index
    %c0_200 = arith.constant 0 : index
    %228 = vector.load %arg12[%c0_199, %c0_200] : memref<38x64xbf16, #tpu.memory_space<vmem>>, vector<24x64xbf16>
    %c0_201 = arith.constant 0 : index
    %c0_202 = arith.constant 0 : index
    %c0_203 = arith.constant 0 : index
    %229 = vector.load %arg6[%c0_201, %c0_202, %c0_203] : memref<9x64x64xbf16, #tpu.memory_space<vmem>>, vector<1x64x64xbf16>
    %230 = vector.shape_cast %229 : vector<1x64x64xbf16> to vector<64x64xbf16>
    %cst_204 = arith.constant dense<0.000000e+00> : vector<24x64xf32>
    %231 = tpu.matmul %228, %230, %cst_204 {dimension_numbers = #tpu.dot_dimension_numbers<[1], [0], [0], [1], [0, 0, 1, 1], [], []>} : vector<24x64xbf16>, vector<64x64xbf16>, vector<24x64xf32> -> vector<24x64xf32>
    %232 = arith.addf %227, %231 : vector<24x64xf32>
    %c1_205 = arith.constant 1 : index
    %c0_206 = arith.constant 0 : index
    %233 = vector.load %arg12[%c1_205, %c0_206] : memref<38x64xbf16, #tpu.memory_space<vmem>>, vector<24x64xbf16>
    %c1_207 = arith.constant 1 : index
    %c0_208 = arith.constant 0 : index
    %c0_209 = arith.constant 0 : index
    %234 = vector.load %arg6[%c1_207, %c0_208, %c0_209] : memref<9x64x64xbf16, #tpu.memory_space<vmem>>, vector<1x64x64xbf16>
    %235 = vector.shape_cast %234 : vector<1x64x64xbf16> to vector<64x64xbf16>
    %cst_210 = arith.constant dense<0.000000e+00> : vector<24x64xf32>
    %236 = tpu.matmul %233, %235, %cst_210 {dimension_numbers = #tpu.dot_dimension_numbers<[1], [0], [0], [1], [0, 0, 1, 1], [], []>} : vector<24x64xbf16>, vector<64x64xbf16>, vector<24x64xf32> -> vector<24x64xf32>
    %237 = arith.addf %232, %236 : vector<24x64xf32>
    %c2_211 = arith.constant 2 : index
    %c0_212 = arith.constant 0 : index
    %238 = vector.load %arg12[%c2_211, %c0_212] : memref<38x64xbf16, #tpu.memory_space<vmem>>, vector<24x64xbf16>
    %c2_213 = arith.constant 2 : index
    %c0_214 = arith.constant 0 : index
    %c0_215 = arith.constant 0 : index
    %239 = vector.load %arg6[%c2_213, %c0_214, %c0_215] : memref<9x64x64xbf16, #tpu.memory_space<vmem>>, vector<1x64x64xbf16>
    %240 = vector.shape_cast %239 : vector<1x64x64xbf16> to vector<64x64xbf16>
    %cst_216 = arith.constant dense<0.000000e+00> : vector<24x64xf32>
    %241 = tpu.matmul %238, %240, %cst_216 {dimension_numbers = #tpu.dot_dimension_numbers<[1], [0], [0], [1], [0, 0, 1, 1], [], []>} : vector<24x64xbf16>, vector<64x64xbf16>, vector<24x64xf32> -> vector<24x64xf32>
    %242 = arith.addf %237, %241 : vector<24x64xf32>
    %c6_217 = arith.constant 6 : index
    %c0_218 = arith.constant 0 : index
    %243 = vector.load %arg12[%c6_217, %c0_218] : memref<38x64xbf16, #tpu.memory_space<vmem>>, vector<24x64xbf16>
    %c3_219 = arith.constant 3 : index
    %c0_220 = arith.constant 0 : index
    %c0_221 = arith.constant 0 : index
    %244 = vector.load %arg6[%c3_219, %c0_220, %c0_221] : memref<9x64x64xbf16, #tpu.memory_space<vmem>>, vector<1x64x64xbf16>
    %245 = vector.shape_cast %244 : vector<1x64x64xbf16> to vector<64x64xbf16>
    %cst_222 = arith.constant dense<0.000000e+00> : vector<24x64xf32>
    %246 = tpu.matmul %243, %245, %cst_222 {dimension_numbers = #tpu.dot_dimension_numbers<[1], [0], [0], [1], [0, 0, 1, 1], [], []>} : vector<24x64xbf16>, vector<64x64xbf16>, vector<24x64xf32> -> vector<24x64xf32>
    %247 = arith.addf %242, %246 : vector<24x64xf32>
    %c7_223 = arith.constant 7 : index
    %c0_224 = arith.constant 0 : index
    %248 = vector.load %arg12[%c7_223, %c0_224] : memref<38x64xbf16, #tpu.memory_space<vmem>>, vector<24x64xbf16>
    %c4_225 = arith.constant 4 : index
    %c0_226 = arith.constant 0 : index
    %c0_227 = arith.constant 0 : index
    %249 = vector.load %arg6[%c4_225, %c0_226, %c0_227] : memref<9x64x64xbf16, #tpu.memory_space<vmem>>, vector<1x64x64xbf16>
    %250 = vector.shape_cast %249 : vector<1x64x64xbf16> to vector<64x64xbf16>
    %cst_228 = arith.constant dense<0.000000e+00> : vector<24x64xf32>
    %251 = tpu.matmul %248, %250, %cst_228 {dimension_numbers = #tpu.dot_dimension_numbers<[1], [0], [0], [1], [0, 0, 1, 1], [], []>} : vector<24x64xbf16>, vector<64x64xbf16>, vector<24x64xf32> -> vector<24x64xf32>
    %252 = arith.addf %247, %251 : vector<24x64xf32>
    %c8_229 = arith.constant 8 : index
    %c0_230 = arith.constant 0 : index
    %253 = vector.load %arg12[%c8_229, %c0_230] : memref<38x64xbf16, #tpu.memory_space<vmem>>, vector<24x64xbf16>
    %c5_231 = arith.constant 5 : index
    %c0_232 = arith.constant 0 : index
    %c0_233 = arith.constant 0 : index
    %254 = vector.load %arg6[%c5_231, %c0_232, %c0_233] : memref<9x64x64xbf16, #tpu.memory_space<vmem>>, vector<1x64x64xbf16>
    %255 = vector.shape_cast %254 : vector<1x64x64xbf16> to vector<64x64xbf16>
    %cst_234 = arith.constant dense<0.000000e+00> : vector<24x64xf32>
    %256 = tpu.matmul %253, %255, %cst_234 {dimension_numbers = #tpu.dot_dimension_numbers<[1], [0], [0], [1], [0, 0, 1, 1], [], []>} : vector<24x64xbf16>, vector<64x64xbf16>, vector<24x64xf32> -> vector<24x64xf32>
    %257 = arith.addf %252, %256 : vector<24x64xf32>
    %c12_235 = arith.constant 12 : index
    %c0_236 = arith.constant 0 : index
    %258 = vector.load %arg12[%c12_235, %c0_236] : memref<38x64xbf16, #tpu.memory_space<vmem>>, vector<24x64xbf16>
    %c6_237 = arith.constant 6 : index
    %c0_238 = arith.constant 0 : index
    %c0_239 = arith.constant 0 : index
    %259 = vector.load %arg6[%c6_237, %c0_238, %c0_239] : memref<9x64x64xbf16, #tpu.memory_space<vmem>>, vector<1x64x64xbf16>
    %260 = vector.shape_cast %259 : vector<1x64x64xbf16> to vector<64x64xbf16>
    %cst_240 = arith.constant dense<0.000000e+00> : vector<24x64xf32>
    %261 = tpu.matmul %258, %260, %cst_240 {dimension_numbers = #tpu.dot_dimension_numbers<[1], [0], [0], [1], [0, 0, 1, 1], [], []>} : vector<24x64xbf16>, vector<64x64xbf16>, vector<24x64xf32> -> vector<24x64xf32>
    %262 = arith.addf %257, %261 : vector<24x64xf32>
    %c13_241 = arith.constant 13 : index
    %c0_242 = arith.constant 0 : index
    %263 = vector.load %arg12[%c13_241, %c0_242] : memref<38x64xbf16, #tpu.memory_space<vmem>>, vector<24x64xbf16>
    %c7_243 = arith.constant 7 : index
    %c0_244 = arith.constant 0 : index
    %c0_245 = arith.constant 0 : index
    %264 = vector.load %arg6[%c7_243, %c0_244, %c0_245] : memref<9x64x64xbf16, #tpu.memory_space<vmem>>, vector<1x64x64xbf16>
    %265 = vector.shape_cast %264 : vector<1x64x64xbf16> to vector<64x64xbf16>
    %cst_246 = arith.constant dense<0.000000e+00> : vector<24x64xf32>
    %266 = tpu.matmul %263, %265, %cst_246 {dimension_numbers = #tpu.dot_dimension_numbers<[1], [0], [0], [1], [0, 0, 1, 1], [], []>} : vector<24x64xbf16>, vector<64x64xbf16>, vector<24x64xf32> -> vector<24x64xf32>
    %267 = arith.addf %262, %266 : vector<24x64xf32>
    %c14 = arith.constant 14 : index
    %c0_247 = arith.constant 0 : index
    %268 = vector.load %arg12[%c14, %c0_247] : memref<38x64xbf16, #tpu.memory_space<vmem>>, vector<24x64xbf16>
    %c8_248 = arith.constant 8 : index
    %c0_249 = arith.constant 0 : index
    %c0_250 = arith.constant 0 : index
    %269 = vector.load %arg6[%c8_248, %c0_249, %c0_250] : memref<9x64x64xbf16, #tpu.memory_space<vmem>>, vector<1x64x64xbf16>
    %270 = vector.shape_cast %269 : vector<1x64x64xbf16> to vector<64x64xbf16>
    %cst_251 = arith.constant dense<0.000000e+00> : vector<24x64xf32>
    %271 = tpu.matmul %268, %270, %cst_251 {dimension_numbers = #tpu.dot_dimension_numbers<[1], [0], [0], [1], [0, 0, 1, 1], [], []>} : vector<24x64xbf16>, vector<64x64xbf16>, vector<24x64xf32> -> vector<24x64xf32>
    %272 = arith.addf %267, %271 : vector<24x64xf32>
    %c0_252 = arith.constant 0 : index
    %c0_253 = arith.constant 0 : index
    %273 = vector.load %arg7[%c0_252, %c0_253] : memref<1x64xf32, #tpu.memory_space<vmem>>, vector<1x64xf32>
    %274 = vector.broadcast %273 : vector<1x64xf32> to vector<24x64xf32>
    %275 = arith.addf %272, %274 : vector<24x64xf32>
    %cst_254 = arith.constant 0.000000e+00 : f32
    %276 = vector.broadcast %cst_254 : f32 to vector<24x64xf32>
    %277 = arith.maximumf %275, %276 : vector<24x64xf32>
    %c0_255 = arith.constant 0 : index
    %c0_256 = arith.constant 0 : index
    %278 = vector.load %arg14[%c0_255, %c0_256] : memref<288x64xf32, #tpu.memory_space<vmem>>, vector<24x64xf32>
    tpu.vector_store %arg14[%c0_255, %c0_256], %277 {strides = array<i32>} : memref<288x64xf32, #tpu.memory_space<vmem>>, vector<24x64xf32>,
    %c0_257 = arith.constant 0 : index
    %c0_258 = arith.constant 0 : index
    %279 = tpu.strided_load %arg14[%c0_257, %c0_258] {strides = array<i32: 2, 1>} : memref<288x64xf32, #tpu.memory_space<vmem>>, vector<2x64xf32>
    %c1_259 = arith.constant 1 : index
    %c0_260 = arith.constant 0 : index
    %280 = tpu.strided_load %arg14[%c1_259, %c0_260] {strides = array<i32: 2, 1>} : memref<288x64xf32, #tpu.memory_space<vmem>>, vector<2x64xf32>
    %c6_261 = arith.constant 6 : index
    %c0_262 = arith.constant 0 : index
    %281 = tpu.strided_load %arg14[%c6_261, %c0_262] {strides = array<i32: 2, 1>} : memref<288x64xf32, #tpu.memory_space<vmem>>, vector<2x64xf32>
    %c7_263 = arith.constant 7 : index
    %c0_264 = arith.constant 0 : index
    %282 = tpu.strided_load %arg14[%c7_263, %c0_264] {strides = array<i32: 2, 1>} : memref<288x64xf32, #tpu.memory_space<vmem>>, vector<2x64xf32>
    %283 = arith.maximumf %279, %280 : vector<2x64xf32>
    %284 = arith.maximumf %281, %282 : vector<2x64xf32>
    %285 = arith.maximumf %283, %284 : vector<2x64xf32>
    %286 = arith.truncf %285 : vector<2x64xf32> to vector<2x64xbf16>
    %c5_265 = arith.constant 5 : index
    %c0_266 = arith.constant 0 : index
    %287 = vector.load %arg13[%c5_265, %c0_266] : memref<18x64xbf16, #tpu.memory_space<vmem>>, vector<2x64xbf16>
    tpu.vector_store %arg13[%c5_265, %c0_266], %286 {strides = array<i32>} : memref<18x64xbf16, #tpu.memory_space<vmem>>, vector<2x64xbf16>,
    %c12_267 = arith.constant 12 : index
    %c0_268 = arith.constant 0 : index
    %288 = tpu.strided_load %arg14[%c12_267, %c0_268] {strides = array<i32: 2, 1>} : memref<288x64xf32, #tpu.memory_space<vmem>>, vector<2x64xf32>
    %c13_269 = arith.constant 13 : index
    %c0_270 = arith.constant 0 : index
    %289 = tpu.strided_load %arg14[%c13_269, %c0_270] {strides = array<i32: 2, 1>} : memref<288x64xf32, #tpu.memory_space<vmem>>, vector<2x64xf32>
    %c18_271 = arith.constant 18 : index
    %c0_272 = arith.constant 0 : index
    %290 = tpu.strided_load %arg14[%c18_271, %c0_272] {strides = array<i32: 2, 1>} : memref<288x64xf32, #tpu.memory_space<vmem>>, vector<2x64xf32>
    %c19_273 = arith.constant 19 : index
    %c0_274 = arith.constant 0 : index
    %291 = tpu.strided_load %arg14[%c19_273, %c0_274] {strides = array<i32: 2, 1>} : memref<288x64xf32, #tpu.memory_space<vmem>>, vector<2x64xf32>
    %292 = arith.maximumf %288, %289 : vector<2x64xf32>
    %293 = arith.maximumf %290, %291 : vector<2x64xf32>
    %294 = arith.maximumf %292, %293 : vector<2x64xf32>
    %295 = arith.truncf %294 : vector<2x64xf32> to vector<2x64xbf16>
    %c9 = arith.constant 9 : index
    %c0_275 = arith.constant 0 : index
    %296 = vector.load %arg13[%c9, %c0_275] : memref<18x64xbf16, #tpu.memory_space<vmem>>, vector<2x64xbf16>
    tpu.vector_store %arg13[%c9, %c0_275], %295 {strides = array<i32>} : memref<18x64xbf16, #tpu.memory_space<vmem>>, vector<2x64xbf16>,
    %cst_276 = arith.constant 0.000000e+00 : f32
    %297 = vector.broadcast %cst_276 : f32 to vector<8x64xf32>
    %c0_277 = arith.constant 0 : index
    %c0_278 = arith.constant 0 : index
    %298 = vector.load %arg13[%c0_277, %c0_278] : memref<18x64xbf16, #tpu.memory_space<vmem>>, vector<8x64xbf16>
    %c0_279 = arith.constant 0 : index
    %c0_280 = arith.constant 0 : index
    %c0_281 = arith.constant 0 : index
    %299 = vector.load %arg8[%c0_279, %c0_280, %c0_281] : memref<9x64x64xbf16, #tpu.memory_space<vmem>>, vector<1x64x64xbf16>
    %300 = vector.shape_cast %299 : vector<1x64x64xbf16> to vector<64x64xbf16>
    %cst_282 = arith.constant dense<0.000000e+00> : vector<8x64xf32>
    %301 = tpu.matmul %298, %300, %cst_282 {dimension_numbers = #tpu.dot_dimension_numbers<[1], [0], [0], [1], [0, 0, 1, 1], [], []>} : vector<8x64xbf16>, vector<64x64xbf16>, vector<8x64xf32> -> vector<8x64xf32>
    %302 = arith.addf %297, %301 : vector<8x64xf32>
    %c1_283 = arith.constant 1 : index
    %c0_284 = arith.constant 0 : index
    %303 = vector.load %arg13[%c1_283, %c0_284] : memref<18x64xbf16, #tpu.memory_space<vmem>>, vector<8x64xbf16>
    %c1_285 = arith.constant 1 : index
    %c0_286 = arith.constant 0 : index
    %c0_287 = arith.constant 0 : index
    %304 = vector.load %arg8[%c1_285, %c0_286, %c0_287] : memref<9x64x64xbf16, #tpu.memory_space<vmem>>, vector<1x64x64xbf16>
    %305 = vector.shape_cast %304 : vector<1x64x64xbf16> to vector<64x64xbf16>
    %cst_288 = arith.constant dense<0.000000e+00> : vector<8x64xf32>
    %306 = tpu.matmul %303, %305, %cst_288 {dimension_numbers = #tpu.dot_dimension_numbers<[1], [0], [0], [1], [0, 0, 1, 1], [], []>} : vector<8x64xbf16>, vector<64x64xbf16>, vector<8x64xf32> -> vector<8x64xf32>
    %307 = arith.addf %302, %306 : vector<8x64xf32>
    %c2_289 = arith.constant 2 : index
    %c0_290 = arith.constant 0 : index
    %308 = vector.load %arg13[%c2_289, %c0_290] : memref<18x64xbf16, #tpu.memory_space<vmem>>, vector<8x64xbf16>
    %c2_291 = arith.constant 2 : index
    %c0_292 = arith.constant 0 : index
    %c0_293 = arith.constant 0 : index
    %309 = vector.load %arg8[%c2_291, %c0_292, %c0_293] : memref<9x64x64xbf16, #tpu.memory_space<vmem>>, vector<1x64x64xbf16>
    %310 = vector.shape_cast %309 : vector<1x64x64xbf16> to vector<64x64xbf16>
    %cst_294 = arith.constant dense<0.000000e+00> : vector<8x64xf32>
    %311 = tpu.matmul %308, %310, %cst_294 {dimension_numbers = #tpu.dot_dimension_numbers<[1], [0], [0], [1], [0, 0, 1, 1], [], []>} : vector<8x64xbf16>, vector<64x64xbf16>, vector<8x64xf32> -> vector<8x64xf32>
    %312 = arith.addf %307, %311 : vector<8x64xf32>
    %c4_295 = arith.constant 4 : index
    %c0_296 = arith.constant 0 : index
    %313 = vector.load %arg13[%c4_295, %c0_296] : memref<18x64xbf16, #tpu.memory_space<vmem>>, vector<8x64xbf16>
    %c3_297 = arith.constant 3 : index
    %c0_298 = arith.constant 0 : index
    %c0_299 = arith.constant 0 : index
    %314 = vector.load %arg8[%c3_297, %c0_298, %c0_299] : memref<9x64x64xbf16, #tpu.memory_space<vmem>>, vector<1x64x64xbf16>
    %315 = vector.shape_cast %314 : vector<1x64x64xbf16> to vector<64x64xbf16>
    %cst_300 = arith.constant dense<0.000000e+00> : vector<8x64xf32>
    %316 = tpu.matmul %313, %315, %cst_300 {dimension_numbers = #tpu.dot_dimension_numbers<[1], [0], [0], [1], [0, 0, 1, 1], [], []>} : vector<8x64xbf16>, vector<64x64xbf16>, vector<8x64xf32> -> vector<8x64xf32>
    %317 = arith.addf %312, %316 : vector<8x64xf32>
    %c5_301 = arith.constant 5 : index
    %c0_302 = arith.constant 0 : index
    %318 = vector.load %arg13[%c5_301, %c0_302] : memref<18x64xbf16, #tpu.memory_space<vmem>>, vector<8x64xbf16>
    %c4_303 = arith.constant 4 : index
    %c0_304 = arith.constant 0 : index
    %c0_305 = arith.constant 0 : index
    %319 = vector.load %arg8[%c4_303, %c0_304, %c0_305] : memref<9x64x64xbf16, #tpu.memory_space<vmem>>, vector<1x64x64xbf16>
    %320 = vector.shape_cast %319 : vector<1x64x64xbf16> to vector<64x64xbf16>
    %cst_306 = arith.constant dense<0.000000e+00> : vector<8x64xf32>
    %321 = tpu.matmul %318, %320, %cst_306 {dimension_numbers = #tpu.dot_dimension_numbers<[1], [0], [0], [1], [0, 0, 1, 1], [], []>} : vector<8x64xbf16>, vector<64x64xbf16>, vector<8x64xf32> -> vector<8x64xf32>
    %322 = arith.addf %317, %321 : vector<8x64xf32>
    %c6_307 = arith.constant 6 : index
    %c0_308 = arith.constant 0 : index
    %323 = vector.load %arg13[%c6_307, %c0_308] : memref<18x64xbf16, #tpu.memory_space<vmem>>, vector<8x64xbf16>
    %c5_309 = arith.constant 5 : index
    %c0_310 = arith.constant 0 : index
    %c0_311 = arith.constant 0 : index
    %324 = vector.load %arg8[%c5_309, %c0_310, %c0_311] : memref<9x64x64xbf16, #tpu.memory_space<vmem>>, vector<1x64x64xbf16>
    %325 = vector.shape_cast %324 : vector<1x64x64xbf16> to vector<64x64xbf16>
    %cst_312 = arith.constant dense<0.000000e+00> : vector<8x64xf32>
    %326 = tpu.matmul %323, %325, %cst_312 {dimension_numbers = #tpu.dot_dimension_numbers<[1], [0], [0], [1], [0, 0, 1, 1], [], []>} : vector<8x64xbf16>, vector<64x64xbf16>, vector<8x64xf32> -> vector<8x64xf32>
    %327 = arith.addf %322, %326 : vector<8x64xf32>
    %c8_313 = arith.constant 8 : index
    %c0_314 = arith.constant 0 : index
    %328 = vector.load %arg13[%c8_313, %c0_314] : memref<18x64xbf16, #tpu.memory_space<vmem>>, vector<8x64xbf16>
    %c6_315 = arith.constant 6 : index
    %c0_316 = arith.constant 0 : index
    %c0_317 = arith.constant 0 : index
    %329 = vector.load %arg8[%c6_315, %c0_316, %c0_317] : memref<9x64x64xbf16, #tpu.memory_space<vmem>>, vector<1x64x64xbf16>
    %330 = vector.shape_cast %329 : vector<1x64x64xbf16> to vector<64x64xbf16>
    %cst_318 = arith.constant dense<0.000000e+00> : vector<8x64xf32>
    %331 = tpu.matmul %328, %330, %cst_318 {dimension_numbers = #tpu.dot_dimension_numbers<[1], [0], [0], [1], [0, 0, 1, 1], [], []>} : vector<8x64xbf16>, vector<64x64xbf16>, vector<8x64xf32> -> vector<8x64xf32>
    %332 = arith.addf %327, %331 : vector<8x64xf32>
    %c9_319 = arith.constant 9 : index
    %c0_320 = arith.constant 0 : index
    %333 = vector.load %arg13[%c9_319, %c0_320] : memref<18x64xbf16, #tpu.memory_space<vmem>>, vector<8x64xbf16>
    %c7_321 = arith.constant 7 : index
    %c0_322 = arith.constant 0 : index
    %c0_323 = arith.constant 0 : index
    %334 = vector.load %arg8[%c7_321, %c0_322, %c0_323] : memref<9x64x64xbf16, #tpu.memory_space<vmem>>, vector<1x64x64xbf16>
    %335 = vector.shape_cast %334 : vector<1x64x64xbf16> to vector<64x64xbf16>
    %cst_324 = arith.constant dense<0.000000e+00> : vector<8x64xf32>
    %336 = tpu.matmul %333, %335, %cst_324 {dimension_numbers = #tpu.dot_dimension_numbers<[1], [0], [0], [1], [0, 0, 1, 1], [], []>} : vector<8x64xbf16>, vector<64x64xbf16>, vector<8x64xf32> -> vector<8x64xf32>
    %337 = arith.addf %332, %336 : vector<8x64xf32>
    %c10_325 = arith.constant 10 : index
    %c0_326 = arith.constant 0 : index
    %338 = vector.load %arg13[%c10_325, %c0_326] : memref<18x64xbf16, #tpu.memory_space<vmem>>, vector<8x64xbf16>
    %c8_327 = arith.constant 8 : index
    %c0_328 = arith.constant 0 : index
    %c0_329 = arith.constant 0 : index
    %339 = vector.load %arg8[%c8_327, %c0_328, %c0_329] : memref<9x64x64xbf16, #tpu.memory_space<vmem>>, vector<1x64x64xbf16>
    %340 = vector.shape_cast %339 : vector<1x64x64xbf16> to vector<64x64xbf16>
    %cst_330 = arith.constant dense<0.000000e+00> : vector<8x64xf32>
    %341 = tpu.matmul %338, %340, %cst_330 {dimension_numbers = #tpu.dot_dimension_numbers<[1], [0], [0], [1], [0, 0, 1, 1], [], []>} : vector<8x64xbf16>, vector<64x64xbf16>, vector<8x64xf32> -> vector<8x64xf32>
    %342 = arith.addf %337, %341 : vector<8x64xf32>
    %c0_331 = arith.constant 0 : index
    %c0_332 = arith.constant 0 : index
    %343 = vector.load %arg9[%c0_331, %c0_332] : memref<1x64xf32, #tpu.memory_space<vmem>>, vector<1x64xf32>
    %344 = vector.broadcast %343 : vector<1x64xf32> to vector<8x64xf32>
    %345 = arith.addf %342, %344 : vector<8x64xf32>
    %346 = vector.extract_strided_slice %345 {offsets = [0, 0], sizes = [1, 64], strides = [1, 1]} : vector<8x64xf32> to vector<1x64xf32>
    %347 = vector.extract_strided_slice %345 {offsets = [1, 0], sizes = [1, 64], strides = [1, 1]} : vector<8x64xf32> to vector<1x64xf32>
    %348 = vector.extract_strided_slice %345 {offsets = [4, 0], sizes = [1, 64], strides = [1, 1]} : vector<8x64xf32> to vector<1x64xf32>
    %349 = vector.extract_strided_slice %345 {offsets = [5, 0], sizes = [1, 64], strides = [1, 1]} : vector<8x64xf32> to vector<1x64xf32>
    %350 = tpu.concatenate %346, %347, %348, %349 in 1 : vector<1x64xf32>, vector<1x64xf32>, vector<1x64xf32>, vector<1x64xf32> -> vector<1x256xf32>
    %c0_333 = arith.constant 0 : index
    %c0_334 = arith.constant 0 : index
    %c0_335 = arith.constant 0 : index
    %351 = vector.load %arg10[%c0_333, %c0_334, %c0_335] : memref<1x1x256xf32, #tpu.memory_space<vmem>>, vector<1x1x256xf32>
    %352 = vector.shape_cast %351 : vector<1x1x256xf32> to vector<1x256xf32>
    %353 = vector.shape_cast %350 : vector<1x256xf32> to vector<1x1x256xf32>
    tpu.vector_store %arg10[%c0_333, %c0_334, %c0_335], %353 {strides = array<i32>} : memref<1x1x256xf32, #tpu.memory_space<vmem>>, vector<1x1x256xf32>,
    return
  }
  func.func @transform_0(%arg0: i32) -> (i32, i32, i32) {
    %c0_i32 = arith.constant 0 : i32
    %c0_i32_0 = arith.constant 0 : i32
    %c0_i32_1 = arith.constant 0 : i32
    return %arg0, %c0_i32, %c0_i32_0 : i32, i32, i32
  }
  func.func @transform_1(%arg0: i32) -> (i32, i32, i32) {
    %c0_i32 = arith.constant 0 : i32
    %c0_i32_0 = arith.constant 0 : i32
    %c0_i32_1 = arith.constant 0 : i32
    %c0_i32_2 = arith.constant 0 : i32
    return %c0_i32, %c0_i32_0, %c0_i32_1 : i32, i32, i32
  }
  func.func @transform_2(%arg0: i32) -> (i32, i32) {
    %c0_i32 = arith.constant 0 : i32
    %c0_i32_0 = arith.constant 0 : i32
    %c0_i32_1 = arith.constant 0 : i32
    return %c0_i32, %c0_i32_0 : i32, i32
  }
  func.func @transform_3(%arg0: i32) -> (i32, i32, i32) {
    %c0_i32 = arith.constant 0 : i32
    %c0_i32_0 = arith.constant 0 : i32
    %c0_i32_1 = arith.constant 0 : i32
    %c0_i32_2 = arith.constant 0 : i32
    return %c0_i32, %c0_i32_0, %c0_i32_1 : i32, i32, i32
  }
  func.func @transform_4(%arg0: i32) -> (i32, i32) {
    %c0_i32 = arith.constant 0 : i32
    %c0_i32_0 = arith.constant 0 : i32
    %c0_i32_1 = arith.constant 0 : i32
    return %c0_i32, %c0_i32_0 : i32, i32
  }
  func.func @transform_5(%arg0: i32) -> (i32, i32, i32) {
    %c0_i32 = arith.constant 0 : i32
    %c0_i32_0 = arith.constant 0 : i32
    %c0_i32_1 = arith.constant 0 : i32
    %c0_i32_2 = arith.constant 0 : i32
    return %c0_i32, %c0_i32_0, %c0_i32_1 : i32, i32, i32
  }
  func.func @transform_6(%arg0: i32) -> (i32, i32) {
    %c0_i32 = arith.constant 0 : i32
    %c0_i32_0 = arith.constant 0 : i32
    %c0_i32_1 = arith.constant 0 : i32
    return %c0_i32, %c0_i32_0 : i32, i32
  }
  func.func @transform_7(%arg0: i32) -> (i32, i32, i32) {
    %c0_i32 = arith.constant 0 : i32
    %c0_i32_0 = arith.constant 0 : i32
    %c0_i32_1 = arith.constant 0 : i32
    %c0_i32_2 = arith.constant 0 : i32
    return %c0_i32, %c0_i32_0, %c0_i32_1 : i32, i32, i32
  }
  func.func @transform_8(%arg0: i32) -> (i32, i32) {
    %c0_i32 = arith.constant 0 : i32
    %c0_i32_0 = arith.constant 0 : i32
    %c0_i32_1 = arith.constant 0 : i32
    return %c0_i32, %c0_i32_0 : i32, i32
  }
  func.func @transform_9(%arg0: i32) -> (i32, i32, i32) {
    %c0_i32 = arith.constant 0 : i32
    %c0_i32_0 = arith.constant 0 : i32
    %c0_i32_1 = arith.constant 0 : i32
    return %arg0, %c0_i32, %c0_i32_0 : i32, i32, i32
  }
}

</mosaic_0001>

<llo_original>
// kernel: backbone_forward.1
$region0: #{backbone_forward.1}
  #allocation0 [shape = 'u32[]', space=smem, size = 0x4, offset = 0x4, fixed_abs, tag = 'smem constant byte address 0x4 - core index']
  #allocation1 [shape = 'u32[144,128]{1,0:T(1,128)}', space=vmem, size = 0x12000, scoped, tag = 'internal scratch']
  #allocation2 [shape = 'bf16[102,64]{1,0:T(8,128)(2,1)}', space=vmem, size = 0x6800, scoped, tag = 'scratch operand']
  #allocation3 [shape = 'bf16[38,64]{1,0:T(8,128)(2,1)}', space=vmem, size = 0x2800, scoped, tag = 'scratch operand']
  #allocation4 [shape = 'bf16[18,64]{1,0:T(8,128)(2,1)}', space=vmem, size = 0x1800, scoped, tag = 'scratch operand']
  #allocation5 [shape = 'f32[288,64]{1,0:T(8,128)}', space=vmem, size = 0x24000, scoped, tag = 'scratch operand']
  %s0 = inlined_call_operand.vmem [shape: bf16[2,326,3], index: 0, kind: input, shape index: {}]
  %s1 = inlined_call_operand.vmem [shape: bf16[9,3,64], index: 1, kind: input, shape index: {}]
  %s2 = inlined_call_operand.vmem [shape: f32[1,64], index: 2, kind: input, shape index: {}]
  %s3 = inlined_call_operand.vmem [shape: bf16[9,64,64], index: 3, kind: input, shape index: {}]
  %s4 = inlined_call_operand.vmem [shape: f32[1,64], index: 4, kind: input, shape index: {}]
  %s5 = inlined_call_operand.vmem [shape: bf16[9,64,64], index: 5, kind: input, shape index: {}]
  %s6 = inlined_call_operand.vmem [shape: f32[1,64], index: 6, kind: input, shape index: {}]
  %s7 = inlined_call_operand.vmem [shape: bf16[9,64,64], index: 7, kind: input, shape index: {}]
  %s8 = inlined_call_operand.vmem [shape: f32[1,64], index: 8, kind: input, shape index: {}]
  %s9 = inlined_call_operand.vmem [shape: f32[2,1,256], index: 9, kind: output, shape index: {}]
  %s10 = sld [smem:[#allocation0]]
  $region69: #{backbone_forward.1} parent=0
    _
  %s12 = ssub.s32 1, %s10
  %s13 = scalar_select 0, %s12, %s10
  loop: start=0, step=1, limit=4
  $region2: #{backbone_forward.1} parent=0 // loop_pre_header
    _
  $region3: #{backbone_forward.1} parent=0 // loop_header
    %s15 = sphi 0, %s19
    %p16 = scmp.ge.s32.totalorder %s15, 4
    %s25 = sphi 0, %s27
    %s28 = sphi 0, %s25
    %s29 = sphi 0, %s28
    %s45 = sphi 0, %s29
    %s49 = sphi 0, %s49
    %s51 = sphi 0, %s49
    %s52 = sphi 0, %s51
    %s66 = sphi 0, %s52
    %s70 = sphi 0, %s70
    %s72 = sphi 0, %s70
    %s73 = sphi 0, %s72
    %s87 = sphi 0, %s73
    %s91 = sphi 0, %s91
    %s93 = sphi 0, %s91
    %s94 = sphi 0, %s93
    %s108 = sphi 0, %s94
    %s112 = sphi 0, %s112
    %s114 = sphi 0, %s112
    %s115 = sphi 0, %s114
    %s129 = sphi 0, %s115
    %s133 = sphi 0, %s133
    %s135 = sphi 0, %s133
    %s136 = sphi 0, %s135
    %s150 = sphi 0, %s136
    %s154 = sphi 0, %s154
    %s156 = sphi 0, %s154
    %s157 = sphi 0, %s156
    %s171 = sphi 0, %s157
    %s175 = sphi 0, %s175
    %s177 = sphi 0, %s175
    %s178 = sphi 0, %s177
    %s192 = sphi 0, %s178
    %s196 = sphi 0, %s196
    %s198 = sphi 0, %s196
    %s199 = sphi 0, %s198
    %s213 = sphi 0, %s199
    %s219 = sphi 0, %s221
    %s222 = sphi 0, %s219
    %s223 = sphi 0, %s222
    %s239 = sphi 0, %s223
  $region4: #{backbone_forward.1} parent=0 // loop_header_branch
    %18 = sbr.rel (%p16) target = $region8
  $region5: #{backbone_forward.1} parent=0 // loop_body
    %s20 = ssub.s32 %s15, 1
    %s21 = ssub.s32 %s15, 2
    %s22 = sadd.s32 %s15, 1
    %s23 = ssub.s32 %s15, %s22
    %p24 = scmp.eq.s32.totalorder %s23, 0
    %s26 = sadd.s32 %s25, 1
    %s27 = scalar_select %p24, %s25, %s26
    %p30 = pneg %p24
    %p31 = scmp.eq.s32.totalorder %s15, 1
    %p32 = por %p30, %p31
    %p33 = scmp.ne.s32.totalorder %s25, %s28
    %p34 = scmp.eq.s32.totalorder %s15, 0
    %p35 = por %p33, %p34
    %p36 = scmp.ne.s32.totalorder %s25, %s28
    %p37 = scmp.eq.s32.totalorder %s20, 1
    %p38 = por %p36, %p37
    %p39 = scmp.ne.s32.totalorder %s28, %s29
    %p40 = scmp.eq.s32.totalorder %s20, 0
    %p41 = por %p39, %p40
    %p42 = scmp.ne.s32.totalorder %s28, %s29
    %p43 = scmp.eq.s32.totalorder %s21, 1
    %p44 = por %p42, %p43
    %p46 = scmp.ne.s32.totalorder %s29, %s45
    %p47 = scmp.eq.s32.totalorder %s21, 0
    %p48 = por %p46, %p47
    %s50 = sadd.s32 %s49, 1
    %p53 = scmp.eq.s32.totalorder %s15, 1
    %p54 = scmp.ne.s32.totalorder %s49, %s51
    %p55 = scmp.eq.s32.totalorder %s15, 0
    %p56 = por %p54, %p55
    %p57 = scmp.ne.s32.totalorder %s49, %s51
    %p58 = scmp.eq.s32.totalorder %s20, 1
    %p59 = por %p57, %p58
    %p60 = scmp.ne.s32.totalorder %s51, %s52
    %p61 = scmp.eq.s32.totalorder %s20, 0
    %p62 = por %p60, %p61
    %p63 = scmp.ne.s32.totalorder %s51, %s52
    %p64 = scmp.eq.s32.totalorder %s21, 1
    %p65 = por %p63, %p64
    %p67 = scmp.ne.s32.totalorder %s52, %s66
    %p68 = scmp.eq.s32.totalorder %s21, 0
    %p69 = por %p67, %p68
    %s71 = sadd.s32 %s70, 1
    %p74 = scmp.eq.s32.totalorder %s15, 1
    %p75 = scmp.ne.s32.totalorder %s70, %s72
    %p76 = scmp.eq.s32.totalorder %s15, 0
    %p77 = por %p75, %p76
    %p78 = scmp.ne.s32.totalorder %s70, %s72
    %p79 = scmp.eq.s32.totalorder %s20, 1
    %p80 = por %p78, %p79
    %p81 = scmp.ne.s32.totalorder %s72, %s73
    %p82 = scmp.eq.s32.totalorder %s20, 0
    %p83 = por %p81, %p82
    %p84 = scmp.ne.s32.totalorder %s72, %s73
    %p85 = scmp.eq.s32.totalorder %s21, 1
    %p86 = por %p84, %p85
    %p88 = scmp.ne.s32.totalorder %s73, %s87
    %p89 = scmp.eq.s32.totalorder %s21, 0
    %p90 = por %p88, %p89
    %s92 = sadd.s32 %s91, 1
    %p95 = scmp.eq.s32.totalorder %s15, 1
    %p96 = scmp.ne.s32.totalorder %s91, %s93
    %p97 = scmp.eq.s32.totalorder %s15, 0
    %p98 = por %p96, %p97
    %p99 = scmp.ne.s32.totalorder %s91, %s93
    %p100 = scmp.eq.s32.totalorder %s20, 1
    %p101 = por %p99, %p100
    %p102 = scmp.ne.s32.totalorder %s93, %s94
    %p103 = scmp.eq.s32.totalorder %s20, 0
    %p104 = por %p102, %p103
    %p105 = scmp.ne.s32.totalorder %s93, %s94
    %p106 = scmp.eq.s32.totalorder %s21, 1
    %p107 = por %p105, %p106
    %p109 = scmp.ne.s32.totalorder %s94, %s108
    %p110 = scmp.eq.s32.totalorder %s21, 0
    %p111 = por %p109, %p110
    %s113 = sadd.s32 %s112, 1
    %p116 = scmp.eq.s32.totalorder %s15, 1
    %p117 = scmp.ne.s32.totalorder %s112, %s114
    %p118 = scmp.eq.s32.totalorder %s15, 0
    %p119 = por %p117, %p118
    %p120 = scmp.ne.s32.totalorder %s112, %s114
    %p121 = scmp.eq.s32.totalorder %s20, 1
    %p122 = por %p120, %p121
    %p123 = scmp.ne.s32.totalorder %s114, %s115
    %p124 = scmp.eq.s32.totalorder %s20, 0
    %p125 = por %p123, %p124
    %p126 = scmp.ne.s32.totalorder %s114, %s115
    %p127 = scmp.eq.s32.totalorder %s21, 1
    %p128 = por %p126, %p127
    %p130 = scmp.ne.s32.totalorder %s115, %s129
    %p131 = scmp.eq.s32.totalorder %s21, 0
    %p132 = por %p130, %p131
    %s134 = sadd.s32 %s133, 1
    %p137 = scmp.eq.s32.totalorder %s15, 1
    %p138 = scmp.ne.s32.totalorder %s133, %s135
    %p139 = scmp.eq.s32.totalorder %s15, 0
    %p140 = por %p138, %p139
    %p141 = scmp.ne.s32.totalorder %s133, %s135
    %p142 = scmp.eq.s32.totalorder %s20, 1
    %p143 = por %p141, %p142
    %p144 = scmp.ne.s32.totalorder %s135, %s136
    %p145 = scmp.eq.s32.totalorder %s20, 0
    %p146 = por %p144, %p145
    %p147 = scmp.ne.s32.totalorder %s135, %s136
    %p148 = scmp.eq.s32.totalorder %s21, 1
    %p149 = por %p147, %p148
    %p151 = scmp.ne.s32.totalorder %s136, %s150
    %p152 = scmp.eq.s32.totalorder %s21, 0
    %p153 = por %p151, %p152
    %s155 = sadd.s32 %s154, 1
    %p158 = scmp.eq.s32.totalorder %s15, 1
    %p159 = scmp.ne.s32.totalorder %s154, %s156
    %p160 = scmp.eq.s32.totalorder %s15, 0
    %p161 = por %p159, %p160
    %p162 = scmp.ne.s32.totalorder %s154, %s156
    %p163 = scmp.eq.s32.totalorder %s20, 1
    %p164 = por %p162, %p163
    %p165 = scmp.ne.s32.totalorder %s156, %s157
    %p166 = scmp.eq.s32.totalorder %s20, 0
    %p167 = por %p165, %p166
    %p168 = scmp.ne.s32.totalorder %s156, %s157
    %p169 = scmp.eq.s32.totalorder %s21, 1
    %p170 = por %p168, %p169
    %p172 = scmp.ne.s32.totalorder %s157, %s171
    %p173 = scmp.eq.s32.totalorder %s21, 0
    %p174 = por %p172, %p173
    %s176 = sadd.s32 %s175, 1
    %p179 = scmp.eq.s32.totalorder %s15, 1
    %p180 = scmp.ne.s32.totalorder %s175, %s177
    %p181 = scmp.eq.s32.totalorder %s15, 0
    %p182 = por %p180, %p181
    %p183 = scmp.ne.s32.totalorder %s175, %s177
    %p184 = scmp.eq.s32.totalorder %s20, 1
    %p185 = por %p183, %p184
    %p186 = scmp.ne.s32.totalorder %s177, %s178
    %p187 = scmp.eq.s32.totalorder %s20, 0
    %p188 = por %p186, %p187
    %p189 = scmp.ne.s32.totalorder %s177, %s178
    %p190 = scmp.eq.s32.totalorder %s21, 1
    %p191 = por %p189, %p190
    %p193 = scmp.ne.s32.totalorder %s178, %s192
    %p194 = scmp.eq.s32.totalorder %s21, 0
    %p195 = por %p193, %p194
    %s197 = sadd.s32 %s196, 1
    %p200 = scmp.eq.s32.totalorder %s15, 1
    %p201 = scmp.ne.s32.totalorder %s196, %s198
    %p202 = scmp.eq.s32.totalorder %s15, 0
    %p203 = por %p201, %p202
    %p204 = scmp.ne.s32.totalorder %s196, %s198
    %p205 = scmp.eq.s32.totalorder %s20, 1
    %p206 = por %p204, %p205
    %p207 = scmp.ne.s32.totalorder %s198, %s199
    %p208 = scmp.eq.s32.totalorder %s20, 0
    %p209 = por %p207, %p208
    %p210 = scmp.ne.s32.totalorder %s198, %s199
    %p211 = scmp.eq.s32.totalorder %s21, 1
    %p212 = por %p210, %p211
    %p214 = scmp.ne.s32.totalorder %s199, %s213
    %p215 = scmp.eq.s32.totalorder %s21, 0
    %p216 = por %p214, %p215
    %s217 = ssub.s32 %s15, %s22
    %p218 = scmp.eq.s32.totalorder %s217, 0
    %s220 = sadd.s32 %s219, 1
    %s221 = scalar_select %p218, %s219, %s220
    %p224 = pneg %p218
    %p225 = scmp.eq.s32.totalorder %s15, 1
    %p226 = por %p224, %p225
    %p227 = scmp.ne.s32.totalorder %s219, %s222
    %p228 = scmp.eq.s32.totalorder %s15, 0
    %p229 = por %p227, %p228
    %p230 = scmp.ne.s32.totalorder %s219, %s222
    %p231 = scmp.eq.s32.totalorder %s20, 1
    %p232 = por %p230, %p231
    %p233 = scmp.ne.s32.totalorder %s222, %s223
    %p234 = scmp.eq.s32.totalorder %s20, 0
    %p235 = por %p233, %p234
    %p236 = scmp.ne.s32.totalorder %s222, %s223
    %p237 = scmp.eq.s32.totalorder %s21, 1
    %p238 = por %p236, %p237
    %p240 = scmp.ne.s32.totalorder %s223, %s239
    %p241 = scmp.eq.s32.totalorder %s21, 0
    %p242 = por %p240, %p241
    %p243 = scmp.le.s32.totalorder 1, %s15
    %p244 = scmp.lt.s32.totalorder %s15, 3
    %p245 = pnand %p243, %p244
    %p246 = pneg %p245
    // Predicated region
    $region9: #{backbone_forward.1} parent=5 // pred_check
      _
    $region10: #{backbone_forward.1} parent=5 // pred_check_branch
      %248 = sbr.rel (%p245) target = $region12
    $region11: #{backbone_forward.1} parent=5 // pred_region
      %s249 = ssub.s32 %s15, 1
      // Predicated region
      $region13: #{backbone_forward.1} parent=11 // pred_check
        %p250 = pneg %p62
      $region14: #{backbone_forward.1} parent=11 // pred_check_branch
        %252 = sbr.rel (%p250) target = $region16
      $region15: #{backbone_forward.1} parent=11 // pred_region
        _
      $region16: #{backbone_forward.1} parent=11 // pred_fallthru
        _
      // Predicated region
      $region17: #{backbone_forward.1} parent=11 // pred_check
        %p253 = pneg %p83
      $region18: #{backbone_forward.1} parent=11 // pred_check_branch
        %255 = sbr.rel (%p253) target = $region20
      $region19: #{backbone_forward.1} parent=11 // pred_region
        _
      $region20: #{backbone_forward.1} parent=11 // pred_fallthru
        _
      // Predicated region
      $region21: #{backbone_forward.1} parent=11 // pred_check
        %p256 = pneg %p104
      $region22: #{backbone_forward.1} parent=11 // pred_check_branch
        %258 = sbr.rel (%p256) target = $region24
      $region23: #{backbone_forward.1} parent=11 // pred_region
        _
      $region24: #{backbone_forward.1} parent=11 // pred_fallthru
        _
      // Predicated region
      $region25: #{backbone_forward.1} parent=11 // pred_check
        %p259 = pneg %p125
      $region26: #{backbone_forward.1} parent=11 // pred_check_branch
        %261 = sbr.rel (%p259) target = $region28
      $region27: #{backbone_forward.1} parent=11 // pred_region
        _
      $region28: #{backbone_forward.1} parent=11 // pred_fallthru
        _
      // Predicated region
      $region29: #{backbone_forward.1} parent=11 // pred_check
        %p262 = pneg %p146
      $region30: #{backbone_forward.1} parent=11 // pred_check_branch
        %264 = sbr.rel (%p262) target = $region32
      $region31: #{backbone_forward.1} parent=11 // pred_region
        _
      $region32: #{backbone_forward.1} parent=11 // pred_fallthru
        _
      // Predicated region
      $region33: #{backbone_forward.1} parent=11 // pred_check
        %p265 = pneg %p167
      $region34: #{backbone_forward.1} parent=11 // pred_check_branch
        %267 = sbr.rel (%p265) target = $region36
      $region35: #{backbone_forward.1} parent=11 // pred_region
        _
      $region36: #{backbone_forward.1} parent=11 // pred_fallthru
        _
      // Predicated region
      $region37: #{backbone_forward.1} parent=11 // pred_check
        %p268 = pneg %p188
      $region38: #{backbone_forward.1} parent=11 // pred_check_branch
        %270 = sbr.rel (%p268) target = $region40
      $region39: #{backbone_forward.1} parent=11 // pred_region
        _
      $region40: #{backbone_forward.1} parent=11 // pred_fallthru
        _
      // Predicated region
      $region41: #{backbone_forward.1} parent=11 // pred_check
        %p271 = pneg %p209
      $region42: #{backbone_forward.1} parent=11 // pred_check_branch
        %273 = sbr.rel (%p271) target = $region44
      $region43: #{backbone_forward.1} parent=11 // pred_region
        _
      $region44: #{backbone_forward.1} parent=11 // pred_fallthru
        _
    $region12: #{backbone_forward.1} parent=5 // pred_fallthru
      _
    %p274 = scmp.lt.s32.totalorder %s15, 2
    // Predicated region
    $region45: #{backbone_forward.1} parent=5 // pred_check
      %p275 = pneg %p274
    $region46: #{backbone_forward.1} parent=5 // pred_check_branch
      %277 = sbr.rel (%p275) target = $region48
    $region47: #{backbone_forward.1} parent=5 // pred_region
      // Predicated region
      $region49: #{backbone_forward.1} parent=47 // pred_check
        %p278 = pneg %p35
      $region50: #{backbone_forward.1} parent=47 // pred_check_branch
        %280 = sbr.rel (%p278) target = $region52
      $region51: #{backbone_forward.1} parent=47 // pred_region
        %p281 = scmp.lt.s32.totalorder %s15, 1
        %s282 = scalar_select %p281, %s15, 1
        %s283 = smul.addr %s282, 41
        %s284 = smul.addr %s283, 4
        %s285 = scalar_lea.vmem %s0, %s284
      $region52: #{backbone_forward.1} parent=47 // pred_fallthru
        _
    $region48: #{backbone_forward.1} parent=5 // pred_fallthru
      _
    %p286 = scmp.le.s32.totalorder 1, %s15
    %p287 = scmp.lt.s32.totalorder %s15, 3
    %p288 = pnand %p286, %p287
    %p289 = pneg %p288
    // Predicated region
    $region53: #{backbone_forward.1} parent=5 // pred_check
      _
    $region54: #{backbone_forward.1} parent=5 // pred_check_branch
      %291 = sbr.rel (%p288) target = $region56
    $region55: #{backbone_forward.1} parent=5 // pred_region
      %s292 = ssub.s32 %s15, 1
      %p293 = scmp.lt.s32.totalorder %s20, 1
      %s294 = scalar_select %p293, %s20, 1
      %s295 = smul.addr %s294, 41
      %s296 = smul.addr %s295, 4
      %s297 = scalar_lea.vmem %s0, %s296
      %p298 = pneg %p41
      %p299 = pneg %p38
      %p300 = pneg %p62
      %p301 = pneg %p59
      %p302 = pneg %p83
      %p303 = pneg %p80
      %p304 = pneg %p104
      %p305 = pneg %p101
      %p306 = pneg %p125
      %p307 = pneg %p122
      %p308 = pneg %p146
      %p309 = pneg %p143
      %p310 = pneg %p167
      %p311 = pneg %p164
      %p312 = pneg %p188
      %p313 = pneg %p185
      %p314 = pneg %p209
      %p315 = pneg %p206
      %p316 = pneg %p235
      %p317 = pneg %p232
      %p318 = scmp.lt.s32.totalorder %s20, 1
      %s319 = scalar_select %p318, %s20, 1
      %s320 = smul.addr %s319, 2
      %s321 = scalar_lea.vmem %s9, %s320
      %p322 = scmp.lt.s32.totalorder %s20, 1
      %s323 = scalar_select %p322, %s20, 1
      %s324 = smul.addr %s323, 41
      %s325 = smul.addr %s324, 4
      %s326 = scalar_lea.vmem %s0, %s325
      %p327 = scmp.lt.s32.totalorder %s20, 1
      %s328 = scalar_select %p327, %s20, 1
      %s329 = smul.addr %s328, 2
      %s330 = scalar_lea.vmem %s9, %s329
      %vm332 = vcmask 519168
      %333 = vst.msk [vmem:[#allocation2] sm:$0xf] %vm332, 0
      %334 = vst.msk [vmem:[#allocation2 + $0x4] sm:$0xf] %vm332, 0
      %335 = vst.msk [vmem:[#allocation2 + $0x8] sm:$0xf] %vm332, 0
      %336 = vst.msk [vmem:[#allocation2 + $0xc] sm:$0xf] %vm332, 0
      %337 = vst.msk [vmem:[#allocation2 + $0x10] sm:$0xf] %vm332, 0
      %338 = vst.msk [vmem:[#allocation2 + $0x14] sm:$0xf] %vm332, 0
      %339 = vst.msk [vmem:[#allocation2 + $0x18] sm:$0xf] %vm332, 0
      %340 = vst.msk [vmem:[#allocation2 + $0x1c] sm:$0xf] %vm332, 0
      %341 = vst.msk [vmem:[#allocation2 + $0x20] sm:$0xf] %vm332, 0
      %342 = vst.msk [vmem:[#allocation2 + $0x24] sm:$0xf] %vm332, 0
      %343 = vst.msk [vmem:[#allocation2 + $0x28] sm:$0xf] %vm332, 0
      %344 = vst.msk [vmem:[#allocation2 + $0x2c] sm:$0xf] %vm332, 0
      %vm345 = vcmask 518144
      %346 = vst.msk [vmem:[#allocation2 + $0x30] sm:$0x7] %vm345, 0
      %347 = vst.msk [vmem:[#allocation3] sm:$0xf] %vm332, 0
      %348 = vst.msk [vmem:[#allocation3 + $0x4] sm:$0xf] %vm332, 0
      %349 = vst.msk [vmem:[#allocation3 + $0x8] sm:$0xf] %vm332, 0
      %350 = vst.msk [vmem:[#allocation3 + $0xc] sm:$0xf] %vm332, 0
      %351 = vst.msk [vmem:[#allocation3 + $0x10] sm:$0x7] %vm345, 0
      %352 = vst.msk [vmem:[#allocation4] sm:$0xf] %vm332, 0
      %353 = vst.msk [vmem:[#allocation4 + $0x4] sm:$0xf] %vm332, 0
      %vm354 = vcmask 516096
      %355 = vst.msk [vmem:[#allocation4 + $0x8] sm:$0x1] %vm354, 0
      %v356 = vld [vmem:[%s326] sm:$0xf]
      %v357 = vld [vmem:[%s326 + $0x4] sm:$0xf]
      %v358 = vld [vmem:[%s326 + $0x8] sm:$0xf]
      %v359 = vld [vmem:[%s326 + $0xc] sm:$0xf]
      %v360 = vld [vmem:[%s326 + $0x10] sm:$0xf]
      %v361 = vld [vmem:[%s326 + $0x14] sm:$0xf]
      %v362 = vld [vmem:[%s326 + $0x18] sm:$0xf]
      %v363 = vld [vmem:[%s326 + $0x1c] sm:$0xf]
      %v364 = vld [vmem:[%s326 + $0x20] sm:$0xf]
      %v365 = vld [vmem:[%s326 + $0x24] sm:$0xf]
      %v366 = vld [vmem:[%s326 + $0x28] sm:$0xf]
      %v367 = vld [vmem:[%s326 + $0x2c] sm:$0xf]
      %v368 = vld [vmem:[%s326 + $0x30] sm:$0xf]
      %v369 = vld [vmem:[%s326 + $0x34] sm:$0xf]
      %v370 = vld [vmem:[%s326 + $0x38] sm:$0xf]
      %v371 = vld [vmem:[%s326 + $0x3c] sm:$0xf]
      %v372 = vld [vmem:[%s326 + $0x40] sm:$0xf]
      %v373 = vld [vmem:[%s326 + $0x44] sm:$0xf]
      %v374 = vld [vmem:[%s326 + $0x48] sm:$0xf]
      %v375 = vld [vmem:[%s326 + $0x4c] sm:$0xf]
      %v376 = vld [vmem:[%s326 + $0x50] sm:$0xf]
      %v377 = vld [vmem:[%s326 + $0x54] sm:$0xf]
      %v378 = vld [vmem:[%s326 + $0x58] sm:$0xf]
      %v379 = vld [vmem:[%s326 + $0x5c] sm:$0xf]
      %v380 = vld [vmem:[%s326 + $0x60] sm:$0xf]
      %v381 = vld [vmem:[%s326 + $0x64] sm:$0xf]
      %v382 = vld [vmem:[%s326 + $0x68] sm:$0xf]
      %v383 = vld [vmem:[%s326 + $0x6c] sm:$0xf]
      %v384 = vld [vmem:[%s326 + $0x70] sm:$0xf]
      %v385 = vld [vmem:[%s326 + $0x74] sm:$0xf]
      %v386 = vld [vmem:[%s326 + $0x78] sm:$0xf]
      %v387 = vld [vmem:[%s326 + $0x7c] sm:$0xf]
      %v388 = vld [vmem:[%s326 + $0x80] sm:$0xf]
      %v389 = vld [vmem:[%s326 + $0x84] sm:$0xf]
      %v390 = vld [vmem:[%s326 + $0x88] sm:$0xf]
      %v391 = vld [vmem:[%s326 + $0x8c] sm:$0xf]
      %v392 = vld [vmem:[%s1] sm:$0x3]
      %v393 = vld [vmem:[%s326 + $0x90] sm:$0x1]
      %s394 = scalar_lea.vmem %s1, 2
      %v395 = vld [vmem:[%s394] sm:$0x3]
      %v433 = vunpack.c.l.b16 %v356
      %v434 = vunpack.c.l.b16 %v357
      %v435 = vunpack.c.l.b16 %v358
      %v436 = vunpack.c.l.b16 %v359
      %v437 = vunpack.c.l.b16 %v360
      %v438 = vunpack.c.l.b16 %v361
      %v439 = vunpack.c.l.b16 %v362
      %v440 = vunpack.c.l.b16 %v363
      %v441 = vunpack.c.l.b16 %v364
      %v442 = vunpack.c.l.b16 %v365
      %v443 = vunpack.c.l.b16 %v366
      %v444 = vunpack.c.l.b16 %v367
      %v445 = vunpack.c.l.b16 %v368
      %v446 = vunpack.c.l.b16 %v369
      %v447 = vunpack.c.l.b16 %v370
      %v448 = vunpack.c.l.b16 %v371
      %v449 = vunpack.c.l.b16 %v372
      %v450 = vunpack.c.l.b16 %v373
      %v451 = vunpack.c.l.b16 %v374
      %v452 = vunpack.c.l.b16 %v375
      %v453 = vunpack.c.l.b16 %v376
      %v454 = vunpack.c.l.b16 %v377
      %v455 = vunpack.c.l.b16 %v378
      %v456 = vunpack.c.l.b16 %v379
      %v457 = vunpack.c.l.b16 %v380
      %v458 = vunpack.c.l.b16 %v381
      %v459 = vunpack.c.l.b16 %v382
      %v460 = vunpack.c.l.b16 %v383
      %v461 = vunpack.c.l.b16 %v384
      %v462 = vunpack.c.l.b16 %v385
      %v463 = vunpack.c.l.b16 %v386
      %v464 = vunpack.c.l.b16 %v387
      %v465 = vunpack.c.l.b16 %v388
      %v466 = vunpack.c.l.b16 %v389
      %v467 = vunpack.c.l.b16 %v390
      %v468 = vunpack.c.l.b16 %v391
      %v469 = vunpack.c.l.b16 %v393
      %v470 = vpack.c.b16 %v434, %v433
      %v471 = vpack.c.b16 %v436, %v435
      %v472 = vpack.c.b16 %v438, %v437
      %v473 = vpack.c.b16 %v440, %v439
      %v474 = vpack.c.b16 %v442, %v441
      %v475 = vpack.c.b16 %v444, %v443
      %v476 = vpack.c.b16 %v446, %v445
      %v477 = vpack.c.b16 %v448, %v447
      %v478 = vpack.c.b16 %v450, %v449
      %v479 = vpack.c.b16 %v452, %v451
      %v480 = vpack.c.b16 %v454, %v453
      %v481 = vpack.c.b16 %v456, %v455
      %v482 = vpack.c.b16 %v458, %v457
      %v483 = vpack.c.b16 %v460, %v459
      %v484 = vpack.c.b16 %v462, %v461
      %v485 = vpack.c.b16 %v464, %v463
      %v486 = vpack.c.b16 %v466, %v465
      %v487 = vpack.c.b16 %v468, %v467
      %v488 = vpack.c.b16 %v469, %v469
      %vm489 = vsmask.f32 7424
      %v491 = vshrl.u32 %v470, 16
      %v493 = vshll.u32 %v470, 16
      %v495 = vrot.slane %v493, 1
      %v496 = vor.u32 %v491, %v495
      %v498 = vshll.u32 %v471, 16
      %v500 = vrot.slane %v498, 1
      %v501 = vsel %vm489, %v496, %v500
      %v502 = vshrl.u32 %v471, 16
      %v504 = vor.u32 %v502, %v500
      %v506 = vshll.u32 %v472, 16
      %v508 = vrot.slane %v506, 1
      %v509 = vsel %vm489, %v504, %v508
      %v510 = vshrl.u32 %v472, 16
      %v512 = vor.u32 %v510, %v508
      %v514 = vshll.u32 %v473, 16
      %v516 = vrot.slane %v514, 1
      %v517 = vsel %vm489, %v512, %v516
      %v518 = vshrl.u32 %v473, 16
      %v520 = vor.u32 %v518, %v516
      %v522 = vshll.u32 %v474, 16
      %v524 = vrot.slane %v522, 1
      %v525 = vsel %vm489, %v520, %v524
      %v526 = vshrl.u32 %v474, 16
      %v528 = vor.u32 %v526, %v524
      %v530 = vshll.u32 %v475, 16
      %v532 = vrot.slane %v530, 1
      %v533 = vsel %vm489, %v528, %v532
      %v534 = vshrl.u32 %v475, 16
      %v536 = vor.u32 %v534, %v532
      %v538 = vshll.u32 %v476, 16
      %v540 = vrot.slane %v538, 1
      %v541 = vsel %vm489, %v536, %v540
      %v542 = vshrl.u32 %v476, 16
      %v544 = vor.u32 %v542, %v540
      %v546 = vshll.u32 %v477, 16
      %v548 = vrot.slane %v546, 1
      %v549 = vsel %vm489, %v544, %v548
      %v550 = vshrl.u32 %v477, 16
      %v552 = vor.u32 %v550, %v548
      %v554 = vshll.u32 %v478, 16
      %v556 = vrot.slane %v554, 1
      %v557 = vsel %vm489, %v552, %v556
      %v558 = vshrl.u32 %v478, 16
      %v560 = vor.u32 %v558, %v556
      %v562 = vshll.u32 %v479, 16
      %v564 = vrot.slane %v562, 1
      %v565 = vsel %vm489, %v560, %v564
      %v566 = vshrl.u32 %v479, 16
      %v568 = vor.u32 %v566, %v564
      %v570 = vshll.u32 %v480, 16
      %v572 = vrot.slane %v570, 1
      %v573 = vsel %vm489, %v568, %v572
      %v574 = vshrl.u32 %v480, 16
      %v576 = vor.u32 %v574, %v572
      %v578 = vshll.u32 %v481, 16
      %v580 = vrot.slane %v578, 1
      %v581 = vsel %vm489, %v576, %v580
      %v582 = vshrl.u32 %v481, 16
      %v584 = vor.u32 %v582, %v580
      %v586 = vshll.u32 %v482, 16
      %v588 = vrot.slane %v586, 1
      %v589 = vsel %vm489, %v584, %v588
      %v590 = vshrl.u32 %v482, 16
      %v592 = vor.u32 %v590, %v588
      %v594 = vshll.u32 %v483, 16
      %v596 = vrot.slane %v594, 1
      %v597 = vsel %vm489, %v592, %v596
      %v598 = vshrl.u32 %v483, 16
      %v600 = vor.u32 %v598, %v596
      %v602 = vshll.u32 %v484, 16
      %v604 = vrot.slane %v602, 1
      %v605 = vsel %vm489, %v600, %v604
      %v606 = vshrl.u32 %v484, 16
      %v608 = vor.u32 %v606, %v604
      %v610 = vshll.u32 %v485, 16
      %v612 = vrot.slane %v610, 1
      %v613 = vsel %vm489, %v608, %v612
      %v614 = vshrl.u32 %v485, 16
      %v616 = vor.u32 %v614, %v612
      %v618 = vshll.u32 %v486, 16
      %v620 = vrot.slane %v618, 1
      %v621 = vsel %vm489, %v616, %v620
      %v622 = vshrl.u32 %v486, 16
      %v624 = vor.u32 %v622, %v620
      %v626 = vshll.u32 %v487, 16
      %v628 = vrot.slane %v626, 1
      %v629 = vsel %vm489, %v624, %v628
      %v630 = vshrl.u32 %v487, 16
      %v632 = vor.u32 %v630, %v628
      %v634 = vshll.u32 %v488, 16
      %v636 = vrot.slane %v634, 1
      %v637 = vsel %vm489, %v632, %v636
      %vm638 = vcmask 23552
      %v640 = vsel %vm638, %v501, 0
      %v643 = vsel %vm638, %v509, 0
      %v646 = vsel %vm638, %v517, 0
      %v649 = vsel %vm638, %v525, 0
      %v652 = vsel %vm638, %v533, 0
      %v655 = vsel %vm638, %v541, 0
      %v658 = vsel %vm638, %v549, 0
      %v661 = vsel %vm638, %v557, 0
      %v664 = vsel %vm638, %v565, 0
      %v667 = vsel %vm638, %v573, 0
      %v670 = vsel %vm638, %v581, 0
      %v673 = vsel %vm638, %v589, 0
      %v676 = vsel %vm638, %v597, 0
      %v679 = vsel %vm638, %v605, 0
      %v682 = vsel %vm638, %v613, 0
      %v685 = vsel %vm638, %v621, 0
      %v688 = vsel %vm638, %v629, 0
      %v691 = vsel %vm638, %v637, 0
      %vm693 = vcmask 1040384
      %vm694 = vcmask 1041408
      %v695 = vsel %vm693, 4294967295, 65535
      %v696 = vsel %vm694, %v695, 0
      %v698 = vand.u32 %v395, %v696
      %700 = vmatprep.subr.bf16.mxu0 0
      %701 = vmatpush1.bf16.msra.mxu0 %v698
      %702 = vmatprep.subr.bf16.mxu0 0
      %703 = vmatpush1.bf16.msra.mxu0 0
      %704 = vmatprep.subr.bf16.mxu0 0
      %705 = vmatpush1.bf16.msra.mxu0 0
      %706 = vmatprep.subr.bf16.mxu0 0
      %707 = vmatpush1.bf16.msra.mxu0 0
      %708 = vmatprep.subr.bf16.mxu0 0
      %709 = vmatpush1.bf16.msra.mxu0 0
      %710 = vmatprep.subr.bf16.mxu0 0
      %711 = vmatpush1.bf16.msra.mxu0 0
      %712 = vmatprep.subr.bf16.mxu0 0
      %713 = vmatpush1.bf16.msra.mxu0 0
      %714 = vmatprep.subr.bf16.mxu0 0
      %715 = vmatpush1.bf16.msra.mxu0 0
      %716 = vmatprep.subr.bf16.mxu0 0
      %717 = vmatpush1.bf16.msra.mxu0 0
      %718 = vmatprep.subr.bf16.mxu0 0
      %719 = vmatpush1.bf16.msra.mxu0 0
      %720 = vmatprep.subr.bf16.mxu0 0
      %721 = vmatpush1.bf16.msra.mxu0 0
      %722 = vmatprep.subr.bf16.mxu0 0
      %723 = vmatpush1.bf16.msra.mxu0 0
      %724 = vmatprep.subr.bf16.mxu0 0
      %725 = vmatpush1.bf16.msra.mxu0 0
      %726 = vmatprep.subr.bf16.mxu0 0
      %727 = vmatpush1.bf16.msra.mxu0 0
      %728 = vmatprep.subr.bf16.mxu0 0
      %729 = vmatpush1.bf16.msra.mxu0 0
      %730 = vmatprep.subr.bf16.mxu0 0
      %731 = vmatpush1.bf16.msra.mxu0 0
      %732 = vmatprep.mubr.bf16.mxu0 0
      %733 = vmatmul.mubr.bf16.gmra.mrb[0].mxu0 %v640
      %v734 = vpop.f32.mrb[0].mxu0
      %v735 = vadd.f32 0.0, %v734
      %v736 = vpop.f32.mrb[0].mxu0
      %v737 = vpop.f32.mrb[0].mxu0
      %v738 = vadd.f32 0.0, %v737
      %v739 = vpop.f32.mrb[0].mxu0
      %740 = vmatprep.mubr.bf16.mxu0 0
      %741 = vmatmul.mubr.bf16.gmra.mrb[0].mxu0 %v643
      %v742 = vpop.f32.mrb[0].mxu0
      %v743 = vadd.f32 0.0, %v742
      %v744 = vpop.f32.mrb[0].mxu0
      %v745 = vpop.f32.mrb[0].mxu0
      %v746 = vadd.f32 0.0, %v745
      %v747 = vpop.f32.mrb[0].mxu0
      %748 = vmatprep.mubr.bf16.mxu0 0
      %749 = vmatmul.mubr.bf16.gmra.mrb[0].mxu0 %v646
      %v750 = vpop.f32.mrb[0].mxu0
      %v751 = vadd.f32 0.0, %v750
      %v752 = vpop.f32.mrb[0].mxu0
      %v753 = vpop.f32.mrb[0].mxu0
      %v754 = vadd.f32 0.0, %v753
      %v755 = vpop.f32.mrb[0].mxu0
      %756 = vmatprep.mubr.bf16.mxu0 0
      %757 = vmatmul.mubr.bf16.gmra.mrb[0].mxu0 %v649
      %v758 = vpop.f32.mrb[0].mxu0
      %v759 = vadd.f32 0.0, %v758
      %v760 = vpop.f32.mrb[0].mxu0
      %v761 = vpop.f32.mrb[0].mxu0
      %v762 = vadd.f32 0.0, %v761
      %v763 = vpop.f32.mrb[0].mxu0
      %764 = vmatprep.mubr.bf16.mxu0 0
      %765 = vmatmul.mubr.bf16.gmra.mrb[0].mxu0 %v652
      %v766 = vpop.f32.mrb[0].mxu0
      %v767 = vadd.f32 0.0, %v766
      %v768 = vpop.f32.mrb[0].mxu0
      %v769 = vpop.f32.mrb[0].mxu0
      %v770 = vadd.f32 0.0, %v769
      %v771 = vpop.f32.mrb[0].mxu0
      %772 = vmatprep.mubr.bf16.mxu0 0
      %773 = vmatmul.mubr.bf16.gmra.mrb[0].mxu0 %v655
      %v774 = vpop.f32.mrb[0].mxu0
      %v775 = vadd.f32 0.0, %v774
      %v776 = vpop.f32.mrb[0].mxu0
      %v777 = vpop.f32.mrb[0].mxu0
      %v778 = vadd.f32 0.0, %v777
      %v779 = vpop.f32.mrb[0].mxu0
      %780 = vmatprep.mubr.bf16.mxu0 0
      %781 = vmatmul.mubr.bf16.gmra.mrb[0].mxu0 %v658
      %v782 = vpop.f32.mrb[0].mxu0
      %v783 = vadd.f32 0.0, %v782
      %v784 = vpop.f32.mrb[0].mxu0
      %v785 = vpop.f32.mrb[0].mxu0
      %v786 = vadd.f32 0.0, %v785
      %v787 = vpop.f32.mrb[0].mxu0
      %788 = vmatprep.mubr.bf16.mxu0 0
      %789 = vmatmul.mubr.bf16.gmra.mrb[0].mxu0 %v661
      %v790 = vpop.f32.mrb[0].mxu0
      %v791 = vadd.f32 0.0, %v790
      %v792 = vpop.f32.mrb[0].mxu0
      %v793 = vpop.f32.mrb[0].mxu0
      %v794 = vadd.f32 0.0, %v793
      %v795 = vpop.f32.mrb[0].mxu0
      %796 = vmatprep.mubr.bf16.mxu0 0
      %797 = vmatmul.mubr.bf16.gmra.mrb[0].mxu0 %v664
      %v798 = vpop.f32.mrb[0].mxu0
      %v799 = vadd.f32 0.0, %v798
      %v800 = vpop.f32.mrb[0].mxu0
      %v801 = vpop.f32.mrb[0].mxu0
      %v802 = vadd.f32 0.0, %v801
      %v803 = vpop.f32.mrb[0].mxu0
      %804 = vmatprep.mubr.bf16.mxu0 0
      %805 = vmatmul.mubr.bf16.gmra.mrb[0].mxu0 %v667
      %v806 = vpop.f32.mrb[0].mxu0
      %v807 = vadd.f32 0.0, %v806
      %v808 = vpop.f32.mrb[0].mxu0
      %v809 = vpop.f32.mrb[0].mxu0
      %v810 = vadd.f32 0.0, %v809
      %v811 = vpop.f32.mrb[0].mxu0
      %812 = vmatprep.mubr.bf16.mxu0 0
      %813 = vmatmul.mubr.bf16.gmra.mrb[0].mxu0 %v670
      %v814 = vpop.f32.mrb[0].mxu0
      %v815 = vadd.f32 0.0, %v814
      %v816 = vpop.f32.mrb[0].mxu0
      %v817 = vpop.f32.mrb[0].mxu0
      %v818 = vadd.f32 0.0, %v817
      %v819 = vpop.f32.mrb[0].mxu0
      %820 = vmatprep.mubr.bf16.mxu0 0
      %821 = vmatmul.mubr.bf16.gmra.mrb[0].mxu0 %v673
      %v822 = vpop.f32.mrb[0].mxu0
      %v823 = vadd.f32 0.0, %v822
      %v824 = vpop.f32.mrb[0].mxu0
      %v825 = vpop.f32.mrb[0].mxu0
      %v826 = vadd.f32 0.0, %v825
      %v827 = vpop.f32.mrb[0].mxu0
      %828 = vmatprep.mubr.bf16.mxu0 0
      %829 = vmatmul.mubr.bf16.gmra.mrb[0].mxu0 %v676
      %v830 = vpop.f32.mrb[0].mxu0
      %v831 = vadd.f32 0.0, %v830
      %v832 = vpop.f32.mrb[0].mxu0
      %v833 = vpop.f32.mrb[0].mxu0
      %v834 = vadd.f32 0.0, %v833
      %v835 = vpop.f32.mrb[0].mxu0
      %836 = vmatprep.mubr.bf16.mxu0 0
      %837 = vmatmul.mubr.bf16.gmra.mrb[0].mxu0 %v679
      %v838 = vpop.f32.mrb[0].mxu0
      %v839 = vadd.f32 0.0, %v838
      %v840 = vpop.f32.mrb[0].mxu0
      %v841 = vpop.f32.mrb[0].mxu0
      %v842 = vadd.f32 0.0, %v841
      %v843 = vpop.f32.mrb[0].mxu0
      %844 = vmatprep.mubr.bf16.mxu0 0
      %845 = vmatmul.mubr.bf16.gmra.mrb[0].mxu0 %v682
      %v846 = vpop.f32.mrb[0].mxu0
      %v847 = vadd.f32 0.0, %v846
      %v848 = vpop.f32.mrb[0].mxu0
      %v849 = vpop.f32.mrb[0].mxu0
      %v850 = vadd.f32 0.0, %v849
      %v851 = vpop.f32.mrb[0].mxu0
      %852 = vmatprep.mubr.bf16.mxu0 0
      %853 = vmatmul.mubr.bf16.gmra.mrb[0].mxu0 %v685
      %v854 = vpop.f32.mrb[0].mxu0
      %v855 = vadd.f32 0.0, %v854
      %v856 = vpop.f32.mrb[0].mxu0
      %v857 = vpop.f32.mrb[0].mxu0
      %v858 = vadd.f32 0.0, %v857
      %v859 = vpop.f32.mrb[0].mxu0
      %860 = vmatprep.mubr.bf16.mxu0 0
      %861 = vmatmul.mubr.bf16.gmra.mrb[0].mxu0 %v688
      %v862 = vpop.f32.mrb[0].mxu0
      %v863 = vadd.f32 0.0, %v862
      %v864 = vpop.f32.mrb[0].mxu0
      %v865 = vpop.f32.mrb[0].mxu0
      %v866 = vadd.f32 0.0, %v865
      %v867 = vpop.f32.mrb[0].mxu0
      %868 = vmatprep.mubr.bf16.mxu0 0
      %869 = vmatmul.mubr.bf16.gmra.mrb[0].mxu0 %v691
      %v870 = vpop.f32.mrb[0].mxu0
      %v871 = vadd.f32 0.0, %v870
      %v872 = vpop.f32.mrb[0].mxu0
      %v873 = vpop.f32.mrb[0].mxu0
      %v874 = vadd.f32 0.0, %v873
      %v875 = vpop.f32.mrb[0].mxu0
      %876 = vdwg.mxu0
      %v877 = vsel %vm638, %v470, 0
      %v879 = vsel %vm638, %v471, 0
      %v881 = vsel %vm638, %v472, 0
      %v883 = vsel %vm638, %v473, 0
      %v885 = vsel %vm638, %v474, 0
      %v887 = vsel %vm638, %v475, 0
      %v889 = vsel %vm638, %v476, 0
      %v891 = vsel %vm638, %v477, 0
      %v893 = vsel %vm638, %v478, 0
      %v895 = vsel %vm638, %v479, 0
      %v897 = vsel %vm638, %v480, 0
      %v899 = vsel %vm638, %v481, 0
      %v901 = vsel %vm638, %v482, 0
      %v903 = vsel %vm638, %v483, 0
      %v905 = vsel %vm638, %v484, 0
      %v907 = vsel %vm638, %v485, 0
      %v909 = vsel %vm638, %v486, 0
      %v911 = vsel %vm638, %v487, 0
      %v914 = vand.u32 %v392, %v696
      %916 = vmatprep.subr.bf16.mxu0 0
      %917 = vmatpush1.bf16.msra.mxu0 %v914
      %918 = vmatprep.subr.bf16.mxu0 0
      %919 = vmatpush1.bf16.msra.mxu0 0
      %920 = vmatprep.subr.bf16.mxu0 0
      %921 = vmatpush1.bf16.msra.mxu0 0
      %922 = vmatprep.subr.bf16.mxu0 0
      %923 = vmatpush1.bf16.msra.mxu0 0
      %924 = vmatprep.subr.bf16.mxu0 0
      %925 = vmatpush1.bf16.msra.mxu0 0
      %926 = vmatprep.subr.bf16.mxu0 0
      %927 = vmatpush1.bf16.msra.mxu0 0
      %928 = vmatprep.subr.bf16.mxu0 0
      %929 = vmatpush1.bf16.msra.mxu0 0
      %930 = vmatprep.subr.bf16.mxu0 0
      %931 = vmatpush1.bf16.msra.mxu0 0
      %932 = vmatprep.subr.bf16.mxu0 0
      %933 = vmatpush1.bf16.msra.mxu0 0
      %934 = vmatprep.subr.bf16.mxu0 0
      %935 = vmatpush1.bf16.msra.mxu0 0
      %936 = vmatprep.subr.bf16.mxu0 0
      %937 = vmatpush1.bf16.msra.mxu0 0
      %938 = vmatprep.subr.bf16.mxu0 0
      %939 = vmatpush1.bf16.msra.mxu0 0
      %940 = vmatprep.subr.bf16.mxu0 0
      %941 = vmatpush1.bf16.msra.mxu0 0
      %942 = vmatprep.subr.bf16.mxu0 0
      %943 = vmatpush1.bf16.msra.mxu0 0
      %944 = vmatprep.subr.bf16.mxu0 0
      %945 = vmatpush1.bf16.msra.mxu0 0
      %946 = vmatprep.subr.bf16.mxu0 0
      %947 = vmatpush1.bf16.msra.mxu0 0
      %948 = vmatprep.mubr.bf16.mxu0 0
      %949 = vmatmul.mubr.bf16.gmra.mrb[0].mxu0 %v877
      %v950 = vpop.f32.mrb[0].mxu0
      %v951 = vadd.f32 %v735, %v950
      %v952 = vpop.f32.mrb[0].mxu0
      %v953 = vpop.f32.mrb[0].mxu0
      %v954 = vadd.f32 %v738, %v953
      %v955 = vpop.f32.mrb[0].mxu0
      %956 = vmatprep.mubr.bf16.mxu0 0
      %957 = vmatmul.mubr.bf16.gmra.mrb[0].mxu0 %v879
      %v958 = vpop.f32.mrb[0].mxu0
      %v959 = vadd.f32 %v743, %v958
      %v960 = vpop.f32.mrb[0].mxu0
      %v961 = vpop.f32.mrb[0].mxu0
      %v962 = vadd.f32 %v746, %v961
      %v963 = vpop.f32.mrb[0].mxu0
      %964 = vmatprep.mubr.bf16.mxu0 0
      %965 = vmatmul.mubr.bf16.gmra.mrb[0].mxu0 %v881
      %v966 = vpop.f32.mrb[0].mxu0
      %v967 = vadd.f32 %v751, %v966
      %v968 = vpop.f32.mrb[0].mxu0
      %v969 = vpop.f32.mrb[0].mxu0
      %v970 = vadd.f32 %v754, %v969
      %v971 = vpop.f32.mrb[0].mxu0
      %972 = vmatprep.mubr.bf16.mxu0 0
      %973 = vmatmul.mubr.bf16.gmra.mrb[0].mxu0 %v883
      %v974 = vpop.f32.mrb[0].mxu0
      %v975 = vadd.f32 %v759, %v974
      %v976 = vpop.f32.mrb[0].mxu0
      %v977 = vpop.f32.mrb[0].mxu0
      %v978 = vadd.f32 %v762, %v977
      %v979 = vpop.f32.mrb[0].mxu0
      %980 = vmatprep.mubr.bf16.mxu0 0
      %981 = vmatmul.mubr.bf16.gmra.mrb[0].mxu0 %v885
      %v982 = vpop.f32.mrb[0].mxu0
      %v983 = vadd.f32 %v767, %v982
      %v984 = vpop.f32.mrb[0].mxu0
      %v985 = vpop.f32.mrb[0].mxu0
      %v986 = vadd.f32 %v770, %v985
      %v987 = vpop.f32.mrb[0].mxu0
      %988 = vmatprep.mubr.bf16.mxu0 0
      %989 = vmatmul.mubr.bf16.gmra.mrb[0].mxu0 %v887
      %v990 = vpop.f32.mrb[0].mxu0
      %v991 = vadd.f32 %v775, %v990
      %v992 = vpop.f32.mrb[0].mxu0
      %v993 = vpop.f32.mrb[0].mxu0
      %v994 = vadd.f32 %v778, %v993
      %v995 = vpop.f32.mrb[0].mxu0
      %996 = vmatprep.mubr.bf16.mxu0 0
      %997 = vmatmul.mubr.bf16.gmra.mrb[0].mxu0 %v889
      %v998 = vpop.f32.mrb[0].mxu0
      %v999 = vadd.f32 %v783, %v998
      %v1000 = vpop.f32.mrb[0].mxu0
      %v1001 = vpop.f32.mrb[0].mxu0
      %v1002 = vadd.f32 %v786, %v1001
      %v1003 = vpop.f32.mrb[0].mxu0
      %1004 = vmatprep.mubr.bf16.mxu0 0
      %1005 = vmatmul.mubr.bf16.gmra.mrb[0].mxu0 %v891
      %v1006 = vpop.f32.mrb[0].mxu0
      %v1007 = vadd.f32 %v791, %v1006
      %v1008 = vpop.f32.mrb[0].mxu0
      %v1009 = vpop.f32.mrb[0].mxu0
      %v1010 = vadd.f32 %v794, %v1009
      %v1011 = vpop.f32.mrb[0].mxu0
      %1012 = vmatprep.mubr.bf16.mxu0 0
      %1013 = vmatmul.mubr.bf16.gmra.mrb[0].mxu0 %v893
      %v1014 = vpop.f32.mrb[0].mxu0
      %v1015 = vadd.f32 %v799, %v1014
      %v1016 = vpop.f32.mrb[0].mxu0
      %v1017 = vpop.f32.mrb[0].mxu0
      %v1018 = vadd.f32 %v802, %v1017
      %v1019 = vpop.f32.mrb[0].mxu0
      %1020 = vmatprep.mubr.bf16.mxu0 0
      %1021 = vmatmul.mubr.bf16.gmra.mrb[0].mxu0 %v895
      %v1022 = vpop.f32.mrb[0].mxu0
      %v1023 = vadd.f32 %v807, %v1022
      %v1024 = vpop.f32.mrb[0].mxu0
      %v1025 = vpop.f32.mrb[0].mxu0
      %v1026 = vadd.f32 %v810, %v1025
      %v1027 = vpop.f32.mrb[0].mxu0
      %1028 = vmatprep.mubr.bf16.mxu0 0
      %1029 = vmatmul.mubr.bf16.gmra.mrb[0].mxu0 %v897
      %v1030 = vpop.f32.mrb[0].mxu0
      %v1031 = vadd.f32 %v815, %v1030
      %v1032 = vpop.f32.mrb[0].mxu0
      %v1033 = vpop.f32.mrb[0].mxu0
      %v1034 = vadd.f32 %v818, %v1033
      %v1035 = vpop.f32.mrb[0].mxu0
      %1036 = vmatprep.mubr.bf16.mxu0 0
      %1037 = vmatmul.mubr.bf16.gmra.mrb[0].mxu0 %v899
      %v1038 = vpop.f32.mrb[0].mxu0
      %v1039 = vadd.f32 %v823, %v1038
      %v1040 = vpop.f32.mrb[0].mxu0
      %v1041 = vpop.f32.mrb[0].mxu0
      %v1042 = vadd.f32 %v826, %v1041
      %v1043 = vpop.f32.mrb[0].mxu0
      %1044 = vmatprep.mubr.bf16.mxu0 0
      %1045 = vmatmul.mubr.bf16.gmra.mrb[0].mxu0 %v901
      %v1046 = vpop.f32.mrb[0].mxu0
      %v1047 = vadd.f32 %v831, %v1046
      %v1048 = vpop.f32.mrb[0].mxu0
      %v1049 = vpop.f32.mrb[0].mxu0
      %v1050 = vadd.f32 %v834, %v1049
      %v1051 = vpop.f32.mrb[0].mxu0
      %1052 = vmatprep.mubr.bf16.mxu0 0
      %1053 = vmatmul.mubr.bf16.gmra.mrb[0].mxu0 %v903
      %v1054 = vpop.f32.mrb[0].mxu0
      %v1055 = vadd.f32 %v839, %v1054
      %v1056 = vpop.f32.mrb[0].mxu0
      %v1057 = vpop.f32.mrb[0].mxu0
      %v1058 = vadd.f32 %v842, %v1057
      %v1059 = vpop.f32.mrb[0].mxu0
      %1060 = vmatprep.mubr.bf16.mxu0 0
      %1061 = vmatmul.mubr.bf16.gmra.mrb[0].mxu0 %v905
      %v1062 = vpop.f32.mrb[0].mxu0
      %v1063 = vadd.f32 %v847, %v1062
      %v1064 = vpop.f32.mrb[0].mxu0
      %v1065 = vpop.f32.mrb[0].mxu0
      %v1066 = vadd.f32 %v850, %v1065
      %v1067 = vpop.f32.mrb[0].mxu0
      %1068 = vmatprep.mubr.bf16.mxu0 0
      %1069 = vmatmul.mubr.bf16.gmra.mrb[0].mxu0 %v907
      %v1070 = vpop.f32.mrb[0].mxu0
      %v1071 = vadd.f32 %v855, %v1070
      %v1072 = vpop.f32.mrb[0].mxu0
      %v1073 = vpop.f32.mrb[0].mxu0
      %v1074 = vadd.f32 %v858, %v1073
      %v1075 = vpop.f32.mrb[0].mxu0
      %1076 = vmatprep.mubr.bf16.mxu0 0
      %1077 = vmatmul.mubr.bf16.gmra.mrb[0].mxu0 %v909
      %v1078 = vpop.f32.mrb[0].mxu0
      %v1079 = vadd.f32 %v863, %v1078
      %v1080 = vpop.f32.mrb[0].mxu0
      %v1081 = vpop.f32.mrb[0].mxu0
      %v1082 = vadd.f32 %v866, %v1081
      %v1083 = vpop.f32.mrb[0].mxu0
      %1084 = vmatprep.mubr.bf16.mxu0 0
      %1085 = vmatmul.mubr.bf16.gmra.mrb[0].mxu0 %v911
      %v1086 = vpop.f32.mrb[0].mxu0
      %v1087 = vadd.f32 %v871, %v1086
      %v1088 = vpop.f32.mrb[0].mxu0
      %v1089 = vpop.f32.mrb[0].mxu0
      %v1090 = vadd.f32 %v874, %v1089
      %v1091 = vpop.f32.mrb[0].mxu0
      %1092 = vdwg.mxu0
      %v1093 = vld [vmem:[%s326] sm:$0xe]
      %s1094 = scalar_lea.vmem %s1, 4
      %v1095 = vld [vmem:[%s1094] sm:$0x3]
      %v1097 = vunpack.c.l.b16 %v1093
      %v1098 = vpack.c.b16 %v434, %v1097
      %vm1099 = vcmask 1046528
      %v1100 = vrot.slane %v1098, 1
      %v1101 = vrot.slane %v471, 1
      %v1102 = vsel %vm1099, %v1100, %v1101
      %v1103 = vrot.slane %v472, 1
      %v1104 = vsel %vm1099, %v1101, %v1103
      %v1105 = vrot.slane %v473, 1
      %v1106 = vsel %vm1099, %v1103, %v1105
      %v1107 = vrot.slane %v474, 1
      %v1108 = vsel %vm1099, %v1105, %v1107
      %v1109 = vrot.slane %v475, 1
      %v1110 = vsel %vm1099, %v1107, %v1109
      %v1111 = vrot.slane %v476, 1
      %v1112 = vsel %vm1099, %v1109, %v1111
      %v1113 = vrot.slane %v477, 1
      %v1114 = vsel %vm1099, %v1111, %v1113
      %v1115 = vrot.slane %v478, 1
      %v1116 = vsel %vm1099, %v1113, %v1115
      %v1117 = vrot.slane %v479, 1
      %v1118 = vsel %vm1099, %v1115, %v1117
      %v1119 = vrot.slane %v480, 1
      %v1120 = vsel %vm1099, %v1117, %v1119
      %v1121 = vrot.slane %v481, 1
      %v1122 = vsel %vm1099, %v1119, %v1121
      %v1123 = vrot.slane %v482, 1
      %v1124 = vsel %vm1099, %v1121, %v1123
      %v1125 = vrot.slane %v483, 1
      %v1126 = vsel %vm1099, %v1123, %v1125
      %v1127 = vrot.slane %v484, 1
      %v1128 = vsel %vm1099, %v1125, %v1127
      %v1129 = vrot.slane %v485, 1
      %v1130 = vsel %vm1099, %v1127, %v1129
      %v1131 = vrot.slane %v486, 1
      %v1132 = vsel %vm1099, %v1129, %v1131
      %v1133 = vrot.slane %v487, 1
      %v1134 = vsel %vm1099, %v1131, %v1133
      %v1135 = vrot.slane %v488, 1
      %v1136 = vsel %vm1099, %v1133, %v1135
      %v1138 = vsel %vm638, %v1102, 0
      %v1141 = vsel %vm638, %v1104, 0
      %v1144 = vsel %vm638, %v1106, 0
      %v1147 = vsel %vm638, %v1108, 0
      %v1150 = vsel %vm638, %v1110, 0
      %v1153 = vsel %vm638, %v1112, 0
      %v1156 = vsel %vm638, %v1114, 0
      %v1159 = vsel %vm638, %v1116, 0
      %v1162 = vsel %vm638, %v1118, 0
      %v1165 = vsel %vm638, %v1120, 0
      %v1168 = vsel %vm638, %v1122, 0
      %v1171 = vsel %vm638, %v1124, 0
      %v1174 = vsel %vm638, %v1126, 0
      %v1177 = vsel %vm638, %v1128, 0
      %v1180 = vsel %vm638, %v1130, 0
      %v1183 = vsel %vm638, %v1132, 0
      %v1186 = vsel %vm638, %v1134, 0
      %v1189 = vsel %vm638, %v1136, 0
      %v1192 = vand.u32 %v1095, %v696
      %1194 = vmatprep.subr.bf16.mxu0 0
      %1195 = vmatpush1.bf16.msra.mxu0 %v1192
      %1196 = vmatprep.subr.bf16.mxu0 0
      %1197 = vmatpush1.bf16.msra.mxu0 0
      %1198 = vmatprep.subr.bf16.mxu0 0
      %1199 = vmatpush1.bf16.msra.mxu0 0
      %1200 = vmatprep.subr.bf16.mxu0 0
      %1201 = vmatpush1.bf16.msra.mxu0 0
      %1202 = vmatprep.subr.bf16.mxu0 0
      %1203 = vmatpush1.bf16.msra.mxu0 0
      %1204 = vmatprep.subr.bf16.mxu0 0
      %1205 = vmatpush1.bf16.msra.mxu0 0
      %1206 = vmatprep.subr.bf16.mxu0 0
      %1207 = vmatpush1.bf16.msra.mxu0 0
      %1208 = vmatprep.subr.bf16.mxu0 0
      %1209 = vmatpush1.bf16.msra.mxu0 0
      %1210 = vmatprep.subr.bf16.mxu0 0
      %1211 = vmatpush1.bf16.msra.mxu0 0
      %1212 = vmatprep.subr.bf16.mxu0 0
      %1213 = vmatpush1.bf16.msra.mxu0 0
      %1214 = vmatprep.subr.bf16.mxu0 0
      %1215 = vmatpush1.bf16.msra.mxu0 0
      %1216 = vmatprep.subr.bf16.mxu0 0
      %1217 = vmatpush1.bf16.msra.mxu0 0
      %1218 = vmatprep.subr.bf16.mxu0 0
      %1219 = vmatpush1.bf16.msra.mxu0 0
      %1220 = vmatprep.subr.bf16.mxu0 0
      %1221 = vmatpush1.bf16.msra.mxu0 0
      %1222 = vmatprep.subr.bf16.mxu0 0
      %1223 = vmatpush1.bf16.msra.mxu0 0
      %1224 = vmatprep.subr.bf16.mxu0 0
      %1225 = vmatpush1.bf16.msra.mxu0 0
      %1226 = vmatprep.mubr.bf16.mxu0 0
      %1227 = vmatmul.mubr.bf16.gmra.mrb[0].mxu0 %v1138
      %v1228 = vpop.f32.mrb[0].mxu0
      %v1229 = vadd.f32 0.0, %v1228
      %v1230 = vpop.f32.mrb[0].mxu0
      %v1231 = vpop.f32.mrb[0].mxu0
      %v1232 = vadd.f32 0.0, %v1231
      %v1233 = vpop.f32.mrb[0].mxu0
      %1234 = vmatprep.mubr.bf16.mxu0 0
      %1235 = vmatmul.mubr.bf16.gmra.mrb[0].mxu0 %v1141
      %v1236 = vpop.f32.mrb[0].mxu0
      %v1237 = vadd.f32 0.0, %v1236
      %v1238 = vpop.f32.mrb[0].mxu0
      %v1239 = vpop.f32.mrb[0].mxu0
      %v1240 = vadd.f32 0.0, %v1239
      %v1241 = vpop.f32.mrb[0].mxu0
      %1242 = vmatprep.mubr.bf16.mxu0 0
      %1243 = vmatmul.mubr.bf16.gmra.mrb[0].mxu0 %v1144
      %v1244 = vpop.f32.mrb[0].mxu0
      %v1245 = vadd.f32 0.0, %v1244
      %v1246 = vpop.f32.mrb[0].mxu0
      %v1247 = vpop.f32.mrb[0].mxu0
      %v1248 = vadd.f32 0.0, %v1247
      %v1249 = vpop.f32.mrb[0].mxu0
      %1250 = vmatprep.mubr.bf16.mxu0 0
      %1251 = vmatmul.mubr.bf16.gmra.mrb[0].mxu0 %v1147
      %v1252 = vpop.f32.mrb[0].mxu0
      %v1253 = vadd.f32 0.0, %v1252
      %v1254 = vpop.f32.mrb[0].mxu0
      %v1255 = vpop.f32.mrb[0].mxu0
      %v1256 = vadd.f32 0.0, %v1255
      %v1257 = vpop.f32.mrb[0].mxu0
      %1258 = vmatprep.mubr.bf16.mxu0 0
      %1259 = vmatmul.mubr.bf16.gmra.mrb[0].mxu0 %v1150
      %v1260 = vpop.f32.mrb[0].mxu0
      %v1261 = vadd.f32 0.0, %v1260
      %v1262 = vpop.f32.mrb[0].mxu0
      %v1263 = vpop.f32.mrb[0].mxu0
      %v1264 = vadd.f32 0.0, %v1263
      %v1265 = vpop.f32.mrb[0].mxu0
      %1266 = vmatprep.mubr.bf16.mxu0 0
      %1267 = vmatmul.mubr.bf16.gmra.mrb[0].mxu0 %v1153
      %v1268 = vpop.f32.mrb[0].mxu0
      %v1269 = vadd.f32 0.0, %v1268
      %v1270 = vpop.f32.mrb[0].mxu0
      %v1271 = vpop.f32.mrb[0].mxu0
      %v1272 = vadd.f32 0.0, %v1271
      %v1273 = vpop.f32.mrb[0].mxu0
      %1274 = vmatprep.mubr.bf16.mxu0 0
      %1275 = vmatmul.mubr.bf16.gmra.mrb[0].mxu0 %v1156
      %v1276 = vpop.f32.mrb[0].mxu0
      %v1277 = vadd.f32 0.0, %v1276
      %v1278 = vpop.f32.mrb[0].mxu0
      %v1279 = vpop.f32.mrb[0].mxu0
      %v1280 = vadd.f32 0.0, %v1279
      %v1281 = vpop.f32.mrb[0].mxu0
      %1282 = vmatprep.mubr.bf16.mxu0 0
      %1283 = vmatmul.mubr.bf16.gmra.mrb[0].mxu0 %v1159
      %v1284 = vpop.f32.mrb[0].mxu0
      %v1285 = vadd.f32 0.0, %v1284
      %v1286 = vpop.f32.mrb[0].mxu0
      %v1287 = vpop.f32.mrb[0].mxu0
      %v1288 = vadd.f32 0.0, %v1287
      %v1289 = vpop.f32.mrb[0].mxu0
      %1290 = vmatprep.mubr.bf16.mxu0 0
      %1291 = vmatmul.mubr.bf16.gmra.mrb[0].mxu0 %v1162
      %v1292 = vpop.f32.mrb[0].mxu0
      %v1293 = vadd.f32 0.0, %v1292
      %v1294 = vpop.f32.mrb[0].mxu0
      %v1295 = vpop.f32.mrb[0].mxu0
      %v1296 = vadd.f32 0.0, %v1295
      %v1297 = vpop.f32.mrb[0].mxu0
      %1298 = vmatprep.mubr.bf16.mxu0 0
      %1299 = vmatmul.mubr.bf16.gmra.mrb[0].mxu0 %v1165
      %v1300 = vpop.f32.mrb[0].mxu0
      %v1301 = vadd.f32 0.0, %v1300
      %v1302 = vpop.f32.mrb[0].mxu0
      %v1303 = vpop.f32.mrb[0].mxu0
      %v1304 = vadd.f32 0.0, %v1303
      %v1305 = vpop.f32.mrb[0].mxu0
      %1306 = vmatprep.mubr.bf16.mxu0 0
      %1307 = vmatmul.mubr.bf16.gmra.mrb[0].mxu0 %v1168
      %v1308 = vpop.f32.mrb[0].mxu0
      %v1309 = vadd.f32 0.0, %v1308
      %v1310 = vpop.f32.mrb[0].mxu0
      %v1311 = vpop.f32.mrb[0].mxu0
      %v1312 = vadd.f32 0.0, %v1311
      %v1313 = vpop.f32.mrb[0].mxu0
      %1314 = vmatprep.mubr.bf16.mxu0 0
      %1315 = vmatmul.mubr.bf16.gmra.mrb[0].mxu0 %v1171
      %v1316 = vpop.f32.mrb[0].mxu0
      %v1317 = vadd.f32 0.0, %v1316
      %v1318 = vpop.f32.mrb[0].mxu0
      %v1319 = vpop.f32.mrb[0].mxu0
      %v1320 = vadd.f32 0.0, %v1319
      %v1321 = vpop.f32.mrb[0].mxu0
      %1322 = vmatprep.mubr.bf16.mxu0 0
      %1323 = vmatmul.mubr.bf16.gmra.mrb[0].mxu0 %v1174
      %v1324 = vpop.f32.mrb[0].mxu0
      %v1325 = vadd.f32 0.0, %v1324
      %v1326 = vpop.f32.mrb[0].mxu0
      %v1327 = vpop.f32.mrb[0].mxu0
      %v1328 = vadd.f32 0.0, %v1327
      %v1329 = vpop.f32.mrb[0].mxu0
      %1330 = vmatprep.mubr.bf16.mxu0 0
      %1331 = vmatmul.mubr.bf16.gmra.mrb[0].mxu0 %v1177
      %v1332 = vpop.f32.mrb[0].mxu0
      %v1333 = vadd.f32 0.0, %v1332
      %v1334 = vpop.f32.mrb[0].mxu0
      %v1335 = vpop.f32.mrb[0].mxu0
      %v1336 = vadd.f32 0.0, %v1335
      %v1337 = vpop.f32.mrb[0].mxu0
      %1338 = vmatprep.mubr.bf16.mxu0 0
      %1339 = vmatmul.mubr.bf16.gmra.mrb[0].mxu0 %v1180
      %v1340 = vpop.f32.mrb[0].mxu0
      %v1341 = vadd.f32 0.0, %v1340
      %v1342 = vpop.f32.mrb[0].mxu0
      %v1343 = vpop.f32.mrb[0].mxu0
      %v1344 = vadd.f32 0.0, %v1343
      %v1345 = vpop.f32.mrb[0].mxu0
      %1346 = vmatprep.mubr.bf16.mxu0 0
      %1347 = vmatmul.mubr.bf16.gmra.mrb[0].mxu0 %v1183
      %v1348 = vpop.f32.mrb[0].mxu0
      %v1349 = vadd.f32 0.0, %v1348
      %v1350 = vpop.f32.mrb[0].mxu0
      %v1351 = vpop.f32.mrb[0].mxu0
      %v1352 = vadd.f32 0.0, %v1351
      %v1353 = vpop.f32.mrb[0].mxu0
      %1354 = vmatprep.mubr.bf16.mxu0 0
      %1355 = vmatmul.mubr.bf16.gmra.mrb[0].mxu0 %v1186
      %v1356 = vpop.f32.mrb[0].mxu0
      %v1357 = vadd.f32 0.0, %v1356
      %v1358 = vpop.f32.mrb[0].mxu0
      %v1359 = vpop.f32.mrb[0].mxu0
      %v1360 = vadd.f32 0.0, %v1359
      %v1361 = vpop.f32.mrb[0].mxu0
      %1362 = vmatprep.mubr.bf16.mxu0 0
      %1363 = vmatmul.mubr.bf16.gmra.mrb[0].mxu0 %v1189
      %v1364 = vpop.f32.mrb[0].mxu0
      %v1365 = vadd.f32 0.0, %v1364
      %v1366 = vpop.f32.mrb[0].mxu0
      %v1367 = vpop.f32.mrb[0].mxu0
      %v1368 = vadd.f32 0.0, %v1367
      %v1369 = vpop.f32.mrb[0].mxu0
      %1370 = vdwg.mxu0
      %v1371 = vadd.f32 %v951, %v1229
      %v1372 = vadd.f32 %v954, %v1232
      %v1373 = vadd.f32 %v959, %v1237
      %v1374 = vadd.f32 %v962, %v1240
      %v1375 = vadd.f32 %v967, %v1245
      %v1376 = vadd.f32 %v970, %v1248
      %v1377 = vadd.f32 %v975, %v1253
      %v1378 = vadd.f32 %v978, %v1256
      %v1379 = vadd.f32 %v983, %v1261
      %v1380 = vadd.f32 %v986, %v1264
      %v1381 = vadd.f32 %v991, %v1269
      %v1382 = vadd.f32 %v994, %v1272
      %v1383 = vadd.f32 %v999, %v1277
      %v1384 = vadd.f32 %v1002, %v1280
      %v1385 = vadd.f32 %v1007, %v1285
      %v1386 = vadd.f32 %v1010, %v1288
      %v1387 = vadd.f32 %v1015, %v1293
      %v1388 = vadd.f32 %v1018, %v1296
      %v1389 = vadd.f32 %v1023, %v1301
      %v1390 = vadd.f32 %v1026, %v1304
      %v1391 = vadd.f32 %v1031, %v1309
      %v1392 = vadd.f32 %v1034, %v1312
      %v1393 = vadd.f32 %v1039, %v1317
      %v1394 = vadd.f32 %v1042, %v1320
      %v1395 = vadd.f32 %v1047, %v1325
      %v1396 = vadd.f32 %v1050, %v1328
      %v1397 = vadd.f32 %v1055, %v1333
      %v1398 = vadd.f32 %v1058, %v1336
      %v1399 = vadd.f32 %v1063, %v1341
      %v1400 = vadd.f32 %v1066, %v1344
      %v1401 = vadd.f32 %v1071, %v1349
      %v1402 = vadd.f32 %v1074, %v1352
      %v1403 = vadd.f32 %v1079, %v1357
      %v1404 = vadd.f32 %v1082, %v1360
      %v1405 = vadd.f32 %v1087, %v1365
      %v1406 = vadd.f32 %v1090, %v1368
      %v1407 = vld [vmem:[%s326 + $0x8] sm:$0xe]
      %v1408 = vld [vmem:[%s326 + $0xc] sm:$0xf]
      %v1409 = vld [vmem:[%s326 + $0x10] sm:$0xf]
      %v1410 = vld [vmem:[%s326 + $0x14] sm:$0xf]
      %v1411 = vld [vmem:[%s326 + $0x18] sm:$0xf]
      %v1412 = vld [vmem:[%s326 + $0x1c] sm:$0xf]
      %v1413 = vld [vmem:[%s326 + $0x20] sm:$0xf]
      %v1414 = vld [vmem:[%s326 + $0x24] sm:$0xf]
      %v1415 = vld [vmem:[%s326 + $0x28] sm:$0xf]
      %v1416 = vld [vmem:[%s326 + $0x2c] sm:$0xf]
      %v1417 = vld [vmem:[%s326 + $0x30] sm:$0xf]
      %v1418 = vld [vmem:[%s326 + $0x34] sm:$0xf]
      %v1419 = vld [vmem:[%s326 + $0x38] sm:$0xf]
      %v1420 = vld [vmem:[%s326 + $0x3c] sm:$0xf]
      %v1421 = vld [vmem:[%s326 + $0x40] sm:$0xf]
      %v1422 = vld [vmem:[%s326 + $0x44] sm:$0xf]
      %v1423 = vld [vmem:[%s326 + $0x48] sm:$0xf]
      %v1424 = vld [vmem:[%s326 + $0x4c] sm:$0xf]
      %v1425 = vld [vmem:[%s326 + $0x50] sm:$0xf]
      %v1426 = vld [vmem:[%s326 + $0x54] sm:$0xf]
      %v1427 = vld [vmem:[%s326 + $0x58] sm:$0xf]
      %v1428 = vld [vmem:[%s326 + $0x5c] sm:$0xf]
      %v1429 = vld [vmem:[%s326 + $0x60] sm:$0xf]
      %v1430 = vld [vmem:[%s326 + $0x64] sm:$0xf]
      %v1431 = vld [vmem:[%s326 + $0x68] sm:$0xf]
      %v1432 = vld [vmem:[%s326 + $0x6c] sm:$0xf]
      %v1433 = vld [vmem:[%s326 + $0x70] sm:$0xf]
      %v1434 = vld [vmem:[%s326 + $0x74] sm:$0xf]
      %v1435 = vld [vmem:[%s326 + $0x78] sm:$0xf]
      %v1436 = vld [vmem:[%s326 + $0x7c] sm:$0xf]
      %v1437 = vld [vmem:[%s326 + $0x80] sm:$0xf]
      %v1438 = vld [vmem:[%s326 + $0x84] sm:$0xf]
      %v1439 = vld [vmem:[%s326 + $0x88] sm:$0xf]
      %v1440 = vld [vmem:[%s326 + $0x8c] sm:$0xf]
      %v1441 = vld [vmem:[%s326 + $0x90] sm:$0xf]
      %v1442 = vld [vmem:[%s326 + $0x94] sm:$0xf]
      %v1443 = vld [vmem:[%s326 + $0x98] sm:$0x1]
      %s1444 = scalar_lea.vmem %s1, 6
      %v1445 = vld [vmem:[%s1444] sm:$0x3]
      %v1483 = vunpack.c.l.b16 %v1407
      %v1484 = vunpack.c.l.b16 %v1408
      %v1485 = vunpack.c.l.b16 %v1409
      %v1486 = vunpack.c.l.b16 %v1410
      %v1487 = vunpack.c.l.b16 %v1411
      %v1488 = vunpack.c.l.b16 %v1412
      %v1489 = vunpack.c.l.b16 %v1413
      %v1490 = vunpack.c.l.b16 %v1414
      %v1491 = vunpack.c.l.b16 %v1415
      %v1492 = vunpack.c.l.b16 %v1416
      %v1493 = vunpack.c.l.b16 %v1417
      %v1494 = vunpack.c.l.b16 %v1418
      %v1495 = vunpack.c.l.b16 %v1419
      %v1496 = vunpack.c.l.b16 %v1420
      %v1497 = vunpack.c.l.b16 %v1421
      %v1498 = vunpack.c.l.b16 %v1422
      %v1499 = vunpack.c.l.b16 %v1423
      %v1500 = vunpack.c.l.b16 %v1424
      %v1501 = vunpack.c.l.b16 %v1425
      %v1502 = vunpack.c.l.b16 %v1426
      %v1503 = vunpack.c.l.b16 %v1427
      %v1504 = vunpack.c.l.b16 %v1428
      %v1505 = vunpack.c.l.b16 %v1429
      %v1506 = vunpack.c.l.b16 %v1430
      %v1507 = vunpack.c.l.b16 %v1431
      %v1508 = vunpack.c.l.b16 %v1432
      %v1509 = vunpack.c.l.b16 %v1433
      %v1510 = vunpack.c.l.b16 %v1434
      %v1511 = vunpack.c.l.b16 %v1435
      %v1512 = vunpack.c.l.b16 %v1436
      %v1513 = vunpack.c.l.b16 %v1437
      %v1514 = vunpack.c.l.b16 %v1438
      %v1515 = vunpack.c.l.b16 %v1439
      %v1516 = vunpack.c.l.b16 %v1440
      %v1517 = vunpack.c.l.b16 %v1441
      %v1518 = vunpack.c.l.b16 %v1442
      %v1519 = vunpack.c.l.b16 %v1443
      %v1520 = vpack.c.b16 %v1484, %v1483
      %v1521 = vpack.c.b16 %v1486, %v1485
      %v1522 = vpack.c.b16 %v1488, %v1487
      %v1523 = vpack.c.b16 %v1490, %v1489
      %v1524 = vpack.c.b16 %v1492, %v1491
      %v1525 = vpack.c.b16 %v1494, %v1493
      %v1526 = vpack.c.b16 %v1496, %v1495
      %v1527 = vpack.c.b16 %v1498, %v1497
      %v1528 = vpack.c.b16 %v1500, %v1499
      %v1529 = vpack.c.b16 %v1502, %v1501
      %v1530 = vpack.c.b16 %v1504, %v1503
      %v1531 = vpack.c.b16 %v1506, %v1505
      %v1532 = vpack.c.b16 %v1508, %v1507
      %v1533 = vpack.c.b16 %v1510, %v1509
      %v1534 = vpack.c.b16 %v1512, %v1511
      %v1535 = vpack.c.b16 %v1514, %v1513
      %v1536 = vpack.c.b16 %v1516, %v1515
      %v1537 = vpack.c.b16 %v1518, %v1517
      %v1538 = vpack.c.b16 %v1519, %v1519
      %v1539 = vrot.slane %v1520, 1
      %v1540 = vrot.slane %v1521, 1
      %v1541 = vsel %vm1099, %v1539, %v1540
      %v1542 = vrot.slane %v1522, 1
      %v1543 = vsel %vm1099, %v1540, %v1542
      %v1544 = vrot.slane %v1523, 1
      %v1545 = vsel %vm1099, %v1542, %v1544
      %v1546 = vrot.slane %v1524, 1
      %v1547 = vsel %vm1099, %v1544, %v1546
      %v1548 = vrot.slane %v1525, 1
      %v1549 = vsel %vm1099, %v1546, %v1548
      %v1550 = vrot.slane %v1526, 1
      %v1551 = vsel %vm1099, %v1548, %v1550
      %v1552 = vrot.slane %v1527, 1
      %v1553 = vsel %vm1099, %v1550, %v1552
      %v1554 = vrot.slane %v1528, 1
      %v1555 = vsel %vm1099, %v1552, %v1554
      %v1556 = vrot.slane %v1529, 1
      %v1557 = vsel %vm1099, %v1554, %v1556
      %v1558 = vrot.slane %v1530, 1
      %v1559 = vsel %vm1099, %v1556, %v1558
      %v1560 = vrot.slane %v1531, 1
      %v1561 = vsel %vm1099, %v1558, %v1560
      %v1562 = vrot.slane %v1532, 1
      %v1563 = vsel %vm1099, %v1560, %v1562
      %v1564 = vrot.slane %v1533, 1
      %v1565 = vsel %vm1099, %v1562, %v1564
      %v1566 = vrot.slane %v1534, 1
      %v1567 = vsel %vm1099, %v1564, %v1566
      %v1568 = vrot.slane %v1535, 1
      %v1569 = vsel %vm1099, %v1566, %v1568
      %v1570 = vrot.slane %v1536, 1
      %v1571 = vsel %vm1099, %v1568, %v1570
      %v1572 = vrot.slane %v1537, 1
      %v1573 = vsel %vm1099, %v1570, %v1572
      %v1574 = vrot.slane %v1538, 1
      %v1575 = vsel %vm1099, %v1572, %v1574
      %v1577 = vsel %vm638, %v1541, 0
      %v1580 = vsel %vm638, %v1543, 0
      %v1583 = vsel %vm638, %v1545, 0
      %v1586 = vsel %vm638, %v1547, 0
      %v1589 = vsel %vm638, %v1549, 0
      %v1592 = vsel %vm638, %v1551, 0
      %v1595 = vsel %vm638, %v1553, 0
      %v1598 = vsel %vm638, %v1555, 0
      %v1601 = vsel %vm638, %v1557, 0
      %v1604 = vsel %vm638, %v1559, 0
      %v1607 = vsel %vm638, %v1561, 0
      %v1610 = vsel %vm638, %v1563, 0
      %v1613 = vsel %vm638, %v1565, 0
      %v1616 = vsel %vm638, %v1567, 0
      %v1619 = vsel %vm638, %v1569, 0
      %v1622 = vsel %vm638, %v1571, 0
      %v1625 = vsel %vm638, %v1573, 0
      %v1628 = vsel %vm638, %v1575, 0
      %v1631 = vand.u32 %v1445, %v696
      %1633 = vmatprep.subr.bf16.mxu0 0
      %1634 = vmatpush1.bf16.msra.mxu0 %v1631
      %1635 = vmatprep.subr.bf16.mxu0 0
      %1636 = vmatpush1.bf16.msra.mxu0 0
      %1637 = vmatprep.subr.bf16.mxu0 0
      %1638 = vmatpush1.bf16.msra.mxu0 0
      %1639 = vmatprep.subr.bf16.mxu0 0
      %1640 = vmatpush1.bf16.msra.mxu0 0
      %1641 = vmatprep.subr.bf16.mxu0 0
      %1642 = vmatpush1.bf16.msra.mxu0 0
      %1643 = vmatprep.subr.bf16.mxu0 0
      %1644 = vmatpush1.bf16.msra.mxu0 0
      %1645 = vmatprep.subr.bf16.mxu0 0
      %1646 = vmatpush1.bf16.msra.mxu0 0
      %1647 = vmatprep.subr.bf16.mxu0 0
      %1648 = vmatpush1.bf16.msra.mxu0 0
      %1649 = vmatprep.subr.bf16.mxu0 0
      %1650 = vmatpush1.bf16.msra.mxu0 0
      %1651 = vmatprep.subr.bf16.mxu0 0
      %1652 = vmatpush1.bf16.msra.mxu0 0
      %1653 = vmatprep.subr.bf16.mxu0 0
      %1654 = vmatpush1.bf16.msra.mxu0 0
      %1655 = vmatprep.subr.bf16.mxu0 0
      %1656 = vmatpush1.bf16.msra.mxu0 0
      %1657 = vmatprep.subr.bf16.mxu0 0
      %1658 = vmatpush1.bf16.msra.mxu0 0
      %1659 = vmatprep.subr.bf16.mxu0 0
      %1660 = vmatpush1.bf16.msra.mxu0 0
      %1661 = vmatprep.subr.bf16.mxu0 0
      %1662 = vmatpush1.bf16.msra.mxu0 0
      %1663 = vmatprep.subr.bf16.mxu0 0
      %1664 = vmatpush1.bf16.msra.mxu0 0
      %1665 = vmatprep.mubr.bf16.mxu0 0
      %1666 = vmatmul.mubr.bf16.gmra.mrb[0].mxu0 %v1577
      %v1667 = vpop.f32.mrb[0].mxu0
      %v1668 = vadd.f32 0.0, %v1667
      %v1669 = vpop.f32.mrb[0].mxu0
      %v1670 = vpop.f32.mrb[0].mxu0
      %v1671 = vadd.f32 0.0, %v1670
      %v1672 = vpop.f32.mrb[0].mxu0
      %1673 = vmatprep.mubr.bf16.mxu0 0
      %1674 = vmatmul.mubr.bf16.gmra.mrb[0].mxu0 %v1580
      %v1675 = vpop.f32.mrb[0].mxu0
      %v1676 = vadd.f32 0.0, %v1675
      %v1677 = vpop.f32.mrb[0].mxu0
      %v1678 = vpop.f32.mrb[0].mxu0
      %v1679 = vadd.f32 0.0, %v1678
      %v1680 = vpop.f32.mrb[0].mxu0
      %1681 = vmatprep.mubr.bf16.mxu0 0
      %1682 = vmatmul.mubr.bf16.gmra.mrb[0].mxu0 %v1583
      %v1683 = vpop.f32.mrb[0].mxu0
      %v1684 = vadd.f32 0.0, %v1683
      %v1685 = vpop.f32.mrb[0].mxu0
      %v1686 = vpop.f32.mrb[0].mxu0
      %v1687 = vadd.f32 0.0, %v1686
      %v1688 = vpop.f32.mrb[0].mxu0
      %1689 = vmatprep.mubr.bf16.mxu0 0
      %1690 = vmatmul.mubr.bf16.gmra.mrb[0].mxu0 %v1586
      %v1691 = vpop.f32.mrb[0].mxu0
      %v1692 = vadd.f32 0.0, %v1691
      %v1693 = vpop.f32.mrb[0].mxu0
      %v1694 = vpop.f32.mrb[0].mxu0
      %v1695 = vadd.f32 0.0, %v1694
      %v1696 = vpop.f32.mrb[0].mxu0
      %1697 = vmatprep.mubr.bf16.mxu0 0
      %1698 = vmatmul.mubr.bf16.gmra.mrb[0].mxu0 %v1589
      %v1699 = vpop.f32.mrb[0].mxu0
      %v1700 = vadd.f32 0.0, %v1699
      %v1701 = vpop.f32.mrb[0].mxu0
      %v1702 = vpop.f32.mrb[0].mxu0
      %v1703 = vadd.f32 0.0, %v1702
      %v1704 = vpop.f32.mrb[0].mxu0
      %1705 = vmatprep.mubr.bf16.mxu0 0
      %1706 = vmatmul.mubr.bf16.gmra.mrb[0].mxu0 %v1592
      %v1707 = vpop.f32.mrb[0].mxu0
      %v1708 = vadd.f32 0.0, %v1707
      %v1709 = vpop.f32.mrb[0].mxu0
      %v1710 = vpop.f32.mrb[0].mxu0
      %v1711 = vadd.f32 0.0, %v1710
      %v1712 = vpop.f32.mrb[0].mxu0
      %1713 = vmatprep.mubr.bf16.mxu0 0
      %1714 = vmatmul.mubr.bf16.gmra.mrb[0].mxu0 %v1595
      %v1715 = vpop.f32.mrb[0].mxu0
      %v1716 = vadd.f32 0.0, %v1715
      %v1717 = vpop.f32.mrb[0].mxu0
      %v1718 = vpop.f32.mrb[0].mxu0
      %v1719 = vadd.f32 0.0, %v1718
      %v1720 = vpop.f32.mrb[0].mxu0
      %1721 = vmatprep.mubr.bf16.mxu0 0
      %1722 = vmatmul.mubr.bf16.gmra.mrb[0].mxu0 %v1598
      %v1723 = vpop.f32.mrb[0].mxu0
      %v1724 = vadd.f32 0.0, %v1723
      %v1725 = vpop.f32.mrb[0].mxu0
      %v1726 = vpop.f32.mrb[0].mxu0
      %v1727 = vadd.f32 0.0, %v1726
      %v1728 = vpop.f32.mrb[0].mxu0
      %1729 = vmatprep.mubr.bf16.mxu0 0
      %1730 = vmatmul.mubr.bf16.gmra.mrb[0].mxu0 %v1601
      %v1731 = vpop.f32.mrb[0].mxu0
      %v1732 = vadd.f32 0.0, %v1731
      %v1733 = vpop.f32.mrb[0].mxu0
      %v1734 = vpop.f32.mrb[0].mxu0
      %v1735 = vadd.f32 0.0, %v1734
      %v1736 = vpop.f32.mrb[0].mxu0
      %1737 = vmatprep.mubr.bf16.mxu0 0
      %1738 = vmatmul.mubr.bf16.gmra.mrb[0].mxu0 %v1604
      %v1739 = vpop.f32.mrb[0].mxu0
      %v1740 = vadd.f32 0.0, %v1739
      %v1741 = vpop.f32.mrb[0].mxu0
      %v1742 = vpop.f32.mrb[0].mxu0
      %v1743 = vadd.f32 0.0, %v1742
      %v1744 = vpop.f32.mrb[0].mxu0
      %1745 = vmatprep.mubr.bf16.mxu0 0
      %1746 = vmatmul.mubr.bf16.gmra.mrb[0].mxu0 %v1607
      %v1747 = vpop.f32.mrb[0].mxu0
      %v1748 = vadd.f32 0.0, %v1747
      %v1749 = vpop.f32.mrb[0].mxu0
      %v1750 = vpop.f32.mrb[0].mxu0
      %v1751 = vadd.f32 0.0, %v1750
      %v1752 = vpop.f32.mrb[0].mxu0
      %1753 = vmatprep.mubr.bf16.mxu0 0
      %1754 = vmatmul.mubr.bf16.gmra.mrb[0].mxu0 %v1610
      %v1755 = vpop.f32.mrb[0].mxu0
      %v1756 = vadd.f32 0.0, %v1755
      %v1757 = vpop.f32.mrb[0].mxu0
      %v1758 = vpop.f32.mrb[0].mxu0
      %v1759 = vadd.f32 0.0, %v1758
      %v1760 = vpop.f32.mrb[0].mxu0
      %1761 = vmatprep.mubr.bf16.mxu0 0
      %1762 = vmatmul.mubr.bf16.gmra.mrb[0].mxu0 %v1613
      %v1763 = vpop.f32.mrb[0].mxu0
      %v1764 = vadd.f32 0.0, %v1763
      %v1765 = vpop.f32.mrb[0].mxu0
      %v1766 = vpop.f32.mrb[0].mxu0
      %v1767 = vadd.f32 0.0, %v1766
      %v1768 = vpop.f32.mrb[0].mxu0
      %1769 = vmatprep.mubr.bf16.mxu0 0
      %1770 = vmatmul.mubr.bf16.gmra.mrb[0].mxu0 %v1616
      %v1771 = vpop.f32.mrb[0].mxu0
      %v1772 = vadd.f32 0.0, %v1771
      %v1773 = vpop.f32.mrb[0].mxu0
      %v1774 = vpop.f32.mrb[0].mxu0
      %v1775 = vadd.f32 0.0, %v1774
      %v1776 = vpop.f32.mrb[0].mxu0
      %1777 = vmatprep.mubr.bf16.mxu0 0
      %1778 = vmatmul.mubr.bf16.gmra.mrb[0].mxu0 %v1619
      %v1779 = vpop.f32.mrb[0].mxu0
      %v1780 = vadd.f32 0.0, %v1779
      %v1781 = vpop.f32.mrb[0].mxu0
      %v1782 = vpop.f32.mrb[0].mxu0
      %v1783 = vadd.f32 0.0, %v1782
      %v1784 = vpop.f32.mrb[0].mxu0
      %1785 = vmatprep.mubr.bf16.mxu0 0
      %1786 = vmatmul.mubr.bf16.gmra.mrb[0].mxu0 %v1622
      %v1787 = vpop.f32.mrb[0].mxu0
      %v1788 = vadd.f32 0.0, %v1787
      %v1789 = vpop.f32.mrb[0].mxu0
      %v1790 = vpop.f32.mrb[0].mxu0
      %v1791 = vadd.f32 0.0, %v1790
      %v1792 = vpop.f32.mrb[0].mxu0
      %1793 = vmatprep.mubr.bf16.mxu0 0
      %1794 = vmatmul.mubr.bf16.gmra.mrb[0].mxu0 %v1625
      %v1795 = vpop.f32.mrb[0].mxu0
      %v1796 = vadd.f32 0.0, %v1795
      %v1797 = vpop.f32.mrb[0].mxu0
      %v1798 = vpop.f32.mrb[0].mxu0
      %v1799 = vadd.f32 0.0, %v1798
      %v1800 = vpop.f32.mrb[0].mxu0
      %1801 = vmatprep.mubr.bf16.mxu0 0
      %1802 = vmatmul.mubr.bf16.gmra.mrb[0].mxu0 %v1628
      %v1803 = vpop.f32.mrb[0].mxu0
      %v1804 = vadd.f32 0.0, %v1803
      %v1805 = vpop.f32.mrb[0].mxu0
      %v1806 = vpop.f32.mrb[0].mxu0
      %v1807 = vadd.f32 0.0, %v1806
      %v1808 = vpop.f32.mrb[0].mxu0
      %1809 = vdwg.mxu0
      %v1810 = vadd.f32 %v1371, %v1668
      %v1811 = vadd.f32 %v1372, %v1671
      %v1812 = vadd.f32 %v1373, %v1676
      %v1813 = vadd.f32 %v1374, %v1679
      %v1814 = vadd.f32 %v1375, %v1684
      %v1815 = vadd.f32 %v1376, %v1687
      %v1816 = vadd.f32 %v1377, %v1692
      %v1817 = vadd.f32 %v1378, %v1695
      %v1818 = vadd.f32 %v1379, %v1700
      %v1819 = vadd.f32 %v1380, %v1703
      %v1820 = vadd.f32 %v1381, %v1708
      %v1821 = vadd.f32 %v1382, %v1711
      %v1822 = vadd.f32 %v1383, %v1716
      %v1823 = vadd.f32 %v1384, %v1719
      %v1824 = vadd.f32 %v1385, %v1724
      %v1825 = vadd.f32 %v1386, %v1727
      %v1826 = vadd.f32 %v1387, %v1732
      %v1827 = vadd.f32 %v1388, %v1735
      %v1828 = vadd.f32 %v1389, %v1740
      %v1829 = vadd.f32 %v1390, %v1743
      %v1830 = vadd.f32 %v1391, %v1748
      %v1831 = vadd.f32 %v1392, %v1751
      %v1832 = vadd.f32 %v1393, %v1756
      %v1833 = vadd.f32 %v1394, %v1759
      %v1834 = vadd.f32 %v1395, %v1764
      %v1835 = vadd.f32 %v1396, %v1767
      %v1836 = vadd.f32 %v1397, %v1772
      %v1837 = vadd.f32 %v1398, %v1775
      %v1838 = vadd.f32 %v1399, %v1780
      %v1839 = vadd.f32 %v1400, %v1783
      %v1840 = vadd.f32 %v1401, %v1788
      %v1841 = vadd.f32 %v1402, %v1791
      %v1842 = vadd.f32 %v1403, %v1796
      %v1843 = vadd.f32 %v1404, %v1799
      %v1844 = vadd.f32 %v1405, %v1804
      %v1845 = vadd.f32 %v1406, %v1807
      %v1846 = vld [vmem:[%s326 + $0x98] sm:$0x3]
      %s1847 = scalar_lea.vmem %s1, 8
      %v1848 = vld [vmem:[%s1847] sm:$0x3]
      %v1850 = vunpack.c.l.b16 %v1846
      %v1851 = vpack.c.b16 %v1850, %v1850
      %vm1852 = vsmask.f32 6400
      %v1854 = vshrl.u32 %v1520, 16
      %v1856 = vrot.slane %v1854, 1
      %v1857 = vshll.u32 %v1520, 16
      %v1859 = vrot.slane %v1857, 2
      %v1860 = vor.u32 %v1856, %v1859
      %v1862 = vshrl.u32 %v1521, 16
      %v1864 = vrot.slane %v1862, 1
      %v1865 = vshll.u32 %v1521, 16
      %v1867 = vrot.slane %v1865, 2
      %v1868 = vor.u32 %v1864, %v1867
      %v1869 = vsel %vm1852, %v1860, %v1868
      %v1871 = vshrl.u32 %v1522, 16
      %v1873 = vrot.slane %v1871, 1
      %v1874 = vshll.u32 %v1522, 16
      %v1876 = vrot.slane %v1874, 2
      %v1877 = vor.u32 %v1873, %v1876
      %v1878 = vsel %vm1852, %v1868, %v1877
      %v1880 = vshrl.u32 %v1523, 16
      %v1882 = vrot.slane %v1880, 1
      %v1883 = vshll.u32 %v1523, 16
      %v1885 = vrot.slane %v1883, 2
      %v1886 = vor.u32 %v1882, %v1885
      %v1887 = vsel %vm1852, %v1877, %v1886
      %v1889 = vshrl.u32 %v1524, 16
      %v1891 = vrot.slane %v1889, 1
      %v1892 = vshll.u32 %v1524, 16
      %v1894 = vrot.slane %v1892, 2
      %v1895 = vor.u32 %v1891, %v1894
      %v1896 = vsel %vm1852, %v1886, %v1895
      %v1898 = vshrl.u32 %v1525, 16
      %v1900 = vrot.slane %v1898, 1
      %v1901 = vshll.u32 %v1525, 16
      %v1903 = vrot.slane %v1901, 2
      %v1904 = vor.u32 %v1900, %v1903
      %v1905 = vsel %vm1852, %v1895, %v1904
      %v1907 = vshrl.u32 %v1526, 16
      %v1909 = vrot.slane %v1907, 1
      %v1910 = vshll.u32 %v1526, 16
      %v1912 = vrot.slane %v1910, 2
      %v1913 = vor.u32 %v1909, %v1912
      %v1914 = vsel %vm1852, %v1904, %v1913
      %v1916 = vshrl.u32 %v1527, 16
      %v1918 = vrot.slane %v1916, 1
      %v1919 = vshll.u32 %v1527, 16
      %v1921 = vrot.slane %v1919, 2
      %v1922 = vor.u32 %v1918, %v1921
      %v1923 = vsel %vm1852, %v1913, %v1922
      %v1925 = vshrl.u32 %v1528, 16
      %v1927 = vrot.slane %v1925, 1
      %v1928 = vshll.u32 %v1528, 16
      %v1930 = vrot.slane %v1928, 2
      %v1931 = vor.u32 %v1927, %v1930
      %v1932 = vsel %vm1852, %v1922, %v1931
      %v1934 = vshrl.u32 %v1529, 16
      %v1936 = vrot.slane %v1934, 1
      %v1937 = vshll.u32 %v1529, 16
      %v1939 = vrot.slane %v1937, 2
      %v1940 = vor.u32 %v1936, %v1939
      %v1941 = vsel %vm1852, %v1931, %v1940
      %v1943 = vshrl.u32 %v1530, 16
      %v1945 = vrot.slane %v1943, 1
      %v1946 = vshll.u32 %v1530, 16
      %v1948 = vrot.slane %v1946, 2
      %v1949 = vor.u32 %v1945, %v1948
      %v1950 = vsel %vm1852, %v1940, %v1949
      %v1952 = vshrl.u32 %v1531, 16
      %v1954 = vrot.slane %v1952, 1
      %v1955 = vshll.u32 %v1531, 16
      %v1957 = vrot.slane %v1955, 2
      %v1958 = vor.u32 %v1954, %v1957
      %v1959 = vsel %vm1852, %v1949, %v1958
      %v1961 = vshrl.u32 %v1532, 16
      %v1963 = vrot.slane %v1961, 1
      %v1964 = vshll.u32 %v1532, 16
      %v1966 = vrot.slane %v1964, 2
      %v1967 = vor.u32 %v1963, %v1966
      %v1968 = vsel %vm1852, %v1958, %v1967
      %v1970 = vshrl.u32 %v1533, 16
      %v1972 = vrot.slane %v1970, 1
      %v1973 = vshll.u32 %v1533, 16
      %v1975 = vrot.slane %v1973, 2
      %v1976 = vor.u32 %v1972, %v1975
      %v1977 = vsel %vm1852, %v1967, %v1976
      %v1979 = vshrl.u32 %v1534, 16
      %v1981 = vrot.slane %v1979, 1
      %v1982 = vshll.u32 %v1534, 16
      %v1984 = vrot.slane %v1982, 2
      %v1985 = vor.u32 %v1981, %v1984
      %v1986 = vsel %vm1852, %v1976, %v1985
      %v1988 = vshrl.u32 %v1535, 16
      %v1990 = vrot.slane %v1988, 1
      %v1991 = vshll.u32 %v1535, 16
      %v1993 = vrot.slane %v1991, 2
      %v1994 = vor.u32 %v1990, %v1993
      %v1995 = vsel %vm1852, %v1985, %v1994
      %v1997 = vshrl.u32 %v1536, 16
      %v1999 = vrot.slane %v1997, 1
      %v2000 = vshll.u32 %v1536, 16
      %v2002 = vrot.slane %v2000, 2
      %v2003 = vor.u32 %v1999, %v2002
      %v2004 = vsel %vm1852, %v1994, %v2003
      %v2006 = vshrl.u32 %v1537, 16
      %v2008 = vrot.slane %v2006, 1
      %v2009 = vshll.u32 %v1537, 16
      %v2011 = vrot.slane %v2009, 2
      %v2012 = vor.u32 %v2008, %v2011
      %v2013 = vsel %vm1852, %v2003, %v2012
      %v2015 = vshrl.u32 %v1851, 16
      %v2017 = vrot.slane %v2015, 1
      %v2018 = vshll.u32 %v1851, 16
      %v2020 = vrot.slane %v2018, 2
      %v2021 = vor.u32 %v2017, %v2020
      %v2022 = vsel %vm1852, %v2012, %v2021
      %v2024 = vsel %vm638, %v1869, 0
      %v2027 = vsel %vm638, %v1878, 0
      %v2030 = vsel %vm638, %v1887, 0
      %v2033 = vsel %vm638, %v1896, 0
      %v2036 = vsel %vm638, %v1905, 0
      %v2039 = vsel %vm638, %v1914, 0
      %v2042 = vsel %vm638, %v1923, 0
      %v2045 = vsel %vm638, %v1932, 0
      %v2048 = vsel %vm638, %v1941, 0
      %v2051 = vsel %vm638, %v1950, 0
      %v2054 = vsel %vm638, %v1959, 0
      %v2057 = vsel %vm638, %v1968, 0
      %v2060 = vsel %vm638, %v1977, 0
      %v2063 = vsel %vm638, %v1986, 0
      %v2066 = vsel %vm638, %v1995, 0
      %v2069 = vsel %vm638, %v2004, 0
      %v2072 = vsel %vm638, %v2013, 0
      %v2075 = vsel %vm638, %v2022, 0
      %v2078 = vand.u32 %v1848, %v696
      %2080 = vmatprep.subr.bf16.mxu0 0
      %2081 = vmatpush1.bf16.msra.mxu0 %v2078
      %2082 = vmatprep.subr.bf16.mxu0 0
      %2083 = vmatpush1.bf16.msra.mxu0 0
      %2084 = vmatprep.subr.bf16.mxu0 0
      %2085 = vmatpush1.bf16.msra.mxu0 0
      %2086 = vmatprep.subr.bf16.mxu0 0
      %2087 = vmatpush1.bf16.msra.mxu0 0
      %2088 = vmatprep.subr.bf16.mxu0 0
      %2089 = vmatpush1.bf16.msra.mxu0 0
      %2090 = vmatprep.subr.bf16.mxu0 0
      %2091 = vmatpush1.bf16.msra.mxu0 0
      %2092 = vmatprep.subr.bf16.mxu0 0
      %2093 = vmatpush1.bf16.msra.mxu0 0
      %2094 = vmatprep.subr.bf16.mxu0 0
      %2095 = vmatpush1.bf16.msra.mxu0 0
      %2096 = vmatprep.subr.bf16.mxu0 0
      %2097 = vmatpush1.bf16.msra.mxu0 0
      %2098 = vmatprep.subr.bf16.mxu0 0
      %2099 = vmatpush1.bf16.msra.mxu0 0
      %2100 = vmatprep.subr.bf16.mxu0 0
      %2101 = vmatpush1.bf16.msra.mxu0 0
      %2102 = vmatprep.subr.bf16.mxu0 0
      %2103 = vmatpush1.bf16.msra.mxu0 0
      %2104 = vmatprep.subr.bf16.mxu0 0
      %2105 = vmatpush1.bf16.msra.mxu0 0
      %2106 = vmatprep.subr.bf16.mxu0 0
      %2107 = vmatpush1.bf16.msra.mxu0 0
      %2108 = vmatprep.subr.bf16.mxu0 0
      %2109 = vmatpush1.bf16.msra.mxu0 0
      %2110 = vmatprep.subr.bf16.mxu0 0
      %2111 = vmatpush1.bf16.msra.mxu0 0
      %2112 = vmatprep.mubr.bf16.mxu0 0
      %2113 = vmatmul.mubr.bf16.gmra.mrb[0].mxu0 %v2024
      %v2114 = vpop.f32.mrb[0].mxu0
      %v2115 = vadd.f32 0.0, %v2114
      %v2116 = vpop.f32.mrb[0].mxu0
      %v2117 = vpop.f32.mrb[0].mxu0
      %v2118 = vadd.f32 0.0, %v2117
      %v2119 = vpop.f32.mrb[0].mxu0
      %2120 = vmatprep.mubr.bf16.mxu0 0
      %2121 = vmatmul.mubr.bf16.gmra.mrb[0].mxu0 %v2027
      %v2122 = vpop.f32.mrb[0].mxu0
      %v2123 = vadd.f32 0.0, %v2122
      %v2124 = vpop.f32.mrb[0].mxu0
      %v2125 = vpop.f32.mrb[0].mxu0
      %v2126 = vadd.f32 0.0, %v2125
      %v2127 = vpop.f32.mrb[0].mxu0
      %2128 = vmatprep.mubr.bf16.mxu0 0
      %2129 = vmatmul.mubr.bf16.gmra.mrb[0].mxu0 %v2030
      %v2130 = vpop.f32.mrb[0].mxu0
      %v2131 = vadd.f32 0.0, %v2130
      %v2132 = vpop.f32.mrb[0].mxu0
      %v2133 = vpop.f32.mrb[0].mxu0
      %v2134 = vadd.f32 0.0, %v2133
      %v2135 = vpop.f32.mrb[0].mxu0
      %2136 = vmatprep.mubr.bf16.mxu0 0
      %2137 = vmatmul.mubr.bf16.gmra.mrb[0].mxu0 %v2033
      %v2138 = vpop.f32.mrb[0].mxu0
      %v2139 = vadd.f32 0.0, %v2138
      %v2140 = vpop.f32.mrb[0].mxu0
      %v2141 = vpop.f32.mrb[0].mxu0
      %v2142 = vadd.f32 0.0, %v2141
      %v2143 = vpop.f32.mrb[0].mxu0
      %2144 = vmatprep.mubr.bf16.mxu0 0
      %2145 = vmatmul.mubr.bf16.gmra.mrb[0].mxu0 %v2036
      %v2146 = vpop.f32.mrb[0].mxu0
      %v2147 = vadd.f32 0.0, %v2146
      %v2148 = vpop.f32.mrb[0].mxu0
      %v2149 = vpop.f32.mrb[0].mxu0
      %v2150 = vadd.f32 0.0, %v2149
      %v2151 = vpop.f32.mrb[0].mxu0
      %2152 = vmatprep.mubr.bf16.mxu0 0
      %2153 = vmatmul.mubr.bf16.gmra.mrb[0].mxu0 %v2039
      %v2154 = vpop.f32.mrb[0].mxu0
      %v2155 = vadd.f32 0.0, %v2154
      %v2156 = vpop.f32.mrb[0].mxu0
      %v2157 = vpop.f32.mrb[0].mxu0
      %v2158 = vadd.f32 0.0, %v2157
      %v2159 = vpop.f32.mrb[0].mxu0
      %2160 = vmatprep.mubr.bf16.mxu0 0
      %2161 = vmatmul.mubr.bf16.gmra.mrb[0].mxu0 %v2042
      %v2162 = vpop.f32.mrb[0].mxu0
      %v2163 = vadd.f32 0.0, %v2162
      %v2164 = vpop.f32.mrb[0].mxu0
      %v2165 = vpop.f32.mrb[0].mxu0
      %v2166 = vadd.f32 0.0, %v2165
      %v2167 = vpop.f32.mrb[0].mxu0
      %2168 = vmatprep.mubr.bf16.mxu0 0
      %2169 = vmatmul.mubr.bf16.gmra.mrb[0].mxu0 %v2045
      %v2170 = vpop.f32.mrb[0].mxu0
      %v2171 = vadd.f32 0.0, %v2170
      %v2172 = vpop.f32.mrb[0].mxu0
      %v2173 = vpop.f32.mrb[0].mxu0
      %v2174 = vadd.f32 0.0, %v2173
      %v2175 = vpop.f32.mrb[0].mxu0
      %2176 = vmatprep.mubr.bf16.mxu0 0
      %2177 = vmatmul.mubr.bf16.gmra.mrb[0].mxu0 %v2048
      %v2178 = vpop.f32.mrb[0].mxu0
      %v2179 = vadd.f32 0.0, %v2178
      %v2180 = vpop.f32.mrb[0].mxu0
      %v2181 = vpop.f32.mrb[0].mxu0
      %v2182 = vadd.f32 0.0, %v2181
      %v2183 = vpop.f32.mrb[0].mxu0
      %2184 = vmatprep.mubr.bf16.mxu0 0
      %2185 = vmatmul.mubr.bf16.gmra.mrb[0].mxu0 %v2051
      %v2186 = vpop.f32.mrb[0].mxu0
      %v2187 = vadd.f32 0.0, %v2186
      %v2188 = vpop.f32.mrb[0].mxu0
      %v2189 = vpop.f32.mrb[0].mxu0
      %v2190 = vadd.f32 0.0, %v2189
      %v2191 = vpop.f32.mrb[0].mxu0
      %2192 = vmatprep.mubr.bf16.mxu0 0
      %2193 = vmatmul.mubr.bf16.gmra.mrb[0].mxu0 %v2054
      %v2194 = vpop.f32.mrb[0].mxu0
      %v2195 = vadd.f32 0.0, %v2194
      %v2196 = vpop.f32.mrb[0].mxu0
      %v2197 = vpop.f32.mrb[0].mxu0
      %v2198 = vadd.f32 0.0, %v2197
      %v2199 = vpop.f32.mrb[0].mxu0
      %2200 = vmatprep.mubr.bf16.mxu0 0
      %2201 = vmatmul.mubr.bf16.gmra.mrb[0].mxu0 %v2057
      %v2202 = vpop.f32.mrb[0].mxu0
      %v2203 = vadd.f32 0.0, %v2202
      %v2204 = vpop.f32.mrb[0].mxu0
      %v2205 = vpop.f32.mrb[0].mxu0
      %v2206 = vadd.f32 0.0, %v2205
      %v2207 = vpop.f32.mrb[0].mxu0
      %2208 = vmatprep.mubr.bf16.mxu0 0
      %2209 = vmatmul.mubr.bf16.gmra.mrb[0].mxu0 %v2060
      %v2210 = vpop.f32.mrb[0].mxu0
      %v2211 = vadd.f32 0.0, %v2210
      %v2212 = vpop.f32.mrb[0].mxu0
      %v2213 = vpop.f32.mrb[0].mxu0
      %v2214 = vadd.f32 0.0, %v2213
      %v2215 = vpop.f32.mrb[0].mxu0
      %2216 = vmatprep.mubr.bf16.mxu0 0
      %2217 = vmatmul.mubr.bf16.gmra.mrb[0].mxu0 %v2063
      %v2218 = vpop.f32.mrb[0].mxu0
      %v2219 = vadd.f32 0.0, %v2218
      %v2220 = vpop.f32.mrb[0].mxu0
      %v2221 = vpop.f32.mrb[0].mxu0
      %v2222 = vadd.f32 0.0, %v2221
      %v2223 = vpop.f32.mrb[0].mxu0
      %2224 = vmatprep.mubr.bf16.mxu0 0
      %2225 = vmatmul.mubr.bf16.gmra.mrb[0].mxu0 %v2066
      %v2226 = vpop.f32.mrb[0].mxu0
      %v2227 = vadd.f32 0.0, %v2226
      %v2228 = vpop.f32.mrb[0].mxu0
      %v2229 = vpop.f32.mrb[0].mxu0
      %v2230 = vadd.f32 0.0, %v2229
      %v2231 = vpop.f32.mrb[0].mxu0
      %2232 = vmatprep.mubr.bf16.mxu0 0
      %2233 = vmatmul.mubr.bf16.gmra.mrb[0].mxu0 %v2069
      %v2234 = vpop.f32.mrb[0].mxu0
      %v2235 = vadd.f32 0.0, %v2234
      %v2236 = vpop.f32.mrb[0].mxu0
      %v2237 = vpop.f32.mrb[0].mxu0
      %v2238 = vadd.f32 0.0, %v2237
      %v2239 = vpop.f32.mrb[0].mxu0
      %2240 = vmatprep.mubr.bf16.mxu0 0
      %2241 = vmatmul.mubr.bf16.gmra.mrb[0].mxu0 %v2072
      %v2242 = vpop.f32.mrb[0].mxu0
      %v2243 = vadd.f32 0.0, %v2242
      %v2244 = vpop.f32.mrb[0].mxu0
      %v2245 = vpop.f32.mrb[0].mxu0
      %v2246 = vadd.f32 0.0, %v2245
      %v2247 = vpop.f32.mrb[0].mxu0
      %2248 = vmatprep.mubr.bf16.mxu0 0
      %2249 = vmatmul.mubr.bf16.gmra.mrb[0].mxu0 %v2075
      %v2250 = vpop.f32.mrb[0].mxu0
      %v2251 = vadd.f32 0.0, %v2250
      %v2252 = vpop.f32.mrb[0].mxu0
      %v2253 = vpop.f32.mrb[0].mxu0
      %v2254 = vadd.f32 0.0, %v2253
      %v2255 = vpop.f32.mrb[0].mxu0
      %2256 = vdwg.mxu0
      %v2257 = vadd.f32 %v1810, %v2115
      %v2258 = vadd.f32 %v1811, %v2118
      %v2259 = vadd.f32 %v1812, %v2123
      %v2260 = vadd.f32 %v1813, %v2126
      %v2261 = vadd.f32 %v1814, %v2131
      %v2262 = vadd.f32 %v1815, %v2134
      %v2263 = vadd.f32 %v1816, %v2139
      %v2264 = vadd.f32 %v1817, %v2142
      %v2265 = vadd.f32 %v1818, %v2147
      %v2266 = vadd.f32 %v1819, %v2150
      %v2267 = vadd.f32 %v1820, %v2155
      %v2268 = vadd.f32 %v1821, %v2158
      %v2269 = vadd.f32 %v1822, %v2163
      %v2270 = vadd.f32 %v1823, %v2166
      %v2271 = vadd.f32 %v1824, %v2171
      %v2272 = vadd.f32 %v1825, %v2174
      %v2273 = vadd.f32 %v1826, %v2179
      %v2274 = vadd.f32 %v1827, %v2182
      %v2275 = vadd.f32 %v1828, %v2187
      %v2276 = vadd.f32 %v1829, %v2190
      %v2277 = vadd.f32 %v1830, %v2195
      %v2278 = vadd.f32 %v1831, %v2198
      %v2279 = vadd.f32 %v1832, %v2203
      %v2280 = vadd.f32 %v1833, %v2206
      %v2281 = vadd.f32 %v1834, %v2211
      %v2282 = vadd.f32 %v1835, %v2214
      %v2283 = vadd.f32 %v1836, %v2219
      %v2284 = vadd.f32 %v1837, %v2222
      %v2285 = vadd.f32 %v1838, %v2227
      %v2286 = vadd.f32 %v1839, %v2230
      %v2287 = vadd.f32 %v1840, %v2235
      %v2288 = vadd.f32 %v1841, %v2238
      %v2289 = vadd.f32 %v1842, %v2243
      %v2290 = vadd.f32 %v1843, %v2246
      %v2291 = vadd.f32 %v1844, %v2251
      %v2292 = vadd.f32 %v1845, %v2254
      %v2293 = vld [vmem:[%s326 + $0x8] sm:$0xc]
      %s2294 = scalar_lea.vmem %s1, 10
      %v2295 = vld [vmem:[%s2294] sm:$0x3]
      %v2297 = vunpack.c.l.b16 %v2293
      %v2298 = vpack.c.b16 %v1484, %v2297
      %vm2299 = vcmask 1045504
      %v2300 = vrot.slane %v2298, 2
      %v2301 = vrot.slane %v1521, 2
      %v2302 = vsel %vm2299, %v2300, %v2301
      %v2303 = vrot.slane %v1522, 2
      %v2304 = vsel %vm2299, %v2301, %v2303
      %v2305 = vrot.slane %v1523, 2
      %v2306 = vsel %vm2299, %v2303, %v2305
      %v2307 = vrot.slane %v1524, 2
      %v2308 = vsel %vm2299, %v2305, %v2307
      %v2309 = vrot.slane %v1525, 2
      %v2310 = vsel %vm2299, %v2307, %v2309
      %v2311 = vrot.slane %v1526, 2
      %v2312 = vsel %vm2299, %v2309, %v2311
      %v2313 = vrot.slane %v1527, 2
      %v2314 = vsel %vm2299, %v2311, %v2313
      %v2315 = vrot.slane %v1528, 2
      %v2316 = vsel %vm2299, %v2313, %v2315
      %v2317 = vrot.slane %v1529, 2
      %v2318 = vsel %vm2299, %v2315, %v2317
      %v2319 = vrot.slane %v1530, 2
      %v2320 = vsel %vm2299, %v2317, %v2319
      %v2321 = vrot.slane %v1531, 2
      %v2322 = vsel %vm2299, %v2319, %v2321
      %v2323 = vrot.slane %v1532, 2
      %v2324 = vsel %vm2299, %v2321, %v2323
      %v2325 = vrot.slane %v1533, 2
      %v2326 = vsel %vm2299, %v2323, %v2325
      %v2327 = vrot.slane %v1534, 2
      %v2328 = vsel %vm2299, %v2325, %v2327
      %v2329 = vrot.slane %v1535, 2
      %v2330 = vsel %vm2299, %v2327, %v2329
      %v2331 = vrot.slane %v1536, 2
      %v2332 = vsel %vm2299, %v2329, %v2331
      %v2333 = vrot.slane %v1537, 2
      %v2334 = vsel %vm2299, %v2331, %v2333
      %v2335 = vrot.slane %v1851, 2
      %v2336 = vsel %vm2299, %v2333, %v2335
      %v2338 = vsel %vm638, %v2302, 0
      %v2341 = vsel %vm638, %v2304, 0
      %v2344 = vsel %vm638, %v2306, 0
      %v2347 = vsel %vm638, %v2308, 0
      %v2350 = vsel %vm638, %v2310, 0
      %v2353 = vsel %vm638, %v2312, 0
      %v2356 = vsel %vm638, %v2314, 0
      %v2359 = vsel %vm638, %v2316, 0
      %v2362 = vsel %vm638, %v2318, 0
      %v2365 = vsel %vm638, %v2320, 0
      %v2368 = vsel %vm638, %v2322, 0
      %v2371 = vsel %vm638, %v2324, 0
      %v2374 = vsel %vm638, %v2326, 0
      %v2377 = vsel %vm638, %v2328, 0
      %v2380 = vsel %vm638, %v2330, 0
      %v2383 = vsel %vm638, %v2332, 0
      %v2386 = vsel %vm638, %v2334, 0
      %v2389 = vsel %vm638, %v2336, 0
      %v2392 = vand.u32 %v2295, %v696
      %2394 = vmatprep.subr.bf16.mxu0 0
      %2395 = vmatpush1.bf16.msra.mxu0 %v2392
      %2396 = vmatprep.subr.bf16.mxu0 0
      %2397 = vmatpush1.bf16.msra.mxu0 0
      %2398 = vmatprep.subr.bf16.mxu0 0
      %2399 = vmatpush1.bf16.msra.mxu0 0
      %2400 = vmatprep.subr.bf16.mxu0 0
      %2401 = vmatpush1.bf16.msra.mxu0 0
      %2402 = vmatprep.subr.bf16.mxu0 0
      %2403 = vmatpush1.bf16.msra.mxu0 0
      %2404 = vmatprep.subr.bf16.mxu0 0
      %2405 = vmatpush1.bf16.msra.mxu0 0
      %2406 = vmatprep.subr.bf16.mxu0 0
      %2407 = vmatpush1.bf16.msra.mxu0 0
      %2408 = vmatprep.subr.bf16.mxu0 0
      %2409 = vmatpush1.bf16.msra.mxu0 0
      %2410 = vmatprep.subr.bf16.mxu0 0
      %2411 = vmatpush1.bf16.msra.mxu0 0
      %2412 = vmatprep.subr.bf16.mxu0 0
      %2413 = vmatpush1.bf16.msra.mxu0 0
      %2414 = vmatprep.subr.bf16.mxu0 0
      %2415 = vmatpush1.bf16.msra.mxu0 0
      %2416 = vmatprep.subr.bf16.mxu0 0
      %2417 = vmatpush1.bf16.msra.mxu0 0
      %2418 = vmatprep.subr.bf16.mxu0 0
      %2419 = vmatpush1.bf16.msra.mxu0 0
      %2420 = vmatprep.subr.bf16.mxu0 0
      %2421 = vmatpush1.bf16.msra.mxu0 0
      %2422 = vmatprep.subr.bf16.mxu0 0
      %2423 = vmatpush1.bf16.msra.mxu0 0
      %2424 = vmatprep.subr.bf16.mxu0 0
      %2425 = vmatpush1.bf16.msra.mxu0 0
      %2426 = vmatprep.mubr.bf16.mxu0 0
      %2427 = vmatmul.mubr.bf16.gmra.mrb[0].mxu0 %v2338
      %v2428 = vpop.f32.mrb[0].mxu0
      %v2429 = vadd.f32 0.0, %v2428
      %v2430 = vpop.f32.mrb[0].mxu0
      %v2431 = vpop.f32.mrb[0].mxu0
      %v2432 = vadd.f32 0.0, %v2431
      %v2433 = vpop.f32.mrb[0].mxu0
      %2434 = vmatprep.mubr.bf16.mxu0 0
      %2435 = vmatmul.mubr.bf16.gmra.mrb[0].mxu0 %v2341
      %v2436 = vpop.f32.mrb[0].mxu0
      %v2437 = vadd.f32 0.0, %v2436
      %v2438 = vpop.f32.mrb[0].mxu0
      %v2439 = vpop.f32.mrb[0].mxu0
      %v2440 = vadd.f32 0.0, %v2439
      %v2441 = vpop.f32.mrb[0].mxu0
      %2442 = vmatprep.mubr.bf16.mxu0 0
      %2443 = vmatmul.mubr.bf16.gmra.mrb[0].mxu0 %v2344
      %v2444 = vpop.f32.mrb[0].mxu0
      %v2445 = vadd.f32 0.0, %v2444
      %v2446 = vpop.f32.mrb[0].mxu0
      %v2447 = vpop.f32.mrb[0].mxu0
      %v2448 = vadd.f32 0.0, %v2447
      %v2449 = vpop.f32.mrb[0].mxu0
      %2450 = vmatprep.mubr.bf16.mxu0 0
      %2451 = vmatmul.mubr.bf16.gmra.mrb[0].mxu0 %v2347
      %v2452 = vpop.f32.mrb[0].mxu0
      %v2453 = vadd.f32 0.0, %v2452
      %v2454 = vpop.f32.mrb[0].mxu0
      %v2455 = vpop.f32.mrb[0].mxu0
      %v2456 = vadd.f32 0.0, %v2455
      %v2457 = vpop.f32.mrb[0].mxu0
      %2458 = vmatprep.mubr.bf16.mxu0 0
      %2459 = vmatmul.mubr.bf16.gmra.mrb[0].mxu0 %v2350
      %v2460 = vpop.f32.mrb[0].mxu0
      %v2461 = vadd.f32 0.0, %v2460
      %v2462 = vpop.f32.mrb[0].mxu0
      %v2463 = vpop.f32.mrb[0].mxu0
      %v2464 = vadd.f32 0.0, %v2463
      %v2465 = vpop.f32.mrb[0].mxu0
      %2466 = vmatprep.mubr.bf16.mxu0 0
      %2467 = vmatmul.mubr.bf16.gmra.mrb[0].mxu0 %v2353
      %v2468 = vpop.f32.mrb[0].mxu0
      %v2469 = vadd.f32 0.0, %v2468
      %v2470 = vpop.f32.mrb[0].mxu0
      %v2471 = vpop.f32.mrb[0].mxu0
      %v2472 = vadd.f32 0.0, %v2471
      %v2473 = vpop.f32.mrb[0].mxu0
      %2474 = vmatprep.mubr.bf16.mxu0 0
      %2475 = vmatmul.mubr.bf16.gmra.mrb[0].mxu0 %v2356
      %v2476 = vpop.f32.mrb[0].mxu0
      %v2477 = vadd.f32 0.0, %v2476
      %v2478 = vpop.f32.mrb[0].mxu0
      %v2479 = vpop.f32.mrb[0].mxu0
      %v2480 = vadd.f32 0.0, %v2479
      %v2481 = vpop.f32.mrb[0].mxu0
      %2482 = vmatprep.mubr.bf16.mxu0 0
      %2483 = vmatmul.mubr.bf16.gmra.mrb[0].mxu0 %v2359
      %v2484 = vpop.f32.mrb[0].mxu0
      %v2485 = vadd.f32 0.0, %v2484
      %v2486 = vpop.f32.mrb[0].mxu0
      %v2487 = vpop.f32.mrb[0].mxu0
      %v2488 = vadd.f32 0.0, %v2487
      %v2489 = vpop.f32.mrb[0].mxu0
      %2490 = vmatprep.mubr.bf16.mxu0 0
      %2491 = vmatmul.mubr.bf16.gmra.mrb[0].mxu0 %v2362
      %v2492 = vpop.f32.mrb[0].mxu0
      %v2493 = vadd.f32 0.0, %v2492
      %v2494 = vpop.f32.mrb[0].mxu0
      %v2495 = vpop.f32.mrb[0].mxu0
      %v2496 = vadd.f32 0.0, %v2495
      %v2497 = vpop.f32.mrb[0].mxu0
      %2498 = vmatprep.mubr.bf16.mxu0 0
      %2499 = vmatmul.mubr.bf16.gmra.mrb[0].mxu0 %v2365
      %v2500 = vpop.f32.mrb[0].mxu0
      %v2501 = vadd.f32 0.0, %v2500
      %v2502 = vpop.f32.mrb[0].mxu0
      %v2503 = vpop.f32.mrb[0].mxu0
      %v2504 = vadd.f32 0.0, %v2503
      %v2505 = vpop.f32.mrb[0].mxu0
      %2506 = vmatprep.mubr.bf16.mxu0 0
      %2507 = vmatmul.mubr.bf16.gmra.mrb[0].mxu0 %v2368
      %v2508 = vpop.f32.mrb[0].mxu0
      %v2509 = vadd.f32 0.0, %v2508
      %v2510 = vpop.f32.mrb[0].mxu0
      %v2511 = vpop.f32.mrb[0].mxu0
      %v2512 = vadd.f32 0.0, %v2511
      %v2513 = vpop.f32.mrb[0].mxu0
      %2514 = vmatprep.mubr.bf16.mxu0 0
      %2515 = vmatmul.mubr.bf16.gmra.mrb[0].mxu0 %v2371
      %v2516 = vpop.f32.mrb[0].mxu0
      %v2517 = vadd.f32 0.0, %v2516
      %v2518 = vpop.f32.mrb[0].mxu0
      %v2519 = vpop.f32.mrb[0].mxu0
      %v2520 = vadd.f32 0.0, %v2519
      %v2521 = vpop.f32.mrb[0].mxu0
      %2522 = vmatprep.mubr.bf16.mxu0 0
      %2523 = vmatmul.mubr.bf16.gmra.mrb[0].mxu0 %v2374
      %v2524 = vpop.f32.mrb[0].mxu0
      %v2525 = vadd.f32 0.0, %v2524
      %v2526 = vpop.f32.mrb[0].mxu0
      %v2527 = vpop.f32.mrb[0].mxu0
      %v2528 = vadd.f32 0.0, %v2527
      %v2529 = vpop.f32.mrb[0].mxu0
      %2530 = vmatprep.mubr.bf16.mxu0 0
      %2531 = vmatmul.mubr.bf16.gmra.mrb[0].mxu0 %v2377
      %v2532 = vpop.f32.mrb[0].mxu0
      %v2533 = vadd.f32 0.0, %v2532
      %v2534 = vpop.f32.mrb[0].mxu0
      %v2535 = vpop.f32.mrb[0].mxu0
      %v2536 = vadd.f32 0.0, %v2535
      %v2537 = vpop.f32.mrb[0].mxu0
      %2538 = vmatprep.mubr.bf16.mxu0 0
      %2539 = vmatmul.mubr.bf16.gmra.mrb[0].mxu0 %v2380
      %v2540 = vpop.f32.mrb[0].mxu0
      %v2541 = vadd.f32 0.0, %v2540
      %v2542 = vpop.f32.mrb[0].mxu0
      %v2543 = vpop.f32.mrb[0].mxu0
      %v2544 = vadd.f32 0.0, %v2543
      %v2545 = vpop.f32.mrb[0].mxu0
      %2546 = vmatprep.mubr.bf16.mxu0 0
      %2547 = vmatmul.mubr.bf16.gmra.mrb[0].mxu0 %v2383
      %v2548 = vpop.f32.mrb[0].mxu0
      %v2549 = vadd.f32 0.0, %v2548
      %v2550 = vpop.f32.mrb[0].mxu0
      %v2551 = vpop.f32.mrb[0].mxu0
      %v2552 = vadd.f32 0.0, %v2551
      %v2553 = vpop.f32.mrb[0].mxu0
      %2554 = vmatprep.mubr.bf16.mxu0 0
      %2555 = vmatmul.mubr.bf16.gmra.mrb[0].mxu0 %v2386
      %v2556 = vpop.f32.mrb[0].mxu0
      %v2557 = vadd.f32 0.0, %v2556
      %v2558 = vpop.f32.mrb[0].mxu0
      %v2559 = vpop.f32.mrb[0].mxu0
      %v2560 = vadd.f32 0.0, %v2559
      %v2561 = vpop.f32.mrb[0].mxu0
      %2562 = vmatprep.mubr.bf16.mxu0 0
      %2563 = vmatmul.mubr.bf16.gmra.mrb[0].mxu0 %v2389
      %v2564 = vpop.f32.mrb[0].mxu0
      %v2565 = vadd.f32 0.0, %v2564
      %v2566 = vpop.f32.mrb[0].mxu0
      %v2567 = vpop.f32.mrb[0].mxu0
      %v2568 = vadd.f32 0.0, %v2567
      %v2569 = vpop.f32.mrb[0].mxu0
      %2570 = vdwg.mxu0
      %v2571 = vadd.f32 %v2257, %v2429
      %v2572 = vadd.f32 %v2258, %v2432
      %v2573 = vadd.f32 %v2259, %v2437
      %v2574 = vadd.f32 %v2260, %v2440
      %v2575 = vadd.f32 %v2261, %v2445
      %v2576 = vadd.f32 %v2262, %v2448
      %v2577 = vadd.f32 %v2263, %v2453
      %v2578 = vadd.f32 %v2264, %v2456
      %v2579 = vadd.f32 %v2265, %v2461
      %v2580 = vadd.f32 %v2266, %v2464
      %v2581 = vadd.f32 %v2267, %v2469
      %v2582 = vadd.f32 %v2268, %v2472
      %v2583 = vadd.f32 %v2269, %v2477
      %v2584 = vadd.f32 %v2270, %v2480
      %v2585 = vadd.f32 %v2271, %v2485
      %v2586 = vadd.f32 %v2272, %v2488
      %v2587 = vadd.f32 %v2273, %v2493
      %v2588 = vadd.f32 %v2274, %v2496
      %v2589 = vadd.f32 %v2275, %v2501
      %v2590 = vadd.f32 %v2276, %v2504
      %v2591 = vadd.f32 %v2277, %v2509
      %v2592 = vadd.f32 %v2278, %v2512
      %v2593 = vadd.f32 %v2279, %v2517
      %v2594 = vadd.f32 %v2280, %v2520
      %v2595 = vadd.f32 %v2281, %v2525
      %v2596 = vadd.f32 %v2282, %v2528
      %v2597 = vadd.f32 %v2283, %v2533
      %v2598 = vadd.f32 %v2284, %v2536
      %v2599 = vadd.f32 %v2285, %v2541
      %v2600 = vadd.f32 %v2286, %v2544
      %v2601 = vadd.f32 %v2287, %v2549
      %v2602 = vadd.f32 %v2288, %v2552
      %v2603 = vadd.f32 %v2289, %v2557
      %v2604 = vadd.f32 %v2290, %v2560
      %v2605 = vadd.f32 %v2291, %v2565
      %v2606 = vadd.f32 %v2292, %v2568
      %v2607 = vld [vmem:[%s326 + $0x10] sm:$0xc]
      %v2608 = vld [vmem:[%s326 + $0x14] sm:$0xf]
      %v2609 = vld [vmem:[%s326 + $0x18] sm:$0xf]
      %v2610 = vld [vmem:[%s326 + $0x1c] sm:$0xf]
      %v2611 = vld [vmem:[%s326 + $0x20] sm:$0xf]
      %v2612 = vld [vmem:[%s326 + $0x24] sm:$0xf]
      %v2613 = vld [vmem:[%s326 + $0x28] sm:$0xf]
      %v2614 = vld [vmem:[%s326 + $0x2c] sm:$0xf]
      %v2615 = vld [vmem:[%s326 + $0x30] sm:$0xf]
      %v2616 = vld [vmem:[%s326 + $0x34] sm:$0xf]
      %v2617 = vld [vmem:[%s326 + $0x38] sm:$0xf]
      %v2618 = vld [vmem:[%s326 + $0x3c] sm:$0xf]
      %v2619 = vld [vmem:[%s326 + $0x40] sm:$0xf]
      %v2620 = vld [vmem:[%s326 + $0x44] sm:$0xf]
      %v2621 = vld [vmem:[%s326 + $0x48] sm:$0xf]
      %v2622 = vld [vmem:[%s326 + $0x4c] sm:$0xf]
      %v2623 = vld [vmem:[%s326 + $0x50] sm:$0xf]
      %v2624 = vld [vmem:[%s326 + $0x54] sm:$0xf]
      %v2625 = vld [vmem:[%s326 + $0x58] sm:$0xf]
      %v2626 = vld [vmem:[%s326 + $0x5c] sm:$0xf]
      %v2627 = vld [vmem:[%s326 + $0x60] sm:$0xf]
      %v2628 = vld [vmem:[%s326 + $0x64] sm:$0xf]
      %v2629 = vld [vmem:[%s326 + $0x68] sm:$0xf]
      %v2630 = vld [vmem:[%s326 + $0x6c] sm:$0xf]
      %v2631 = vld [vmem:[%s326 + $0x70] sm:$0xf]
      %v2632 = vld [vmem:[%s326 + $0x74] sm:$0xf]
      %v2633 = vld [vmem:[%s326 + $0x78] sm:$0xf]
      %v2634 = vld [vmem:[%s326 + $0x7c] sm:$0xf]
      %v2635 = vld [vmem:[%s326 + $0x80] sm:$0xf]
      %v2636 = vld [vmem:[%s326 + $0x84] sm:$0xf]
      %v2637 = vld [vmem:[%s326 + $0x88] sm:$0xf]
      %v2638 = vld [vmem:[%s326 + $0x8c] sm:$0xf]
      %v2639 = vld [vmem:[%s326 + $0x90] sm:$0xf]
      %v2640 = vld [vmem:[%s326 + $0x94] sm:$0xf]
      %v2641 = vld [vmem:[%s326 + $0x98] sm:$0xf]
      %v2642 = vld [vmem:[%s326 + $0x9c] sm:$0xf]
      %v2643 = vld [vmem:[%s326 + $0xa0] sm:$0x3]
      %s2644 = scalar_lea.vmem %s1, 12
      %v2645 = vld [vmem:[%s2644] sm:$0x3]
      %v2683 = vunpack.c.l.b16 %v2607
      %v2684 = vunpack.c.l.b16 %v2608
      %v2685 = vunpack.c.l.b16 %v2609
      %v2686 = vunpack.c.l.b16 %v2610
      %v2687 = vunpack.c.l.b16 %v2611
      %v2688 = vunpack.c.l.b16 %v2612
      %v2689 = vunpack.c.l.b16 %v2613
      %v2690 = vunpack.c.l.b16 %v2614
      %v2691 = vunpack.c.l.b16 %v2615
      %v2692 = vunpack.c.l.b16 %v2616
      %v2693 = vunpack.c.l.b16 %v2617
      %v2694 = vunpack.c.l.b16 %v2618
      %v2695 = vunpack.c.l.b16 %v2619
      %v2696 = vunpack.c.l.b16 %v2620
      %v2697 = vunpack.c.l.b16 %v2621
      %v2698 = vunpack.c.l.b16 %v2622
      %v2699 = vunpack.c.l.b16 %v2623
      %v2700 = vunpack.c.l.b16 %v2624
      %v2701 = vunpack.c.l.b16 %v2625
      %v2702 = vunpack.c.l.b16 %v2626
      %v2703 = vunpack.c.l.b16 %v2627
      %v2704 = vunpack.c.l.b16 %v2628
      %v2705 = vunpack.c.l.b16 %v2629
      %v2706 = vunpack.c.l.b16 %v2630
      %v2707 = vunpack.c.l.b16 %v2631
      %v2708 = vunpack.c.l.b16 %v2632
      %v2709 = vunpack.c.l.b16 %v2633
      %v2710 = vunpack.c.l.b16 %v2634
      %v2711 = vunpack.c.l.b16 %v2635
      %v2712 = vunpack.c.l.b16 %v2636
      %v2713 = vunpack.c.l.b16 %v2637
      %v2714 = vunpack.c.l.b16 %v2638
      %v2715 = vunpack.c.l.b16 %v2639
      %v2716 = vunpack.c.l.b16 %v2640
      %v2717 = vunpack.c.l.b16 %v2641
      %v2718 = vunpack.c.l.b16 %v2642
      %v2719 = vunpack.c.l.b16 %v2643
      %v2720 = vpack.c.b16 %v2684, %v2683
      %v2721 = vpack.c.b16 %v2686, %v2685
      %v2722 = vpack.c.b16 %v2688, %v2687
      %v2723 = vpack.c.b16 %v2690, %v2689
      %v2724 = vpack.c.b16 %v2692, %v2691
      %v2725 = vpack.c.b16 %v2694, %v2693
      %v2726 = vpack.c.b16 %v2696, %v2695
      %v2727 = vpack.c.b16 %v2698, %v2697
      %v2728 = vpack.c.b16 %v2700, %v2699
      %v2729 = vpack.c.b16 %v2702, %v2701
      %v2730 = vpack.c.b16 %v2704, %v2703
      %v2731 = vpack.c.b16 %v2706, %v2705
      %v2732 = vpack.c.b16 %v2708, %v2707
      %v2733 = vpack.c.b16 %v2710, %v2709
      %v2734 = vpack.c.b16 %v2712, %v2711
      %v2735 = vpack.c.b16 %v2714, %v2713
      %v2736 = vpack.c.b16 %v2716, %v2715
      %v2737 = vpack.c.b16 %v2718, %v2717
      %v2738 = vpack.c.b16 %v2719, %v2719
      %v2739 = vrot.slane %v2720, 2
      %v2740 = vrot.slane %v2721, 2
      %v2741 = vsel %vm2299, %v2739, %v2740
      %v2742 = vrot.slane %v2722, 2
      %v2743 = vsel %vm2299, %v2740, %v2742
      %v2744 = vrot.slane %v2723, 2
      %v2745 = vsel %vm2299, %v2742, %v2744
      %v2746 = vrot.slane %v2724, 2
      %v2747 = vsel %vm2299, %v2744, %v2746
      %v2748 = vrot.slane %v2725, 2
      %v2749 = vsel %vm2299, %v2746, %v2748
      %v2750 = vrot.slane %v2726, 2
      %v2751 = vsel %vm2299, %v2748, %v2750
      %v2752 = vrot.slane %v2727, 2
      %v2753 = vsel %vm2299, %v2750, %v2752
      %v2754 = vrot.slane %v2728, 2
      %v2755 = vsel %vm2299, %v2752, %v2754
      %v2756 = vrot.slane %v2729, 2
      %v2757 = vsel %vm2299, %v2754, %v2756
      %v2758 = vrot.slane %v2730, 2
      %v2759 = vsel %vm2299, %v2756, %v2758
      %v2760 = vrot.slane %v2731, 2
      %v2761 = vsel %vm2299, %v2758, %v2760
      %v2762 = vrot.slane %v2732, 2
      %v2763 = vsel %vm2299, %v2760, %v2762
      %v2764 = vrot.slane %v2733, 2
      %v2765 = vsel %vm2299, %v2762, %v2764
      %v2766 = vrot.slane %v2734, 2
      %v2767 = vsel %vm2299, %v2764, %v2766
      %v2768 = vrot.slane %v2735, 2
      %v2769 = vsel %vm2299, %v2766, %v2768
      %v2770 = vrot.slane %v2736, 2
      %v2771 = vsel %vm2299, %v2768, %v2770
      %v2772 = vrot.slane %v2737, 2
      %v2773 = vsel %vm2299, %v2770, %v2772
      %v2774 = vrot.slane %v2738, 2
      %v2775 = vsel %vm2299, %v2772, %v2774
      %v2777 = vsel %vm638, %v2741, 0
      %v2780 = vsel %vm638, %v2743, 0
      %v2783 = vsel %vm638, %v2745, 0
      %v2786 = vsel %vm638, %v2747, 0
      %v2789 = vsel %vm638, %v2749, 0
      %v2792 = vsel %vm638, %v2751, 0
      %v2795 = vsel %vm638, %v2753, 0
      %v2798 = vsel %vm638, %v2755, 0
      %v2801 = vsel %vm638, %v2757, 0
      %v2804 = vsel %vm638, %v2759, 0
      %v2807 = vsel %vm638, %v2761, 0
      %v2810 = vsel %vm638, %v2763, 0
      %v2813 = vsel %vm638, %v2765, 0
      %v2816 = vsel %vm638, %v2767, 0
      %v2819 = vsel %vm638, %v2769, 0
      %v2822 = vsel %vm638, %v2771, 0
      %v2825 = vsel %vm638, %v2773, 0
      %v2828 = vsel %vm638, %v2775, 0
      %v2831 = vand.u32 %v2645, %v696
      %2833 = vmatprep.subr.bf16.mxu0 0
      %2834 = vmatpush1.bf16.msra.mxu0 %v2831
      %2835 = vmatprep.subr.bf16.mxu0 0
      %2836 = vmatpush1.bf16.msra.mxu0 0
      %2837 = vmatprep.subr.bf16.mxu0 0
      %2838 = vmatpush1.bf16.msra.mxu0 0
      %2839 = vmatprep.subr.bf16.mxu0 0
      %2840 = vmatpush1.bf16.msra.mxu0 0
      %2841 = vmatprep.subr.bf16.mxu0 0
      %2842 = vmatpush1.bf16.msra.mxu0 0
      %2843 = vmatprep.subr.bf16.mxu0 0
      %2844 = vmatpush1.bf16.msra.mxu0 0
      %2845 = vmatprep.subr.bf16.mxu0 0
      %2846 = vmatpush1.bf16.msra.mxu0 0
      %2847 = vmatprep.subr.bf16.mxu0 0
      %2848 = vmatpush1.bf16.msra.mxu0 0
      %2849 = vmatprep.subr.bf16.mxu0 0
      %2850 = vmatpush1.bf16.msra.mxu0 0
      %2851 = vmatprep.subr.bf16.mxu0 0
      %2852 = vmatpush1.bf16.msra.mxu0 0
      %2853 = vmatprep.subr.bf16.mxu0 0
      %2854 = vmatpush1.bf16.msra.mxu0 0
      %2855 = vmatprep.subr.bf16.mxu0 0
      %2856 = vmatpush1.bf16.msra.mxu0 0
      %2857 = vmatprep.subr.bf16.mxu0 0
      %2858 = vmatpush1.bf16.msra.mxu0 0
      %2859 = vmatprep.subr.bf16.mxu0 0
      %2860 = vmatpush1.bf16.msra.mxu0 0
      %2861 = vmatprep.subr.bf16.mxu0 0
      %2862 = vmatpush1.bf16.msra.mxu0 0
      %2863 = vmatprep.subr.bf16.mxu0 0
      %2864 = vmatpush1.bf16.msra.mxu0 0
      %2865 = vmatprep.mubr.bf16.mxu0 0
      %2866 = vmatmul.mubr.bf16.gmra.mrb[0].mxu0 %v2777
      %v2867 = vpop.f32.mrb[0].mxu0
      %v2868 = vadd.f32 0.0, %v2867
      %v2869 = vpop.f32.mrb[0].mxu0
      %v2870 = vpop.f32.mrb[0].mxu0
      %v2871 = vadd.f32 0.0, %v2870
      %v2872 = vpop.f32.mrb[0].mxu0
      %2873 = vmatprep.mubr.bf16.mxu0 0
      %2874 = vmatmul.mubr.bf16.gmra.mrb[0].mxu0 %v2780
      %v2875 = vpop.f32.mrb[0].mxu0
      %v2876 = vadd.f32 0.0, %v2875
      %v2877 = vpop.f32.mrb[0].mxu0
      %v2878 = vpop.f32.mrb[0].mxu0
      %v2879 = vadd.f32 0.0, %v2878
      %v2880 = vpop.f32.mrb[0].mxu0
      %2881 = vmatprep.mubr.bf16.mxu0 0
      %2882 = vmatmul.mubr.bf16.gmra.mrb[0].mxu0 %v2783
      %v2883 = vpop.f32.mrb[0].mxu0
      %v2884 = vadd.f32 0.0, %v2883
      %v2885 = vpop.f32.mrb[0].mxu0
      %v2886 = vpop.f32.mrb[0].mxu0
      %v2887 = vadd.f32 0.0, %v2886
      %v2888 = vpop.f32.mrb[0].mxu0
      %2889 = vmatprep.mubr.bf16.mxu0 0
      %2890 = vmatmul.mubr.bf16.gmra.mrb[0].mxu0 %v2786
      %v2891 = vpop.f32.mrb[0].mxu0
      %v2892 = vadd.f32 0.0, %v2891
      %v2893 = vpop.f32.mrb[0].mxu0
      %v2894 = vpop.f32.mrb[0].mxu0
      %v2895 = vadd.f32 0.0, %v2894
      %v2896 = vpop.f32.mrb[0].mxu0
      %2897 = vmatprep.mubr.bf16.mxu0 0
      %2898 = vmatmul.mubr.bf16.gmra.mrb[0].mxu0 %v2789
      %v2899 = vpop.f32.mrb[0].mxu0
      %v2900 = vadd.f32 0.0, %v2899
      %v2901 = vpop.f32.mrb[0].mxu0
      %v2902 = vpop.f32.mrb[0].mxu0
      %v2903 = vadd.f32 0.0, %v2902
      %v2904 = vpop.f32.mrb[0].mxu0
      %2905 = vmatprep.mubr.bf16.mxu0 0
      %2906 = vmatmul.mubr.bf16.gmra.mrb[0].mxu0 %v2792
      %v2907 = vpop.f32.mrb[0].mxu0
      %v2908 = vadd.f32 0.0, %v2907
      %v2909 = vpop.f32.mrb[0].mxu0
      %v2910 = vpop.f32.mrb[0].mxu0
      %v2911 = vadd.f32 0.0, %v2910
      %v2912 = vpop.f32.mrb[0].mxu0
      %2913 = vmatprep.mubr.bf16.mxu0 0
      %2914 = vmatmul.mubr.bf16.gmra.mrb[0].mxu0 %v2795
      %v2915 = vpop.f32.mrb[0].mxu0
      %v2916 = vadd.f32 0.0, %v2915
      %v2917 = vpop.f32.mrb[0].mxu0
      %v2918 = vpop.f32.mrb[0].mxu0
      %v2919 = vadd.f32 0.0, %v2918
      %v2920 = vpop.f32.mrb[0].mxu0
      %2921 = vmatprep.mubr.bf16.mxu0 0
      %2922 = vmatmul.mubr.bf16.gmra.mrb[0].mxu0 %v2798
      %v2923 = vpop.f32.mrb[0].mxu0
      %v2924 = vadd.f32 0.0, %v2923
      %v2925 = vpop.f32.mrb[0].mxu0
      %v2926 = vpop.f32.mrb[0].mxu0
      %v2927 = vadd.f32 0.0, %v2926
      %v2928 = vpop.f32.mrb[0].mxu0
      %2929 = vmatprep.mubr.bf16.mxu0 0
      %2930 = vmatmul.mubr.bf16.gmra.mrb[0].mxu0 %v2801
      %v2931 = vpop.f32.mrb[0].mxu0
      %v2932 = vadd.f32 0.0, %v2931
      %v2933 = vpop.f32.mrb[0].mxu0
      %v2934 = vpop.f32.mrb[0].mxu0
      %v2935 = vadd.f32 0.0, %v2934
      %v2936 = vpop.f32.mrb[0].mxu0
      %2937 = vmatprep.mubr.bf16.mxu0 0
      %2938 = vmatmul.mubr.bf16.gmra.mrb[0].mxu0 %v2804
      %v2939 = vpop.f32.mrb[0].mxu0
      %v2940 = vadd.f32 0.0, %v2939
      %v2941 = vpop.f32.mrb[0].mxu0
      %v2942 = vpop.f32.mrb[0].mxu0
      %v2943 = vadd.f32 0.0, %v2942
      %v2944 = vpop.f32.mrb[0].mxu0
      %2945 = vmatprep.mubr.bf16.mxu0 0
      %2946 = vmatmul.mubr.bf16.gmra.mrb[0].mxu0 %v2807
      %v2947 = vpop.f32.mrb[0].mxu0
      %v2948 = vadd.f32 0.0, %v2947
      %v2949 = vpop.f32.mrb[0].mxu0
      %v2950 = vpop.f32.mrb[0].mxu0
      %v2951 = vadd.f32 0.0, %v2950
      %v2952 = vpop.f32.mrb[0].mxu0
      %2953 = vmatprep.mubr.bf16.mxu0 0
      %2954 = vmatmul.mubr.bf16.gmra.mrb[0].mxu0 %v2810
      %v2955 = vpop.f32.mrb[0].mxu0
      %v2956 = vadd.f32 0.0, %v2955
      %v2957 = vpop.f32.mrb[0].mxu0
      %v2958 = vpop.f32.mrb[0].mxu0
      %v2959 = vadd.f32 0.0, %v2958
      %v2960 = vpop.f32.mrb[0].mxu0
      %2961 = vmatprep.mubr.bf16.mxu0 0
      %2962 = vmatmul.mubr.bf16.gmra.mrb[0].mxu0 %v2813
      %v2963 = vpop.f32.mrb[0].mxu0
      %v2964 = vadd.f32 0.0, %v2963
      %v2965 = vpop.f32.mrb[0].mxu0
      %v2966 = vpop.f32.mrb[0].mxu0
      %v2967 = vadd.f32 0.0, %v2966
      %v2968 = vpop.f32.mrb[0].mxu0
      %2969 = vmatprep.mubr.bf16.mxu0 0
      %2970 = vmatmul.mubr.bf16.gmra.mrb[0].mxu0 %v2816
      %v2971 = vpop.f32.mrb[0].mxu0
      %v2972 = vadd.f32 0.0, %v2971
      %v2973 = vpop.f32.mrb[0].mxu0
      %v2974 = vpop.f32.mrb[0].mxu0
      %v2975 = vadd.f32 0.0, %v2974
      %v2976 = vpop.f32.mrb[0].mxu0
      %2977 = vmatprep.mubr.bf16.mxu0 0
      %2978 = vmatmul.mubr.bf16.gmra.mrb[0].mxu0 %v2819
      %v2979 = vpop.f32.mrb[0].mxu0
      %v2980 = vadd.f32 0.0, %v2979
      %v2981 = vpop.f32.mrb[0].mxu0
      %v2982 = vpop.f32.mrb[0].mxu0
      %v2983 = vadd.f32 0.0, %v2982
      %v2984 = vpop.f32.mrb[0].mxu0
      %2985 = vmatprep.mubr.bf16.mxu0 0
      %2986 = vmatmul.mubr.bf16.gmra.mrb[0].mxu0 %v2822
      %v2987 = vpop.f32.mrb[0].mxu0
      %v2988 = vadd.f32 0.0, %v2987
      %v2989 = vpop.f32.mrb[0].mxu0
      %v2990 = vpop.f32.mrb[0].mxu0
      %v2991 = vadd.f32 0.0, %v2990
      %v2992 = vpop.f32.mrb[0].mxu0
      %2993 = vmatprep.mubr.bf16.mxu0 0
      %2994 = vmatmul.mubr.bf16.gmra.mrb[0].mxu0 %v2825
      %v2995 = vpop.f32.mrb[0].mxu0
      %v2996 = vadd.f32 0.0, %v2995
      %v2997 = vpop.f32.mrb[0].mxu0
      %v2998 = vpop.f32.mrb[0].mxu0
      %v2999 = vadd.f32 0.0, %v2998
      %v3000 = vpop.f32.mrb[0].mxu0
      %3001 = vmatprep.mubr.bf16.mxu0 0
      %3002 = vmatmul.mubr.bf16.gmra.mrb[0].mxu0 %v2828
      %v3003 = vpop.f32.mrb[0].mxu0
      %v3004 = vadd.f32 0.0, %v3003
      %v3005 = vpop.f32.mrb[0].mxu0
      %v3006 = vpop.f32.mrb[0].mxu0
      %v3007 = vadd.f32 0.0, %v3006
      %v3008 = vpop.f32.mrb[0].mxu0
      %3009 = vdwg.mxu0
      %v3010 = vadd.f32 %v2571, %v2868
      %v3011 = vadd.f32 %v2572, %v2871
      %v3012 = vadd.f32 %v2573, %v2876
      %v3013 = vadd.f32 %v2574, %v2879
      %v3014 = vadd.f32 %v2575, %v2884
      %v3015 = vadd.f32 %v2576, %v2887
      %v3016 = vadd.f32 %v2577, %v2892
      %v3017 = vadd.f32 %v2578, %v2895
      %v3018 = vadd.f32 %v2579, %v2900
      %v3019 = vadd.f32 %v2580, %v2903
      %v3020 = vadd.f32 %v2581, %v2908
      %v3021 = vadd.f32 %v2582, %v2911
      %v3022 = vadd.f32 %v2583, %v2916
      %v3023 = vadd.f32 %v2584, %v2919
      %v3024 = vadd.f32 %v2585, %v2924
      %v3025 = vadd.f32 %v2586, %v2927
      %v3026 = vadd.f32 %v2587, %v2932
      %v3027 = vadd.f32 %v2588, %v2935
      %v3028 = vadd.f32 %v2589, %v2940
      %v3029 = vadd.f32 %v2590, %v2943
      %v3030 = vadd.f32 %v2591, %v2948
      %v3031 = vadd.f32 %v2592, %v2951
      %v3032 = vadd.f32 %v2593, %v2956
      %v3033 = vadd.f32 %v2594, %v2959
      %v3034 = vadd.f32 %v2595, %v2964
      %v3035 = vadd.f32 %v2596, %v2967
      %v3036 = vadd.f32 %v2597, %v2972
      %v3037 = vadd.f32 %v2598, %v2975
      %v3038 = vadd.f32 %v2599, %v2980
      %v3039 = vadd.f32 %v2600, %v2983
      %v3040 = vadd.f32 %v2601, %v2988
      %v3041 = vadd.f32 %v2602, %v2991
      %v3042 = vadd.f32 %v2603, %v2996
      %v3043 = vadd.f32 %v2604, %v2999
      %v3044 = vadd.f32 %v2605, %v3004
      %v3045 = vadd.f32 %v2606, %v3007
      %v3046 = vld [vmem:[%s326 + $0xa0] sm:$0x7]
      %s3047 = scalar_lea.vmem %s1, 14
      %v3048 = vld [vmem:[%s3047] sm:$0x3]
      %v3050 = vunpack.c.l.b16 %v3046
      %v3051 = vpack.c.b16 %v3050, %v3050
      %vm3052 = vsmask.f32 5376
      %v3054 = vshrl.u32 %v2720, 16
      %v3056 = vrot.slane %v3054, 2
      %v3057 = vshll.u32 %v2720, 16
      %v3059 = vrot.slane %v3057, 3
      %v3060 = vor.u32 %v3056, %v3059
      %v3062 = vshrl.u32 %v2721, 16
      %v3064 = vrot.slane %v3062, 2
      %v3065 = vshll.u32 %v2721, 16
      %v3067 = vrot.slane %v3065, 3
      %v3068 = vor.u32 %v3064, %v3067
      %v3069 = vsel %vm3052, %v3060, %v3068
      %v3071 = vshrl.u32 %v2722, 16
      %v3073 = vrot.slane %v3071, 2
      %v3074 = vshll.u32 %v2722, 16
      %v3076 = vrot.slane %v3074, 3
      %v3077 = vor.u32 %v3073, %v3076
      %v3078 = vsel %vm3052, %v3068, %v3077
      %v3080 = vshrl.u32 %v2723, 16
      %v3082 = vrot.slane %v3080, 2
      %v3083 = vshll.u32 %v2723, 16
      %v3085 = vrot.slane %v3083, 3
      %v3086 = vor.u32 %v3082, %v3085
      %v3087 = vsel %vm3052, %v3077, %v3086
      %v3089 = vshrl.u32 %v2724, 16
      %v3091 = vrot.slane %v3089, 2
      %v3092 = vshll.u32 %v2724, 16
      %v3094 = vrot.slane %v3092, 3
      %v3095 = vor.u32 %v3091, %v3094
      %v3096 = vsel %vm3052, %v3086, %v3095
      %v3098 = vshrl.u32 %v2725, 16
      %v3100 = vrot.slane %v3098, 2
      %v3101 = vshll.u32 %v2725, 16
      %v3103 = vrot.slane %v3101, 3
      %v3104 = vor.u32 %v3100, %v3103
      %v3105 = vsel %vm3052, %v3095, %v3104
      %v3107 = vshrl.u32 %v2726, 16
      %v3109 = vrot.slane %v3107, 2
      %v3110 = vshll.u32 %v2726, 16
      %v3112 = vrot.slane %v3110, 3
      %v3113 = vor.u32 %v3109, %v3112
      %v3114 = vsel %vm3052, %v3104, %v3113
      %v3116 = vshrl.u32 %v2727, 16
      %v3118 = vrot.slane %v3116, 2
      %v3119 = vshll.u32 %v2727, 16
      %v3121 = vrot.slane %v3119, 3
      %v3122 = vor.u32 %v3118, %v3121
      %v3123 = vsel %vm3052, %v3113, %v3122
      %v3125 = vshrl.u32 %v2728, 16
      %v3127 = vrot.slane %v3125, 2
      %v3128 = vshll.u32 %v2728, 16
      %v3130 = vrot.slane %v3128, 3
      %v3131 = vor.u32 %v3127, %v3130
      %v3132 = vsel %vm3052, %v3122, %v3131
      %v3134 = vshrl.u32 %v2729, 16
      %v3136 = vrot.slane %v3134, 2
      %v3137 = vshll.u32 %v2729, 16
      %v3139 = vrot.slane %v3137, 3
      %v3140 = vor.u32 %v3136, %v3139
      %v3141 = vsel %vm3052, %v3131, %v3140
      %v3143 = vshrl.u32 %v2730, 16
      %v3145 = vrot.slane %v3143, 2
      %v3146 = vshll.u32 %v2730, 16
      %v3148 = vrot.slane %v3146, 3
      %v3149 = vor.u32 %v3145, %v3148
      %v3150 = vsel %vm3052, %v3140, %v3149
      %v3152 = vshrl.u32 %v2731, 16
      %v3154 = vrot.slane %v3152, 2
      %v3155 = vshll.u32 %v2731, 16
      %v3157 = vrot.slane %v3155, 3
      %v3158 = vor.u32 %v3154, %v3157
      %v3159 = vsel %vm3052, %v3149, %v3158
      %v3161 = vshrl.u32 %v2732, 16
      %v3163 = vrot.slane %v3161, 2
      %v3164 = vshll.u32 %v2732, 16
      %v3166 = vrot.slane %v3164, 3
      %v3167 = vor.u32 %v3163, %v3166
      %v3168 = vsel %vm3052, %v3158, %v3167
      %v3170 = vshrl.u32 %v2733, 16
      %v3172 = vrot.slane %v3170, 2
      %v3173 = vshll.u32 %v2733, 16
      %v3175 = vrot.slane %v3173, 3
      %v3176 = vor.u32 %v3172, %v3175
      %v3177 = vsel %vm3052, %v3167, %v3176
      %v3179 = vshrl.u32 %v2734, 16
      %v3181 = vrot.slane %v3179, 2
      %v3182 = vshll.u32 %v2734, 16
      %v3184 = vrot.slane %v3182, 3
      %v3185 = vor.u32 %v3181, %v3184
      %v3186 = vsel %vm3052, %v3176, %v3185
      %v3188 = vshrl.u32 %v2735, 16
      %v3190 = vrot.slane %v3188, 2
      %v3191 = vshll.u32 %v2735, 16
      %v3193 = vrot.slane %v3191, 3
      %v3194 = vor.u32 %v3190, %v3193
      %v3195 = vsel %vm3052, %v3185, %v3194
      %v3197 = vshrl.u32 %v2736, 16
      %v3199 = vrot.slane %v3197, 2
      %v3200 = vshll.u32 %v2736, 16
      %v3202 = vrot.slane %v3200, 3
      %v3203 = vor.u32 %v3199, %v3202
      %v3204 = vsel %vm3052, %v3194, %v3203
      %v3206 = vshrl.u32 %v2737, 16
      %v3208 = vrot.slane %v3206, 2
      %v3209 = vshll.u32 %v2737, 16
      %v3211 = vrot.slane %v3209, 3
      %v3212 = vor.u32 %v3208, %v3211
      %v3213 = vsel %vm3052, %v3203, %v3212
      %v3215 = vshrl.u32 %v3051, 16
      %v3217 = vrot.slane %v3215, 2
      %v3218 = vshll.u32 %v3051, 16
      %v3220 = vrot.slane %v3218, 3
      %v3221 = vor.u32 %v3217, %v3220
      %v3222 = vsel %vm3052, %v3212, %v3221
      %v3224 = vsel %vm638, %v3069, 0
      %v3227 = vsel %vm638, %v3078, 0
      %v3230 = vsel %vm638, %v3087, 0
      %v3233 = vsel %vm638, %v3096, 0
      %v3236 = vsel %vm638, %v3105, 0
      %v3239 = vsel %vm638, %v3114, 0
      %v3242 = vsel %vm638, %v3123, 0
      %v3245 = vsel %vm638, %v3132, 0
      %v3248 = vsel %vm638, %v3141, 0
      %v3251 = vsel %vm638, %v3150, 0
      %v3254 = vsel %vm638, %v3159, 0
      %v3257 = vsel %vm638, %v3168, 0
      %v3260 = vsel %vm638, %v3177, 0
      %v3263 = vsel %vm638, %v3186, 0
      %v3266 = vsel %vm638, %v3195, 0
      %v3269 = vsel %vm638, %v3204, 0
      %v3272 = vsel %vm638, %v3213, 0
      %v3275 = vsel %vm638, %v3222, 0
      %v3278 = vand.u32 %v3048, %v696
      %3280 = vmatprep.subr.bf16.mxu0 0
      %3281 = vmatpush1.bf16.msra.mxu0 %v3278
      %3282 = vmatprep.subr.bf16.mxu0 0
      %3283 = vmatpush1.bf16.msra.mxu0 0
      %3284 = vmatprep.subr.bf16.mxu0 0
      %3285 = vmatpush1.bf16.msra.mxu0 0
      %3286 = vmatprep.subr.bf16.mxu0 0
      %3287 = vmatpush1.bf16.msra.mxu0 0
      %3288 = vmatprep.subr.bf16.mxu0 0
      %3289 = vmatpush1.bf16.msra.mxu0 0
      %3290 = vmatprep.subr.bf16.mxu0 0
      %3291 = vmatpush1.bf16.msra.mxu0 0
      %3292 = vmatprep.subr.bf16.mxu0 0
      %3293 = vmatpush1.bf16.msra.mxu0 0
      %3294 = vmatprep.subr.bf16.mxu0 0
      %3295 = vmatpush1.bf16.msra.mxu0 0
      %3296 = vmatprep.subr.bf16.mxu0 0
      %3297 = vmatpush1.bf16.msra.mxu0 0
      %3298 = vmatprep.subr.bf16.mxu0 0
      %3299 = vmatpush1.bf16.msra.mxu0 0
      %3300 = vmatprep.subr.bf16.mxu0 0
      %3301 = vmatpush1.bf16.msra.mxu0 0
      %3302 = vmatprep.subr.bf16.mxu0 0
      %3303 = vmatpush1.bf16.msra.mxu0 0
      %3304 = vmatprep.subr.bf16.mxu0 0
      %3305 = vmatpush1.bf16.msra.mxu0 0
      %3306 = vmatprep.subr.bf16.mxu0 0
      %3307 = vmatpush1.bf16.msra.mxu0 0
      %3308 = vmatprep.subr.bf16.mxu0 0
      %3309 = vmatpush1.bf16.msra.mxu0 0
      %3310 = vmatprep.subr.bf16.mxu0 0
      %3311 = vmatpush1.bf16.msra.mxu0 0
      %3312 = vmatprep.mubr.bf16.mxu0 0
      %3313 = vmatmul.mubr.bf16.gmra.mrb[0].mxu0 %v3224
      %v3314 = vpop.f32.mrb[0].mxu0
      %v3315 = vadd.f32 0.0, %v3314
      %v3316 = vpop.f32.mrb[0].mxu0
      %v3317 = vpop.f32.mrb[0].mxu0
      %v3318 = vadd.f32 0.0, %v3317
      %v3319 = vpop.f32.mrb[0].mxu0
      %3320 = vmatprep.mubr.bf16.mxu0 0
      %3321 = vmatmul.mubr.bf16.gmra.mrb[0].mxu0 %v3227
      %v3322 = vpop.f32.mrb[0].mxu0
      %v3323 = vadd.f32 0.0, %v3322
      %v3324 = vpop.f32.mrb[0].mxu0
      %v3325 = vpop.f32.mrb[0].mxu0
      %v3326 = vadd.f32 0.0, %v3325
      %v3327 = vpop.f32.mrb[0].mxu0
      %3328 = vmatprep.mubr.bf16.mxu0 0
      %3329 = vmatmul.mubr.bf16.gmra.mrb[0].mxu0 %v3230
      %v3330 = vpop.f32.mrb[0].mxu0
      %v3331 = vadd.f32 0.0, %v3330
      %v3332 = vpop.f32.mrb[0].mxu0
      %v3333 = vpop.f32.mrb[0].mxu0
      %v3334 = vadd.f32 0.0, %v3333
      %v3335 = vpop.f32.mrb[0].mxu0
      %3336 = vmatprep.mubr.bf16.mxu0 0
      %3337 = vmatmul.mubr.bf16.gmra.mrb[0].mxu0 %v3233
      %v3338 = vpop.f32.mrb[0].mxu0
      %v3339 = vadd.f32 0.0, %v3338
      %v3340 = vpop.f32.mrb[0].mxu0
      %v3341 = vpop.f32.mrb[0].mxu0
      %v3342 = vadd.f32 0.0, %v3341
      %v3343 = vpop.f32.mrb[0].mxu0
      %3344 = vmatprep.mubr.bf16.mxu0 0
      %3345 = vmatmul.mubr.bf16.gmra.mrb[0].mxu0 %v3236
      %v3346 = vpop.f32.mrb[0].mxu0
      %v3347 = vadd.f32 0.0, %v3346
      %v3348 = vpop.f32.mrb[0].mxu0
      %v3349 = vpop.f32.mrb[0].mxu0
      %v3350 = vadd.f32 0.0, %v3349
      %v3351 = vpop.f32.mrb[0].mxu0
      %3352 = vmatprep.mubr.bf16.mxu0 0
      %3353 = vmatmul.mubr.bf16.gmra.mrb[0].mxu0 %v3239
      %v3354 = vpop.f32.mrb[0].mxu0
      %v3355 = vadd.f32 0.0, %v3354
      %v3356 = vpop.f32.mrb[0].mxu0
      %v3357 = vpop.f32.mrb[0].mxu0
      %v3358 = vadd.f32 0.0, %v3357
      %v3359 = vpop.f32.mrb[0].mxu0
      %3360 = vmatprep.mubr.bf16.mxu0 0
      %3361 = vmatmul.mubr.bf16.gmra.mrb[0].mxu0 %v3242
      %v3362 = vpop.f32.mrb[0].mxu0
      %v3363 = vadd.f32 0.0, %v3362
      %v3364 = vpop.f32.mrb[0].mxu0
      %v3365 = vpop.f32.mrb[0].mxu0
      %v3366 = vadd.f32 0.0, %v3365
      %v3367 = vpop.f32.mrb[0].mxu0
      %3368 = vmatprep.mubr.bf16.mxu0 0
      %3369 = vmatmul.mubr.bf16.gmra.mrb[0].mxu0 %v3245
      %v3370 = vpop.f32.mrb[0].mxu0
      %v3371 = vadd.f32 0.0, %v3370
      %v3372 = vpop.f32.mrb[0].mxu0
      %v3373 = vpop.f32.mrb[0].mxu0
      %v3374 = vadd.f32 0.0, %v3373
      %v3375 = vpop.f32.mrb[0].mxu0
      %3376 = vmatprep.mubr.bf16.mxu0 0
      %3377 = vmatmul.mubr.bf16.gmra.mrb[0].mxu0 %v3248
      %v3378 = vpop.f32.mrb[0].mxu0
      %v3379 = vadd.f32 0.0, %v3378
      %v3380 = vpop.f32.mrb[0].mxu0
      %v3381 = vpop.f32.mrb[0].mxu0
      %v3382 = vadd.f32 0.0, %v3381
      %v3383 = vpop.f32.mrb[0].mxu0
      %3384 = vmatprep.mubr.bf16.mxu0 0
      %3385 = vmatmul.mubr.bf16.gmra.mrb[0].mxu0 %v3251
      %v3386 = vpop.f32.mrb[0].mxu0
      %v3387 = vadd.f32 0.0, %v3386
      %v3388 = vpop.f32.mrb[0].mxu0
      %v3389 = vpop.f32.mrb[0].mxu0
      %v3390 = vadd.f32 0.0, %v3389
      %v3391 = vpop.f32.mrb[0].mxu0
      %3392 = vmatprep.mubr.bf16.mxu0 0
      %3393 = vmatmul.mubr.bf16.gmra.mrb[0].mxu0 %v3254
      %v3394 = vpop.f32.mrb[0].mxu0
      %v3395 = vadd.f32 0.0, %v3394
      %v3396 = vpop.f32.mrb[0].mxu0
      %v3397 = vpop.f32.mrb[0].mxu0
      %v3398 = vadd.f32 0.0, %v3397
      %v3399 = vpop.f32.mrb[0].mxu0
      %3400 = vmatprep.mubr.bf16.mxu0 0
      %3401 = vmatmul.mubr.bf16.gmra.mrb[0].mxu0 %v3257
      %v3402 = vpop.f32.mrb[0].mxu0
      %v3403 = vadd.f32 0.0, %v3402
      %v3404 = vpop.f32.mrb[0].mxu0
      %v3405 = vpop.f32.mrb[0].mxu0
      %v3406 = vadd.f32 0.0, %v3405
      %v3407 = vpop.f32.mrb[0].mxu0
      %3408 = vmatprep.mubr.bf16.mxu0 0
      %3409 = vmatmul.mubr.bf16.gmra.mrb[0].mxu0 %v3260
      %v3410 = vpop.f32.mrb[0].mxu0
      %v3411 = vadd.f32 0.0, %v3410
      %v3412 = vpop.f32.mrb[0].mxu0
      %v3413 = vpop.f32.mrb[0].mxu0
      %v3414 = vadd.f32 0.0, %v3413
      %v3415 = vpop.f32.mrb[0].mxu0
      %3416 = vmatprep.mubr.bf16.mxu0 0
      %3417 = vmatmul.mubr.bf16.gmra.mrb[0].mxu0 %v3263
      %v3418 = vpop.f32.mrb[0].mxu0
      %v3419 = vadd.f32 0.0, %v3418
      %v3420 = vpop.f32.mrb[0].mxu0
      %v3421 = vpop.f32.mrb[0].mxu0
      %v3422 = vadd.f32 0.0, %v3421
      %v3423 = vpop.f32.mrb[0].mxu0
      %3424 = vmatprep.mubr.bf16.mxu0 0
      %3425 = vmatmul.mubr.bf16.gmra.mrb[0].mxu0 %v3266
      %v3426 = vpop.f32.mrb[0].mxu0
      %v3427 = vadd.f32 0.0, %v3426
      %v3428 = vpop.f32.mrb[0].mxu0
      %v3429 = vpop.f32.mrb[0].mxu0
      %v3430 = vadd.f32 0.0, %v3429
      %v3431 = vpop.f32.mrb[0].mxu0
      %3432 = vmatprep.mubr.bf16.mxu0 0
      %3433 = vmatmul.mubr.bf16.gmra.mrb[0].mxu0 %v3269
      %v3434 = vpop.f32.mrb[0].mxu0
      %v3435 = vadd.f32 0.0, %v3434
      %v3436 = vpop.f32.mrb[0].mxu0
      %v3437 = vpop.f32.mrb[0].mxu0
      %v3438 = vadd.f32 0.0, %v3437
      %v3439 = vpop.f32.mrb[0].mxu0
      %3440 = vmatprep.mubr.bf16.mxu0 0
      %3441 = vmatmul.mubr.bf16.gmra.mrb[0].mxu0 %v3272
      %v3442 = vpop.f32.mrb[0].mxu0
      %v3443 = vadd.f32 0.0, %v3442
      %v3444 = vpop.f32.mrb[0].mxu0
      %v3445 = vpop.f32.mrb[0].mxu0
      %v3446 = vadd.f32 0.0, %v3445
      %v3447 = vpop.f32.mrb[0].mxu0
      %3448 = vmatprep.mubr.bf16.mxu0 0
      %3449 = vmatmul.mubr.bf16.gmra.mrb[0].mxu0 %v3275
      %v3450 = vpop.f32.mrb[0].mxu0
      %v3451 = vadd.f32 0.0, %v3450
      %v3452 = vpop.f32.mrb[0].mxu0
      %v3453 = vpop.f32.mrb[0].mxu0
      %v3454 = vadd.f32 0.0, %v3453
      %v3455 = vpop.f32.mrb[0].mxu0
      %3456 = vdwg.mxu0
      %v3457 = vadd.f32 %v3010, %v3315
      %v3458 = vadd.f32 %v3011, %v3318
      %v3459 = vadd.f32 %v3012, %v3323
      %v3460 = vadd.f32 %v3013, %v3326
      %v3461 = vadd.f32 %v3014, %v3331
      %v3462 = vadd.f32 %v3015, %v3334
      %v3463 = vadd.f32 %v3016, %v3339
      %v3464 = vadd.f32 %v3017, %v3342
      %v3465 = vadd.f32 %v3018, %v3347
      %v3466 = vadd.f32 %v3019, %v3350
      %v3467 = vadd.f32 %v3020, %v3355
      %v3468 = vadd.f32 %v3021, %v3358
      %v3469 = vadd.f32 %v3022, %v3363
      %v3470 = vadd.f32 %v3023, %v3366
      %v3471 = vadd.f32 %v3024, %v3371
      %v3472 = vadd.f32 %v3025, %v3374
      %v3473 = vadd.f32 %v3026, %v3379
      %v3474 = vadd.f32 %v3027, %v3382
      %v3475 = vadd.f32 %v3028, %v3387
      %v3476 = vadd.f32 %v3029, %v3390
      %v3477 = vadd.f32 %v3030, %v3395
      %v3478 = vadd.f32 %v3031, %v3398
      %v3479 = vadd.f32 %v3032, %v3403
      %v3480 = vadd.f32 %v3033, %v3406
      %v3481 = vadd.f32 %v3034, %v3411
      %v3482 = vadd.f32 %v3035, %v3414
      %v3483 = vadd.f32 %v3036, %v3419
      %v3484 = vadd.f32 %v3037, %v3422
      %v3485 = vadd.f32 %v3038, %v3427
      %v3486 = vadd.f32 %v3039, %v3430
      %v3487 = vadd.f32 %v3040, %v3435
      %v3488 = vadd.f32 %v3041, %v3438
      %v3489 = vadd.f32 %v3042, %v3443
      %v3490 = vadd.f32 %v3043, %v3446
      %v3491 = vadd.f32 %v3044, %v3451
      %v3492 = vadd.f32 %v3045, %v3454
      %v3493 = vld [vmem:[%s326 + $0x10] sm:$0x8]
      %s3494 = scalar_lea.vmem %s1, 16
      %v3495 = vld [vmem:[%s3494] sm:$0x3]
      %v3497 = vunpack.c.l.b16 %v3493
      %v3498 = vpack.c.b16 %v2684, %v3497
      %vm3499 = vcmask 1044480
      %v3500 = vrot.slane %v3498, 3
      %v3501 = vrot.slane %v2721, 3
      %v3502 = vsel %vm3499, %v3500, %v3501
      %v3503 = vrot.slane %v2722, 3
      %v3504 = vsel %vm3499, %v3501, %v3503
      %v3505 = vrot.slane %v2723, 3
      %v3506 = vsel %vm3499, %v3503, %v3505
      %v3507 = vrot.slane %v2724, 3
      %v3508 = vsel %vm3499, %v3505, %v3507
      %v3509 = vrot.slane %v2725, 3
      %v3510 = vsel %vm3499, %v3507, %v3509
      %v3511 = vrot.slane %v2726, 3
      %v3512 = vsel %vm3499, %v3509, %v3511
      %v3513 = vrot.slane %v2727, 3
      %v3514 = vsel %vm3499, %v3511, %v3513
      %v3515 = vrot.slane %v2728, 3
      %v3516 = vsel %vm3499, %v3513, %v3515
      %v3517 = vrot.slane %v2729, 3
      %v3518 = vsel %vm3499, %v3515, %v3517
      %v3519 = vrot.slane %v2730, 3
      %v3520 = vsel %vm3499, %v3517, %v3519
      %v3521 = vrot.slane %v2731, 3
      %v3522 = vsel %vm3499, %v3519, %v3521
      %v3523 = vrot.slane %v2732, 3
      %v3524 = vsel %vm3499, %v3521, %v3523
      %v3525 = vrot.slane %v2733, 3
      %v3526 = vsel %vm3499, %v3523, %v3525
      %v3527 = vrot.slane %v2734, 3
      %v3528 = vsel %vm3499, %v3525, %v3527
      %v3529 = vrot.slane %v2735, 3
      %v3530 = vsel %vm3499, %v3527, %v3529
      %v3531 = vrot.slane %v2736, 3
      %v3532 = vsel %vm3499, %v3529, %v3531
      %v3533 = vrot.slane %v2737, 3
      %v3534 = vsel %vm3499, %v3531, %v3533
      %v3535 = vrot.slane %v3051, 3
      %v3536 = vsel %vm3499, %v3533, %v3535
      %v3538 = vsel %vm638, %v3502, 0
      %v3541 = vsel %vm638, %v3504, 0
      %v3544 = vsel %vm638, %v3506, 0
      %v3547 = vsel %vm638, %v3508, 0
      %v3550 = vsel %vm638, %v3510, 0
      %v3553 = vsel %vm638, %v3512, 0
      %v3556 = vsel %vm638, %v3514, 0
      %v3559 = vsel %vm638, %v3516, 0
      %v3562 = vsel %vm638, %v3518, 0
      %v3565 = vsel %vm638, %v3520, 0
      %v3568 = vsel %vm638, %v3522, 0
      %v3571 = vsel %vm638, %v3524, 0
      %v3574 = vsel %vm638, %v3526, 0
      %v3577 = vsel %vm638, %v3528, 0
      %v3580 = vsel %vm638, %v3530, 0
      %v3583 = vsel %vm638, %v3532, 0
      %v3586 = vsel %vm638, %v3534, 0
      %v3589 = vsel %vm638, %v3536, 0
      %v3592 = vand.u32 %v3495, %v696
      %3594 = vmatprep.subr.bf16.mxu0 0
      %3595 = vmatpush1.bf16.msra.mxu0 %v3592
      %3596 = vmatprep.subr.bf16.mxu0 0
      %3597 = vmatpush1.bf16.msra.mxu0 0
      %3598 = vmatprep.subr.bf16.mxu0 0
      %3599 = vmatpush1.bf16.msra.mxu0 0
      %3600 = vmatprep.subr.bf16.mxu0 0
      %3601 = vmatpush1.bf16.msra.mxu0 0
      %3602 = vmatprep.subr.bf16.mxu0 0
      %3603 = vmatpush1.bf16.msra.mxu0 0
      %3604 = vmatprep.subr.bf16.mxu0 0
      %3605 = vmatpush1.bf16.msra.mxu0 0
      %3606 = vmatprep.subr.bf16.mxu0 0
      %3607 = vmatpush1.bf16.msra.mxu0 0
      %3608 = vmatprep.subr.bf16.mxu0 0
      %3609 = vmatpush1.bf16.msra.mxu0 0
      %3610 = vmatprep.subr.bf16.mxu0 0
      %3611 = vmatpush1.bf16.msra.mxu0 0
      %3612 = vmatprep.subr.bf16.mxu0 0
      %3613 = vmatpush1.bf16.msra.mxu0 0
      %3614 = vmatprep.subr.bf16.mxu0 0
      %3615 = vmatpush1.bf16.msra.mxu0 0
      %3616 = vmatprep.subr.bf16.mxu0 0
      %3617 = vmatpush1.bf16.msra.mxu0 0
      %3618 = vmatprep.subr.bf16.mxu0 0
      %3619 = vmatpush1.bf16.msra.mxu0 0
      %3620 = vmatprep.subr.bf16.mxu0 0
      %3621 = vmatpush1.bf16.msra.mxu0 0
      %3622 = vmatprep.subr.bf16.mxu0 0
      %3623 = vmatpush1.bf16.msra.mxu0 0
      %3624 = vmatprep.subr.bf16.mxu0 0
      %3625 = vmatpush1.bf16.msra.mxu0 0
      %3626 = vmatprep.mubr.bf16.mxu0 0
      %3627 = vmatmul.mubr.bf16.gmra.mrb[0].mxu0 %v3538
      %v3628 = vpop.f32.mrb[0].mxu0
      %v3629 = vadd.f32 0.0, %v3628
      %v3630 = vpop.f32.mrb[0].mxu0
      %v3631 = vpop.f32.mrb[0].mxu0
      %v3632 = vadd.f32 0.0, %v3631
      %v3633 = vpop.f32.mrb[0].mxu0
      %3634 = vmatprep.mubr.bf16.mxu0 0
      %3635 = vmatmul.mubr.bf16.gmra.mrb[0].mxu0 %v3541
      %v3636 = vpop.f32.mrb[0].mxu0
      %v3637 = vadd.f32 0.0, %v3636
      %v3638 = vpop.f32.mrb[0].mxu0
      %v3639 = vpop.f32.mrb[0].mxu0
      %v3640 = vadd.f32 0.0, %v3639
      %v3641 = vpop.f32.mrb[0].mxu0
      %3642 = vmatprep.mubr.bf16.mxu0 0
      %3643 = vmatmul.mubr.bf16.gmra.mrb[0].mxu0 %v3544
      %v3644 = vpop.f32.mrb[0].mxu0
      %v3645 = vadd.f32 0.0, %v3644
      %v3646 = vpop.f32.mrb[0].mxu0
      %v3647 = vpop.f32.mrb[0].mxu0
      %v3648 = vadd.f32 0.0, %v3647
      %v3649 = vpop.f32.mrb[0].mxu0
      %3650 = vmatprep.mubr.bf16.mxu0 0
      %3651 = vmatmul.mubr.bf16.gmra.mrb[0].mxu0 %v3547
      %v3652 = vpop.f32.mrb[0].mxu0
      %v3653 = vadd.f32 0.0, %v3652
      %v3654 = vpop.f32.mrb[0].mxu0
      %v3655 = vpop.f32.mrb[0].mxu0
      %v3656 = vadd.f32 0.0, %v3655
      %v3657 = vpop.f32.mrb[0].mxu0
      %3658 = vmatprep.mubr.bf16.mxu0 0
      %3659 = vmatmul.mubr.bf16.gmra.mrb[0].mxu0 %v3550
      %v3660 = vpop.f32.mrb[0].mxu0
      %v3661 = vadd.f32 0.0, %v3660
      %v3662 = vpop.f32.mrb[0].mxu0
      %v3663 = vpop.f32.mrb[0].mxu0
      %v3664 = vadd.f32 0.0, %v3663
      %v3665 = vpop.f32.mrb[0].mxu0
      %3666 = vmatprep.mubr.bf16.mxu0 0
      %3667 = vmatmul.mubr.bf16.gmra.mrb[0].mxu0 %v3553
      %v3668 = vpop.f32.mrb[0].mxu0
      %v3669 = vadd.f32 0.0, %v3668
      %v3670 = vpop.f32.mrb[0].mxu0
      %v3671 = vpop.f32.mrb[0].mxu0
      %v3672 = vadd.f32 0.0, %v3671
      %v3673 = vpop.f32.mrb[0].mxu0
      %3674 = vmatprep.mubr.bf16.mxu0 0
      %3675 = vmatmul.mubr.bf16.gmra.mrb[0].mxu0 %v3556
      %v3676 = vpop.f32.mrb[0].mxu0
      %v3677 = vadd.f32 0.0, %v3676
      %v3678 = vpop.f32.mrb[0].mxu0
      %v3679 = vpop.f32.mrb[0].mxu0
      %v3680 = vadd.f32 0.0, %v3679
      %v3681 = vpop.f32.mrb[0].mxu0
      %3682 = vmatprep.mubr.bf16.mxu0 0
      %3683 = vmatmul.mubr.bf16.gmra.mrb[0].mxu0 %v3559
      %v3684 = vpop.f32.mrb[0].mxu0
      %v3685 = vadd.f32 0.0, %v3684
      %v3686 = vpop.f32.mrb[0].mxu0
      %v3687 = vpop.f32.mrb[0].mxu0
      %v3688 = vadd.f32 0.0, %v3687
      %v3689 = vpop.f32.mrb[0].mxu0
      %3690 = vmatprep.mubr.bf16.mxu0 0
      %3691 = vmatmul.mubr.bf16.gmra.mrb[0].mxu0 %v3562
      %v3692 = vpop.f32.mrb[0].mxu0
      %v3693 = vadd.f32 0.0, %v3692
      %v3694 = vpop.f32.mrb[0].mxu0
      %v3695 = vpop.f32.mrb[0].mxu0
      %v3696 = vadd.f32 0.0, %v3695
      %v3697 = vpop.f32.mrb[0].mxu0
      %3698 = vmatprep.mubr.bf16.mxu0 0
      %3699 = vmatmul.mubr.bf16.gmra.mrb[0].mxu0 %v3565
      %v3700 = vpop.f32.mrb[0].mxu0
      %v3701 = vadd.f32 0.0, %v3700
      %v3702 = vpop.f32.mrb[0].mxu0
      %v3703 = vpop.f32.mrb[0].mxu0
      %v3704 = vadd.f32 0.0, %v3703
      %v3705 = vpop.f32.mrb[0].mxu0
      %3706 = vmatprep.mubr.bf16.mxu0 0
      %3707 = vmatmul.mubr.bf16.gmra.mrb[0].mxu0 %v3568
      %v3708 = vpop.f32.mrb[0].mxu0
      %v3709 = vadd.f32 0.0, %v3708
      %v3710 = vpop.f32.mrb[0].mxu0
      %v3711 = vpop.f32.mrb[0].mxu0
      %v3712 = vadd.f32 0.0, %v3711
      %v3713 = vpop.f32.mrb[0].mxu0
      %3714 = vmatprep.mubr.bf16.mxu0 0
      %3715 = vmatmul.mubr.bf16.gmra.mrb[0].mxu0 %v3571
      %v3716 = vpop.f32.mrb[0].mxu0
      %v3717 = vadd.f32 0.0, %v3716
      %v3718 = vpop.f32.mrb[0].mxu0
      %v3719 = vpop.f32.mrb[0].mxu0
      %v3720 = vadd.f32 0.0, %v3719
      %v3721 = vpop.f32.mrb[0].mxu0
      %3722 = vmatprep.mubr.bf16.mxu0 0
      %3723 = vmatmul.mubr.bf16.gmra.mrb[0].mxu0 %v3574
      %v3724 = vpop.f32.mrb[0].mxu0
      %v3725 = vadd.f32 0.0, %v3724
      %v3726 = vpop.f32.mrb[0].mxu0
      %v3727 = vpop.f32.mrb[0].mxu0
      %v3728 = vadd.f32 0.0, %v3727
      %v3729 = vpop.f32.mrb[0].mxu0
      %3730 = vmatprep.mubr.bf16.mxu0 0
      %3731 = vmatmul.mubr.bf16.gmra.mrb[0].mxu0 %v3577
      %v3732 = vpop.f32.mrb[0].mxu0
      %v3733 = vadd.f32 0.0, %v3732
      %v3734 = vpop.f32.mrb[0].mxu0
      %v3735 = vpop.f32.mrb[0].mxu0
      %v3736 = vadd.f32 0.0, %v3735
      %v3737 = vpop.f32.mrb[0].mxu0
      %3738 = vmatprep.mubr.bf16.mxu0 0
      %3739 = vmatmul.mubr.bf16.gmra.mrb[0].mxu0 %v3580
      %v3740 = vpop.f32.mrb[0].mxu0
      %v3741 = vadd.f32 0.0, %v3740
      %v3742 = vpop.f32.mrb[0].mxu0
      %v3743 = vpop.f32.mrb[0].mxu0
      %v3744 = vadd.f32 0.0, %v3743
      %v3745 = vpop.f32.mrb[0].mxu0
      %3746 = vmatprep.mubr.bf16.mxu0 0
      %3747 = vmatmul.mubr.bf16.gmra.mrb[0].mxu0 %v3583
      %v3748 = vpop.f32.mrb[0].mxu0
      %v3749 = vadd.f32 0.0, %v3748
      %v3750 = vpop.f32.mrb[0].mxu0
      %v3751 = vpop.f32.mrb[0].mxu0
      %v3752 = vadd.f32 0.0, %v3751
      %v3753 = vpop.f32.mrb[0].mxu0
      %3754 = vmatprep.mubr.bf16.mxu0 0
      %3755 = vmatmul.mubr.bf16.gmra.mrb[0].mxu0 %v3586
      %v3756 = vpop.f32.mrb[0].mxu0
      %v3757 = vadd.f32 0.0, %v3756
      %v3758 = vpop.f32.mrb[0].mxu0
      %v3759 = vpop.f32.mrb[0].mxu0
      %v3760 = vadd.f32 0.0, %v3759
      %v3761 = vpop.f32.mrb[0].mxu0
      %3762 = vmatprep.mubr.bf16.mxu0 0
      %3763 = vmatmul.mubr.bf16.gmra.mrb[0].mxu0 %v3589
      %v3764 = vpop.f32.mrb[0].mxu0
      %v3765 = vadd.f32 0.0, %v3764
      %v3766 = vpop.f32.mrb[0].mxu0
      %v3767 = vpop.f32.mrb[0].mxu0
      %v3768 = vadd.f32 0.0, %v3767
      %v3769 = vpop.f32.mrb[0].mxu0
      %3770 = vdwg.mxu0
      %v3771 = vadd.f32 %v3457, %v3629
      %v3772 = vadd.f32 %v3458, %v3632
      %v3773 = vadd.f32 %v3459, %v3637
      %v3774 = vadd.f32 %v3460, %v3640
      %v3775 = vadd.f32 %v3461, %v3645
      %v3776 = vadd.f32 %v3462, %v3648
      %v3777 = vadd.f32 %v3463, %v3653
      %v3778 = vadd.f32 %v3464, %v3656
      %v3779 = vadd.f32 %v3465, %v3661
      %v3780 = vadd.f32 %v3466, %v3664
      %v3781 = vadd.f32 %v3467, %v3669
      %v3782 = vadd.f32 %v3468, %v3672
      %v3783 = vadd.f32 %v3469, %v3677
      %v3784 = vadd.f32 %v3470, %v3680
      %v3785 = vadd.f32 %v3471, %v3685
      %v3786 = vadd.f32 %v3472, %v3688
      %v3787 = vadd.f32 %v3473, %v3693
      %v3788 = vadd.f32 %v3474, %v3696
      %v3789 = vadd.f32 %v3475, %v3701
      %v3790 = vadd.f32 %v3476, %v3704
      %v3791 = vadd.f32 %v3477, %v3709
      %v3792 = vadd.f32 %v3478, %v3712
      %v3793 = vadd.f32 %v3479, %v3717
      %v3794 = vadd.f32 %v3480, %v3720
      %v3795 = vadd.f32 %v3481, %v3725
      %v3796 = vadd.f32 %v3482, %v3728
      %v3797 = vadd.f32 %v3483, %v3733
      %v3798 = vadd.f32 %v3484, %v3736
      %v3799 = vadd.f32 %v3485, %v3741
      %v3800 = vadd.f32 %v3486, %v3744
      %v3801 = vadd.f32 %v3487, %v3749
      %v3802 = vadd.f32 %v3488, %v3752
      %v3803 = vadd.f32 %v3489, %v3757
      %v3804 = vadd.f32 %v3490, %v3760
      %v3805 = vadd.f32 %v3491, %v3765
      %v3806 = vadd.f32 %v3492, %v3768
      %v3807 = vld [vmem:[%s2] sm:$0x1]
      %v3809 = vlaneseq
      %v3810 = vshrl.u32 %v3809, 7
      %v3811 = vsub.s32 0, %v3810
      %v3812 = vrot.slane %v3807, %v3811
      %v3814 = vadd.f32 %v3771, %v3812
      %v3815 = vadd.f32 %v3772, %v3812
      %v3816 = vadd.f32 %v3773, %v3812
      %v3817 = vadd.f32 %v3774, %v3812
      %v3818 = vadd.f32 %v3775, %v3812
      %v3819 = vadd.f32 %v3776, %v3812
      %v3820 = vadd.f32 %v3777, %v3812
      %v3821 = vadd.f32 %v3778, %v3812
      %v3822 = vadd.f32 %v3779, %v3812
      %v3823 = vadd.f32 %v3780, %v3812
      %v3824 = vadd.f32 %v3781, %v3812
      %v3825 = vadd.f32 %v3782, %v3812
      %v3826 = vadd.f32 %v3783, %v3812
      %v3827 = vadd.f32 %v3784, %v3812
      %v3828 = vadd.f32 %v3785, %v3812
      %v3829 = vadd.f32 %v3786, %v3812
      %v3830 = vadd.f32 %v3787, %v3812
      %v3831 = vadd.f32 %v3788, %v3812
      %v3832 = vadd.f32 %v3789, %v3812
      %v3833 = vadd.f32 %v3790, %v3812
      %v3834 = vadd.f32 %v3791, %v3812
      %v3835 = vadd.f32 %v3792, %v3812
      %v3836 = vadd.f32 %v3793, %v3812
      %v3837 = vadd.f32 %v3794, %v3812
      %v3838 = vadd.f32 %v3795, %v3812
      %v3839 = vadd.f32 %v3796, %v3812
      %v3840 = vadd.f32 %v3797, %v3812
      %v3841 = vadd.f32 %v3798, %v3812
      %v3842 = vadd.f32 %v3799, %v3812
      %v3843 = vadd.f32 %v3800, %v3812
      %v3844 = vadd.f32 %v3801, %v3812
      %v3845 = vadd.f32 %v3802, %v3812
      %v3846 = vadd.f32 %v3803, %v3812
      %v3847 = vadd.f32 %v3804, %v3812
      %v3848 = vadd.f32 %v3805, %v3812
      %v3849 = vadd.f32 %v3806, %v3812
      %v3850 = vmax.f32 %v3814, 0.0
      %v3851 = vmax.f32 %v3815, 0.0
      %v3852 = vmax.f32 %v3816, 0.0
      %v3853 = vmax.f32 %v3817, 0.0
      %v3854 = vmax.f32 %v3818, 0.0
      %v3855 = vmax.f32 %v3819, 0.0
      %v3856 = vmax.f32 %v3820, 0.0
      %v3857 = vmax.f32 %v3821, 0.0
      %v3858 = vmax.f32 %v3822, 0.0
      %v3859 = vmax.f32 %v3823, 0.0
      %v3860 = vmax.f32 %v3824, 0.0
      %v3861 = vmax.f32 %v3825, 0.0
      %v3862 = vmax.f32 %v3826, 0.0
      %v3863 = vmax.f32 %v3827, 0.0
      %v3864 = vmax.f32 %v3828, 0.0
      %v3865 = vmax.f32 %v3829, 0.0
      %v3866 = vmax.f32 %v3830, 0.0
      %v3867 = vmax.f32 %v3831, 0.0
      %v3868 = vmax.f32 %v3832, 0.0
      %v3869 = vmax.f32 %v3833, 0.0
      %v3870 = vmax.f32 %v3834, 0.0
      %v3871 = vmax.f32 %v3835, 0.0
      %v3872 = vmax.f32 %v3836, 0.0
      %v3873 = vmax.f32 %v3837, 0.0
      %v3874 = vmax.f32 %v3838, 0.0
      %v3875 = vmax.f32 %v3839, 0.0
      %v3876 = vmax.f32 %v3840, 0.0
      %v3877 = vmax.f32 %v3841, 0.0
      %v3878 = vmax.f32 %v3842, 0.0
      %v3879 = vmax.f32 %v3843, 0.0
      %v3880 = vmax.f32 %v3844, 0.0
      %v3881 = vmax.f32 %v3845, 0.0
      %v3882 = vmax.f32 %v3846, 0.0
      %v3883 = vmax.f32 %v3847, 0.0
      %v3884 = vmax.f32 %v3848, 0.0
      %v3885 = vmax.f32 %v3849, 0.0
      %vm3886 = vcmask 523264
      %3887 = vst.msk [vmem:[#allocation5] sm:$0xff] %vm3886, %v3850
      %3888 = vst.msk [vmem:[#allocation5 + $0x8] sm:$0xff] %vm3886, %v3851
      %3889 = vst.msk [vmem:[#allocation5 + $0x10] sm:$0xff] %vm3886, %v3852
      %3890 = vst.msk [vmem:[#allocation5 + $0x18] sm:$0xff] %vm3886, %v3853
      %3891 = vst.msk [vmem:[#allocation5 + $0x20] sm:$0xff] %vm3886, %v3854
      %3892 = vst.msk [vmem:[#allocation5 + $0x28] sm:$0xff] %vm3886, %v3855
      %3893 = vst.msk [vmem:[#allocation5 + $0x30] sm:$0xff] %vm3886, %v3856
      %3894 = vst.msk [vmem:[#allocation5 + $0x38] sm:$0xff] %vm3886, %v3857
      %3895 = vst.msk [vmem:[#allocation5 + $0x40] sm:$0xff] %vm3886, %v3858
      %3896 = vst.msk [vmem:[#allocation5 + $0x48] sm:$0xff] %vm3886, %v3859
      %3897 = vst.msk [vmem:[#allocation5 + $0x50] sm:$0xff] %vm3886, %v3860
      %3898 = vst.msk [vmem:[#allocation5 + $0x58] sm:$0xff] %vm3886, %v3861
      %3899 = vst.msk [vmem:[#allocation5 + $0x60] sm:$0xff] %vm3886, %v3862
      %3900 = vst.msk [vmem:[#allocation5 + $0x68] sm:$0xff] %vm3886, %v3863
      %3901 = vst.msk [vmem:[#allocation5 + $0x70] sm:$0xff] %vm3886, %v3864
      %3902 = vst.msk [vmem:[#allocation5 + $0x78] sm:$0xff] %vm3886, %v3865
      %3903 = vst.msk [vmem:[#allocation5 + $0x80] sm:$0xff] %vm3886, %v3866
      %3904 = vst.msk [vmem:[#allocation5 + $0x88] sm:$0xff] %vm3886, %v3867
      %3905 = vst.msk [vmem:[#allocation5 + $0x90] sm:$0xff] %vm3886, %v3868
      %3906 = vst.msk [vmem:[#allocation5 + $0x98] sm:$0xff] %vm3886, %v3869
      %3907 = vst.msk [vmem:[#allocation5 + $0xa0] sm:$0xff] %vm3886, %v3870
      %3908 = vst.msk [vmem:[#allocation5 + $0xa8] sm:$0xff] %vm3886, %v3871
      %3909 = vst.msk [vmem:[#allocation5 + $0xb0] sm:$0xff] %vm3886, %v3872
      %3910 = vst.msk [vmem:[#allocation5 + $0xb8] sm:$0xff] %vm3886, %v3873
      %3911 = vst.msk [vmem:[#allocation5 + $0xc0] sm:$0xff] %vm3886, %v3874
      %3912 = vst.msk [vmem:[#allocation5 + $0xc8] sm:$0xff] %vm3886, %v3875
      %3913 = vst.msk [vmem:[#allocation5 + $0xd0] sm:$0xff] %vm3886, %v3876
      %3914 = vst.msk [vmem:[#allocation5 + $0xd8] sm:$0xff] %vm3886, %v3877
      %3915 = vst.msk [vmem:[#allocation5 + $0xe0] sm:$0xff] %vm3886, %v3878
      %3916 = vst.msk [vmem:[#allocation5 + $0xe8] sm:$0xff] %vm3886, %v3879
      %3917 = vst.msk [vmem:[#allocation5 + $0xf0] sm:$0xff] %vm3886, %v3880
      %3918 = vst.msk [vmem:[#allocation5 + $0xf8] sm:$0xff] %vm3886, %v3881
      %3919 = vst.msk [vmem:[#allocation5 + $0x100] sm:$0xff] %vm3886, %v3882
      %3920 = vst.msk [vmem:[#allocation5 + $0x108] sm:$0xff] %vm3886, %v3883
      %3921 = vst.msk [vmem:[#allocation5 + $0x110] sm:$0xff] %vm3886, %v3884
      %3922 = vst.msk [vmem:[#allocation5 + $0x118] sm:$0xff] %vm3886, %v3885
      %v3923 = vld [vmem:[#allocation5] ss:$2 sm:$0xff]
      %s3924 = scalar_lea.vmem [#allocation5], 1
      %v3925 = vld [vmem:[%s3924] ss:$2 sm:$0xff]
      %s3926 = scalar_lea.vmem [#allocation5], 18
      %v3927 = vld [vmem:[%s3926] ss:$2 sm:$0xff]
      %s3928 = scalar_lea.vmem [#allocation5], 19
      %v3929 = vld [vmem:[%s3928] ss:$2 sm:$0xff]
      %v3930 = vmax.f32 %v3923, %v3925
      %v3931 = vmax.f32 %v3927, %v3929
      %v3932 = vmax.f32 %v3930, %v3931
      %v3933 = vpack.c.bf16 %v3932, %v3932
      %v3935 = vunpack.c.l.b16 %v3933
      %v3936 = vpack.c.b16 %v3935, %v3935
      %v3938 = vshrl.u32 %v3936, 16
      %v3940 = vrot.slane %v3938, 6
      %v3941 = vshll.u32 %v3936, 16
      %v3943 = vrot.slane %v3941, 7
      %v3944 = vor.u32 %v3940, %v3943
      %v3945 = vrot.slane %v3944, 4
      %vm3948 = vcmask 519169
      %vm3949 = vsmask.f32 7942
      %vm3950 = vmand %vm3948, %vm3949
      %v3951 = vld [vmem:[#allocation2 + $0x4] sm:$0xe]
      %v3952 = vsel %vm3950, %v3944, %v3951
      %3953 = vst [vmem:[#allocation2 + $0x4] sm:$0xe] %v3952
      %vm3954 = vcmask 517120
      %vm3955 = vsmask.f32 1280
      %vm3956 = vmand %vm3954, %vm3955
      %v3957 = vld [vmem:[#allocation2 + $0x8] sm:$0x3]
      %v3958 = vsel %vm3956, %v3945, %v3957
      %3959 = vst [vmem:[#allocation2 + $0x8] sm:$0x3] %v3958
      %s3960 = scalar_lea.vmem [#allocation5], 36
      %v3961 = vld [vmem:[%s3960] ss:$2 sm:$0xff]
      %s3962 = scalar_lea.vmem [#allocation5], 37
      %v3963 = vld [vmem:[%s3962] ss:$2 sm:$0xff]
      %s3964 = scalar_lea.vmem [#allocation5], 54
      %v3965 = vld [vmem:[%s3964] ss:$2 sm:$0xff]
      %s3966 = scalar_lea.vmem [#allocation5], 55
      %v3967 = vld [vmem:[%s3966] ss:$2 sm:$0xff]
      %v3968 = vmax.f32 %v3961, %v3963
      %v3969 = vmax.f32 %v3965, %v3967
      %v3970 = vmax.f32 %v3968, %v3969
      %v3971 = vpack.c.bf16 %v3970, %v3970
      %v3973 = vunpack.c.l.b16 %v3971
      %v3974 = vpack.c.b16 %v3973, %v3973
      %v3976 = vshrl.u32 %v3974, 16
      %v3978 = vrot.slane %v3976, 5
      %v3979 = vshll.u32 %v3974, 16
      %v3981 = vrot.slane %v3979, 6
      %v3982 = vor.u32 %v3978, %v3981
      %v3983 = vrot.slane %v3982, 4
      %vm3986 = vcmask 519170
      %vm3987 = vsmask.f32 7946
      %vm3988 = vmand %vm3986, %vm3987
      %v3989 = vld [vmem:[#allocation2 + $0x8] sm:$0xc]
      %v3990 = vsel %vm3988, %v3982, %v3989
      %3991 = vst [vmem:[#allocation2 + $0x8] sm:$0xc] %v3990
      %vm3992 = vcmask 518144
      %vm3993 = vsmask.f32 2304
      %vm3994 = vmand %vm3992, %vm3993
      %v3995 = vld [vmem:[#allocation2 + $0xc] sm:$0x7]
      %v3996 = vsel %vm3994, %v3983, %v3995
      %3997 = vst [vmem:[#allocation2 + $0xc] sm:$0x7] %v3996
      %s3998 = scalar_lea.vmem [#allocation5], 72
      %v3999 = vld [vmem:[%s3998] ss:$2 sm:$0xff]
      %s4000 = scalar_lea.vmem [#allocation5], 73
      %v4001 = vld [vmem:[%s4000] ss:$2 sm:$0xff]
      %s4002 = scalar_lea.vmem [#allocation5], 90
      %v4003 = vld [vmem:[%s4002] ss:$2 sm:$0xff]
      %s4004 = scalar_lea.vmem [#allocation5], 91
      %v4005 = vld [vmem:[%s4004] ss:$2 sm:$0xff]
      %v4006 = vmax.f32 %v3999, %v4001
      %v4007 = vmax.f32 %v4003, %v4005
      %v4008 = vmax.f32 %v4006, %v4007
      %v4009 = vpack.c.bf16 %v4008, %v4008
      %v4011 = vunpack.c.l.b16 %v4009
      %v4012 = vpack.c.b16 %v4011, %v4011
      %v4014 = vshll.u32 %v4012, 16
      %v4016 = vrot.slane %v4014, 5
      %v4017 = vshrl.u32 %v4012, 16
      %v4019 = vrot.slane %v4017, 4
      %v4020 = vor.u32 %v4019, %v4016
      %v4021 = vrot.slane %v4020, 4
      %vm4024 = vcmask 519171
      %vm4025 = vsmask.f32 7950
      %vm4026 = vmand %vm4024, %vm4025
      %v4027 = vld [vmem:[#allocation2 + $0xc] sm:$0x8]
      %v4028 = vsel %vm4026, %v4016, %v4027
      %4029 = vst [vmem:[#allocation2 + $0xc] sm:$0x8] %v4028
      %vm4030 = vcmask 519168
      %vm4031 = vsmask.f32 3328
      %vm4032 = vmand %vm4030, %vm4031
      %v4033 = vld [vmem:[#allocation2 + $0x10] sm:$0xf]
      %v4034 = vsel %vm4032, %v4021, %v4033
      %4035 = vst [vmem:[#allocation2 + $0x10] sm:$0xf] %v4034
      %s4036 = scalar_lea.vmem [#allocation5], 108
      %v4037 = vld [vmem:[%s4036] ss:$2 sm:$0xff]
      %s4038 = scalar_lea.vmem [#allocation5], 109
      %v4039 = vld [vmem:[%s4038] ss:$2 sm:$0xff]
      %s4040 = scalar_lea.vmem [#allocation5], 126
      %v4041 = vld [vmem:[%s4040] ss:$2 sm:$0xff]
      %s4042 = scalar_lea.vmem [#allocation5], 127
      %v4043 = vld [vmem:[%s4042] ss:$2 sm:$0xff]
      %v4044 = vmax.f32 %v4037, %v4039
      %v4045 = vmax.f32 %v4041, %v4043
      %v4046 = vmax.f32 %v4044, %v4045
      %v4047 = vpack.c.bf16 %v4046, %v4046
      %v4049 = vunpack.c.l.b16 %v4047
      %v4050 = vpack.c.b16 %v4049, %v4049
      %v4052 = vshrl.u32 %v4050, 16
      %v4054 = vrot.slane %v4052, 7
      %v4055 = vshll.u32 %v4050, 16
      %v4057 = vor.u32 %v4054, %v4055
      %v4058 = vrot.slane %v4054, 4
      %vm4061 = vsmask.f32 7938
      %vm4062 = vmand %vm4030, %vm4061
      %v4063 = vld [vmem:[#allocation2 + $0x14] sm:$0xf]
      %v4064 = vsel %vm4062, %v4057, %v4063
      %4065 = vst [vmem:[#allocation2 + $0x14] sm:$0xf] %v4064
      %vm4066 = vcmask 516096
      %vm4067 = vsmask.f32 256
      %vm4068 = vmand %vm4066, %vm4067
      %v4069 = vld [vmem:[#allocation2 + $0x18] sm:$0x1]
      %v4070 = vsel %vm4068, %v4058, %v4069
      %4071 = vst [vmem:[#allocation2 + $0x18] sm:$0x1] %v4070
      %s4072 = scalar_lea.vmem [#allocation5], 144
      %v4073 = vld [vmem:[%s4072] ss:$2 sm:$0xff]
      %s4074 = scalar_lea.vmem [#allocation5], 145
      %v4075 = vld [vmem:[%s4074] ss:$2 sm:$0xff]
      %s4076 = scalar_lea.vmem [#allocation5], 162
      %v4077 = vld [vmem:[%s4076] ss:$2 sm:$0xff]
      %s4078 = scalar_lea.vmem [#allocation5], 163
      %v4079 = vld [vmem:[%s4078] ss:$2 sm:$0xff]
      %v4080 = vmax.f32 %v4073, %v4075
      %v4081 = vmax.f32 %v4077, %v4079
      %v4082 = vmax.f32 %v4080, %v4081
      %v4083 = vpack.c.bf16 %v4082, %v4082
      %v4085 = vunpack.c.l.b16 %v4083
      %v4086 = vpack.c.b16 %v4085, %v4085
      %v4088 = vshrl.u32 %v4086, 16
      %v4090 = vrot.slane %v4088, 6
      %v4091 = vshll.u32 %v4086, 16
      %v4093 = vrot.slane %v4091, 7
      %v4094 = vor.u32 %v4090, %v4093
      %v4095 = vrot.slane %v4094, 4
      %v4098 = vld [vmem:[#allocation2 + $0x18] sm:$0xe]
      %v4099 = vsel %vm3950, %v4094, %v4098
      %4100 = vst [vmem:[#allocation2 + $0x18] sm:$0xe] %v4099
      %v4101 = vld [vmem:[#allocation2 + $0x1c] sm:$0x3]
      %v4102 = vsel %vm3956, %v4095, %v4101
      %4103 = vst [vmem:[#allocation2 + $0x1c] sm:$0x3] %v4102
      %s4104 = scalar_lea.vmem [#allocation5], 180
      %v4105 = vld [vmem:[%s4104] ss:$2 sm:$0xff]
      %s4106 = scalar_lea.vmem [#allocation5], 181
      %v4107 = vld [vmem:[%s4106] ss:$2 sm:$0xff]
      %s4108 = scalar_lea.vmem [#allocation5], 198
      %v4109 = vld [vmem:[%s4108] ss:$2 sm:$0xff]
      %s4110 = scalar_lea.vmem [#allocation5], 199
      %v4111 = vld [vmem:[%s4110] ss:$2 sm:$0xff]
      %v4112 = vmax.f32 %v4105, %v4107
      %v4113 = vmax.f32 %v4109, %v4111
      %v4114 = vmax.f32 %v4112, %v4113
      %v4115 = vpack.c.bf16 %v4114, %v4114
      %v4117 = vunpack.c.l.b16 %v4115
      %v4118 = vpack.c.b16 %v4117, %v4117
      %v4120 = vshrl.u32 %v4118, 16
      %v4122 = vrot.slane %v4120, 5
      %v4123 = vshll.u32 %v4118, 16
      %v4125 = vrot.slane %v4123, 6
      %v4126 = vor.u32 %v4122, %v4125
      %v4127 = vrot.slane %v4126, 4
      %v4130 = vld [vmem:[#allocation2 + $0x1c] sm:$0xc]
      %v4131 = vsel %vm3988, %v4126, %v4130
      %4132 = vst [vmem:[#allocation2 + $0x1c] sm:$0xc] %v4131
      %v4133 = vld [vmem:[#allocation2 + $0x20] sm:$0x7]
      %v4134 = vsel %vm3994, %v4127, %v4133
      %4135 = vst [vmem:[#allocation2 + $0x20] sm:$0x7] %v4134
      %s4136 = scalar_lea.vmem [#allocation5], 216
      %v4137 = vld [vmem:[%s4136] ss:$2 sm:$0xff]
      %s4138 = scalar_lea.vmem [#allocation5], 217
      %v4139 = vld [vmem:[%s4138] ss:$2 sm:$0xff]
      %s4140 = scalar_lea.vmem [#allocation5], 234
      %v4141 = vld [vmem:[%s4140] ss:$2 sm:$0xff]
      %s4142 = scalar_lea.vmem [#allocation5], 235
      %v4143 = vld [vmem:[%s4142] ss:$2 sm:$0xff]
      %v4144 = vmax.f32 %v4137, %v4139
      %v4145 = vmax.f32 %v4141, %v4143
      %v4146 = vmax.f32 %v4144, %v4145
      %v4147 = vpack.c.bf16 %v4146, %v4146
      %v4149 = vunpack.c.l.b16 %v4147
      %v4150 = vpack.c.b16 %v4149, %v4149
      %v4152 = vshll.u32 %v4150, 16
      %v4154 = vrot.slane %v4152, 5
      %v4155 = vshrl.u32 %v4150, 16
      %v4157 = vrot.slane %v4155, 4
      %v4158 = vor.u32 %v4157, %v4154
      %v4159 = vrot.slane %v4158, 4
      %v4162 = vld [vmem:[#allocation2 + $0x20] sm:$0x8]
      %v4163 = vsel %vm4026, %v4154, %v4162
      %4164 = vst [vmem:[#allocation2 + $0x20] sm:$0x8] %v4163
      %v4165 = vld [vmem:[#allocation2 + $0x24] sm:$0xf]
      %v4166 = vsel %vm4032, %v4159, %v4165
      %4167 = vst [vmem:[#allocation2 + $0x24] sm:$0xf] %v4166
      %s4168 = scalar_lea.vmem [#allocation5], 252
      %v4169 = vld [vmem:[%s4168] ss:$2 sm:$0xff]
      %s4170 = scalar_lea.vmem [#allocation5], 253
      %v4171 = vld [vmem:[%s4170] ss:$2 sm:$0xff]
      %s4172 = scalar_lea.vmem [#allocation5], 270
      %v4173 = vld [vmem:[%s4172] ss:$2 sm:$0xff]
      %s4174 = scalar_lea.vmem [#allocation5], 271
      %v4175 = vld [vmem:[%s4174] ss:$2 sm:$0xff]
      %v4176 = vmax.f32 %v4169, %v4171
      %v4177 = vmax.f32 %v4173, %v4175
      %v4178 = vmax.f32 %v4176, %v4177
      %v4179 = vpack.c.bf16 %v4178, %v4178
      %v4181 = vunpack.c.l.b16 %v4179
      %v4182 = vpack.c.b16 %v4181, %v4181
      %v4184 = vshrl.u32 %v4182, 16
      %v4186 = vrot.slane %v4184, 7
      %v4187 = vshll.u32 %v4182, 16
      %v4189 = vor.u32 %v4186, %v4187
      %v4190 = vrot.slane %v4186, 4
      %v4193 = vld [vmem:[#allocation2 + $0x28] sm:$0xf]
      %v4194 = vsel %vm4062, %v4189, %v4193
      %4195 = vst [vmem:[#allocation2 + $0x28] sm:$0xf] %v4194
      %v4196 = vld [vmem:[#allocation2 + $0x2c] sm:$0x1]
      %v4197 = vsel %vm4068, %v4190, %v4196
      %4198 = vst [vmem:[#allocation2 + $0x2c] sm:$0x1] %v4197
      %v4199 = vld [vmem:[#allocation2] sm:$0xf]
      %v4200 = vld [vmem:[#allocation2 + $0x4] sm:$0xf]
      %v4201 = vld [vmem:[#allocation2 + $0x8] sm:$0xf]
      %v4202 = vld [vmem:[#allocation2 + $0xc] sm:$0xf]
      %v4203 = vld [vmem:[#allocation2 + $0x10] sm:$0xf]
      %v4204 = vld [vmem:[#allocation2 + $0x14] sm:$0xf]
      %v4205 = vld [vmem:[#allocation2 + $0x18] sm:$0xf]
      %v4206 = vld [vmem:[#allocation2 + $0x1c] sm:$0xf]
      %v4207 = vld [vmem:[#allocation2 + $0x20] sm:$0xf]
      %v4208 = vld [vmem:[#allocation2 + $0x24] sm:$0xf]
      %v4209 = vld [vmem:[%s3] sm:$0xf]
      %v4210 = vld [vmem:[%s3 + $0x4] sm:$0xf]
      %v4211 = vld [vmem:[%s3 + $0x8] sm:$0xf]
      %v4212 = vld [vmem:[%s3 + $0xc] sm:$0xf]
      %v4213 = vld [vmem:[%s3 + $0x10] sm:$0xf]
      %v4214 = vld [vmem:[%s3 + $0x14] sm:$0xf]
      %v4215 = vld [vmem:[%s3 + $0x18] sm:$0xf]
      %v4216 = vld [vmem:[%s3 + $0x1c] sm:$0xf]
      %v4217 = vld [vmem:[#allocation2 + $0x28] sm:$0x1]
      %s4218 = scalar_lea.vmem %s3, 32
      %v4219 = vld [vmem:[%s4218] sm:$0xf]
      %v4220 = vld [vmem:[%s4218 + $0x4] sm:$0xf]
      %v4221 = vld [vmem:[%s4218 + $0x8] sm:$0xf]
      %v4222 = vld [vmem:[%s4218 + $0xc] sm:$0xf]
      %v4223 = vld [vmem:[%s4218 + $0x10] sm:$0xf]
      %v4224 = vld [vmem:[%s4218 + $0x14] sm:$0xf]
      %v4225 = vld [vmem:[%s4218 + $0x18] sm:$0xf]
      %v4226 = vld [vmem:[%s4218 + $0x1c] sm:$0xf]
      %v4238 = vunpack.c.l.b16 %v4199
      %v4239 = vunpack.c.l.b16 %v4200
      %v4240 = vunpack.c.l.b16 %v4201
      %v4241 = vunpack.c.l.b16 %v4202
      %v4242 = vunpack.c.l.b16 %v4203
      %v4243 = vunpack.c.l.b16 %v4204
      %v4244 = vunpack.c.l.b16 %v4205
      %v4245 = vunpack.c.l.b16 %v4206
      %v4246 = vunpack.c.l.b16 %v4207
      %v4247 = vunpack.c.l.b16 %v4208
      %v4248 = vunpack.c.l.b16 %v4217
      %v4249 = vpack.c.b16 %v4239, %v4238
      %v4250 = vpack.c.b16 %v4241, %v4240
      %v4251 = vpack.c.b16 %v4243, %v4242
      %v4252 = vpack.c.b16 %v4245, %v4244
      %v4253 = vpack.c.b16 %v4247, %v4246
      %v4254 = vpack.c.b16 %v4248, %v4248
      %v4256 = vshrl.u32 %v4249, 16
      %v4258 = vshll.u32 %v4249, 16
      %v4260 = vrot.slane %v4258, 1
      %v4261 = vor.u32 %v4256, %v4260
      %v4263 = vshll.u32 %v4250, 16
      %v4265 = vrot.slane %v4263, 1
      %v4266 = vsel %vm489, %v4261, %v4265
      %v4267 = vshrl.u32 %v4250, 16
      %v4269 = vor.u32 %v4267, %v4265
      %v4271 = vshll.u32 %v4251, 16
      %v4273 = vrot.slane %v4271, 1
      %v4274 = vsel %vm489, %v4269, %v4273
      %v4275 = vshrl.u32 %v4251, 16
      %v4277 = vor.u32 %v4275, %v4273
      %v4279 = vshll.u32 %v4252, 16
      %v4281 = vrot.slane %v4279, 1
      %v4282 = vsel %vm489, %v4277, %v4281
      %v4283 = vshrl.u32 %v4252, 16
      %v4285 = vor.u32 %v4283, %v4281
      %v4287 = vshll.u32 %v4253, 16
      %v4289 = vrot.slane %v4287, 1
      %v4290 = vsel %vm489, %v4285, %v4289
      %v4291 = vshrl.u32 %v4253, 16
      %v4293 = vor.u32 %v4291, %v4289
      %v4295 = vshll.u32 %v4254, 16
      %v4297 = vrot.slane %v4295, 1
      %v4298 = vsel %vm489, %v4293, %v4297
      %v4307 = vunpack.c.l.b16 %v4219
      %v4308 = vunpack.c.l.b16 %v4220
      %v4309 = vunpack.c.l.b16 %v4221
      %v4310 = vunpack.c.l.b16 %v4222
      %v4311 = vunpack.c.l.b16 %v4223
      %v4312 = vunpack.c.l.b16 %v4224
      %v4313 = vunpack.c.l.b16 %v4225
      %v4314 = vunpack.c.l.b16 %v4226
      %v4315 = vpack.c.b16 %v4308, %v4307
      %v4316 = vpack.c.b16 %v4310, %v4309
      %v4317 = vpack.c.b16 %v4312, %v4311
      %v4318 = vpack.c.b16 %v4314, %v4313
      %v4324 = vsel %vm3886, %v4266, 0
      %v4327 = vsel %vm3886, %v4274, 0
      %v4330 = vsel %vm3886, %v4282, 0
      %v4333 = vsel %vm3886, %v4290, 0
      %v4336 = vsel %vm3886, %v4298, 0
      %4338 = vmatprep.subr.bf16.mxu0 0
      %4339 = vmatpush1.bf16.msra.mxu0 %v4315
      %4340 = vmatprep.subr.bf16.mxu0 0
      %4341 = vmatpush1.bf16.msra.mxu0 %v4316
      %4342 = vmatprep.subr.bf16.mxu0 0
      %4343 = vmatpush1.bf16.msra.mxu0 %v4317
      %4344 = vmatprep.subr.bf16.mxu0 0
      %4345 = vmatpush1.bf16.msra.mxu0 %v4318
      %4346 = vmatprep.subr.bf16.mxu0 0
      %4347 = vmatpush1.bf16.msra.mxu0 0
      %4348 = vmatprep.subr.bf16.mxu0 0
      %4349 = vmatpush1.bf16.msra.mxu0 0
      %4350 = vmatprep.subr.bf16.mxu0 0
      %4351 = vmatpush1.bf16.msra.mxu0 0
      %4352 = vmatprep.subr.bf16.mxu0 0
      %4353 = vmatpush1.bf16.msra.mxu0 0
      %4354 = vmatprep.subr.bf16.mxu0 0
      %4355 = vmatpush1.bf16.msra.mxu0 0
      %4356 = vmatprep.subr.bf16.mxu0 0
      %4357 = vmatpush1.bf16.msra.mxu0 0
      %4358 = vmatprep.subr.bf16.mxu0 0
      %4359 = vmatpush1.bf16.msra.mxu0 0
      %4360 = vmatprep.subr.bf16.mxu0 0
      %4361 = vmatpush1.bf16.msra.mxu0 0
      %4362 = vmatprep.subr.bf16.mxu0 0
      %4363 = vmatpush1.bf16.msra.mxu0 0
      %4364 = vmatprep.subr.bf16.mxu0 0
      %4365 = vmatpush1.bf16.msra.mxu0 0
      %4366 = vmatprep.subr.bf16.mxu0 0
      %4367 = vmatpush1.bf16.msra.mxu0 0
      %4368 = vmatprep.subr.bf16.mxu0 0
      %4369 = vmatpush1.bf16.msra.mxu0 0
      %4370 = vmatprep.mubr.bf16.mxu0 0
      %4371 = vmatmul.mubr.bf16.gmra.mrb[0].mxu0 %v4324
      %v4372 = vpop.f32.mrb[0].mxu0
      %v4373 = vadd.f32 0.0, %v4372
      %v4374 = vpop.f32.mrb[0].mxu0
      %v4375 = vpop.f32.mrb[0].mxu0
      %v4376 = vadd.f32 0.0, %v4375
      %v4377 = vpop.f32.mrb[0].mxu0
      %4378 = vmatprep.mubr.bf16.mxu0 0
      %4379 = vmatmul.mubr.bf16.gmra.mrb[0].mxu0 %v4327
      %v4380 = vpop.f32.mrb[0].mxu0
      %v4381 = vadd.f32 0.0, %v4380
      %v4382 = vpop.f32.mrb[0].mxu0
      %v4383 = vpop.f32.mrb[0].mxu0
      %v4384 = vadd.f32 0.0, %v4383
      %v4385 = vpop.f32.mrb[0].mxu0
      %4386 = vmatprep.mubr.bf16.mxu0 0
      %4387 = vmatmul.mubr.bf16.gmra.mrb[0].mxu0 %v4330
      %v4388 = vpop.f32.mrb[0].mxu0
      %v4389 = vadd.f32 0.0, %v4388
      %v4390 = vpop.f32.mrb[0].mxu0
      %v4391 = vpop.f32.mrb[0].mxu0
      %v4392 = vadd.f32 0.0, %v4391
      %v4393 = vpop.f32.mrb[0].mxu0
      %4394 = vmatprep.mubr.bf16.mxu0 0
      %4395 = vmatmul.mubr.bf16.gmra.mrb[0].mxu0 %v4333
      %v4396 = vpop.f32.mrb[0].mxu0
      %v4397 = vadd.f32 0.0, %v4396
      %v4398 = vpop.f32.mrb[0].mxu0
      %v4399 = vpop.f32.mrb[0].mxu0
      %v4400 = vadd.f32 0.0, %v4399
      %v4401 = vpop.f32.mrb[0].mxu0
      %4402 = vmatprep.mubr.bf16.mxu0 0
      %4403 = vmatmul.mubr.bf16.gmra.mrb[0].mxu0 %v4336
      %v4404 = vpop.f32.mrb[0].mxu0
      %v4405 = vadd.f32 0.0, %v4404
      %v4406 = vpop.f32.mrb[0].mxu0
      %v4407 = vpop.f32.mrb[0].mxu0
      %v4408 = vadd.f32 0.0, %v4407
      %v4409 = vpop.f32.mrb[0].mxu0
      %4410 = vdwg.mxu0
      %v4419 = vunpack.c.l.b16 %v4209
      %v4420 = vunpack.c.l.b16 %v4210
      %v4421 = vunpack.c.l.b16 %v4211
      %v4422 = vunpack.c.l.b16 %v4212
      %v4423 = vunpack.c.l.b16 %v4213
      %v4424 = vunpack.c.l.b16 %v4214
      %v4425 = vunpack.c.l.b16 %v4215
      %v4426 = vunpack.c.l.b16 %v4216
      %v4427 = vpack.c.b16 %v4420, %v4419
      %v4428 = vpack.c.b16 %v4422, %v4421
      %v4429 = vpack.c.b16 %v4424, %v4423
      %v4430 = vpack.c.b16 %v4426, %v4425
      %v4435 = vsel %vm3886, %v4249, 0
      %v4437 = vsel %vm3886, %v4250, 0
      %v4439 = vsel %vm3886, %v4251, 0
      %v4441 = vsel %vm3886, %v4252, 0
      %v4443 = vsel %vm3886, %v4253, 0
      %4445 = vmatprep.subr.bf16.mxu0 0
      %4446 = vmatpush1.bf16.msra.mxu0 %v4427
      %4447 = vmatprep.subr.bf16.mxu0 0
      %4448 = vmatpush1.bf16.msra.mxu0 %v4428
      %4449 = vmatprep.subr.bf16.mxu0 0
      %4450 = vmatpush1.bf16.msra.mxu0 %v4429
      %4451 = vmatprep.subr.bf16.mxu0 0
      %4452 = vmatpush1.bf16.msra.mxu0 %v4430
      %4453 = vmatprep.subr.bf16.mxu0 0
      %4454 = vmatpush1.bf16.msra.mxu0 0
      %4455 = vmatprep.subr.bf16.mxu0 0
      %4456 = vmatpush1.bf16.msra.mxu0 0
      %4457 = vmatprep.subr.bf16.mxu0 0
      %4458 = vmatpush1.bf16.msra.mxu0 0
      %4459 = vmatprep.subr.bf16.mxu0 0
      %4460 = vmatpush1.bf16.msra.mxu0 0
      %4461 = vmatprep.subr.bf16.mxu0 0
      %4462 = vmatpush1.bf16.msra.mxu0 0
      %4463 = vmatprep.subr.bf16.mxu0 0
      %4464 = vmatpush1.bf16.msra.mxu0 0
      %4465 = vmatprep.subr.bf16.mxu0 0
      %4466 = vmatpush1.bf16.msra.mxu0 0
      %4467 = vmatprep.subr.bf16.mxu0 0
      %4468 = vmatpush1.bf16.msra.mxu0 0
      %4469 = vmatprep.subr.bf16.mxu0 0
      %4470 = vmatpush1.bf16.msra.mxu0 0
      %4471 = vmatprep.subr.bf16.mxu0 0
      %4472 = vmatpush1.bf16.msra.mxu0 0
      %4473 = vmatprep.subr.bf16.mxu0 0
      %4474 = vmatpush1.bf16.msra.mxu0 0
      %4475 = vmatprep.subr.bf16.mxu0 0
      %4476 = vmatpush1.bf16.msra.mxu0 0
      %4477 = vmatprep.mubr.bf16.mxu0 0
      %4478 = vmatmul.mubr.bf16.gmra.mrb[0].mxu0 %v4435
      %v4479 = vpop.f32.mrb[0].mxu0
      %v4480 = vadd.f32 %v4373, %v4479
      %v4481 = vpop.f32.mrb[0].mxu0
      %v4482 = vpop.f32.mrb[0].mxu0
      %v4483 = vadd.f32 %v4376, %v4482
      %v4484 = vpop.f32.mrb[0].mxu0
      %4485 = vmatprep.mubr.bf16.mxu0 0
      %4486 = vmatmul.mubr.bf16.gmra.mrb[0].mxu0 %v4437
      %v4487 = vpop.f32.mrb[0].mxu0
      %v4488 = vadd.f32 %v4381, %v4487
      %v4489 = vpop.f32.mrb[0].mxu0
      %v4490 = vpop.f32.mrb[0].mxu0
      %v4491 = vadd.f32 %v4384, %v4490
      %v4492 = vpop.f32.mrb[0].mxu0
      %4493 = vmatprep.mubr.bf16.mxu0 0
      %4494 = vmatmul.mubr.bf16.gmra.mrb[0].mxu0 %v4439
      %v4495 = vpop.f32.mrb[0].mxu0
      %v4496 = vadd.f32 %v4389, %v4495
      %v4497 = vpop.f32.mrb[0].mxu0
      %v4498 = vpop.f32.mrb[0].mxu0
      %v4499 = vadd.f32 %v4392, %v4498
      %v4500 = vpop.f32.mrb[0].mxu0
      %4501 = vmatprep.mubr.bf16.mxu0 0
      %4502 = vmatmul.mubr.bf16.gmra.mrb[0].mxu0 %v4441
      %v4503 = vpop.f32.mrb[0].mxu0
      %v4504 = vadd.f32 %v4397, %v4503
      %v4505 = vpop.f32.mrb[0].mxu0
      %v4506 = vpop.f32.mrb[0].mxu0
      %v4507 = vadd.f32 %v4400, %v4506
      %v4508 = vpop.f32.mrb[0].mxu0
      %4509 = vmatprep.mubr.bf16.mxu0 0
      %4510 = vmatmul.mubr.bf16.gmra.mrb[0].mxu0 %v4443
      %v4511 = vpop.f32.mrb[0].mxu0
      %v4512 = vadd.f32 %v4405, %v4511
      %v4513 = vpop.f32.mrb[0].mxu0
      %v4514 = vpop.f32.mrb[0].mxu0
      %v4515 = vadd.f32 %v4408, %v4514
      %v4516 = vpop.f32.mrb[0].mxu0
      %4517 = vdwg.mxu0
      %v4518 = vld [vmem:[#allocation2] sm:$0xe]
      %s4519 = scalar_lea.vmem %s3, 64
      %v4520 = vld [vmem:[%s4519] sm:$0xf]
      %v4521 = vld [vmem:[%s4519 + $0x4] sm:$0xf]
      %v4522 = vld [vmem:[%s4519 + $0x8] sm:$0xf]
      %v4523 = vld [vmem:[%s4519 + $0xc] sm:$0xf]
      %v4524 = vld [vmem:[%s4519 + $0x10] sm:$0xf]
      %v4525 = vld [vmem:[%s4519 + $0x14] sm:$0xf]
      %v4526 = vld [vmem:[%s4519 + $0x18] sm:$0xf]
      %v4527 = vld [vmem:[%s4519 + $0x1c] sm:$0xf]
      %v4529 = vunpack.c.l.b16 %v4518
      %v4530 = vpack.c.b16 %v4239, %v4529
      %v4531 = vrot.slane %v4530, 1
      %v4532 = vrot.slane %v4250, 1
      %v4533 = vsel %vm1099, %v4531, %v4532
      %v4534 = vrot.slane %v4251, 1
      %v4535 = vsel %vm1099, %v4532, %v4534
      %v4536 = vrot.slane %v4252, 1
      %v4537 = vsel %vm1099, %v4534, %v4536
      %v4538 = vrot.slane %v4253, 1
      %v4539 = vsel %vm1099, %v4536, %v4538
      %v4540 = vrot.slane %v4254, 1
      %v4541 = vsel %vm1099, %v4538, %v4540
      %v4550 = vunpack.c.l.b16 %v4520
      %v4551 = vunpack.c.l.b16 %v4521
      %v4552 = vunpack.c.l.b16 %v4522
      %v4553 = vunpack.c.l.b16 %v4523
      %v4554 = vunpack.c.l.b16 %v4524
      %v4555 = vunpack.c.l.b16 %v4525
      %v4556 = vunpack.c.l.b16 %v4526
      %v4557 = vunpack.c.l.b16 %v4527
      %v4558 = vpack.c.b16 %v4551, %v4550
      %v4559 = vpack.c.b16 %v4553, %v4552
      %v4560 = vpack.c.b16 %v4555, %v4554
      %v4561 = vpack.c.b16 %v4557, %v4556
      %v4567 = vsel %vm3886, %v4533, 0
      %v4570 = vsel %vm3886, %v4535, 0
      %v4573 = vsel %vm3886, %v4537, 0
      %v4576 = vsel %vm3886, %v4539, 0
      %v4579 = vsel %vm3886, %v4541, 0
      %4581 = vmatprep.subr.bf16.mxu0 0
      %4582 = vmatpush1.bf16.msra.mxu0 %v4558
      %4583 = vmatprep.subr.bf16.mxu0 0
      %4584 = vmatpush1.bf16.msra.mxu0 %v4559
      %4585 = vmatprep.subr.bf16.mxu0 0
      %4586 = vmatpush1.bf16.msra.mxu0 %v4560
      %4587 = vmatprep.subr.bf16.mxu0 0
      %4588 = vmatpush1.bf16.msra.mxu0 %v4561
      %4589 = vmatprep.subr.bf16.mxu0 0
      %4590 = vmatpush1.bf16.msra.mxu0 0
      %4591 = vmatprep.subr.bf16.mxu0 0
      %4592 = vmatpush1.bf16.msra.mxu0 0
      %4593 = vmatprep.subr.bf16.mxu0 0
      %4594 = vmatpush1.bf16.msra.mxu0 0
      %4595 = vmatprep.subr.bf16.mxu0 0
      %4596 = vmatpush1.bf16.msra.mxu0 0
      %4597 = vmatprep.subr.bf16.mxu0 0
      %4598 = vmatpush1.bf16.msra.mxu0 0
      %4599 = vmatprep.subr.bf16.mxu0 0
      %4600 = vmatpush1.bf16.msra.mxu0 0
      %4601 = vmatprep.subr.bf16.mxu0 0
      %4602 = vmatpush1.bf16.msra.mxu0 0
      %4603 = vmatprep.subr.bf16.mxu0 0
      %4604 = vmatpush1.bf16.msra.mxu0 0
      %4605 = vmatprep.subr.bf16.mxu0 0
      %4606 = vmatpush1.bf16.msra.mxu0 0
      %4607 = vmatprep.subr.bf16.mxu0 0
      %4608 = vmatpush1.bf16.msra.mxu0 0
      %4609 = vmatprep.subr.bf16.mxu0 0
      %4610 = vmatpush1.bf16.msra.mxu0 0
      %4611 = vmatprep.subr.bf16.mxu0 0
      %4612 = vmatpush1.bf16.msra.mxu0 0
      %4613 = vmatprep.mubr.bf16.mxu0 0
      %4614 = vmatmul.mubr.bf16.gmra.mrb[0].mxu0 %v4567
      %v4615 = vpop.f32.mrb[0].mxu0
      %v4616 = vadd.f32 0.0, %v4615
      %v4617 = vpop.f32.mrb[0].mxu0
      %v4618 = vpop.f32.mrb[0].mxu0
      %v4619 = vadd.f32 0.0, %v4618
      %v4620 = vpop.f32.mrb[0].mxu0
      %4621 = vmatprep.mubr.bf16.mxu0 0
      %4622 = vmatmul.mubr.bf16.gmra.mrb[0].mxu0 %v4570
      %v4623 = vpop.f32.mrb[0].mxu0
      %v4624 = vadd.f32 0.0, %v4623
      %v4625 = vpop.f32.mrb[0].mxu0
      %v4626 = vpop.f32.mrb[0].mxu0
      %v4627 = vadd.f32 0.0, %v4626
      %v4628 = vpop.f32.mrb[0].mxu0
      %4629 = vmatprep.mubr.bf16.mxu0 0
      %4630 = vmatmul.mubr.bf16.gmra.mrb[0].mxu0 %v4573
      %v4631 = vpop.f32.mrb[0].mxu0
      %v4632 = vadd.f32 0.0, %v4631
      %v4633 = vpop.f32.mrb[0].mxu0
      %v4634 = vpop.f32.mrb[0].mxu0
      %v4635 = vadd.f32 0.0, %v4634
      %v4636 = vpop.f32.mrb[0].mxu0
      %4637 = vmatprep.mubr.bf16.mxu0 0
      %4638 = vmatmul.mubr.bf16.gmra.mrb[0].mxu0 %v4576
      %v4639 = vpop.f32.mrb[0].mxu0
      %v4640 = vadd.f32 0.0, %v4639
      %v4641 = vpop.f32.mrb[0].mxu0
      %v4642 = vpop.f32.mrb[0].mxu0
      %v4643 = vadd.f32 0.0, %v4642
      %v4644 = vpop.f32.mrb[0].mxu0
      %4645 = vmatprep.mubr.bf16.mxu0 0
      %4646 = vmatmul.mubr.bf16.gmra.mrb[0].mxu0 %v4579
      %v4647 = vpop.f32.mrb[0].mxu0
      %v4648 = vadd.f32 0.0, %v4647
      %v4649 = vpop.f32.mrb[0].mxu0
      %v4650 = vpop.f32.mrb[0].mxu0
      %v4651 = vadd.f32 0.0, %v4650
      %v4652 = vpop.f32.mrb[0].mxu0
      %4653 = vdwg.mxu0
      %v4654 = vadd.f32 %v4480, %v4616
      %v4655 = vadd.f32 %v4483, %v4619
      %v4656 = vadd.f32 %v4488, %v4624
      %v4657 = vadd.f32 %v4491, %v4627
      %v4658 = vadd.f32 %v4496, %v4632
      %v4659 = vadd.f32 %v4499, %v4635
      %v4660 = vadd.f32 %v4504, %v4640
      %v4661 = vadd.f32 %v4507, %v4643
      %v4662 = vadd.f32 %v4512, %v4648
      %v4663 = vadd.f32 %v4515, %v4651
      %v4664 = vld [vmem:[#allocation2 + $0x4] sm:$0xe]
      %v4665 = vld [vmem:[#allocation2 + $0x8] sm:$0xf]
      %v4666 = vld [vmem:[#allocation2 + $0xc] sm:$0xf]
      %v4667 = vld [vmem:[#allocation2 + $0x10] sm:$0xf]
      %v4668 = vld [vmem:[#allocation2 + $0x14] sm:$0xf]
      %v4669 = vld [vmem:[#allocation2 + $0x18] sm:$0xf]
      %v4670 = vld [vmem:[#allocation2 + $0x1c] sm:$0xf]
      %v4671 = vld [vmem:[#allocation2 + $0x20] sm:$0xf]
      %v4672 = vld [vmem:[#allocation2 + $0x24] sm:$0xf]
      %v4673 = vld [vmem:[#allocation2 + $0x28] sm:$0xf]
      %v4674 = vld [vmem:[#allocation2 + $0x2c] sm:$0x1]
      %s4675 = scalar_lea.vmem %s3, 96
      %v4676 = vld [vmem:[%s4675] sm:$0xf]
      %v4677 = vld [vmem:[%s4675 + $0x4] sm:$0xf]
      %v4678 = vld [vmem:[%s4675 + $0x8] sm:$0xf]
      %v4679 = vld [vmem:[%s4675 + $0xc] sm:$0xf]
      %v4680 = vld [vmem:[%s4675 + $0x10] sm:$0xf]
      %v4681 = vld [vmem:[%s4675 + $0x14] sm:$0xf]
      %v4682 = vld [vmem:[%s4675 + $0x18] sm:$0xf]
      %v4683 = vld [vmem:[%s4675 + $0x1c] sm:$0xf]
      %v4695 = vunpack.c.l.b16 %v4664
      %v4696 = vunpack.c.l.b16 %v4665
      %v4697 = vunpack.c.l.b16 %v4666
      %v4698 = vunpack.c.l.b16 %v4667
      %v4699 = vunpack.c.l.b16 %v4668
      %v4700 = vunpack.c.l.b16 %v4669
      %v4701 = vunpack.c.l.b16 %v4670
      %v4702 = vunpack.c.l.b16 %v4671
      %v4703 = vunpack.c.l.b16 %v4672
      %v4704 = vunpack.c.l.b16 %v4673
      %v4705 = vunpack.c.l.b16 %v4674
      %v4706 = vpack.c.b16 %v4696, %v4695
      %v4707 = vpack.c.b16 %v4698, %v4697
      %v4708 = vpack.c.b16 %v4700, %v4699
      %v4709 = vpack.c.b16 %v4702, %v4701
      %v4710 = vpack.c.b16 %v4704, %v4703
      %v4711 = vpack.c.b16 %v4705, %v4705
      %v4712 = vrot.slane %v4706, 1
      %v4713 = vrot.slane %v4707, 1
      %v4714 = vsel %vm1099, %v4712, %v4713
      %v4715 = vrot.slane %v4708, 1
      %v4716 = vsel %vm1099, %v4713, %v4715
      %v4717 = vrot.slane %v4709, 1
      %v4718 = vsel %vm1099, %v4715, %v4717
      %v4719 = vrot.slane %v4710, 1
      %v4720 = vsel %vm1099, %v4717, %v4719
      %v4721 = vrot.slane %v4711, 1
      %v4722 = vsel %vm1099, %v4719, %v4721
      %v4731 = vunpack.c.l.b16 %v4676
      %v4732 = vunpack.c.l.b16 %v4677
      %v4733 = vunpack.c.l.b16 %v4678
      %v4734 = vunpack.c.l.b16 %v4679
      %v4735 = vunpack.c.l.b16 %v4680
      %v4736 = vunpack.c.l.b16 %v4681
      %v4737 = vunpack.c.l.b16 %v4682
      %v4738 = vunpack.c.l.b16 %v4683
      %v4739 = vpack.c.b16 %v4732, %v4731
      %v4740 = vpack.c.b16 %v4734, %v4733
      %v4741 = vpack.c.b16 %v4736, %v4735
      %v4742 = vpack.c.b16 %v4738, %v4737
      %v4748 = vsel %vm3886, %v4714, 0
      %v4751 = vsel %vm3886, %v4716, 0
      %v4754 = vsel %vm3886, %v4718, 0
      %v4757 = vsel %vm3886, %v4720, 0
      %v4760 = vsel %vm3886, %v4722, 0
      %4762 = vmatprep.subr.bf16.mxu0 0
      %4763 = vmatpush1.bf16.msra.mxu0 %v4739
      %4764 = vmatprep.subr.bf16.mxu0 0
      %4765 = vmatpush1.bf16.msra.mxu0 %v4740
      %4766 = vmatprep.subr.bf16.mxu0 0
      %4767 = vmatpush1.bf16.msra.mxu0 %v4741
      %4768 = vmatprep.subr.bf16.mxu0 0
      %4769 = vmatpush1.bf16.msra.mxu0 %v4742
      %4770 = vmatprep.subr.bf16.mxu0 0
      %4771 = vmatpush1.bf16.msra.mxu0 0
      %4772 = vmatprep.subr.bf16.mxu0 0
      %4773 = vmatpush1.bf16.msra.mxu0 0
      %4774 = vmatprep.subr.bf16.mxu0 0
      %4775 = vmatpush1.bf16.msra.mxu0 0
      %4776 = vmatprep.subr.bf16.mxu0 0
      %4777 = vmatpush1.bf16.msra.mxu0 0
      %4778 = vmatprep.subr.bf16.mxu0 0
      %4779 = vmatpush1.bf16.msra.mxu0 0
      %4780 = vmatprep.subr.bf16.mxu0 0
      %4781 = vmatpush1.bf16.msra.mxu0 0
      %4782 = vmatprep.subr.bf16.mxu0 0
      %4783 = vmatpush1.bf16.msra.mxu0 0
      %4784 = vmatprep.subr.bf16.mxu0 0
      %4785 = vmatpush1.bf16.msra.mxu0 0
      %4786 = vmatprep.subr.bf16.mxu0 0
      %4787 = vmatpush1.bf16.msra.mxu0 0
      %4788 = vmatprep.subr.bf16.mxu0 0
      %4789 = vmatpush1.bf16.msra.mxu0 0
      %4790 = vmatprep.subr.bf16.mxu0 0
      %4791 = vmatpush1.bf16.msra.mxu0 0
      %4792 = vmatprep.subr.bf16.mxu0 0
      %4793 = vmatpush1.bf16.msra.mxu0 0
      %4794 = vmatprep.mubr.bf16.mxu0 0
      %4795 = vmatmul.mubr.bf16.gmra.mrb[0].mxu0 %v4748
      %v4796 = vpop.f32.mrb[0].mxu0
      %v4797 = vadd.f32 0.0, %v4796
      %v4798 = vpop.f32.mrb[0].mxu0
      %v4799 = vpop.f32.mrb[0].mxu0
      %v4800 = vadd.f32 0.0, %v4799
      %v4801 = vpop.f32.mrb[0].mxu0
      %4802 = vmatprep.mubr.bf16.mxu0 0
      %4803 = vmatmul.mubr.bf16.gmra.mrb[0].mxu0 %v4751
      %v4804 = vpop.f32.mrb[0].mxu0
      %v4805 = vadd.f32 0.0, %v4804
      %v4806 = vpop.f32.mrb[0].mxu0
      %v4807 = vpop.f32.mrb[0].mxu0
      %v4808 = vadd.f32 0.0, %v4807
      %v4809 = vpop.f32.mrb[0].mxu0
      %4810 = vmatprep.mubr.bf16.mxu0 0
      %4811 = vmatmul.mubr.bf16.gmra.mrb[0].mxu0 %v4754
      %v4812 = vpop.f32.mrb[0].mxu0
      %v4813 = vadd.f32 0.0, %v4812
      %v4814 = vpop.f32.mrb[0].mxu0
      %v4815 = vpop.f32.mrb[0].mxu0
      %v4816 = vadd.f32 0.0, %v4815
      %v4817 = vpop.f32.mrb[0].mxu0
      %4818 = vmatprep.mubr.bf16.mxu0 0
      %4819 = vmatmul.mubr.bf16.gmra.mrb[0].mxu0 %v4757
      %v4820 = vpop.f32.mrb[0].mxu0
      %v4821 = vadd.f32 0.0, %v4820
      %v4822 = vpop.f32.mrb[0].mxu0
      %v4823 = vpop.f32.mrb[0].mxu0
      %v4824 = vadd.f32 0.0, %v4823
      %v4825 = vpop.f32.mrb[0].mxu0
      %4826 = vmatprep.mubr.bf16.mxu0 0
      %4827 = vmatmul.mubr.bf16.gmra.mrb[0].mxu0 %v4760
      %v4828 = vpop.f32.mrb[0].mxu0
      %v4829 = vadd.f32 0.0, %v4828
      %v4830 = vpop.f32.mrb[0].mxu0
      %v4831 = vpop.f32.mrb[0].mxu0
      %v4832 = vadd.f32 0.0, %v4831
      %v4833 = vpop.f32.mrb[0].mxu0
      %4834 = vdwg.mxu0
      %v4835 = vadd.f32 %v4654, %v4797
      %v4836 = vadd.f32 %v4655, %v4800
      %v4837 = vadd.f32 %v4656, %v4805
      %v4838 = vadd.f32 %v4657, %v4808
      %v4839 = vadd.f32 %v4658, %v4813
      %v4840 = vadd.f32 %v4659, %v4816
      %v4841 = vadd.f32 %v4660, %v4821
      %v4842 = vadd.f32 %v4661, %v4824
      %v4843 = vadd.f32 %v4662, %v4829
      %v4844 = vadd.f32 %v4663, %v4832
      %v4845 = vld [vmem:[#allocation2 + $0x2c] sm:$0x3]
      %s4846 = scalar_lea.vmem %s3, 128
      %v4847 = vld [vmem:[%s4846] sm:$0xf]
      %v4848 = vld [vmem:[%s4846 + $0x4] sm:$0xf]
      %v4849 = vld [vmem:[%s4846 + $0x8] sm:$0xf]
      %v4850 = vld [vmem:[%s4846 + $0xc] sm:$0xf]
      %v4851 = vld [vmem:[%s4846 + $0x10] sm:$0xf]
      %v4852 = vld [vmem:[%s4846 + $0x14] sm:$0xf]
      %v4853 = vld [vmem:[%s4846 + $0x18] sm:$0xf]
      %v4854 = vld [vmem:[%s4846 + $0x1c] sm:$0xf]
      %v4856 = vunpack.c.l.b16 %v4845
      %v4857 = vpack.c.b16 %v4856, %v4856
      %v4859 = vshrl.u32 %v4706, 16
      %v4861 = vrot.slane %v4859, 1
      %v4862 = vshll.u32 %v4706, 16
      %v4864 = vrot.slane %v4862, 2
      %v4865 = vor.u32 %v4861, %v4864
      %v4867 = vshrl.u32 %v4707, 16
      %v4869 = vrot.slane %v4867, 1
      %v4870 = vshll.u32 %v4707, 16
      %v4872 = vrot.slane %v4870, 2
      %v4873 = vor.u32 %v4869, %v4872
      %v4874 = vsel %vm1852, %v4865, %v4873
      %v4876 = vshrl.u32 %v4708, 16
      %v4878 = vrot.slane %v4876, 1
      %v4879 = vshll.u32 %v4708, 16
      %v4881 = vrot.slane %v4879, 2
      %v4882 = vor.u32 %v4878, %v4881
      %v4883 = vsel %vm1852, %v4873, %v4882
      %v4885 = vshrl.u32 %v4709, 16
      %v4887 = vrot.slane %v4885, 1
      %v4888 = vshll.u32 %v4709, 16
      %v4890 = vrot.slane %v4888, 2
      %v4891 = vor.u32 %v4887, %v4890
      %v4892 = vsel %vm1852, %v4882, %v4891
      %v4894 = vshrl.u32 %v4710, 16
      %v4896 = vrot.slane %v4894, 1
      %v4897 = vshll.u32 %v4710, 16
      %v4899 = vrot.slane %v4897, 2
      %v4900 = vor.u32 %v4896, %v4899
      %v4901 = vsel %vm1852, %v4891, %v4900
      %v4903 = vshrl.u32 %v4857, 16
      %v4905 = vrot.slane %v4903, 1
      %v4906 = vshll.u32 %v4857, 16
      %v4908 = vrot.slane %v4906, 2
      %v4909 = vor.u32 %v4905, %v4908
      %v4910 = vsel %vm1852, %v4900, %v4909
      %v4919 = vunpack.c.l.b16 %v4847
      %v4920 = vunpack.c.l.b16 %v4848
      %v4921 = vunpack.c.l.b16 %v4849
      %v4922 = vunpack.c.l.b16 %v4850
      %v4923 = vunpack.c.l.b16 %v4851
      %v4924 = vunpack.c.l.b16 %v4852
      %v4925 = vunpack.c.l.b16 %v4853
      %v4926 = vunpack.c.l.b16 %v4854
      %v4927 = vpack.c.b16 %v4920, %v4919
      %v4928 = vpack.c.b16 %v4922, %v4921
      %v4929 = vpack.c.b16 %v4924, %v4923
      %v4930 = vpack.c.b16 %v4926, %v4925
      %v4936 = vsel %vm3886, %v4874, 0
      %v4939 = vsel %vm3886, %v4883, 0
      %v4942 = vsel %vm3886, %v4892, 0
      %v4945 = vsel %vm3886, %v4901, 0
      %v4948 = vsel %vm3886, %v4910, 0
      %4950 = vmatprep.subr.bf16.mxu0 0
      %4951 = vmatpush1.bf16.msra.mxu0 %v4927
      %4952 = vmatprep.subr.bf16.mxu0 0
      %4953 = vmatpush1.bf16.msra.mxu0 %v4928
      %4954 = vmatprep.subr.bf16.mxu0 0
      %4955 = vmatpush1.bf16.msra.mxu0 %v4929
      %4956 = vmatprep.subr.bf16.mxu0 0
      %4957 = vmatpush1.bf16.msra.mxu0 %v4930
      %4958 = vmatprep.subr.bf16.mxu0 0
      %4959 = vmatpush1.bf16.msra.mxu0 0
      %4960 = vmatprep.subr.bf16.mxu0 0
      %4961 = vmatpush1.bf16.msra.mxu0 0
      %4962 = vmatprep.subr.bf16.mxu0 0
      %4963 = vmatpush1.bf16.msra.mxu0 0
      %4964 = vmatprep.subr.bf16.mxu0 0
      %4965 = vmatpush1.bf16.msra.mxu0 0
      %4966 = vmatprep.subr.bf16.mxu0 0
      %4967 = vmatpush1.bf16.msra.mxu0 0
      %4968 = vmatprep.subr.bf16.mxu0 0
      %4969 = vmatpush1.bf16.msra.mxu0 0
      %4970 = vmatprep.subr.bf16.mxu0 0
      %4971 = vmatpush1.bf16.msra.mxu0 0
      %4972 = vmatprep.subr.bf16.mxu0 0
      %4973 = vmatpush1.bf16.msra.mxu0 0
      %4974 = vmatprep.subr.bf16.mxu0 0
      %4975 = vmatpush1.bf16.msra.mxu0 0
      %4976 = vmatprep.subr.bf16.mxu0 0
      %4977 = vmatpush1.bf16.msra.mxu0 0
      %4978 = vmatprep.subr.bf16.mxu0 0
      %4979 = vmatpush1.bf16.msra.mxu0 0
      %4980 = vmatprep.subr.bf16.mxu0 0
      %4981 = vmatpush1.bf16.msra.mxu0 0
      %4982 = vmatprep.mubr.bf16.mxu0 0
      %4983 = vmatmul.mubr.bf16.gmra.mrb[0].mxu0 %v4936
      %v4984 = vpop.f32.mrb[0].mxu0
      %v4985 = vadd.f32 0.0, %v4984
      %v4986 = vpop.f32.mrb[0].mxu0
      %v4987 = vpop.f32.mrb[0].mxu0
      %v4988 = vadd.f32 0.0, %v4987
      %v4989 = vpop.f32.mrb[0].mxu0
      %4990 = vmatprep.mubr.bf16.mxu0 0
      %4991 = vmatmul.mubr.bf16.gmra.mrb[0].mxu0 %v4939
      %v4992 = vpop.f32.mrb[0].mxu0
      %v4993 = vadd.f32 0.0, %v4992
      %v4994 = vpop.f32.mrb[0].mxu0
      %v4995 = vpop.f32.mrb[0].mxu0
      %v4996 = vadd.f32 0.0, %v4995
      %v4997 = vpop.f32.mrb[0].mxu0
      %4998 = vmatprep.mubr.bf16.mxu0 0
      %4999 = vmatmul.mubr.bf16.gmra.mrb[0].mxu0 %v4942
      %v5000 = vpop.f32.mrb[0].mxu0
      %v5001 = vadd.f32 0.0, %v5000
      %v5002 = vpop.f32.mrb[0].mxu0
      %v5003 = vpop.f32.mrb[0].mxu0
      %v5004 = vadd.f32 0.0, %v5003
      %v5005 = vpop.f32.mrb[0].mxu0
      %5006 = vmatprep.mubr.bf16.mxu0 0
      %5007 = vmatmul.mubr.bf16.gmra.mrb[0].mxu0 %v4945
      %v5008 = vpop.f32.mrb[0].mxu0
      %v5009 = vadd.f32 0.0, %v5008
      %v5010 = vpop.f32.mrb[0].mxu0
      %v5011 = vpop.f32.mrb[0].mxu0
      %v5012 = vadd.f32 0.0, %v5011
      %v5013 = vpop.f32.mrb[0].mxu0
      %5014 = vmatprep.mubr.bf16.mxu0 0
      %5015 = vmatmul.mubr.bf16.gmra.mrb[0].mxu0 %v4948
      %v5016 = vpop.f32.mrb[0].mxu0
      %v5017 = vadd.f32 0.0, %v5016
      %v5018 = vpop.f32.mrb[0].mxu0
      %v5019 = vpop.f32.mrb[0].mxu0
      %v5020 = vadd.f32 0.0, %v5019
      %v5021 = vpop.f32.mrb[0].mxu0
      %5022 = vdwg.mxu0
      %v5023 = vadd.f32 %v4835, %v4985
      %v5024 = vadd.f32 %v4836, %v4988
      %v5025 = vadd.f32 %v4837, %v4993
      %v5026 = vadd.f32 %v4838, %v4996
      %v5027 = vadd.f32 %v4839, %v5001
      %v5028 = vadd.f32 %v4840, %v5004
      %v5029 = vadd.f32 %v4841, %v5009
      %v5030 = vadd.f32 %v4842, %v5012
      %v5031 = vadd.f32 %v4843, %v5017
      %v5032 = vadd.f32 %v4844, %v5020
      %v5033 = vld [vmem:[#allocation2 + $0x4] sm:$0xc]
      %s5034 = scalar_lea.vmem %s3, 160
      %v5035 = vld [vmem:[%s5034] sm:$0xf]
      %v5036 = vld [vmem:[%s5034 + $0x4] sm:$0xf]
      %v5037 = vld [vmem:[%s5034 + $0x8] sm:$0xf]
      %v5038 = vld [vmem:[%s5034 + $0xc] sm:$0xf]
      %v5039 = vld [vmem:[%s5034 + $0x10] sm:$0xf]
      %v5040 = vld [vmem:[%s5034 + $0x14] sm:$0xf]
      %v5041 = vld [vmem:[%s5034 + $0x18] sm:$0xf]
      %v5042 = vld [vmem:[%s5034 + $0x1c] sm:$0xf]
      %v5044 = vunpack.c.l.b16 %v5033
      %v5045 = vpack.c.b16 %v4696, %v5044
      %v5046 = vrot.slane %v5045, 2
      %v5047 = vrot.slane %v4707, 2
      %v5048 = vsel %vm2299, %v5046, %v5047
      %v5049 = vrot.slane %v4708, 2
      %v5050 = vsel %vm2299, %v5047, %v5049
      %v5051 = vrot.slane %v4709, 2
      %v5052 = vsel %vm2299, %v5049, %v5051
      %v5053 = vrot.slane %v4710, 2
      %v5054 = vsel %vm2299, %v5051, %v5053
      %v5055 = vrot.slane %v4857, 2
      %v5056 = vsel %vm2299, %v5053, %v5055
      %v5065 = vunpack.c.l.b16 %v5035
      %v5066 = vunpack.c.l.b16 %v5036
      %v5067 = vunpack.c.l.b16 %v5037
      %v5068 = vunpack.c.l.b16 %v5038
      %v5069 = vunpack.c.l.b16 %v5039
      %v5070 = vunpack.c.l.b16 %v5040
      %v5071 = vunpack.c.l.b16 %v5041
      %v5072 = vunpack.c.l.b16 %v5042
      %v5073 = vpack.c.b16 %v5066, %v5065
      %v5074 = vpack.c.b16 %v5068, %v5067
      %v5075 = vpack.c.b16 %v5070, %v5069
      %v5076 = vpack.c.b16 %v5072, %v5071
      %v5082 = vsel %vm3886, %v5048, 0
      %v5085 = vsel %vm3886, %v5050, 0
      %v5088 = vsel %vm3886, %v5052, 0
      %v5091 = vsel %vm3886, %v5054, 0
      %v5094 = vsel %vm3886, %v5056, 0
      %5096 = vmatprep.subr.bf16.mxu0 0
      %5097 = vmatpush1.bf16.msra.mxu0 %v5073
      %5098 = vmatprep.subr.bf16.mxu0 0
      %5099 = vmatpush1.bf16.msra.mxu0 %v5074
      %5100 = vmatprep.subr.bf16.mxu0 0
      %5101 = vmatpush1.bf16.msra.mxu0 %v5075
      %5102 = vmatprep.subr.bf16.mxu0 0
      %5103 = vmatpush1.bf16.msra.mxu0 %v5076
      %5104 = vmatprep.subr.bf16.mxu0 0
      %5105 = vmatpush1.bf16.msra.mxu0 0
      %5106 = vmatprep.subr.bf16.mxu0 0
      %5107 = vmatpush1.bf16.msra.mxu0 0
      %5108 = vmatprep.subr.bf16.mxu0 0
      %5109 = vmatpush1.bf16.msra.mxu0 0
      %5110 = vmatprep.subr.bf16.mxu0 0
      %5111 = vmatpush1.bf16.msra.mxu0 0
      %5112 = vmatprep.subr.bf16.mxu0 0
      %5113 = vmatpush1.bf16.msra.mxu0 0
      %5114 = vmatprep.subr.bf16.mxu0 0
      %5115 = vmatpush1.bf16.msra.mxu0 0
      %5116 = vmatprep.subr.bf16.mxu0 0
      %5117 = vmatpush1.bf16.msra.mxu0 0
      %5118 = vmatprep.subr.bf16.mxu0 0
      %5119 = vmatpush1.bf16.msra.mxu0 0
      %5120 = vmatprep.subr.bf16.mxu0 0
      %5121 = vmatpush1.bf16.msra.mxu0 0
      %5122 = vmatprep.subr.bf16.mxu0 0
      %5123 = vmatpush1.bf16.msra.mxu0 0
      %5124 = vmatprep.subr.bf16.mxu0 0
      %5125 = vmatpush1.bf16.msra.mxu0 0
      %5126 = vmatprep.subr.bf16.mxu0 0
      %5127 = vmatpush1.bf16.msra.mxu0 0
      %5128 = vmatprep.mubr.bf16.mxu0 0
      %5129 = vmatmul.mubr.bf16.gmra.mrb[0].mxu0 %v5082
      %v5130 = vpop.f32.mrb[0].mxu0
      %v5131 = vadd.f32 0.0, %v5130
      %v5132 = vpop.f32.mrb[0].mxu0
      %v5133 = vpop.f32.mrb[0].mxu0
      %v5134 = vadd.f32 0.0, %v5133
      %v5135 = vpop.f32.mrb[0].mxu0
      %5136 = vmatprep.mubr.bf16.mxu0 0
      %5137 = vmatmul.mubr.bf16.gmra.mrb[0].mxu0 %v5085
      %v5138 = vpop.f32.mrb[0].mxu0
      %v5139 = vadd.f32 0.0, %v5138
      %v5140 = vpop.f32.mrb[0].mxu0
      %v5141 = vpop.f32.mrb[0].mxu0
      %v5142 = vadd.f32 0.0, %v5141
      %v5143 = vpop.f32.mrb[0].mxu0
      %5144 = vmatprep.mubr.bf16.mxu0 0
      %5145 = vmatmul.mubr.bf16.gmra.mrb[0].mxu0 %v5088
      %v5146 = vpop.f32.mrb[0].mxu0
      %v5147 = vadd.f32 0.0, %v5146
      %v5148 = vpop.f32.mrb[0].mxu0
      %v5149 = vpop.f32.mrb[0].mxu0
      %v5150 = vadd.f32 0.0, %v5149
      %v5151 = vpop.f32.mrb[0].mxu0
      %5152 = vmatprep.mubr.bf16.mxu0 0
      %5153 = vmatmul.mubr.bf16.gmra.mrb[0].mxu0 %v5091
      %v5154 = vpop.f32.mrb[0].mxu0
      %v5155 = vadd.f32 0.0, %v5154
      %v5156 = vpop.f32.mrb[0].mxu0
      %v5157 = vpop.f32.mrb[0].mxu0
      %v5158 = vadd.f32 0.0, %v5157
      %v5159 = vpop.f32.mrb[0].mxu0
      %5160 = vmatprep.mubr.bf16.mxu0 0
      %5161 = vmatmul.mubr.bf16.gmra.mrb[0].mxu0 %v5094
      %v5162 = vpop.f32.mrb[0].mxu0
      %v5163 = vadd.f32 0.0, %v5162
      %v5164 = vpop.f32.mrb[0].mxu0
      %v5165 = vpop.f32.mrb[0].mxu0
      %v5166 = vadd.f32 0.0, %v5165
      %v5167 = vpop.f32.mrb[0].mxu0
      %5168 = vdwg.mxu0
      %v5169 = vadd.f32 %v5023, %v5131
      %v5170 = vadd.f32 %v5024, %v5134
      %v5171 = vadd.f32 %v5025, %v5139
      %v5172 = vadd.f32 %v5026, %v5142
      %v5173 = vadd.f32 %v5027, %v5147
      %v5174 = vadd.f32 %v5028, %v5150
      %v5175 = vadd.f32 %v5029, %v5155
      %v5176 = vadd.f32 %v5030, %v5158
      %v5177 = vadd.f32 %v5031, %v5163
      %v5178 = vadd.f32 %v5032, %v5166
      %v5179 = vld [vmem:[#allocation2 + $0x8] sm:$0xc]
      %v5180 = vld [vmem:[#allocation2 + $0xc] sm:$0xf]
      %v5181 = vld [vmem:[#allocation2 + $0x10] sm:$0xf]
      %v5182 = vld [vmem:[#allocation2 + $0x14] sm:$0xf]
      %v5183 = vld [vmem:[#allocation2 + $0x18] sm:$0xf]
      %v5184 = vld [vmem:[#allocation2 + $0x1c] sm:$0xf]
      %v5185 = vld [vmem:[#allocation2 + $0x20] sm:$0xf]
      %v5186 = vld [vmem:[#allocation2 + $0x24] sm:$0xf]
      %v5187 = vld [vmem:[#allocation2 + $0x28] sm:$0xf]
      %v5188 = vld [vmem:[#allocation2 + $0x2c] sm:$0xf]
      %v5189 = vld [vmem:[#allocation2 + $0x30] sm:$0x3]
      %s5190 = scalar_lea.vmem %s3, 192
      %v5191 = vld [vmem:[%s5190] sm:$0xf]
      %v5192 = vld [vmem:[%s5190 + $0x4] sm:$0xf]
      %v5193 = vld [vmem:[%s5190 + $0x8] sm:$0xf]
      %v5194 = vld [vmem:[%s5190 + $0xc] sm:$0xf]
      %v5195 = vld [vmem:[%s5190 + $0x10] sm:$0xf]
      %v5196 = vld [vmem:[%s5190 + $0x14] sm:$0xf]
      %v5197 = vld [vmem:[%s5190 + $0x18] sm:$0xf]
      %v5198 = vld [vmem:[%s5190 + $0x1c] sm:$0xf]
      %v5210 = vunpack.c.l.b16 %v5179
      %v5211 = vunpack.c.l.b16 %v5180
      %v5212 = vunpack.c.l.b16 %v5181
      %v5213 = vunpack.c.l.b16 %v5182
      %v5214 = vunpack.c.l.b16 %v5183
      %v5215 = vunpack.c.l.b16 %v5184
      %v5216 = vunpack.c.l.b16 %v5185
      %v5217 = vunpack.c.l.b16 %v5186
      %v5218 = vunpack.c.l.b16 %v5187
      %v5219 = vunpack.c.l.b16 %v5188
      %v5220 = vunpack.c.l.b16 %v5189
      %v5221 = vpack.c.b16 %v5211, %v5210
      %v5222 = vpack.c.b16 %v5213, %v5212
      %v5223 = vpack.c.b16 %v5215, %v5214
      %v5224 = vpack.c.b16 %v5217, %v5216
      %v5225 = vpack.c.b16 %v5219, %v5218
      %v5226 = vpack.c.b16 %v5220, %v5220
      %v5227 = vrot.slane %v5221, 2
      %v5228 = vrot.slane %v5222, 2
      %v5229 = vsel %vm2299, %v5227, %v5228
      %v5230 = vrot.slane %v5223, 2
      %v5231 = vsel %vm2299, %v5228, %v5230
      %v5232 = vrot.slane %v5224, 2
      %v5233 = vsel %vm2299, %v5230, %v5232
      %v5234 = vrot.slane %v5225, 2
      %v5235 = vsel %vm2299, %v5232, %v5234
      %v5236 = vrot.slane %v5226, 2
      %v5237 = vsel %vm2299, %v5234, %v5236
      %v5246 = vunpack.c.l.b16 %v5191
      %v5247 = vunpack.c.l.b16 %v5192
      %v5248 = vunpack.c.l.b16 %v5193
      %v5249 = vunpack.c.l.b16 %v5194
      %v5250 = vunpack.c.l.b16 %v5195
      %v5251 = vunpack.c.l.b16 %v5196
      %v5252 = vunpack.c.l.b16 %v5197
      %v5253 = vunpack.c.l.b16 %v5198
      %v5254 = vpack.c.b16 %v5247, %v5246
      %v5255 = vpack.c.b16 %v5249, %v5248
      %v5256 = vpack.c.b16 %v5251, %v5250
      %v5257 = vpack.c.b16 %v5253, %v5252
      %v5263 = vsel %vm3886, %v5229, 0
      %v5266 = vsel %vm3886, %v5231, 0
      %v5269 = vsel %vm3886, %v5233, 0
      %v5272 = vsel %vm3886, %v5235, 0
      %v5275 = vsel %vm3886, %v5237, 0
      %5277 = vmatprep.subr.bf16.mxu0 0
      %5278 = vmatpush1.bf16.msra.mxu0 %v5254
      %5279 = vmatprep.subr.bf16.mxu0 0
      %5280 = vmatpush1.bf16.msra.mxu0 %v5255
      %5281 = vmatprep.subr.bf16.mxu0 0
      %5282 = vmatpush1.bf16.msra.mxu0 %v5256
      %5283 = vmatprep.subr.bf16.mxu0 0
      %5284 = vmatpush1.bf16.msra.mxu0 %v5257
      %5285 = vmatprep.subr.bf16.mxu0 0
      %5286 = vmatpush1.bf16.msra.mxu0 0
      %5287 = vmatprep.subr.bf16.mxu0 0
      %5288 = vmatpush1.bf16.msra.mxu0 0
      %5289 = vmatprep.subr.bf16.mxu0 0
      %5290 = vmatpush1.bf16.msra.mxu0 0
      %5291 = vmatprep.subr.bf16.mxu0 0
      %5292 = vmatpush1.bf16.msra.mxu0 0
      %5293 = vmatprep.subr.bf16.mxu0 0
      %5294 = vmatpush1.bf16.msra.mxu0 0
      %5295 = vmatprep.subr.bf16.mxu0 0
      %5296 = vmatpush1.bf16.msra.mxu0 0
      %5297 = vmatprep.subr.bf16.mxu0 0
      %5298 = vmatpush1.bf16.msra.mxu0 0
      %5299 = vmatprep.subr.bf16.mxu0 0
      %5300 = vmatpush1.bf16.msra.mxu0 0
      %5301 = vmatprep.subr.bf16.mxu0 0
      %5302 = vmatpush1.bf16.msra.mxu0 0
      %5303 = vmatprep.subr.bf16.mxu0 0
      %5304 = vmatpush1.bf16.msra.mxu0 0
      %5305 = vmatprep.subr.bf16.mxu0 0
      %5306 = vmatpush1.bf16.msra.mxu0 0
      %5307 = vmatprep.subr.bf16.mxu0 0
      %5308 = vmatpush1.bf16.msra.mxu0 0
      %5309 = vmatprep.mubr.bf16.mxu0 0
      %5310 = vmatmul.mubr.bf16.gmra.mrb[0].mxu0 %v5263
      %v5311 = vpop.f32.mrb[0].mxu0
      %v5312 = vadd.f32 0.0, %v5311
      %v5313 = vpop.f32.mrb[0].mxu0
      %v5314 = vpop.f32.mrb[0].mxu0
      %v5315 = vadd.f32 0.0, %v5314
      %v5316 = vpop.f32.mrb[0].mxu0
      %5317 = vmatprep.mubr.bf16.mxu0 0
      %5318 = vmatmul.mubr.bf16.gmra.mrb[0].mxu0 %v5266
      %v5319 = vpop.f32.mrb[0].mxu0
      %v5320 = vadd.f32 0.0, %v5319
      %v5321 = vpop.f32.mrb[0].mxu0
      %v5322 = vpop.f32.mrb[0].mxu0
      %v5323 = vadd.f32 0.0, %v5322
      %v5324 = vpop.f32.mrb[0].mxu0
      %5325 = vmatprep.mubr.bf16.mxu0 0
      %5326 = vmatmul.mubr.bf16.gmra.mrb[0].mxu0 %v5269
      %v5327 = vpop.f32.mrb[0].mxu0
      %v5328 = vadd.f32 0.0, %v5327
      %v5329 = vpop.f32.mrb[0].mxu0
      %v5330 = vpop.f32.mrb[0].mxu0
      %v5331 = vadd.f32 0.0, %v5330
      %v5332 = vpop.f32.mrb[0].mxu0
      %5333 = vmatprep.mubr.bf16.mxu0 0
      %5334 = vmatmul.mubr.bf16.gmra.mrb[0].mxu0 %v5272
      %v5335 = vpop.f32.mrb[0].mxu0
      %v5336 = vadd.f32 0.0, %v5335
      %v5337 = vpop.f32.mrb[0].mxu0
      %v5338 = vpop.f32.mrb[0].mxu0
      %v5339 = vadd.f32 0.0, %v5338
      %v5340 = vpop.f32.mrb[0].mxu0
      %5341 = vmatprep.mubr.bf16.mxu0 0
      %5342 = vmatmul.mubr.bf16.gmra.mrb[0].mxu0 %v5275
      %v5343 = vpop.f32.mrb[0].mxu0
      %v5344 = vadd.f32 0.0, %v5343
      %v5345 = vpop.f32.mrb[0].mxu0
      %v5346 = vpop.f32.mrb[0].mxu0
      %v5347 = vadd.f32 0.0, %v5346
      %v5348 = vpop.f32.mrb[0].mxu0
      %5349 = vdwg.mxu0
      %v5350 = vadd.f32 %v5169, %v5312
      %v5351 = vadd.f32 %v5170, %v5315
      %v5352 = vadd.f32 %v5171, %v5320
      %v5353 = vadd.f32 %v5172, %v5323
      %v5354 = vadd.f32 %v5173, %v5328
      %v5355 = vadd.f32 %v5174, %v5331
      %v5356 = vadd.f32 %v5175, %v5336
      %v5357 = vadd.f32 %v5176, %v5339
      %v5358 = vadd.f32 %v5177, %v5344
      %v5359 = vadd.f32 %v5178, %v5347
      %v5360 = vld [vmem:[#allocation2 + $0x30] sm:$0x7]
      %s5361 = scalar_lea.vmem %s3, 224
      %v5362 = vld [vmem:[%s5361] sm:$0xf]
      %v5363 = vld [vmem:[%s5361 + $0x4] sm:$0xf]
      %v5364 = vld [vmem:[%s5361 + $0x8] sm:$0xf]
      %v5365 = vld [vmem:[%s5361 + $0xc] sm:$0xf]
      %v5366 = vld [vmem:[%s5361 + $0x10] sm:$0xf]
      %v5367 = vld [vmem:[%s5361 + $0x14] sm:$0xf]
      %v5368 = vld [vmem:[%s5361 + $0x18] sm:$0xf]
      %v5369 = vld [vmem:[%s5361 + $0x1c] sm:$0xf]
      %v5371 = vunpack.c.l.b16 %v5360
      %v5372 = vpack.c.b16 %v5371, %v5371
      %v5374 = vshrl.u32 %v5221, 16
      %v5376 = vrot.slane %v5374, 2
      %v5377 = vshll.u32 %v5221, 16
      %v5379 = vrot.slane %v5377, 3
      %v5380 = vor.u32 %v5376, %v5379
      %v5382 = vshrl.u32 %v5222, 16
      %v5384 = vrot.slane %v5382, 2
      %v5385 = vshll.u32 %v5222, 16
      %v5387 = vrot.slane %v5385, 3
      %v5388 = vor.u32 %v5384, %v5387
      %v5389 = vsel %vm3052, %v5380, %v5388
      %v5391 = vshrl.u32 %v5223, 16
      %v5393 = vrot.slane %v5391, 2
      %v5394 = vshll.u32 %v5223, 16
      %v5396 = vrot.slane %v5394, 3
      %v5397 = vor.u32 %v5393, %v5396
      %v5398 = vsel %vm3052, %v5388, %v5397
      %v5400 = vshrl.u32 %v5224, 16
      %v5402 = vrot.slane %v5400, 2
      %v5403 = vshll.u32 %v5224, 16
      %v5405 = vrot.slane %v5403, 3
      %v5406 = vor.u32 %v5402, %v5405
      %v5407 = vsel %vm3052, %v5397, %v5406
      %v5409 = vshrl.u32 %v5225, 16
      %v5411 = vrot.slane %v5409, 2
      %v5412 = vshll.u32 %v5225, 16
      %v5414 = vrot.slane %v5412, 3
      %v5415 = vor.u32 %v5411, %v5414
      %v5416 = vsel %vm3052, %v5406, %v5415
      %v5418 = vshrl.u32 %v5372, 16
      %v5420 = vrot.slane %v5418, 2
      %v5421 = vshll.u32 %v5372, 16
      %v5423 = vrot.slane %v5421, 3
      %v5424 = vor.u32 %v5420, %v5423
      %v5425 = vsel %vm3052, %v5415, %v5424
      %v5434 = vunpack.c.l.b16 %v5362
      %v5435 = vunpack.c.l.b16 %v5363
      %v5436 = vunpack.c.l.b16 %v5364
      %v5437 = vunpack.c.l.b16 %v5365
      %v5438 = vunpack.c.l.b16 %v5366
      %v5439 = vunpack.c.l.b16 %v5367
      %v5440 = vunpack.c.l.b16 %v5368
      %v5441 = vunpack.c.l.b16 %v5369
      %v5442 = vpack.c.b16 %v5435, %v5434
      %v5443 = vpack.c.b16 %v5437, %v5436
      %v5444 = vpack.c.b16 %v5439, %v5438
      %v5445 = vpack.c.b16 %v5441, %v5440
      %v5451 = vsel %vm3886, %v5389, 0
      %v5454 = vsel %vm3886, %v5398, 0
      %v5457 = vsel %vm3886, %v5407, 0
      %v5460 = vsel %vm3886, %v5416, 0
      %v5463 = vsel %vm3886, %v5425, 0
      %5465 = vmatprep.subr.bf16.mxu0 0
      %5466 = vmatpush1.bf16.msra.mxu0 %v5442
      %5467 = vmatprep.subr.bf16.mxu0 0
      %5468 = vmatpush1.bf16.msra.mxu0 %v5443
      %5469 = vmatprep.subr.bf16.mxu0 0
      %5470 = vmatpush1.bf16.msra.mxu0 %v5444
      %5471 = vmatprep.subr.bf16.mxu0 0
      %5472 = vmatpush1.bf16.msra.mxu0 %v5445
      %5473 = vmatprep.subr.bf16.mxu0 0
      %5474 = vmatpush1.bf16.msra.mxu0 0
      %5475 = vmatprep.subr.bf16.mxu0 0
      %5476 = vmatpush1.bf16.msra.mxu0 0
      %5477 = vmatprep.subr.bf16.mxu0 0
      %5478 = vmatpush1.bf16.msra.mxu0 0
      %5479 = vmatprep.subr.bf16.mxu0 0
      %5480 = vmatpush1.bf16.msra.mxu0 0
      %5481 = vmatprep.subr.bf16.mxu0 0
      %5482 = vmatpush1.bf16.msra.mxu0 0
      %5483 = vmatprep.subr.bf16.mxu0 0
      %5484 = vmatpush1.bf16.msra.mxu0 0
      %5485 = vmatprep.subr.bf16.mxu0 0
      %5486 = vmatpush1.bf16.msra.mxu0 0
      %5487 = vmatprep.subr.bf16.mxu0 0
      %5488 = vmatpush1.bf16.msra.mxu0 0
      %5489 = vmatprep.subr.bf16.mxu0 0
      %5490 = vmatpush1.bf16.msra.mxu0 0
      %5491 = vmatprep.subr.bf16.mxu0 0
      %5492 = vmatpush1.bf16.msra.mxu0 0
      %5493 = vmatprep.subr.bf16.mxu0 0
      %5494 = vmatpush1.bf16.msra.mxu0 0
      %5495 = vmatprep.subr.bf16.mxu0 0
      %5496 = vmatpush1.bf16.msra.mxu0 0
      %5497 = vmatprep.mubr.bf16.mxu0 0
      %5498 = vmatmul.mubr.bf16.gmra.mrb[0].mxu0 %v5451
      %v5499 = vpop.f32.mrb[0].mxu0
      %v5500 = vadd.f32 0.0, %v5499
      %v5501 = vpop.f32.mrb[0].mxu0
      %v5502 = vpop.f32.mrb[0].mxu0
      %v5503 = vadd.f32 0.0, %v5502
      %v5504 = vpop.f32.mrb[0].mxu0
      %5505 = vmatprep.mubr.bf16.mxu0 0
      %5506 = vmatmul.mubr.bf16.gmra.mrb[0].mxu0 %v5454
      %v5507 = vpop.f32.mrb[0].mxu0
      %v5508 = vadd.f32 0.0, %v5507
      %v5509 = vpop.f32.mrb[0].mxu0
      %v5510 = vpop.f32.mrb[0].mxu0
      %v5511 = vadd.f32 0.0, %v5510
      %v5512 = vpop.f32.mrb[0].mxu0
      %5513 = vmatprep.mubr.bf16.mxu0 0
      %5514 = vmatmul.mubr.bf16.gmra.mrb[0].mxu0 %v5457
      %v5515 = vpop.f32.mrb[0].mxu0
      %v5516 = vadd.f32 0.0, %v5515
      %v5517 = vpop.f32.mrb[0].mxu0
      %v5518 = vpop.f32.mrb[0].mxu0
      %v5519 = vadd.f32 0.0, %v5518
      %v5520 = vpop.f32.mrb[0].mxu0
      %5521 = vmatprep.mubr.bf16.mxu0 0
      %5522 = vmatmul.mubr.bf16.gmra.mrb[0].mxu0 %v5460
      %v5523 = vpop.f32.mrb[0].mxu0
      %v5524 = vadd.f32 0.0, %v5523
      %v5525 = vpop.f32.mrb[0].mxu0
      %v5526 = vpop.f32.mrb[0].mxu0
      %v5527 = vadd.f32 0.0, %v5526
      %v5528 = vpop.f32.mrb[0].mxu0
      %5529 = vmatprep.mubr.bf16.mxu0 0
      %5530 = vmatmul.mubr.bf16.gmra.mrb[0].mxu0 %v5463
      %v5531 = vpop.f32.mrb[0].mxu0
      %v5532 = vadd.f32 0.0, %v5531
      %v5533 = vpop.f32.mrb[0].mxu0
      %v5534 = vpop.f32.mrb[0].mxu0
      %v5535 = vadd.f32 0.0, %v5534
      %v5536 = vpop.f32.mrb[0].mxu0
      %5537 = vdwg.mxu0
      %v5538 = vadd.f32 %v5350, %v5500
      %v5539 = vadd.f32 %v5351, %v5503
      %v5540 = vadd.f32 %v5352, %v5508
      %v5541 = vadd.f32 %v5353, %v5511
      %v5542 = vadd.f32 %v5354, %v5516
      %v5543 = vadd.f32 %v5355, %v5519
      %v5544 = vadd.f32 %v5356, %v5524
      %v5545 = vadd.f32 %v5357, %v5527
      %v5546 = vadd.f32 %v5358, %v5532
      %v5547 = vadd.f32 %v5359, %v5535
      %v5548 = vld [vmem:[#allocation2 + $0x8] sm:$0x8]
      %s5549 = scalar_lea.vmem %s3, 256
      %v5550 = vld [vmem:[%s5549] sm:$0xf]
      %v5551 = vld [vmem:[%s5549 + $0x4] sm:$0xf]
      %v5552 = vld [vmem:[%s5549 + $0x8] sm:$0xf]
      %v5553 = vld [vmem:[%s5549 + $0xc] sm:$0xf]
      %v5554 = vld [vmem:[%s5549 + $0x10] sm:$0xf]
      %v5555 = vld [vmem:[%s5549 + $0x14] sm:$0xf]
      %v5556 = vld [vmem:[%s5549 + $0x18] sm:$0xf]
      %v5557 = vld [vmem:[%s5549 + $0x1c] sm:$0xf]
      %v5559 = vunpack.c.l.b16 %v5548
      %v5560 = vpack.c.b16 %v5211, %v5559
      %v5561 = vrot.slane %v5560, 3
      %v5562 = vrot.slane %v5222, 3
      %v5563 = vsel %vm3499, %v5561, %v5562
      %v5564 = vrot.slane %v5223, 3
      %v5565 = vsel %vm3499, %v5562, %v5564
      %v5566 = vrot.slane %v5224, 3
      %v5567 = vsel %vm3499, %v5564, %v5566
      %v5568 = vrot.slane %v5225, 3
      %v5569 = vsel %vm3499, %v5566, %v5568
      %v5570 = vrot.slane %v5372, 3
      %v5571 = vsel %vm3499, %v5568, %v5570
      %v5580 = vunpack.c.l.b16 %v5550
      %v5581 = vunpack.c.l.b16 %v5551
      %v5582 = vunpack.c.l.b16 %v5552
      %v5583 = vunpack.c.l.b16 %v5553
      %v5584 = vunpack.c.l.b16 %v5554
      %v5585 = vunpack.c.l.b16 %v5555
      %v5586 = vunpack.c.l.b16 %v5556
      %v5587 = vunpack.c.l.b16 %v5557
      %v5588 = vpack.c.b16 %v5581, %v5580
      %v5589 = vpack.c.b16 %v5583, %v5582
      %v5590 = vpack.c.b16 %v5585, %v5584
      %v5591 = vpack.c.b16 %v5587, %v5586
      %v5597 = vsel %vm3886, %v5563, 0
      %v5600 = vsel %vm3886, %v5565, 0
      %v5603 = vsel %vm3886, %v5567, 0
      %v5606 = vsel %vm3886, %v5569, 0
      %v5609 = vsel %vm3886, %v5571, 0
      %5611 = vmatprep.subr.bf16.mxu0 0
      %5612 = vmatpush1.bf16.msra.mxu0 %v5588
      %5613 = vmatprep.subr.bf16.mxu0 0
      %5614 = vmatpush1.bf16.msra.mxu0 %v5589
      %5615 = vmatprep.subr.bf16.mxu0 0
      %5616 = vmatpush1.bf16.msra.mxu0 %v5590
      %5617 = vmatprep.subr.bf16.mxu0 0
      %5618 = vmatpush1.bf16.msra.mxu0 %v5591
      %5619 = vmatprep.subr.bf16.mxu0 0
      %5620 = vmatpush1.bf16.msra.mxu0 0
      %5621 = vmatprep.subr.bf16.mxu0 0
      %5622 = vmatpush1.bf16.msra.mxu0 0
      %5623 = vmatprep.subr.bf16.mxu0 0
      %5624 = vmatpush1.bf16.msra.mxu0 0
      %5625 = vmatprep.subr.bf16.mxu0 0
      %5626 = vmatpush1.bf16.msra.mxu0 0
      %5627 = vmatprep.subr.bf16.mxu0 0
      %5628 = vmatpush1.bf16.msra.mxu0 0
      %5629 = vmatprep.subr.bf16.mxu0 0
      %5630 = vmatpush1.bf16.msra.mxu0 0
      %5631 = vmatprep.subr.bf16.mxu0 0
      %5632 = vmatpush1.bf16.msra.mxu0 0
      %5633 = vmatprep.subr.bf16.mxu0 0
      %5634 = vmatpush1.bf16.msra.mxu0 0
      %5635 = vmatprep.subr.bf16.mxu0 0
      %5636 = vmatpush1.bf16.msra.mxu0 0
      %5637 = vmatprep.subr.bf16.mxu0 0
      %5638 = vmatpush1.bf16.msra.mxu0 0
      %5639 = vmatprep.subr.bf16.mxu0 0
      %5640 = vmatpush1.bf16.msra.mxu0 0
      %5641 = vmatprep.subr.bf16.mxu0 0
      %5642 = vmatpush1.bf16.msra.mxu0 0
      %5643 = vmatprep.mubr.bf16.mxu0 0
      %5644 = vmatmul.mubr.bf16.gmra.mrb[0].mxu0 %v5597
      %v5645 = vpop.f32.mrb[0].mxu0
      %v5646 = vadd.f32 0.0, %v5645
      %v5647 = vpop.f32.mrb[0].mxu0
      %v5648 = vpop.f32.mrb[0].mxu0
      %v5649 = vadd.f32 0.0, %v5648
      %v5650 = vpop.f32.mrb[0].mxu0
      %5651 = vmatprep.mubr.bf16.mxu0 0
      %5652 = vmatmul.mubr.bf16.gmra.mrb[0].mxu0 %v5600
      %v5653 = vpop.f32.mrb[0].mxu0
      %v5654 = vadd.f32 0.0, %v5653
      %v5655 = vpop.f32.mrb[0].mxu0
      %v5656 = vpop.f32.mrb[0].mxu0
      %v5657 = vadd.f32 0.0, %v5656
      %v5658 = vpop.f32.mrb[0].mxu0
      %5659 = vmatprep.mubr.bf16.mxu0 0
      %5660 = vmatmul.mubr.bf16.gmra.mrb[0].mxu0 %v5603
      %v5661 = vpop.f32.mrb[0].mxu0
      %v5662 = vadd.f32 0.0, %v5661
      %v5663 = vpop.f32.mrb[0].mxu0
      %v5664 = vpop.f32.mrb[0].mxu0
      %v5665 = vadd.f32 0.0, %v5664
      %v5666 = vpop.f32.mrb[0].mxu0
      %5667 = vmatprep.mubr.bf16.mxu0 0
      %5668 = vmatmul.mubr.bf16.gmra.mrb[0].mxu0 %v5606
      %v5669 = vpop.f32.mrb[0].mxu0
      %v5670 = vadd.f32 0.0, %v5669
      %v5671 = vpop.f32.mrb[0].mxu0
      %v5672 = vpop.f32.mrb[0].mxu0
      %v5673 = vadd.f32 0.0, %v5672
      %v5674 = vpop.f32.mrb[0].mxu0
      %5675 = vmatprep.mubr.bf16.mxu0 0
      %5676 = vmatmul.mubr.bf16.gmra.mrb[0].mxu0 %v5609
      %v5677 = vpop.f32.mrb[0].mxu0
      %v5678 = vadd.f32 0.0, %v5677
      %v5679 = vpop.f32.mrb[0].mxu0
      %v5680 = vpop.f32.mrb[0].mxu0
      %v5681 = vadd.f32 0.0, %v5680
      %v5682 = vpop.f32.mrb[0].mxu0
      %5683 = vdwg.mxu0
      %v5684 = vadd.f32 %v5538, %v5646
      %v5685 = vadd.f32 %v5539, %v5649
      %v5686 = vadd.f32 %v5540, %v5654
      %v5687 = vadd.f32 %v5541, %v5657
      %v5688 = vadd.f32 %v5542, %v5662
      %v5689 = vadd.f32 %v5543, %v5665
      %v5690 = vadd.f32 %v5544, %v5670
      %v5691 = vadd.f32 %v5545, %v5673
      %v5692 = vadd.f32 %v5546, %v5678
      %v5693 = vadd.f32 %v5547, %v5681
      %v5694 = vld [vmem:[%s4] sm:$0x1]
      %v5696 = vlaneseq
      %v5697 = vshrl.u32 %v5696, 7
      %v5698 = vsub.s32 0, %v5697
      %v5699 = vrot.slane %v5694, %v5698
      %v5701 = vadd.f32 %v5684, %v5699
      %v5702 = vadd.f32 %v5685, %v5699
      %v5703 = vadd.f32 %v5686, %v5699
      %v5704 = vadd.f32 %v5687, %v5699
      %v5705 = vadd.f32 %v5688, %v5699
      %v5706 = vadd.f32 %v5689, %v5699
      %v5707 = vadd.f32 %v5690, %v5699
      %v5708 = vadd.f32 %v5691, %v5699
      %v5709 = vadd.f32 %v5692, %v5699
      %v5710 = vadd.f32 %v5693, %v5699
      %v5711 = vmax.f32 %v5701, 0.0
      %v5712 = vmax.f32 %v5702, 0.0
      %v5713 = vmax.f32 %v5703, 0.0
      %v5714 = vmax.f32 %v5704, 0.0
      %v5715 = vmax.f32 %v5705, 0.0
      %v5716 = vmax.f32 %v5706, 0.0
      %v5717 = vmax.f32 %v5707, 0.0
      %v5718 = vmax.f32 %v5708, 0.0
      %v5719 = vmax.f32 %v5709, 0.0
      %v5720 = vmax.f32 %v5710, 0.0
      %5721 = vst.msk [vmem:[#allocation5] sm:$0xff] %vm3886, %v5711
      %5722 = vst.msk [vmem:[#allocation5 + $0x8] sm:$0xff] %vm3886, %v5712
      %5723 = vst.msk [vmem:[#allocation5 + $0x10] sm:$0xff] %vm3886, %v5713
      %5724 = vst.msk [vmem:[#allocation5 + $0x18] sm:$0xff] %vm3886, %v5714
      %5725 = vst.msk [vmem:[#allocation5 + $0x20] sm:$0xff] %vm3886, %v5715
      %5726 = vst.msk [vmem:[#allocation5 + $0x28] sm:$0xff] %vm3886, %v5716
      %5727 = vst.msk [vmem:[#allocation5 + $0x30] sm:$0xff] %vm3886, %v5717
      %5728 = vst.msk [vmem:[#allocation5 + $0x38] sm:$0xff] %vm3886, %v5718
      %5729 = vst.msk [vmem:[#allocation5 + $0x40] sm:$0xff] %vm3886, %v5719
      %5730 = vst.msk [vmem:[#allocation5 + $0x48] sm:$0xff] %vm3886, %v5720
      %v5731 = vld [vmem:[#allocation5] ss:$2 sm:$0xf]
      %v5732 = vld [vmem:[%s3924] ss:$2 sm:$0xf]
      %s5733 = scalar_lea.vmem [#allocation5], 10
      %v5734 = vld [vmem:[%s5733] ss:$2 sm:$0xf]
      %s5735 = scalar_lea.vmem [#allocation5], 11
      %v5736 = vld [vmem:[%s5735] ss:$2 sm:$0xf]
      %v5737 = vmax.f32 %v5731, %v5732
      %v5738 = vmax.f32 %v5734, %v5736
      %v5739 = vmax.f32 %v5737, %v5738
      %v5740 = vpack.c.bf16 %v5739, %v5739
      %v5742 = vunpack.c.l.b16 %v5740
      %v5743 = vpack.c.b16 %v5742, %v5742
      %v5745 = vshll.u32 %v5743, 16
      %v5747 = vrot.slane %v5745, 5
      %v5748 = vshrl.u32 %v5743, 16
      %v5750 = vrot.slane %v5748, 4
      %v5751 = vor.u32 %v5750, %v5747
      %v5752 = vrot.slane %v5751, 4
      %v5755 = vld [vmem:[#allocation3] sm:$0x8]
      %v5756 = vsel %vm4026, %v5747, %v5755
      %5757 = vst [vmem:[#allocation3] sm:$0x8] %v5756
      %v5758 = vld [vmem:[#allocation3 + $0x4] sm:$0x3]
      %v5759 = vsel %vm3956, %v5752, %v5758
      %5760 = vst [vmem:[#allocation3 + $0x4] sm:$0x3] %v5759
      %s5761 = scalar_lea.vmem [#allocation5], 20
      %v5762 = vld [vmem:[%s5761] ss:$2 sm:$0xf]
      %s5763 = scalar_lea.vmem [#allocation5], 21
      %v5764 = vld [vmem:[%s5763] ss:$2 sm:$0xf]
      %s5765 = scalar_lea.vmem [#allocation5], 30
      %v5766 = vld [vmem:[%s5765] ss:$2 sm:$0xf]
      %s5767 = scalar_lea.vmem [#allocation5], 31
      %v5768 = vld [vmem:[%s5767] ss:$2 sm:$0xf]
      %v5769 = vmax.f32 %v5762, %v5764
      %v5770 = vmax.f32 %v5766, %v5768
      %v5771 = vmax.f32 %v5769, %v5770
      %v5772 = vpack.c.bf16 %v5771, %v5771
      %v5774 = vunpack.c.l.b16 %v5772
      %v5775 = vpack.c.b16 %v5774, %v5774
      %v5777 = vshrl.u32 %v5775, 16
      %v5779 = vrot.slane %v5777, 5
      %v5780 = vshll.u32 %v5775, 16
      %v5782 = vrot.slane %v5780, 6
      %v5783 = vor.u32 %v5779, %v5782
      %v5784 = vrot.slane %v5779, 4
      %v5787 = vld [vmem:[#allocation3 + $0x4] sm:$0xc]
      %v5788 = vsel %vm3988, %v5783, %v5787
      %5789 = vst [vmem:[#allocation3 + $0x4] sm:$0xc] %v5788
      %v5790 = vld [vmem:[#allocation3 + $0x8] sm:$0x1]
      %v5791 = vsel %vm4068, %v5784, %v5790
      %5792 = vst [vmem:[#allocation3 + $0x8] sm:$0x1] %v5791
      %s5793 = scalar_lea.vmem [#allocation5], 40
      %v5794 = vld [vmem:[%s5793] ss:$2 sm:$0xf]
      %s5795 = scalar_lea.vmem [#allocation5], 41
      %v5796 = vld [vmem:[%s5795] ss:$2 sm:$0xf]
      %s5797 = scalar_lea.vmem [#allocation5], 50
      %v5798 = vld [vmem:[%s5797] ss:$2 sm:$0xf]
      %s5799 = scalar_lea.vmem [#allocation5], 51
      %v5800 = vld [vmem:[%s5799] ss:$2 sm:$0xf]
      %v5801 = vmax.f32 %v5794, %v5796
      %v5802 = vmax.f32 %v5798, %v5800
      %v5803 = vmax.f32 %v5801, %v5802
      %v5804 = vpack.c.bf16 %v5803, %v5803
      %v5806 = vunpack.c.l.b16 %v5804
      %v5807 = vpack.c.b16 %v5806, %v5806
      %v5809 = vshrl.u32 %v5807, 16
      %v5811 = vrot.slane %v5809, 6
      %v5812 = vshll.u32 %v5807, 16
      %v5814 = vrot.slane %v5812, 7
      %v5815 = vor.u32 %v5811, %v5814
      %vm5817 = vsmask.f32 3334
      %vm5818 = vmand %vm3948, %vm5817
      %v5819 = vld [vmem:[#allocation3 + $0x8] sm:$0xe]
      %v5820 = vsel %vm5818, %v5815, %v5819
      %5821 = vst [vmem:[#allocation3 + $0x8] sm:$0xe] %v5820
      %s5822 = scalar_lea.vmem [#allocation5], 60
      %v5823 = vld [vmem:[%s5822] ss:$2 sm:$0xf]
      %s5824 = scalar_lea.vmem [#allocation5], 61
      %v5825 = vld [vmem:[%s5824] ss:$2 sm:$0xf]
      %s5826 = scalar_lea.vmem [#allocation5], 70
      %v5827 = vld [vmem:[%s5826] ss:$2 sm:$0xf]
      %s5828 = scalar_lea.vmem [#allocation5], 71
      %v5829 = vld [vmem:[%s5828] ss:$2 sm:$0xf]
      %v5830 = vmax.f32 %v5823, %v5825
      %v5831 = vmax.f32 %v5827, %v5829
      %v5832 = vmax.f32 %v5830, %v5831
      %v5833 = vpack.c.bf16 %v5832, %v5832
      %v5835 = vunpack.c.l.b16 %v5833
      %v5836 = vpack.c.b16 %v5835, %v5835
      %v5838 = vshrl.u32 %v5836, 16
      %v5840 = vrot.slane %v5838, 7
      %v5841 = vshll.u32 %v5836, 16
      %v5843 = vor.u32 %v5840, %v5841
      %vm5845 = vsmask.f32 2306
      %vm5846 = vmand %vm3992, %vm5845
      %v5847 = vld [vmem:[#allocation3 + $0xc] sm:$0x7]
      %v5848 = vsel %vm5846, %v5843, %v5847
      %5849 = vst [vmem:[#allocation3 + $0xc] sm:$0x7] %v5848
      %v5850 = vld [vmem:[#allocation3] sm:$0xf]
      %v5851 = vld [vmem:[#allocation3 + $0x4] sm:$0xf]
      %v5852 = vld [vmem:[#allocation3 + $0x8] sm:$0xf]
      %v5853 = vld [vmem:[%s5] sm:$0xf]
      %v5854 = vld [vmem:[%s5 + $0x4] sm:$0xf]
      %v5855 = vld [vmem:[%s5 + $0x8] sm:$0xf]
      %v5856 = vld [vmem:[%s5 + $0xc] sm:$0xf]
      %v5857 = vld [vmem:[%s5 + $0x10] sm:$0xf]
      %v5858 = vld [vmem:[%s5 + $0x14] sm:$0xf]
      %v5859 = vld [vmem:[%s5 + $0x18] sm:$0xf]
      %v5860 = vld [vmem:[%s5 + $0x1c] sm:$0xf]
      %v5861 = vld [vmem:[#allocation3 + $0xc] sm:$0x1]
      %s5862 = scalar_lea.vmem %s5, 32
      %v5863 = vld [vmem:[%s5862] sm:$0xf]
      %v5864 = vld [vmem:[%s5862 + $0x4] sm:$0xf]
      %v5865 = vld [vmem:[%s5862 + $0x8] sm:$0xf]
      %v5866 = vld [vmem:[%s5862 + $0xc] sm:$0xf]
      %v5867 = vld [vmem:[%s5862 + $0x10] sm:$0xf]
      %v5868 = vld [vmem:[%s5862 + $0x14] sm:$0xf]
      %v5869 = vld [vmem:[%s5862 + $0x18] sm:$0xf]
      %v5870 = vld [vmem:[%s5862 + $0x1c] sm:$0xf]
      %v5875 = vunpack.c.l.b16 %v5850
      %v5876 = vunpack.c.l.b16 %v5851
      %v5877 = vunpack.c.l.b16 %v5852
      %v5878 = vunpack.c.l.b16 %v5861
      %v5879 = vpack.c.b16 %v5876, %v5875
      %v5880 = vpack.c.b16 %v5878, %v5877
      %v5882 = vshrl.u32 %v5879, 16
      %v5884 = vshll.u32 %v5879, 16
      %v5886 = vrot.slane %v5884, 1
      %v5887 = vor.u32 %v5882, %v5886
      %v5889 = vshll.u32 %v5880, 16
      %v5891 = vrot.slane %v5889, 1
      %v5892 = vsel %vm489, %v5887, %v5891
      %v5893 = vshrl.u32 %v5880, 16
      %v5895 = vor.u32 %v5893, %v5891
      %v5904 = vunpack.c.l.b16 %v5863
      %v5905 = vunpack.c.l.b16 %v5864
      %v5906 = vunpack.c.l.b16 %v5865
      %v5907 = vunpack.c.l.b16 %v5866
      %v5908 = vunpack.c.l.b16 %v5867
      %v5909 = vunpack.c.l.b16 %v5868
      %v5910 = vunpack.c.l.b16 %v5869
      %v5911 = vunpack.c.l.b16 %v5870
      %v5912 = vpack.c.b16 %v5905, %v5904
      %v5913 = vpack.c.b16 %v5907, %v5906
      %v5914 = vpack.c.b16 %v5909, %v5908
      %v5915 = vpack.c.b16 %v5911, %v5910
      %v5921 = vsel %vm3886, %v5892, 0
      %v5924 = vsel %vm3886, %v5895, 0
      %5926 = vmatprep.subr.bf16.mxu0 0
      %5927 = vmatpush1.bf16.msra.mxu0 %v5912
      %5928 = vmatprep.subr.bf16.mxu0 0
      %5929 = vmatpush1.bf16.msra.mxu0 %v5913
      %5930 = vmatprep.subr.bf16.mxu0 0
      %5931 = vmatpush1.bf16.msra.mxu0 %v5914
      %5932 = vmatprep.subr.bf16.mxu0 0
      %5933 = vmatpush1.bf16.msra.mxu0 %v5915
      %5934 = vmatprep.subr.bf16.mxu0 0
      %5935 = vmatpush1.bf16.msra.mxu0 0
      %5936 = vmatprep.subr.bf16.mxu0 0
      %5937 = vmatpush1.bf16.msra.mxu0 0
      %5938 = vmatprep.subr.bf16.mxu0 0
      %5939 = vmatpush1.bf16.msra.mxu0 0
      %5940 = vmatprep.subr.bf16.mxu0 0
      %5941 = vmatpush1.bf16.msra.mxu0 0
      %5942 = vmatprep.subr.bf16.mxu0 0
      %5943 = vmatpush1.bf16.msra.mxu0 0
      %5944 = vmatprep.subr.bf16.mxu0 0
      %5945 = vmatpush1.bf16.msra.mxu0 0
      %5946 = vmatprep.subr.bf16.mxu0 0
      %5947 = vmatpush1.bf16.msra.mxu0 0
      %5948 = vmatprep.subr.bf16.mxu0 0
      %5949 = vmatpush1.bf16.msra.mxu0 0
      %5950 = vmatprep.subr.bf16.mxu0 0
      %5951 = vmatpush1.bf16.msra.mxu0 0
      %5952 = vmatprep.subr.bf16.mxu0 0
      %5953 = vmatpush1.bf16.msra.mxu0 0
      %5954 = vmatprep.subr.bf16.mxu0 0
      %5955 = vmatpush1.bf16.msra.mxu0 0
      %5956 = vmatprep.subr.bf16.mxu0 0
      %5957 = vmatpush1.bf16.msra.mxu0 0
      %5958 = vmatprep.mubr.bf16.mxu0 0
      %5959 = vmatmul.mubr.bf16.gmra.mrb[0].mxu0 %v5921
      %v5960 = vpop.f32.mrb[0].mxu0
      %v5961 = vadd.f32 0.0, %v5960
      %v5962 = vpop.f32.mrb[0].mxu0
      %v5963 = vpop.f32.mrb[0].mxu0
      %v5964 = vadd.f32 0.0, %v5963
      %v5965 = vpop.f32.mrb[0].mxu0
      %5966 = vmatprep.mubr.bf16.mxu0 0
      %5967 = vmatmul.mubr.bf16.gmra.mrb[0].mxu0 %v5924
      %v5968 = vpop.f32.mrb[0].mxu0
      %v5969 = vadd.f32 0.0, %v5968
      %v5970 = vpop.f32.mrb[0].mxu0
      %v5971 = vpop.f32.mrb[0].mxu0
      %v5972 = vpop.f32.mrb[0].mxu0
      %5973 = vdwg.mxu0
      %v5974 = vpack.c.b16 %v5877, %v5877
      %v5983 = vunpack.c.l.b16 %v5853
      %v5984 = vunpack.c.l.b16 %v5854
      %v5985 = vunpack.c.l.b16 %v5855
      %v5986 = vunpack.c.l.b16 %v5856
      %v5987 = vunpack.c.l.b16 %v5857
      %v5988 = vunpack.c.l.b16 %v5858
      %v5989 = vunpack.c.l.b16 %v5859
      %v5990 = vunpack.c.l.b16 %v5860
      %v5991 = vpack.c.b16 %v5984, %v5983
      %v5992 = vpack.c.b16 %v5986, %v5985
      %v5993 = vpack.c.b16 %v5988, %v5987
      %v5994 = vpack.c.b16 %v5990, %v5989
      %v5999 = vsel %vm3886, %v5879, 0
      %v6002 = vsel %vm3886, %v5974, 0
      %6004 = vmatprep.subr.bf16.mxu0 0
      %6005 = vmatpush1.bf16.msra.mxu0 %v5991
      %6006 = vmatprep.subr.bf16.mxu0 0
      %6007 = vmatpush1.bf16.msra.mxu0 %v5992
      %6008 = vmatprep.subr.bf16.mxu0 0
      %6009 = vmatpush1.bf16.msra.mxu0 %v5993
      %6010 = vmatprep.subr.bf16.mxu0 0
      %6011 = vmatpush1.bf16.msra.mxu0 %v5994
      %6012 = vmatprep.subr.bf16.mxu0 0
      %6013 = vmatpush1.bf16.msra.mxu0 0
      %6014 = vmatprep.subr.bf16.mxu0 0
      %6015 = vmatpush1.bf16.msra.mxu0 0
      %6016 = vmatprep.subr.bf16.mxu0 0
      %6017 = vmatpush1.bf16.msra.mxu0 0
      %6018 = vmatprep.subr.bf16.mxu0 0
      %6019 = vmatpush1.bf16.msra.mxu0 0
      %6020 = vmatprep.subr.bf16.mxu0 0
      %6021 = vmatpush1.bf16.msra.mxu0 0
      %6022 = vmatprep.subr.bf16.mxu0 0
      %6023 = vmatpush1.bf16.msra.mxu0 0
      %6024 = vmatprep.subr.bf16.mxu0 0
      %6025 = vmatpush1.bf16.msra.mxu0 0
      %6026 = vmatprep.subr.bf16.mxu0 0
      %6027 = vmatpush1.bf16.msra.mxu0 0
      %6028 = vmatprep.subr.bf16.mxu0 0
      %6029 = vmatpush1.bf16.msra.mxu0 0
      %6030 = vmatprep.subr.bf16.mxu0 0
      %6031 = vmatpush1.bf16.msra.mxu0 0
      %6032 = vmatprep.subr.bf16.mxu0 0
      %6033 = vmatpush1.bf16.msra.mxu0 0
      %6034 = vmatprep.subr.bf16.mxu0 0
      %6035 = vmatpush1.bf16.msra.mxu0 0
      %6036 = vmatprep.mubr.bf16.mxu0 0
      %6037 = vmatmul.mubr.bf16.gmra.mrb[0].mxu0 %v5999
      %v6038 = vpop.f32.mrb[0].mxu0
      %v6039 = vadd.f32 %v5961, %v6038
      %v6040 = vpop.f32.mrb[0].mxu0
      %v6041 = vpop.f32.mrb[0].mxu0
      %v6042 = vadd.f32 %v5964, %v6041
      %v6043 = vpop.f32.mrb[0].mxu0
      %6044 = vmatprep.mubr.bf16.mxu0 0
      %6045 = vmatmul.mubr.bf16.gmra.mrb[0].mxu0 %v6002
      %v6046 = vpop.f32.mrb[0].mxu0
      %v6047 = vadd.f32 %v5969, %v6046
      %v6048 = vpop.f32.mrb[0].mxu0
      %v6049 = vpop.f32.mrb[0].mxu0
      %v6050 = vpop.f32.mrb[0].mxu0
      %6051 = vdwg.mxu0
      %v6052 = vld [vmem:[#allocation3] sm:$0xe]
      %s6053 = scalar_lea.vmem %s5, 64
      %v6054 = vld [vmem:[%s6053] sm:$0xf]
      %v6055 = vld [vmem:[%s6053 + $0x4] sm:$0xf]
      %v6056 = vld [vmem:[%s6053 + $0x8] sm:$0xf]
      %v6057 = vld [vmem:[%s6053 + $0xc] sm:$0xf]
      %v6058 = vld [vmem:[%s6053 + $0x10] sm:$0xf]
      %v6059 = vld [vmem:[%s6053 + $0x14] sm:$0xf]
      %v6060 = vld [vmem:[%s6053 + $0x18] sm:$0xf]
      %v6061 = vld [vmem:[%s6053 + $0x1c] sm:$0xf]
      %v6063 = vunpack.c.l.b16 %v6052
      %v6064 = vpack.c.b16 %v5876, %v6063
      %v6065 = vrot.slane %v6064, 1
      %v6066 = vrot.slane %v5880, 1
      %v6067 = vsel %vm1099, %v6065, %v6066
      %v6076 = vunpack.c.l.b16 %v6054
      %v6077 = vunpack.c.l.b16 %v6055
      %v6078 = vunpack.c.l.b16 %v6056
      %v6079 = vunpack.c.l.b16 %v6057
      %v6080 = vunpack.c.l.b16 %v6058
      %v6081 = vunpack.c.l.b16 %v6059
      %v6082 = vunpack.c.l.b16 %v6060
      %v6083 = vunpack.c.l.b16 %v6061
      %v6084 = vpack.c.b16 %v6077, %v6076
      %v6085 = vpack.c.b16 %v6079, %v6078
      %v6086 = vpack.c.b16 %v6081, %v6080
      %v6087 = vpack.c.b16 %v6083, %v6082
      %v6093 = vsel %vm3886, %v6067, 0
      %v6096 = vsel %vm3886, %v6066, 0
      %6098 = vmatprep.subr.bf16.mxu0 0
      %6099 = vmatpush1.bf16.msra.mxu0 %v6084
      %6100 = vmatprep.subr.bf16.mxu0 0
      %6101 = vmatpush1.bf16.msra.mxu0 %v6085
      %6102 = vmatprep.subr.bf16.mxu0 0
      %6103 = vmatpush1.bf16.msra.mxu0 %v6086
      %6104 = vmatprep.subr.bf16.mxu0 0
      %6105 = vmatpush1.bf16.msra.mxu0 %v6087
      %6106 = vmatprep.subr.bf16.mxu0 0
      %6107 = vmatpush1.bf16.msra.mxu0 0
      %6108 = vmatprep.subr.bf16.mxu0 0
      %6109 = vmatpush1.bf16.msra.mxu0 0
      %6110 = vmatprep.subr.bf16.mxu0 0
      %6111 = vmatpush1.bf16.msra.mxu0 0
      %6112 = vmatprep.subr.bf16.mxu0 0
      %6113 = vmatpush1.bf16.msra.mxu0 0
      %6114 = vmatprep.subr.bf16.mxu0 0
      %6115 = vmatpush1.bf16.msra.mxu0 0
      %6116 = vmatprep.subr.bf16.mxu0 0
      %6117 = vmatpush1.bf16.msra.mxu0 0
      %6118 = vmatprep.subr.bf16.mxu0 0
      %6119 = vmatpush1.bf16.msra.mxu0 0
      %6120 = vmatprep.subr.bf16.mxu0 0
      %6121 = vmatpush1.bf16.msra.mxu0 0
      %6122 = vmatprep.subr.bf16.mxu0 0
      %6123 = vmatpush1.bf16.msra.mxu0 0
      %6124 = vmatprep.subr.bf16.mxu0 0
      %6125 = vmatpush1.bf16.msra.mxu0 0
      %6126 = vmatprep.subr.bf16.mxu0 0
      %6127 = vmatpush1.bf16.msra.mxu0 0
      %6128 = vmatprep.subr.bf16.mxu0 0
      %6129 = vmatpush1.bf16.msra.mxu0 0
      %6130 = vmatprep.mubr.bf16.mxu0 0
      %6131 = vmatmul.mubr.bf16.gmra.mrb[0].mxu0 %v6093
      %v6132 = vpop.f32.mrb[0].mxu0
      %v6133 = vadd.f32 0.0, %v6132
      %v6134 = vpop.f32.mrb[0].mxu0
      %v6135 = vpop.f32.mrb[0].mxu0
      %v6136 = vadd.f32 0.0, %v6135
      %v6137 = vpop.f32.mrb[0].mxu0
      %6138 = vmatprep.mubr.bf16.mxu0 0
      %6139 = vmatmul.mubr.bf16.gmra.mrb[0].mxu0 %v6096
      %v6140 = vpop.f32.mrb[0].mxu0
      %v6141 = vadd.f32 0.0, %v6140
      %v6142 = vpop.f32.mrb[0].mxu0
      %v6143 = vpop.f32.mrb[0].mxu0
      %v6144 = vpop.f32.mrb[0].mxu0
      %6145 = vdwg.mxu0
      %v6146 = vadd.f32 %v6039, %v6133
      %v6147 = vadd.f32 %v6042, %v6136
      %v6148 = vadd.f32 %v6047, %v6141
      %v6149 = vld [vmem:[#allocation3] sm:$0x8]
      %v6150 = vld [vmem:[#allocation3 + $0xc] sm:$0x7]
      %s6151 = scalar_lea.vmem %s5, 96
      %v6152 = vld [vmem:[%s6151] sm:$0xf]
      %v6153 = vld [vmem:[%s6151 + $0x4] sm:$0xf]
      %v6154 = vld [vmem:[%s6151 + $0x8] sm:$0xf]
      %v6155 = vld [vmem:[%s6151 + $0xc] sm:$0xf]
      %v6156 = vld [vmem:[%s6151 + $0x10] sm:$0xf]
      %v6157 = vld [vmem:[%s6151 + $0x14] sm:$0xf]
      %v6158 = vld [vmem:[%s6151 + $0x18] sm:$0xf]
      %v6159 = vld [vmem:[%s6151 + $0x1c] sm:$0xf]
      %v6162 = vunpack.c.l.b16 %v6149
      %v6163 = vunpack.c.l.b16 %v6150
      %v6164 = vpack.c.b16 %v5876, %v6162
      %v6165 = vpack.c.b16 %v6163, %v5877
      %v6166 = vrot.slane %v6164, 3
      %v6167 = vrot.slane %v6165, 3
      %v6168 = vsel %vm3499, %v6166, %v6167
      %v6177 = vunpack.c.l.b16 %v6152
      %v6178 = vunpack.c.l.b16 %v6153
      %v6179 = vunpack.c.l.b16 %v6154
      %v6180 = vunpack.c.l.b16 %v6155
      %v6181 = vunpack.c.l.b16 %v6156
      %v6182 = vunpack.c.l.b16 %v6157
      %v6183 = vunpack.c.l.b16 %v6158
      %v6184 = vunpack.c.l.b16 %v6159
      %v6185 = vpack.c.b16 %v6178, %v6177
      %v6186 = vpack.c.b16 %v6180, %v6179
      %v6187 = vpack.c.b16 %v6182, %v6181
      %v6188 = vpack.c.b16 %v6184, %v6183
      %v6194 = vsel %vm3886, %v6168, 0
      %v6197 = vsel %vm3886, %v6167, 0
      %6199 = vmatprep.subr.bf16.mxu0 0
      %6200 = vmatpush1.bf16.msra.mxu0 %v6185
      %6201 = vmatprep.subr.bf16.mxu0 0
      %6202 = vmatpush1.bf16.msra.mxu0 %v6186
      %6203 = vmatprep.subr.bf16.mxu0 0
      %6204 = vmatpush1.bf16.msra.mxu0 %v6187
      %6205 = vmatprep.subr.bf16.mxu0 0
      %6206 = vmatpush1.bf16.msra.mxu0 %v6188
      %6207 = vmatprep.subr.bf16.mxu0 0
      %6208 = vmatpush1.bf16.msra.mxu0 0
      %6209 = vmatprep.subr.bf16.mxu0 0
      %6210 = vmatpush1.bf16.msra.mxu0 0
      %6211 = vmatprep.subr.bf16.mxu0 0
      %6212 = vmatpush1.bf16.msra.mxu0 0
      %6213 = vmatprep.subr.bf16.mxu0 0
      %6214 = vmatpush1.bf16.msra.mxu0 0
      %6215 = vmatprep.subr.bf16.mxu0 0
      %6216 = vmatpush1.bf16.msra.mxu0 0
      %6217 = vmatprep.subr.bf16.mxu0 0
      %6218 = vmatpush1.bf16.msra.mxu0 0
      %6219 = vmatprep.subr.bf16.mxu0 0
      %6220 = vmatpush1.bf16.msra.mxu0 0
      %6221 = vmatprep.subr.bf16.mxu0 0
      %6222 = vmatpush1.bf16.msra.mxu0 0
      %6223 = vmatprep.subr.bf16.mxu0 0
      %6224 = vmatpush1.bf16.msra.mxu0 0
      %6225 = vmatprep.subr.bf16.mxu0 0
      %6226 = vmatpush1.bf16.msra.mxu0 0
      %6227 = vmatprep.subr.bf16.mxu0 0
      %6228 = vmatpush1.bf16.msra.mxu0 0
      %6229 = vmatprep.subr.bf16.mxu0 0
      %6230 = vmatpush1.bf16.msra.mxu0 0
      %6231 = vmatprep.mubr.bf16.mxu0 0
      %6232 = vmatmul.mubr.bf16.gmra.mrb[0].mxu0 %v6194
      %v6233 = vpop.f32.mrb[0].mxu0
      %v6234 = vadd.f32 0.0, %v6233
      %v6235 = vpop.f32.mrb[0].mxu0
      %v6236 = vpop.f32.mrb[0].mxu0
      %v6237 = vadd.f32 0.0, %v6236
      %v6238 = vpop.f32.mrb[0].mxu0
      %6239 = vmatprep.mubr.bf16.mxu0 0
      %6240 = vmatmul.mubr.bf16.gmra.mrb[0].mxu0 %v6197
      %v6241 = vpop.f32.mrb[0].mxu0
      %v6242 = vadd.f32 0.0, %v6241
      %v6243 = vpop.f32.mrb[0].mxu0
      %v6244 = vpop.f32.mrb[0].mxu0
      %v6245 = vpop.f32.mrb[0].mxu0
      %6246 = vdwg.mxu0
      %v6247 = vadd.f32 %v6146, %v6234
      %v6248 = vadd.f32 %v6147, %v6237
      %v6249 = vadd.f32 %v6148, %v6242
      %v6250 = vld [vmem:[#allocation3 + $0xc] sm:$0xf]
      %s6251 = scalar_lea.vmem %s5, 128
      %v6252 = vld [vmem:[%s6251] sm:$0xf]
      %v6253 = vld [vmem:[%s6251 + $0x4] sm:$0xf]
      %v6254 = vld [vmem:[%s6251 + $0x8] sm:$0xf]
      %v6255 = vld [vmem:[%s6251 + $0xc] sm:$0xf]
      %v6256 = vld [vmem:[%s6251 + $0x10] sm:$0xf]
      %v6257 = vld [vmem:[%s6251 + $0x14] sm:$0xf]
      %v6258 = vld [vmem:[%s6251 + $0x18] sm:$0xf]
      %v6259 = vld [vmem:[%s6251 + $0x1c] sm:$0xf]
      %v6261 = vunpack.c.l.b16 %v6250
      %v6262 = vpack.c.b16 %v6261, %v5877
      %vm6263 = vsmask.f32 4352
      %v6265 = vshrl.u32 %v6164, 16
      %v6267 = vrot.slane %v6265, 3
      %v6268 = vshll.u32 %v6164, 16
      %v6270 = vrot.slane %v6268, 4
      %v6271 = vor.u32 %v6267, %v6270
      %v6273 = vshrl.u32 %v6262, 16
      %v6275 = vrot.slane %v6273, 3
      %v6276 = vshll.u32 %v6262, 16
      %v6278 = vrot.slane %v6276, 4
      %v6279 = vor.u32 %v6275, %v6278
      %v6280 = vsel %vm6263, %v6271, %v6279
      %v6289 = vunpack.c.l.b16 %v6252
      %v6290 = vunpack.c.l.b16 %v6253
      %v6291 = vunpack.c.l.b16 %v6254
      %v6292 = vunpack.c.l.b16 %v6255
      %v6293 = vunpack.c.l.b16 %v6256
      %v6294 = vunpack.c.l.b16 %v6257
      %v6295 = vunpack.c.l.b16 %v6258
      %v6296 = vunpack.c.l.b16 %v6259
      %v6297 = vpack.c.b16 %v6290, %v6289
      %v6298 = vpack.c.b16 %v6292, %v6291
      %v6299 = vpack.c.b16 %v6294, %v6293
      %v6300 = vpack.c.b16 %v6296, %v6295
      %v6306 = vsel %vm3886, %v6280, 0
      %v6309 = vsel %vm3886, %v6279, 0
      %6311 = vmatprep.subr.bf16.mxu0 0
      %6312 = vmatpush1.bf16.msra.mxu0 %v6297
      %6313 = vmatprep.subr.bf16.mxu0 0
      %6314 = vmatpush1.bf16.msra.mxu0 %v6298
      %6315 = vmatprep.subr.bf16.mxu0 0
      %6316 = vmatpush1.bf16.msra.mxu0 %v6299
      %6317 = vmatprep.subr.bf16.mxu0 0
      %6318 = vmatpush1.bf16.msra.mxu0 %v6300
      %6319 = vmatprep.subr.bf16.mxu0 0
      %6320 = vmatpush1.bf16.msra.mxu0 0
      %6321 = vmatprep.subr.bf16.mxu0 0
      %6322 = vmatpush1.bf16.msra.mxu0 0
      %6323 = vmatprep.subr.bf16.mxu0 0
      %6324 = vmatpush1.bf16.msra.mxu0 0
      %6325 = vmatprep.subr.bf16.mxu0 0
      %6326 = vmatpush1.bf16.msra.mxu0 0
      %6327 = vmatprep.subr.bf16.mxu0 0
      %6328 = vmatpush1.bf16.msra.mxu0 0
      %6329 = vmatprep.subr.bf16.mxu0 0
      %6330 = vmatpush1.bf16.msra.mxu0 0
      %6331 = vmatprep.subr.bf16.mxu0 0
      %6332 = vmatpush1.bf16.msra.mxu0 0
      %6333 = vmatprep.subr.bf16.mxu0 0
      %6334 = vmatpush1.bf16.msra.mxu0 0
      %6335 = vmatprep.subr.bf16.mxu0 0
      %6336 = vmatpush1.bf16.msra.mxu0 0
      %6337 = vmatprep.subr.bf16.mxu0 0
      %6338 = vmatpush1.bf16.msra.mxu0 0
      %6339 = vmatprep.subr.bf16.mxu0 0
      %6340 = vmatpush1.bf16.msra.mxu0 0
      %6341 = vmatprep.subr.bf16.mxu0 0
      %6342 = vmatpush1.bf16.msra.mxu0 0
      %6343 = vmatprep.mubr.bf16.mxu0 0
      %6344 = vmatmul.mubr.bf16.gmra.mrb[0].mxu0 %v6306
      %v6345 = vpop.f32.mrb[0].mxu0
      %v6346 = vadd.f32 0.0, %v6345
      %v6347 = vpop.f32.mrb[0].mxu0
      %v6348 = vpop.f32.mrb[0].mxu0
      %v6349 = vadd.f32 0.0, %v6348
      %v6350 = vpop.f32.mrb[0].mxu0
      %6351 = vmatprep.mubr.bf16.mxu0 0
      %6352 = vmatmul.mubr.bf16.gmra.mrb[0].mxu0 %v6309
      %v6353 = vpop.f32.mrb[0].mxu0
      %v6354 = vadd.f32 0.0, %v6353
      %v6355 = vpop.f32.mrb[0].mxu0
      %v6356 = vpop.f32.mrb[0].mxu0
      %v6357 = vpop.f32.mrb[0].mxu0
      %6358 = vdwg.mxu0
      %v6359 = vadd.f32 %v6247, %v6346
      %v6360 = vadd.f32 %v6248, %v6349
      %v6361 = vadd.f32 %v6249, %v6354
      %s6362 = scalar_lea.vmem %s5, 160
      %v6363 = vld [vmem:[%s6362] sm:$0xf]
      %v6364 = vld [vmem:[%s6362 + $0x4] sm:$0xf]
      %v6365 = vld [vmem:[%s6362 + $0x8] sm:$0xf]
      %v6366 = vld [vmem:[%s6362 + $0xc] sm:$0xf]
      %v6367 = vld [vmem:[%s6362 + $0x10] sm:$0xf]
      %v6368 = vld [vmem:[%s6362 + $0x14] sm:$0xf]
      %v6369 = vld [vmem:[%s6362 + $0x18] sm:$0xf]
      %v6370 = vld [vmem:[%s6362 + $0x1c] sm:$0xf]
      %v6371 = vpack.c.b16 %v5877, %v5876
      %v6372 = vpack.c.b16 %v6261, %v6261
      %v6381 = vunpack.c.l.b16 %v6363
      %v6382 = vunpack.c.l.b16 %v6364
      %v6383 = vunpack.c.l.b16 %v6365
      %v6384 = vunpack.c.l.b16 %v6366
      %v6385 = vunpack.c.l.b16 %v6367
      %v6386 = vunpack.c.l.b16 %v6368
      %v6387 = vunpack.c.l.b16 %v6369
      %v6388 = vunpack.c.l.b16 %v6370
      %v6389 = vpack.c.b16 %v6382, %v6381
      %v6390 = vpack.c.b16 %v6384, %v6383
      %v6391 = vpack.c.b16 %v6386, %v6385
      %v6392 = vpack.c.b16 %v6388, %v6387
      %v6398 = vsel %vm3886, %v6371, 0
      %v6401 = vsel %vm3886, %v6372, 0
      %6403 = vmatprep.subr.bf16.mxu0 0
      %6404 = vmatpush1.bf16.msra.mxu0 %v6389
      %6405 = vmatprep.subr.bf16.mxu0 0
      %6406 = vmatpush1.bf16.msra.mxu0 %v6390
      %6407 = vmatprep.subr.bf16.mxu0 0
      %6408 = vmatpush1.bf16.msra.mxu0 %v6391
      %6409 = vmatprep.subr.bf16.mxu0 0
      %6410 = vmatpush1.bf16.msra.mxu0 %v6392
      %6411 = vmatprep.subr.bf16.mxu0 0
      %6412 = vmatpush1.bf16.msra.mxu0 0
      %6413 = vmatprep.subr.bf16.mxu0 0
      %6414 = vmatpush1.bf16.msra.mxu0 0
      %6415 = vmatprep.subr.bf16.mxu0 0
      %6416 = vmatpush1.bf16.msra.mxu0 0
      %6417 = vmatprep.subr.bf16.mxu0 0
      %6418 = vmatpush1.bf16.msra.mxu0 0
      %6419 = vmatprep.subr.bf16.mxu0 0
      %6420 = vmatpush1.bf16.msra.mxu0 0
      %6421 = vmatprep.subr.bf16.mxu0 0
      %6422 = vmatpush1.bf16.msra.mxu0 0
      %6423 = vmatprep.subr.bf16.mxu0 0
      %6424 = vmatpush1.bf16.msra.mxu0 0
      %6425 = vmatprep.subr.bf16.mxu0 0
      %6426 = vmatpush1.bf16.msra.mxu0 0
      %6427 = vmatprep.subr.bf16.mxu0 0
      %6428 = vmatpush1.bf16.msra.mxu0 0
      %6429 = vmatprep.subr.bf16.mxu0 0
      %6430 = vmatpush1.bf16.msra.mxu0 0
      %6431 = vmatprep.subr.bf16.mxu0 0
      %6432 = vmatpush1.bf16.msra.mxu0 0
      %6433 = vmatprep.subr.bf16.mxu0 0
      %6434 = vmatpush1.bf16.msra.mxu0 0
      %6435 = vmatprep.mubr.bf16.mxu0 0
      %6436 = vmatmul.mubr.bf16.gmra.mrb[0].mxu0 %v6398
      %v6437 = vpop.f32.mrb[0].mxu0
      %v6438 = vadd.f32 0.0, %v6437
      %v6439 = vpop.f32.mrb[0].mxu0
      %v6440 = vpop.f32.mrb[0].mxu0
      %v6441 = vadd.f32 0.0, %v6440
      %v6442 = vpop.f32.mrb[0].mxu0
      %6443 = vmatprep.mubr.bf16.mxu0 0
      %6444 = vmatmul.mubr.bf16.gmra.mrb[0].mxu0 %v6401
      %v6445 = vpop.f32.mrb[0].mxu0
      %v6446 = vadd.f32 0.0, %v6445
      %v6447 = vpop.f32.mrb[0].mxu0
      %v6448 = vpop.f32.mrb[0].mxu0
      %v6449 = vpop.f32.mrb[0].mxu0
      %6450 = vdwg.mxu0
      %v6451 = vadd.f32 %v6359, %v6438
      %v6452 = vadd.f32 %v6360, %v6441
      %v6453 = vadd.f32 %v6361, %v6446
      %v6454 = vld [vmem:[#allocation3 + $0x4] sm:$0xc]
      %v6455 = vld [vmem:[#allocation3 + $0x8] sm:$0xf]
      %v6456 = vld [vmem:[#allocation3 + $0xc] sm:$0xf]
      %v6457 = vld [vmem:[#allocation3 + $0x10] sm:$0x3]
      %s6458 = scalar_lea.vmem %s5, 192
      %v6459 = vld [vmem:[%s6458] sm:$0xf]
      %v6460 = vld [vmem:[%s6458 + $0x4] sm:$0xf]
      %v6461 = vld [vmem:[%s6458 + $0x8] sm:$0xf]
      %v6462 = vld [vmem:[%s6458 + $0xc] sm:$0xf]
      %v6463 = vld [vmem:[%s6458 + $0x10] sm:$0xf]
      %v6464 = vld [vmem:[%s6458 + $0x14] sm:$0xf]
      %v6465 = vld [vmem:[%s6458 + $0x18] sm:$0xf]
      %v6466 = vld [vmem:[%s6458 + $0x1c] sm:$0xf]
      %v6471 = vunpack.c.l.b16 %v6454
      %v6472 = vunpack.c.l.b16 %v6455
      %v6473 = vunpack.c.l.b16 %v6456
      %v6474 = vunpack.c.l.b16 %v6457
      %v6475 = vpack.c.b16 %v6472, %v6471
      %v6476 = vpack.c.b16 %v6474, %v6473
      %v6477 = vrot.slane %v6475, 2
      %v6478 = vrot.slane %v6476, 2
      %v6479 = vsel %vm2299, %v6477, %v6478
      %v6488 = vunpack.c.l.b16 %v6459
      %v6489 = vunpack.c.l.b16 %v6460
      %v6490 = vunpack.c.l.b16 %v6461
      %v6491 = vunpack.c.l.b16 %v6462
      %v6492 = vunpack.c.l.b16 %v6463
      %v6493 = vunpack.c.l.b16 %v6464
      %v6494 = vunpack.c.l.b16 %v6465
      %v6495 = vunpack.c.l.b16 %v6466
      %v6496 = vpack.c.b16 %v6489, %v6488
      %v6497 = vpack.c.b16 %v6491, %v6490
      %v6498 = vpack.c.b16 %v6493, %v6492
      %v6499 = vpack.c.b16 %v6495, %v6494
      %v6505 = vsel %vm3886, %v6479, 0
      %v6508 = vsel %vm3886, %v6478, 0
      %6510 = vmatprep.subr.bf16.mxu0 0
      %6511 = vmatpush1.bf16.msra.mxu0 %v6496
      %6512 = vmatprep.subr.bf16.mxu0 0
      %6513 = vmatpush1.bf16.msra.mxu0 %v6497
      %6514 = vmatprep.subr.bf16.mxu0 0
      %6515 = vmatpush1.bf16.msra.mxu0 %v6498
      %6516 = vmatprep.subr.bf16.mxu0 0
      %6517 = vmatpush1.bf16.msra.mxu0 %v6499
      %6518 = vmatprep.subr.bf16.mxu0 0
      %6519 = vmatpush1.bf16.msra.mxu0 0
      %6520 = vmatprep.subr.bf16.mxu0 0
      %6521 = vmatpush1.bf16.msra.mxu0 0
      %6522 = vmatprep.subr.bf16.mxu0 0
      %6523 = vmatpush1.bf16.msra.mxu0 0
      %6524 = vmatprep.subr.bf16.mxu0 0
      %6525 = vmatpush1.bf16.msra.mxu0 0
      %6526 = vmatprep.subr.bf16.mxu0 0
      %6527 = vmatpush1.bf16.msra.mxu0 0
      %6528 = vmatprep.subr.bf16.mxu0 0
      %6529 = vmatpush1.bf16.msra.mxu0 0
      %6530 = vmatprep.subr.bf16.mxu0 0
      %6531 = vmatpush1.bf16.msra.mxu0 0
      %6532 = vmatprep.subr.bf16.mxu0 0
      %6533 = vmatpush1.bf16.msra.mxu0 0
      %6534 = vmatprep.subr.bf16.mxu0 0
      %6535 = vmatpush1.bf16.msra.mxu0 0
      %6536 = vmatprep.subr.bf16.mxu0 0
      %6537 = vmatpush1.bf16.msra.mxu0 0
      %6538 = vmatprep.subr.bf16.mxu0 0
      %6539 = vmatpush1.bf16.msra.mxu0 0
      %6540 = vmatprep.subr.bf16.mxu0 0
      %6541 = vmatpush1.bf16.msra.mxu0 0
      %6542 = vmatprep.mubr.bf16.mxu0 0
      %6543 = vmatmul.mubr.bf16.gmra.mrb[0].mxu0 %v6505
      %v6544 = vpop.f32.mrb[0].mxu0
      %v6545 = vadd.f32 0.0, %v6544
      %v6546 = vpop.f32.mrb[0].mxu0
      %v6547 = vpop.f32.mrb[0].mxu0
      %v6548 = vadd.f32 0.0, %v6547
      %v6549 = vpop.f32.mrb[0].mxu0
      %6550 = vmatprep.mubr.bf16.mxu0 0
      %6551 = vmatmul.mubr.bf16.gmra.mrb[0].mxu0 %v6508
      %v6552 = vpop.f32.mrb[0].mxu0
      %v6553 = vadd.f32 0.0, %v6552
      %v6554 = vpop.f32.mrb[0].mxu0
      %v6555 = vpop.f32.mrb[0].mxu0
      %v6556 = vpop.f32.mrb[0].mxu0
      %6557 = vdwg.mxu0
      %v6558 = vadd.f32 %v6451, %v6545
      %v6559 = vadd.f32 %v6452, %v6548
      %v6560 = vadd.f32 %v6453, %v6553
      %v6561 = vld [vmem:[#allocation3 + $0x10] sm:$0x7]
      %s6562 = scalar_lea.vmem %s5, 224
      %v6563 = vld [vmem:[%s6562] sm:$0xf]
      %v6564 = vld [vmem:[%s6562 + $0x4] sm:$0xf]
      %v6565 = vld [vmem:[%s6562 + $0x8] sm:$0xf]
      %v6566 = vld [vmem:[%s6562 + $0xc] sm:$0xf]
      %v6567 = vld [vmem:[%s6562 + $0x10] sm:$0xf]
      %v6568 = vld [vmem:[%s6562 + $0x14] sm:$0xf]
      %v6569 = vld [vmem:[%s6562 + $0x18] sm:$0xf]
      %v6570 = vld [vmem:[%s6562 + $0x1c] sm:$0xf]
      %v6572 = vunpack.c.l.b16 %v6561
      %v6573 = vpack.c.b16 %v6572, %v6473
      %v6575 = vshrl.u32 %v6475, 16
      %v6577 = vrot.slane %v6575, 2
      %v6578 = vshll.u32 %v6475, 16
      %v6580 = vrot.slane %v6578, 3
      %v6581 = vor.u32 %v6577, %v6580
      %v6583 = vshrl.u32 %v6573, 16
      %v6585 = vrot.slane %v6583, 2
      %v6586 = vshll.u32 %v6573, 16
      %v6588 = vrot.slane %v6586, 3
      %v6589 = vor.u32 %v6585, %v6588
      %v6590 = vsel %vm3052, %v6581, %v6589
      %v6599 = vunpack.c.l.b16 %v6563
      %v6600 = vunpack.c.l.b16 %v6564
      %v6601 = vunpack.c.l.b16 %v6565
      %v6602 = vunpack.c.l.b16 %v6566
      %v6603 = vunpack.c.l.b16 %v6567
      %v6604 = vunpack.c.l.b16 %v6568
      %v6605 = vunpack.c.l.b16 %v6569
      %v6606 = vunpack.c.l.b16 %v6570
      %v6607 = vpack.c.b16 %v6600, %v6599
      %v6608 = vpack.c.b16 %v6602, %v6601
      %v6609 = vpack.c.b16 %v6604, %v6603
      %v6610 = vpack.c.b16 %v6606, %v6605
      %v6616 = vsel %vm3886, %v6590, 0
      %v6619 = vsel %vm3886, %v6589, 0
      %6621 = vmatprep.subr.bf16.mxu0 0
      %6622 = vmatpush1.bf16.msra.mxu0 %v6607
      %6623 = vmatprep.subr.bf16.mxu0 0
      %6624 = vmatpush1.bf16.msra.mxu0 %v6608
      %6625 = vmatprep.subr.bf16.mxu0 0
      %6626 = vmatpush1.bf16.msra.mxu0 %v6609
      %6627 = vmatprep.subr.bf16.mxu0 0
      %6628 = vmatpush1.bf16.msra.mxu0 %v6610
      %6629 = vmatprep.subr.bf16.mxu0 0
      %6630 = vmatpush1.bf16.msra.mxu0 0
      %6631 = vmatprep.subr.bf16.mxu0 0
      %6632 = vmatpush1.bf16.msra.mxu0 0
      %6633 = vmatprep.subr.bf16.mxu0 0
      %6634 = vmatpush1.bf16.msra.mxu0 0
      %6635 = vmatprep.subr.bf16.mxu0 0
      %6636 = vmatpush1.bf16.msra.mxu0 0
      %6637 = vmatprep.subr.bf16.mxu0 0
      %6638 = vmatpush1.bf16.msra.mxu0 0
      %6639 = vmatprep.subr.bf16.mxu0 0
      %6640 = vmatpush1.bf16.msra.mxu0 0
      %6641 = vmatprep.subr.bf16.mxu0 0
      %6642 = vmatpush1.bf16.msra.mxu0 0
      %6643 = vmatprep.subr.bf16.mxu0 0
      %6644 = vmatpush1.bf16.msra.mxu0 0
      %6645 = vmatprep.subr.bf16.mxu0 0
      %6646 = vmatpush1.bf16.msra.mxu0 0
      %6647 = vmatprep.subr.bf16.mxu0 0
      %6648 = vmatpush1.bf16.msra.mxu0 0
      %6649 = vmatprep.subr.bf16.mxu0 0
      %6650 = vmatpush1.bf16.msra.mxu0 0
      %6651 = vmatprep.subr.bf16.mxu0 0
      %6652 = vmatpush1.bf16.msra.mxu0 0
      %6653 = vmatprep.mubr.bf16.mxu0 0
      %6654 = vmatmul.mubr.bf16.gmra.mrb[0].mxu0 %v6616
      %v6655 = vpop.f32.mrb[0].mxu0
      %v6656 = vadd.f32 0.0, %v6655
      %v6657 = vpop.f32.mrb[0].mxu0
      %v6658 = vpop.f32.mrb[0].mxu0
      %v6659 = vadd.f32 0.0, %v6658
      %v6660 = vpop.f32.mrb[0].mxu0
      %6661 = vmatprep.mubr.bf16.mxu0 0
      %6662 = vmatmul.mubr.bf16.gmra.mrb[0].mxu0 %v6619
      %v6663 = vpop.f32.mrb[0].mxu0
      %v6664 = vadd.f32 0.0, %v6663
      %v6665 = vpop.f32.mrb[0].mxu0
      %v6666 = vpop.f32.mrb[0].mxu0
      %v6667 = vpop.f32.mrb[0].mxu0
      %6668 = vdwg.mxu0
      %v6669 = vadd.f32 %v6558, %v6656
      %v6670 = vadd.f32 %v6559, %v6659
      %v6671 = vadd.f32 %v6560, %v6664
      %v6672 = vld [vmem:[#allocation3 + $0x4] sm:$0x8]
      %s6673 = scalar_lea.vmem %s5, 256
      %v6674 = vld [vmem:[%s6673] sm:$0xf]
      %v6675 = vld [vmem:[%s6673 + $0x4] sm:$0xf]
      %v6676 = vld [vmem:[%s6673 + $0x8] sm:$0xf]
      %v6677 = vld [vmem:[%s6673 + $0xc] sm:$0xf]
      %v6678 = vld [vmem:[%s6673 + $0x10] sm:$0xf]
      %v6679 = vld [vmem:[%s6673 + $0x14] sm:$0xf]
      %v6680 = vld [vmem:[%s6673 + $0x18] sm:$0xf]
      %v6681 = vld [vmem:[%s6673 + $0x1c] sm:$0xf]
      %v6683 = vunpack.c.l.b16 %v6672
      %v6684 = vpack.c.b16 %v6472, %v6683
      %v6685 = vrot.slane %v6684, 3
      %v6686 = vrot.slane %v6573, 3
      %v6687 = vsel %vm3499, %v6685, %v6686
      %v6696 = vunpack.c.l.b16 %v6674
      %v6697 = vunpack.c.l.b16 %v6675
      %v6698 = vunpack.c.l.b16 %v6676
      %v6699 = vunpack.c.l.b16 %v6677
      %v6700 = vunpack.c.l.b16 %v6678
      %v6701 = vunpack.c.l.b16 %v6679
      %v6702 = vunpack.c.l.b16 %v6680
      %v6703 = vunpack.c.l.b16 %v6681
      %v6704 = vpack.c.b16 %v6697, %v6696
      %v6705 = vpack.c.b16 %v6699, %v6698
      %v6706 = vpack.c.b16 %v6701, %v6700
      %v6707 = vpack.c.b16 %v6703, %v6702
      %v6713 = vsel %vm3886, %v6687, 0
      %v6716 = vsel %vm3886, %v6686, 0
      %6718 = vmatprep.subr.bf16.mxu0 0
      %6719 = vmatpush1.bf16.msra.mxu0 %v6704
      %6720 = vmatprep.subr.bf16.mxu0 0
      %6721 = vmatpush1.bf16.msra.mxu0 %v6705
      %6722 = vmatprep.subr.bf16.mxu0 0
      %6723 = vmatpush1.bf16.msra.mxu0 %v6706
      %6724 = vmatprep.subr.bf16.mxu0 0
      %6725 = vmatpush1.bf16.msra.mxu0 %v6707
      %6726 = vmatprep.subr.bf16.mxu0 0
      %6727 = vmatpush1.bf16.msra.mxu0 0
      %6728 = vmatprep.subr.bf16.mxu0 0
      %6729 = vmatpush1.bf16.msra.mxu0 0
      %6730 = vmatprep.subr.bf16.mxu0 0
      %6731 = vmatpush1.bf16.msra.mxu0 0
      %6732 = vmatprep.subr.bf16.mxu0 0
      %6733 = vmatpush1.bf16.msra.mxu0 0
      %6734 = vmatprep.subr.bf16.mxu0 0
      %6735 = vmatpush1.bf16.msra.mxu0 0
      %6736 = vmatprep.subr.bf16.mxu0 0
      %6737 = vmatpush1.bf16.msra.mxu0 0
      %6738 = vmatprep.subr.bf16.mxu0 0
      %6739 = vmatpush1.bf16.msra.mxu0 0
      %6740 = vmatprep.subr.bf16.mxu0 0
      %6741 = vmatpush1.bf16.msra.mxu0 0
      %6742 = vmatprep.subr.bf16.mxu0 0
      %6743 = vmatpush1.bf16.msra.mxu0 0
      %6744 = vmatprep.subr.bf16.mxu0 0
      %6745 = vmatpush1.bf16.msra.mxu0 0
      %6746 = vmatprep.subr.bf16.mxu0 0
      %6747 = vmatpush1.bf16.msra.mxu0 0
      %6748 = vmatprep.subr.bf16.mxu0 0
      %6749 = vmatpush1.bf16.msra.mxu0 0
      %6750 = vmatprep.mubr.bf16.mxu0 0
      %6751 = vmatmul.mubr.bf16.gmra.mrb[0].mxu0 %v6713
      %v6752 = vpop.f32.mrb[0].mxu0
      %v6753 = vadd.f32 0.0, %v6752
      %v6754 = vpop.f32.mrb[0].mxu0
      %v6755 = vpop.f32.mrb[0].mxu0
      %v6756 = vadd.f32 0.0, %v6755
      %v6757 = vpop.f32.mrb[0].mxu0
      %6758 = vmatprep.mubr.bf16.mxu0 0
      %6759 = vmatmul.mubr.bf16.gmra.mrb[0].mxu0 %v6716
      %v6760 = vpop.f32.mrb[0].mxu0
      %v6761 = vadd.f32 0.0, %v6760
      %v6762 = vpop.f32.mrb[0].mxu0
      %v6763 = vpop.f32.mrb[0].mxu0
      %v6764 = vpop.f32.mrb[0].mxu0
      %6765 = vdwg.mxu0
      %v6766 = vadd.f32 %v6669, %v6753
      %v6767 = vadd.f32 %v6670, %v6756
      %v6768 = vadd.f32 %v6671, %v6761
      %v6769 = vld [vmem:[%s6] sm:$0x1]
      %v6771 = vlaneseq
      %v6772 = vshrl.u32 %v6771, 7
      %v6773 = vsub.s32 0, %v6772
      %v6774 = vrot.slane %v6769, %v6773
      %v6776 = vadd.f32 %v6766, %v6774
      %v6777 = vadd.f32 %v6767, %v6774
      %v6778 = vadd.f32 %v6768, %v6774
      %v6779 = vmax.f32 %v6776, 0.0
      %v6780 = vmax.f32 %v6777, 0.0
      %v6781 = vmax.f32 %v6778, 0.0
      %6782 = vst.msk [vmem:[#allocation5] sm:$0xff] %vm3886, %v6779
      %6783 = vst.msk [vmem:[#allocation5 + $0x8] sm:$0xff] %vm3886, %v6780
      %6784 = vst.msk [vmem:[#allocation5 + $0x10] sm:$0xff] %vm3886, %v6781
      %v6785 = vld [vmem:[#allocation5] ss:$2 sm:$0x3]
      %v6786 = vld [vmem:[%s3924] ss:$2 sm:$0x3]
      %s6787 = scalar_lea.vmem [#allocation5], 6
      %v6788 = vld [vmem:[%s6787] ss:$2 sm:$0x3]
      %s6789 = scalar_lea.vmem [#allocation5], 7
      %v6790 = vld [vmem:[%s6789] ss:$2 sm:$0x3]
      %v6791 = vmax.f32 %v6785, %v6786
      %v6792 = vmax.f32 %v6788, %v6790
      %v6793 = vmax.f32 %v6791, %v6792
      %v6794 = vpack.c.bf16 %v6793, %v6793
      %v6796 = vunpack.c.l.b16 %v6794
      %v6797 = vpack.c.b16 %v6796, %v6796
      %v6799 = vshrl.u32 %v6797, 16
      %v6801 = vrot.slane %v6799, 5
      %v6802 = vshll.u32 %v6797, 16
      %v6804 = vrot.slane %v6802, 6
      %v6805 = vor.u32 %v6801, %v6804
      %vm6807 = vsmask.f32 3338
      %vm6808 = vmand %vm3986, %vm6807
      %v6809 = vld [vmem:[#allocation4] sm:$0xc]
      %v6810 = vsel %vm6808, %v6805, %v6809
      %6811 = vst [vmem:[#allocation4] sm:$0xc] %v6810
      %s6812 = scalar_lea.vmem [#allocation5], 12
      %v6813 = vld [vmem:[%s6812] ss:$2 sm:$0x3]
      %s6814 = scalar_lea.vmem [#allocation5], 13
      %v6815 = vld [vmem:[%s6814] ss:$2 sm:$0x3]
      %v6816 = vld [vmem:[%s3926] ss:$2 sm:$0x3]
      %v6817 = vld [vmem:[%s3928] ss:$2 sm:$0x3]
      %v6818 = vmax.f32 %v6813, %v6815
      %v6819 = vmax.f32 %v6816, %v6817
      %v6820 = vmax.f32 %v6818, %v6819
      %v6821 = vpack.c.bf16 %v6820, %v6820
      %v6823 = vunpack.c.l.b16 %v6821
      %v6824 = vpack.c.b16 %v6823, %v6823
      %v6826 = vshrl.u32 %v6824, 16
      %v6828 = vrot.slane %v6826, 7
      %v6829 = vshll.u32 %v6824, 16
      %v6831 = vor.u32 %v6828, %v6829
      %vm6833 = vsmask.f32 1282
      %vm6834 = vmand %vm3954, %vm6833
      %v6835 = vld [vmem:[#allocation4 + $0x4] sm:$0x3]
      %v6836 = vsel %vm6834, %v6831, %v6835
      %6837 = vst [vmem:[#allocation4 + $0x4] sm:$0x3] %v6836
      %v6838 = vld [vmem:[#allocation4] sm:$0xf]
      %v6839 = vld [vmem:[%s7] sm:$0xf]
      %v6840 = vld [vmem:[%s7 + $0x4] sm:$0xf]
      %v6841 = vld [vmem:[%s7 + $0x8] sm:$0xf]
      %v6842 = vld [vmem:[%s7 + $0xc] sm:$0xf]
      %v6843 = vld [vmem:[%s7 + $0x10] sm:$0xf]
      %v6844 = vld [vmem:[%s7 + $0x14] sm:$0xf]
      %v6845 = vld [vmem:[%s7 + $0x18] sm:$0xf]
      %v6846 = vld [vmem:[%s7 + $0x1c] sm:$0xf]
      %v6847 = vld [vmem:[#allocation4 + $0x4] sm:$0x1]
      %s6848 = scalar_lea.vmem %s7, 32
      %v6849 = vld [vmem:[%s6848] sm:$0xf]
      %v6850 = vld [vmem:[%s6848 + $0x4] sm:$0xf]
      %v6851 = vld [vmem:[%s6848 + $0x8] sm:$0xf]
      %v6852 = vld [vmem:[%s6848 + $0xc] sm:$0xf]
      %v6853 = vld [vmem:[%s6848 + $0x10] sm:$0xf]
      %v6854 = vld [vmem:[%s6848 + $0x14] sm:$0xf]
      %v6855 = vld [vmem:[%s6848 + $0x18] sm:$0xf]
      %v6856 = vld [vmem:[%s6848 + $0x1c] sm:$0xf]
      %v6859 = vunpack.c.l.b16 %v6838
      %v6860 = vunpack.c.l.b16 %v6847
      %v6861 = vpack.c.b16 %v6860, %v6859
      %v6863 = vshrl.u32 %v6861, 16
      %v6865 = vshll.u32 %v6861, 16
      %v6867 = vrot.slane %v6865, 1
      %v6868 = vor.u32 %v6863, %v6867
      %v6877 = vunpack.c.l.b16 %v6849
      %v6878 = vunpack.c.l.b16 %v6850
      %v6879 = vunpack.c.l.b16 %v6851
      %v6880 = vunpack.c.l.b16 %v6852
      %v6881 = vunpack.c.l.b16 %v6853
      %v6882 = vunpack.c.l.b16 %v6854
      %v6883 = vunpack.c.l.b16 %v6855
      %v6884 = vunpack.c.l.b16 %v6856
      %v6885 = vpack.c.b16 %v6878, %v6877
      %v6886 = vpack.c.b16 %v6880, %v6879
      %v6887 = vpack.c.b16 %v6882, %v6881
      %v6888 = vpack.c.b16 %v6884, %v6883
      %v6894 = vsel %vm3886, %v6868, 0
      %6896 = vmatprep.subr.bf16.mxu0 0
      %6897 = vmatpush1.bf16.msra.mxu0 %v6885
      %6898 = vmatprep.subr.bf16.mxu0 0
      %6899 = vmatpush1.bf16.msra.mxu0 %v6886
      %6900 = vmatprep.subr.bf16.mxu0 0
      %6901 = vmatpush1.bf16.msra.mxu0 %v6887
      %6902 = vmatprep.subr.bf16.mxu0 0
      %6903 = vmatpush1.bf16.msra.mxu0 %v6888
      %6904 = vmatprep.subr.bf16.mxu0 0
      %6905 = vmatpush1.bf16.msra.mxu0 0
      %6906 = vmatprep.subr.bf16.mxu0 0
      %6907 = vmatpush1.bf16.msra.mxu0 0
      %6908 = vmatprep.subr.bf16.mxu0 0
      %6909 = vmatpush1.bf16.msra.mxu0 0
      %6910 = vmatprep.subr.bf16.mxu0 0
      %6911 = vmatpush1.bf16.msra.mxu0 0
      %6912 = vmatprep.subr.bf16.mxu0 0
      %6913 = vmatpush1.bf16.msra.mxu0 0
      %6914 = vmatprep.subr.bf16.mxu0 0
      %6915 = vmatpush1.bf16.msra.mxu0 0
      %6916 = vmatprep.subr.bf16.mxu0 0
      %6917 = vmatpush1.bf16.msra.mxu0 0
      %6918 = vmatprep.subr.bf16.mxu0 0
      %6919 = vmatpush1.bf16.msra.mxu0 0
      %6920 = vmatprep.subr.bf16.mxu0 0
      %6921 = vmatpush1.bf16.msra.mxu0 0
      %6922 = vmatprep.subr.bf16.mxu0 0
      %6923 = vmatpush1.bf16.msra.mxu0 0
      %6924 = vmatprep.subr.bf16.mxu0 0
      %6925 = vmatpush1.bf16.msra.mxu0 0
      %6926 = vmatprep.subr.bf16.mxu0 0
      %6927 = vmatpush1.bf16.msra.mxu0 0
      %6928 = vmatprep.mubr.bf16.mxu0 0
      %6929 = vmatmul.mubr.bf16.gmra.mrb[0].mxu0 %v6894
      %v6930 = vpop.f32.mrb[0].mxu0
      %v6931 = vadd.f32 0.0, %v6930
      %v6932 = vpop.f32.mrb[0].mxu0
      %v6933 = vpop.f32.mrb[0].mxu0
      %v6934 = vpop.f32.mrb[0].mxu0
      %6935 = vdwg.mxu0
      %v6944 = vunpack.c.l.b16 %v6839
      %v6945 = vunpack.c.l.b16 %v6840
      %v6946 = vunpack.c.l.b16 %v6841
      %v6947 = vunpack.c.l.b16 %v6842
      %v6948 = vunpack.c.l.b16 %v6843
      %v6949 = vunpack.c.l.b16 %v6844
      %v6950 = vunpack.c.l.b16 %v6845
      %v6951 = vunpack.c.l.b16 %v6846
      %v6952 = vpack.c.b16 %v6945, %v6944
      %v6953 = vpack.c.b16 %v6947, %v6946
      %v6954 = vpack.c.b16 %v6949, %v6948
      %v6955 = vpack.c.b16 %v6951, %v6950
      %v6961 = vsel %vm3886, %v6838, 0
      %6963 = vmatprep.subr.bf16.mxu0 0
      %6964 = vmatpush1.bf16.msra.mxu0 %v6952
      %6965 = vmatprep.subr.bf16.mxu0 0
      %6966 = vmatpush1.bf16.msra.mxu0 %v6953
      %6967 = vmatprep.subr.bf16.mxu0 0
      %6968 = vmatpush1.bf16.msra.mxu0 %v6954
      %6969 = vmatprep.subr.bf16.mxu0 0
      %6970 = vmatpush1.bf16.msra.mxu0 %v6955
      %6971 = vmatprep.subr.bf16.mxu0 0
      %6972 = vmatpush1.bf16.msra.mxu0 0
      %6973 = vmatprep.subr.bf16.mxu0 0
      %6974 = vmatpush1.bf16.msra.mxu0 0
      %6975 = vmatprep.subr.bf16.mxu0 0
      %6976 = vmatpush1.bf16.msra.mxu0 0
      %6977 = vmatprep.subr.bf16.mxu0 0
      %6978 = vmatpush1.bf16.msra.mxu0 0
      %6979 = vmatprep.subr.bf16.mxu0 0
      %6980 = vmatpush1.bf16.msra.mxu0 0
      %6981 = vmatprep.subr.bf16.mxu0 0
      %6982 = vmatpush1.bf16.msra.mxu0 0
      %6983 = vmatprep.subr.bf16.mxu0 0
      %6984 = vmatpush1.bf16.msra.mxu0 0
      %6985 = vmatprep.subr.bf16.mxu0 0
      %6986 = vmatpush1.bf16.msra.mxu0 0
      %6987 = vmatprep.subr.bf16.mxu0 0
      %6988 = vmatpush1.bf16.msra.mxu0 0
      %6989 = vmatprep.subr.bf16.mxu0 0
      %6990 = vmatpush1.bf16.msra.mxu0 0
      %6991 = vmatprep.subr.bf16.mxu0 0
      %6992 = vmatpush1.bf16.msra.mxu0 0
      %6993 = vmatprep.subr.bf16.mxu0 0
      %6994 = vmatpush1.bf16.msra.mxu0 0
      %6995 = vmatprep.mubr.bf16.mxu0 0
      %6996 = vmatmul.mubr.bf16.gmra.mrb[0].mxu0 %v6961
      %v6997 = vpop.f32.mrb[0].mxu0
      %v6998 = vadd.f32 %v6931, %v6997
      %v6999 = vpop.f32.mrb[0].mxu0
      %v7000 = vpop.f32.mrb[0].mxu0
      %v7001 = vpop.f32.mrb[0].mxu0
      %7002 = vdwg.mxu0
      %v7003 = vld [vmem:[#allocation4] sm:$0xe]
      %s7004 = scalar_lea.vmem %s7, 64
      %v7005 = vld [vmem:[%s7004] sm:$0xf]
      %v7006 = vld [vmem:[%s7004 + $0x4] sm:$0xf]
      %v7007 = vld [vmem:[%s7004 + $0x8] sm:$0xf]
      %v7008 = vld [vmem:[%s7004 + $0xc] sm:$0xf]
      %v7009 = vld [vmem:[%s7004 + $0x10] sm:$0xf]
      %v7010 = vld [vmem:[%s7004 + $0x14] sm:$0xf]
      %v7011 = vld [vmem:[%s7004 + $0x18] sm:$0xf]
      %v7012 = vld [vmem:[%s7004 + $0x1c] sm:$0xf]
      %v7014 = vunpack.c.l.b16 %v7003
      %v7015 = vpack.c.b16 %v6860, %v7014
      %v7016 = vrot.slane %v7015, 1
      %v7025 = vunpack.c.l.b16 %v7005
      %v7026 = vunpack.c.l.b16 %v7006
      %v7027 = vunpack.c.l.b16 %v7007
      %v7028 = vunpack.c.l.b16 %v7008
      %v7029 = vunpack.c.l.b16 %v7009
      %v7030 = vunpack.c.l.b16 %v7010
      %v7031 = vunpack.c.l.b16 %v7011
      %v7032 = vunpack.c.l.b16 %v7012
      %v7033 = vpack.c.b16 %v7026, %v7025
      %v7034 = vpack.c.b16 %v7028, %v7027
      %v7035 = vpack.c.b16 %v7030, %v7029
      %v7036 = vpack.c.b16 %v7032, %v7031
      %v7042 = vsel %vm3886, %v7016, 0
      %7044 = vmatprep.subr.bf16.mxu0 0
      %7045 = vmatpush1.bf16.msra.mxu0 %v7033
      %7046 = vmatprep.subr.bf16.mxu0 0
      %7047 = vmatpush1.bf16.msra.mxu0 %v7034
      %7048 = vmatprep.subr.bf16.mxu0 0
      %7049 = vmatpush1.bf16.msra.mxu0 %v7035
      %7050 = vmatprep.subr.bf16.mxu0 0
      %7051 = vmatpush1.bf16.msra.mxu0 %v7036
      %7052 = vmatprep.subr.bf16.mxu0 0
      %7053 = vmatpush1.bf16.msra.mxu0 0
      %7054 = vmatprep.subr.bf16.mxu0 0
      %7055 = vmatpush1.bf16.msra.mxu0 0
      %7056 = vmatprep.subr.bf16.mxu0 0
      %7057 = vmatpush1.bf16.msra.mxu0 0
      %7058 = vmatprep.subr.bf16.mxu0 0
      %7059 = vmatpush1.bf16.msra.mxu0 0
      %7060 = vmatprep.subr.bf16.mxu0 0
      %7061 = vmatpush1.bf16.msra.mxu0 0
      %7062 = vmatprep.subr.bf16.mxu0 0
      %7063 = vmatpush1.bf16.msra.mxu0 0
      %7064 = vmatprep.subr.bf16.mxu0 0
      %7065 = vmatpush1.bf16.msra.mxu0 0
      %7066 = vmatprep.subr.bf16.mxu0 0
      %7067 = vmatpush1.bf16.msra.mxu0 0
      %7068 = vmatprep.subr.bf16.mxu0 0
      %7069 = vmatpush1.bf16.msra.mxu0 0
      %7070 = vmatprep.subr.bf16.mxu0 0
      %7071 = vmatpush1.bf16.msra.mxu0 0
      %7072 = vmatprep.subr.bf16.mxu0 0
      %7073 = vmatpush1.bf16.msra.mxu0 0
      %7074 = vmatprep.subr.bf16.mxu0 0
      %7075 = vmatpush1.bf16.msra.mxu0 0
      %7076 = vmatprep.mubr.bf16.mxu0 0
      %7077 = vmatmul.mubr.bf16.gmra.mrb[0].mxu0 %v7042
      %v7078 = vpop.f32.mrb[0].mxu0
      %v7079 = vadd.f32 0.0, %v7078
      %v7080 = vpop.f32.mrb[0].mxu0
      %v7081 = vpop.f32.mrb[0].mxu0
      %v7082 = vpop.f32.mrb[0].mxu0
      %7083 = vdwg.mxu0
      %v7084 = vadd.f32 %v6998, %v7079
      %v7085 = vld [vmem:[#allocation4] sm:$0xc]
      %v7086 = vld [vmem:[#allocation4 + $0x4] sm:$0x3]
      %s7087 = scalar_lea.vmem %s7, 96
      %v7088 = vld [vmem:[%s7087] sm:$0xf]
      %v7089 = vld [vmem:[%s7087 + $0x4] sm:$0xf]
      %v7090 = vld [vmem:[%s7087 + $0x8] sm:$0xf]
      %v7091 = vld [vmem:[%s7087 + $0xc] sm:$0xf]
      %v7092 = vld [vmem:[%s7087 + $0x10] sm:$0xf]
      %v7093 = vld [vmem:[%s7087 + $0x14] sm:$0xf]
      %v7094 = vld [vmem:[%s7087 + $0x18] sm:$0xf]
      %v7095 = vld [vmem:[%s7087 + $0x1c] sm:$0xf]
      %v7098 = vunpack.c.l.b16 %v7085
      %v7099 = vunpack.c.l.b16 %v7086
      %v7100 = vpack.c.b16 %v7099, %v7098
      %v7101 = vrot.slane %v7100, 2
      %v7110 = vunpack.c.l.b16 %v7088
      %v7111 = vunpack.c.l.b16 %v7089
      %v7112 = vunpack.c.l.b16 %v7090
      %v7113 = vunpack.c.l.b16 %v7091
      %v7114 = vunpack.c.l.b16 %v7092
      %v7115 = vunpack.c.l.b16 %v7093
      %v7116 = vunpack.c.l.b16 %v7094
      %v7117 = vunpack.c.l.b16 %v7095
      %v7118 = vpack.c.b16 %v7111, %v7110
      %v7119 = vpack.c.b16 %v7113, %v7112
      %v7120 = vpack.c.b16 %v7115, %v7114
      %v7121 = vpack.c.b16 %v7117, %v7116
      %v7127 = vsel %vm3886, %v7101, 0
      %7129 = vmatprep.subr.bf16.mxu0 0
      %7130 = vmatpush1.bf16.msra.mxu0 %v7118
      %7131 = vmatprep.subr.bf16.mxu0 0
      %7132 = vmatpush1.bf16.msra.mxu0 %v7119
      %7133 = vmatprep.subr.bf16.mxu0 0
      %7134 = vmatpush1.bf16.msra.mxu0 %v7120
      %7135 = vmatprep.subr.bf16.mxu0 0
      %7136 = vmatpush1.bf16.msra.mxu0 %v7121
      %7137 = vmatprep.subr.bf16.mxu0 0
      %7138 = vmatpush1.bf16.msra.mxu0 0
      %7139 = vmatprep.subr.bf16.mxu0 0
      %7140 = vmatpush1.bf16.msra.mxu0 0
      %7141 = vmatprep.subr.bf16.mxu0 0
      %7142 = vmatpush1.bf16.msra.mxu0 0
      %7143 = vmatprep.subr.bf16.mxu0 0
      %7144 = vmatpush1.bf16.msra.mxu0 0
      %7145 = vmatprep.subr.bf16.mxu0 0
      %7146 = vmatpush1.bf16.msra.mxu0 0
      %7147 = vmatprep.subr.bf16.mxu0 0
      %7148 = vmatpush1.bf16.msra.mxu0 0
      %7149 = vmatprep.subr.bf16.mxu0 0
      %7150 = vmatpush1.bf16.msra.mxu0 0
      %7151 = vmatprep.subr.bf16.mxu0 0
      %7152 = vmatpush1.bf16.msra.mxu0 0
      %7153 = vmatprep.subr.bf16.mxu0 0
      %7154 = vmatpush1.bf16.msra.mxu0 0
      %7155 = vmatprep.subr.bf16.mxu0 0
      %7156 = vmatpush1.bf16.msra.mxu0 0
      %7157 = vmatprep.subr.bf16.mxu0 0
      %7158 = vmatpush1.bf16.msra.mxu0 0
      %7159 = vmatprep.subr.bf16.mxu0 0
      %7160 = vmatpush1.bf16.msra.mxu0 0
      %7161 = vmatprep.mubr.bf16.mxu0 0
      %7162 = vmatmul.mubr.bf16.gmra.mrb[0].mxu0 %v7127
      %v7163 = vpop.f32.mrb[0].mxu0
      %v7164 = vadd.f32 0.0, %v7163
      %v7165 = vpop.f32.mrb[0].mxu0
      %v7166 = vpop.f32.mrb[0].mxu0
      %v7167 = vpop.f32.mrb[0].mxu0
      %7168 = vdwg.mxu0
      %v7169 = vadd.f32 %v7084, %v7164
      %v7170 = vld [vmem:[#allocation4 + $0x4] sm:$0x7]
      %s7171 = scalar_lea.vmem %s7, 128
      %v7172 = vld [vmem:[%s7171] sm:$0xf]
      %v7173 = vld [vmem:[%s7171 + $0x4] sm:$0xf]
      %v7174 = vld [vmem:[%s7171 + $0x8] sm:$0xf]
      %v7175 = vld [vmem:[%s7171 + $0xc] sm:$0xf]
      %v7176 = vld [vmem:[%s7171 + $0x10] sm:$0xf]
      %v7177 = vld [vmem:[%s7171 + $0x14] sm:$0xf]
      %v7178 = vld [vmem:[%s7171 + $0x18] sm:$0xf]
      %v7179 = vld [vmem:[%s7171 + $0x1c] sm:$0xf]
      %v7181 = vunpack.c.l.b16 %v7170
      %v7182 = vpack.c.b16 %v7181, %v7098
      %v7184 = vshrl.u32 %v7182, 16
      %v7186 = vrot.slane %v7184, 2
      %v7187 = vshll.u32 %v7182, 16
      %v7189 = vrot.slane %v7187, 3
      %v7190 = vor.u32 %v7186, %v7189
      %v7199 = vunpack.c.l.b16 %v7172
      %v7200 = vunpack.c.l.b16 %v7173
      %v7201 = vunpack.c.l.b16 %v7174
      %v7202 = vunpack.c.l.b16 %v7175
      %v7203 = vunpack.c.l.b16 %v7176
      %v7204 = vunpack.c.l.b16 %v7177
      %v7205 = vunpack.c.l.b16 %v7178
      %v7206 = vunpack.c.l.b16 %v7179
      %v7207 = vpack.c.b16 %v7200, %v7199
      %v7208 = vpack.c.b16 %v7202, %v7201
      %v7209 = vpack.c.b16 %v7204, %v7203
      %v7210 = vpack.c.b16 %v7206, %v7205
      %v7216 = vsel %vm3886, %v7190, 0
      %7218 = vmatprep.subr.bf16.mxu0 0
      %7219 = vmatpush1.bf16.msra.mxu0 %v7207
      %7220 = vmatprep.subr.bf16.mxu0 0
      %7221 = vmatpush1.bf16.msra.mxu0 %v7208
      %7222 = vmatprep.subr.bf16.mxu0 0
      %7223 = vmatpush1.bf16.msra.mxu0 %v7209
      %7224 = vmatprep.subr.bf16.mxu0 0
      %7225 = vmatpush1.bf16.msra.mxu0 %v7210
      %7226 = vmatprep.subr.bf16.mxu0 0
      %7227 = vmatpush1.bf16.msra.mxu0 0
      %7228 = vmatprep.subr.bf16.mxu0 0
      %7229 = vmatpush1.bf16.msra.mxu0 0
      %7230 = vmatprep.subr.bf16.mxu0 0
      %7231 = vmatpush1.bf16.msra.mxu0 0
      %7232 = vmatprep.subr.bf16.mxu0 0
      %7233 = vmatpush1.bf16.msra.mxu0 0
      %7234 = vmatprep.subr.bf16.mxu0 0
      %7235 = vmatpush1.bf16.msra.mxu0 0
      %7236 = vmatprep.subr.bf16.mxu0 0
      %7237 = vmatpush1.bf16.msra.mxu0 0
      %7238 = vmatprep.subr.bf16.mxu0 0
      %7239 = vmatpush1.bf16.msra.mxu0 0
      %7240 = vmatprep.subr.bf16.mxu0 0
      %7241 = vmatpush1.bf16.msra.mxu0 0
      %7242 = vmatprep.subr.bf16.mxu0 0
      %7243 = vmatpush1.bf16.msra.mxu0 0
      %7244 = vmatprep.subr.bf16.mxu0 0
      %7245 = vmatpush1.bf16.msra.mxu0 0
      %7246 = vmatprep.subr.bf16.mxu0 0
      %7247 = vmatpush1.bf16.msra.mxu0 0
      %7248 = vmatprep.subr.bf16.mxu0 0
      %7249 = vmatpush1.bf16.msra.mxu0 0
      %7250 = vmatprep.mubr.bf16.mxu0 0
      %7251 = vmatmul.mubr.bf16.gmra.mrb[0].mxu0 %v7216
      %v7252 = vpop.f32.mrb[0].mxu0
      %v7253 = vadd.f32 0.0, %v7252
      %v7254 = vpop.f32.mrb[0].mxu0
      %v7255 = vpop.f32.mrb[0].mxu0
      %v7256 = vpop.f32.mrb[0].mxu0
      %7257 = vdwg.mxu0
      %v7258 = vadd.f32 %v7169, %v7253
      %v7259 = vld [vmem:[#allocation4] sm:$0x8]
      %s7260 = scalar_lea.vmem %s7, 160
      %v7261 = vld [vmem:[%s7260] sm:$0xf]
      %v7262 = vld [vmem:[%s7260 + $0x4] sm:$0xf]
      %v7263 = vld [vmem:[%s7260 + $0x8] sm:$0xf]
      %v7264 = vld [vmem:[%s7260 + $0xc] sm:$0xf]
      %v7265 = vld [vmem:[%s7260 + $0x10] sm:$0xf]
      %v7266 = vld [vmem:[%s7260 + $0x14] sm:$0xf]
      %v7267 = vld [vmem:[%s7260 + $0x18] sm:$0xf]
      %v7268 = vld [vmem:[%s7260 + $0x1c] sm:$0xf]
      %v7270 = vunpack.c.l.b16 %v7259
      %v7271 = vpack.c.b16 %v7181, %v7270
      %v7272 = vrot.slane %v7271, 3
      %v7281 = vunpack.c.l.b16 %v7261
      %v7282 = vunpack.c.l.b16 %v7262
      %v7283 = vunpack.c.l.b16 %v7263
      %v7284 = vunpack.c.l.b16 %v7264
      %v7285 = vunpack.c.l.b16 %v7265
      %v7286 = vunpack.c.l.b16 %v7266
      %v7287 = vunpack.c.l.b16 %v7267
      %v7288 = vunpack.c.l.b16 %v7268
      %v7289 = vpack.c.b16 %v7282, %v7281
      %v7290 = vpack.c.b16 %v7284, %v7283
      %v7291 = vpack.c.b16 %v7286, %v7285
      %v7292 = vpack.c.b16 %v7288, %v7287
      %v7298 = vsel %vm3886, %v7272, 0
      %7300 = vmatprep.subr.bf16.mxu0 0
      %7301 = vmatpush1.bf16.msra.mxu0 %v7289
      %7302 = vmatprep.subr.bf16.mxu0 0
      %7303 = vmatpush1.bf16.msra.mxu0 %v7290
      %7304 = vmatprep.subr.bf16.mxu0 0
      %7305 = vmatpush1.bf16.msra.mxu0 %v7291
      %7306 = vmatprep.subr.bf16.mxu0 0
      %7307 = vmatpush1.bf16.msra.mxu0 %v7292
      %7308 = vmatprep.subr.bf16.mxu0 0
      %7309 = vmatpush1.bf16.msra.mxu0 0
      %7310 = vmatprep.subr.bf16.mxu0 0
      %7311 = vmatpush1.bf16.msra.mxu0 0
      %7312 = vmatprep.subr.bf16.mxu0 0
      %7313 = vmatpush1.bf16.msra.mxu0 0
      %7314 = vmatprep.subr.bf16.mxu0 0
      %7315 = vmatpush1.bf16.msra.mxu0 0
      %7316 = vmatprep.subr.bf16.mxu0 0
      %7317 = vmatpush1.bf16.msra.mxu0 0
      %7318 = vmatprep.subr.bf16.mxu0 0
      %7319 = vmatpush1.bf16.msra.mxu0 0
      %7320 = vmatprep.subr.bf16.mxu0 0
      %7321 = vmatpush1.bf16.msra.mxu0 0
      %7322 = vmatprep.subr.bf16.mxu0 0
      %7323 = vmatpush1.bf16.msra.mxu0 0
      %7324 = vmatprep.subr.bf16.mxu0 0
      %7325 = vmatpush1.bf16.msra.mxu0 0
      %7326 = vmatprep.subr.bf16.mxu0 0
      %7327 = vmatpush1.bf16.msra.mxu0 0
      %7328 = vmatprep.subr.bf16.mxu0 0
      %7329 = vmatpush1.bf16.msra.mxu0 0
      %7330 = vmatprep.subr.bf16.mxu0 0
      %7331 = vmatpush1.bf16.msra.mxu0 0
      %7332 = vmatprep.mubr.bf16.mxu0 0
      %7333 = vmatmul.mubr.bf16.gmra.mrb[0].mxu0 %v7298
      %v7334 = vpop.f32.mrb[0].mxu0
      %v7335 = vadd.f32 0.0, %v7334
      %v7336 = vpop.f32.mrb[0].mxu0
      %v7337 = vpop.f32.mrb[0].mxu0
      %v7338 = vpop.f32.mrb[0].mxu0
      %7339 = vdwg.mxu0
      %v7340 = vadd.f32 %v7258, %v7335
      %v7341 = vld [vmem:[#allocation4 + $0x4] sm:$0xf]
      %s7342 = scalar_lea.vmem %s7, 192
      %v7343 = vld [vmem:[%s7342] sm:$0xf]
      %v7344 = vld [vmem:[%s7342 + $0x4] sm:$0xf]
      %v7345 = vld [vmem:[%s7342 + $0x8] sm:$0xf]
      %v7346 = vld [vmem:[%s7342 + $0xc] sm:$0xf]
      %v7347 = vld [vmem:[%s7342 + $0x10] sm:$0xf]
      %v7348 = vld [vmem:[%s7342 + $0x14] sm:$0xf]
      %v7349 = vld [vmem:[%s7342 + $0x18] sm:$0xf]
      %v7350 = vld [vmem:[%s7342 + $0x1c] sm:$0xf]
      %v7359 = vunpack.c.l.b16 %v7343
      %v7360 = vunpack.c.l.b16 %v7344
      %v7361 = vunpack.c.l.b16 %v7345
      %v7362 = vunpack.c.l.b16 %v7346
      %v7363 = vunpack.c.l.b16 %v7347
      %v7364 = vunpack.c.l.b16 %v7348
      %v7365 = vunpack.c.l.b16 %v7349
      %v7366 = vunpack.c.l.b16 %v7350
      %v7367 = vpack.c.b16 %v7360, %v7359
      %v7368 = vpack.c.b16 %v7362, %v7361
      %v7369 = vpack.c.b16 %v7364, %v7363
      %v7370 = vpack.c.b16 %v7366, %v7365
      %v7376 = vsel %vm3886, %v7341, 0
      %7378 = vmatprep.subr.bf16.mxu0 0
      %7379 = vmatpush1.bf16.msra.mxu0 %v7367
      %7380 = vmatprep.subr.bf16.mxu0 0
      %7381 = vmatpush1.bf16.msra.mxu0 %v7368
      %7382 = vmatprep.subr.bf16.mxu0 0
      %7383 = vmatpush1.bf16.msra.mxu0 %v7369
      %7384 = vmatprep.subr.bf16.mxu0 0
      %7385 = vmatpush1.bf16.msra.mxu0 %v7370
      %7386 = vmatprep.subr.bf16.mxu0 0
      %7387 = vmatpush1.bf16.msra.mxu0 0
      %7388 = vmatprep.subr.bf16.mxu0 0
      %7389 = vmatpush1.bf16.msra.mxu0 0
      %7390 = vmatprep.subr.bf16.mxu0 0
      %7391 = vmatpush1.bf16.msra.mxu0 0
      %7392 = vmatprep.subr.bf16.mxu0 0
      %7393 = vmatpush1.bf16.msra.mxu0 0
      %7394 = vmatprep.subr.bf16.mxu0 0
      %7395 = vmatpush1.bf16.msra.mxu0 0
      %7396 = vmatprep.subr.bf16.mxu0 0
      %7397 = vmatpush1.bf16.msra.mxu0 0
      %7398 = vmatprep.subr.bf16.mxu0 0
      %7399 = vmatpush1.bf16.msra.mxu0 0
      %7400 = vmatprep.subr.bf16.mxu0 0
      %7401 = vmatpush1.bf16.msra.mxu0 0
      %7402 = vmatprep.subr.bf16.mxu0 0
      %7403 = vmatpush1.bf16.msra.mxu0 0
      %7404 = vmatprep.subr.bf16.mxu0 0
      %7405 = vmatpush1.bf16.msra.mxu0 0
      %7406 = vmatprep.subr.bf16.mxu0 0
      %7407 = vmatpush1.bf16.msra.mxu0 0
      %7408 = vmatprep.subr.bf16.mxu0 0
      %7409 = vmatpush1.bf16.msra.mxu0 0
      %7410 = vmatprep.mubr.bf16.mxu0 0
      %7411 = vmatmul.mubr.bf16.gmra.mrb[0].mxu0 %v7376
      %v7412 = vpop.f32.mrb[0].mxu0
      %v7413 = vadd.f32 0.0, %v7412
      %v7414 = vpop.f32.mrb[0].mxu0
      %v7415 = vpop.f32.mrb[0].mxu0
      %v7416 = vpop.f32.mrb[0].mxu0
      %7417 = vdwg.mxu0
      %v7418 = vadd.f32 %v7340, %v7413
      %v7419 = vld [vmem:[#allocation4 + $0x4] sm:$0xf]
      %v7420 = vld [vmem:[#allocation4 + $0x8] sm:$0x1]
      %s7421 = scalar_lea.vmem %s7, 224
      %v7422 = vld [vmem:[%s7421] sm:$0xf]
      %v7423 = vld [vmem:[%s7421 + $0x4] sm:$0xf]
      %v7424 = vld [vmem:[%s7421 + $0x8] sm:$0xf]
      %v7425 = vld [vmem:[%s7421 + $0xc] sm:$0xf]
      %v7426 = vld [vmem:[%s7421 + $0x10] sm:$0xf]
      %v7427 = vld [vmem:[%s7421 + $0x14] sm:$0xf]
      %v7428 = vld [vmem:[%s7421 + $0x18] sm:$0xf]
      %v7429 = vld [vmem:[%s7421 + $0x1c] sm:$0xf]
      %v7432 = vunpack.c.l.b16 %v7419
      %v7433 = vunpack.c.l.b16 %v7420
      %v7434 = vpack.c.b16 %v7433, %v7432
      %v7436 = vshrl.u32 %v7434, 16
      %v7438 = vshll.u32 %v7434, 16
      %v7440 = vrot.slane %v7438, 1
      %v7441 = vor.u32 %v7436, %v7440
      %v7450 = vunpack.c.l.b16 %v7422
      %v7451 = vunpack.c.l.b16 %v7423
      %v7452 = vunpack.c.l.b16 %v7424
      %v7453 = vunpack.c.l.b16 %v7425
      %v7454 = vunpack.c.l.b16 %v7426
      %v7455 = vunpack.c.l.b16 %v7427
      %v7456 = vunpack.c.l.b16 %v7428
      %v7457 = vunpack.c.l.b16 %v7429
      %v7458 = vpack.c.b16 %v7451, %v7450
      %v7459 = vpack.c.b16 %v7453, %v7452
      %v7460 = vpack.c.b16 %v7455, %v7454
      %v7461 = vpack.c.b16 %v7457, %v7456
      %v7467 = vsel %vm3886, %v7441, 0
      %7469 = vmatprep.subr.bf16.mxu0 0
      %7470 = vmatpush1.bf16.msra.mxu0 %v7458
      %7471 = vmatprep.subr.bf16.mxu0 0
      %7472 = vmatpush1.bf16.msra.mxu0 %v7459
      %7473 = vmatprep.subr.bf16.mxu0 0
      %7474 = vmatpush1.bf16.msra.mxu0 %v7460
      %7475 = vmatprep.subr.bf16.mxu0 0
      %7476 = vmatpush1.bf16.msra.mxu0 %v7461
      %7477 = vmatprep.subr.bf16.mxu0 0
      %7478 = vmatpush1.bf16.msra.mxu0 0
      %7479 = vmatprep.subr.bf16.mxu0 0
      %7480 = vmatpush1.bf16.msra.mxu0 0
      %7481 = vmatprep.subr.bf16.mxu0 0
      %7482 = vmatpush1.bf16.msra.mxu0 0
      %7483 = vmatprep.subr.bf16.mxu0 0
      %7484 = vmatpush1.bf16.msra.mxu0 0
      %7485 = vmatprep.subr.bf16.mxu0 0
      %7486 = vmatpush1.bf16.msra.mxu0 0
      %7487 = vmatprep.subr.bf16.mxu0 0
      %7488 = vmatpush1.bf16.msra.mxu0 0
      %7489 = vmatprep.subr.bf16.mxu0 0
      %7490 = vmatpush1.bf16.msra.mxu0 0
      %7491 = vmatprep.subr.bf16.mxu0 0
      %7492 = vmatpush1.bf16.msra.mxu0 0
      %7493 = vmatprep.subr.bf16.mxu0 0
      %7494 = vmatpush1.bf16.msra.mxu0 0
      %7495 = vmatprep.subr.bf16.mxu0 0
      %7496 = vmatpush1.bf16.msra.mxu0 0
      %7497 = vmatprep.subr.bf16.mxu0 0
      %7498 = vmatpush1.bf16.msra.mxu0 0
      %7499 = vmatprep.subr.bf16.mxu0 0
      %7500 = vmatpush1.bf16.msra.mxu0 0
      %7501 = vmatprep.mubr.bf16.mxu0 0
      %7502 = vmatmul.mubr.bf16.gmra.mrb[0].mxu0 %v7467
      %v7503 = vpop.f32.mrb[0].mxu0
      %v7504 = vadd.f32 0.0, %v7503
      %v7505 = vpop.f32.mrb[0].mxu0
      %v7506 = vpop.f32.mrb[0].mxu0
      %v7507 = vpop.f32.mrb[0].mxu0
      %7508 = vdwg.mxu0
      %v7509 = vadd.f32 %v7418, %v7504
      %v7510 = vld [vmem:[#allocation4 + $0x4] sm:$0xe]
      %s7511 = scalar_lea.vmem %s7, 256
      %v7512 = vld [vmem:[%s7511] sm:$0xf]
      %v7513 = vld [vmem:[%s7511 + $0x4] sm:$0xf]
      %v7514 = vld [vmem:[%s7511 + $0x8] sm:$0xf]
      %v7515 = vld [vmem:[%s7511 + $0xc] sm:$0xf]
      %v7516 = vld [vmem:[%s7511 + $0x10] sm:$0xf]
      %v7517 = vld [vmem:[%s7511 + $0x14] sm:$0xf]
      %v7518 = vld [vmem:[%s7511 + $0x18] sm:$0xf]
      %v7519 = vld [vmem:[%s7511 + $0x1c] sm:$0xf]
      %v7521 = vunpack.c.l.b16 %v7510
      %v7522 = vpack.c.b16 %v7433, %v7521
      %v7523 = vrot.slane %v7522, 1
      %v7532 = vunpack.c.l.b16 %v7512
      %v7533 = vunpack.c.l.b16 %v7513
      %v7534 = vunpack.c.l.b16 %v7514
      %v7535 = vunpack.c.l.b16 %v7515
      %v7536 = vunpack.c.l.b16 %v7516
      %v7537 = vunpack.c.l.b16 %v7517
      %v7538 = vunpack.c.l.b16 %v7518
      %v7539 = vunpack.c.l.b16 %v7519
      %v7540 = vpack.c.b16 %v7533, %v7532
      %v7541 = vpack.c.b16 %v7535, %v7534
      %v7542 = vpack.c.b16 %v7537, %v7536
      %v7543 = vpack.c.b16 %v7539, %v7538
      %v7549 = vsel %vm3886, %v7523, 0
      %7551 = vmatprep.subr.bf16.mxu0 0
      %7552 = vmatpush1.bf16.msra.mxu0 %v7540
      %7553 = vmatprep.subr.bf16.mxu0 0
      %7554 = vmatpush1.bf16.msra.mxu0 %v7541
      %7555 = vmatprep.subr.bf16.mxu0 0
      %7556 = vmatpush1.bf16.msra.mxu0 %v7542
      %7557 = vmatprep.subr.bf16.mxu0 0
      %7558 = vmatpush1.bf16.msra.mxu0 %v7543
      %7559 = vmatprep.subr.bf16.mxu0 0
      %7560 = vmatpush1.bf16.msra.mxu0 0
      %7561 = vmatprep.subr.bf16.mxu0 0
      %7562 = vmatpush1.bf16.msra.mxu0 0
      %7563 = vmatprep.subr.bf16.mxu0 0
      %7564 = vmatpush1.bf16.msra.mxu0 0
      %7565 = vmatprep.subr.bf16.mxu0 0
      %7566 = vmatpush1.bf16.msra.mxu0 0
      %7567 = vmatprep.subr.bf16.mxu0 0
      %7568 = vmatpush1.bf16.msra.mxu0 0
      %7569 = vmatprep.subr.bf16.mxu0 0
      %7570 = vmatpush1.bf16.msra.mxu0 0
      %7571 = vmatprep.subr.bf16.mxu0 0
      %7572 = vmatpush1.bf16.msra.mxu0 0
      %7573 = vmatprep.subr.bf16.mxu0 0
      %7574 = vmatpush1.bf16.msra.mxu0 0
      %7575 = vmatprep.subr.bf16.mxu0 0
      %7576 = vmatpush1.bf16.msra.mxu0 0
      %7577 = vmatprep.subr.bf16.mxu0 0
      %7578 = vmatpush1.bf16.msra.mxu0 0
      %7579 = vmatprep.subr.bf16.mxu0 0
      %7580 = vmatpush1.bf16.msra.mxu0 0
      %7581 = vmatprep.subr.bf16.mxu0 0
      %7582 = vmatpush1.bf16.msra.mxu0 0
      %7583 = vmatprep.mubr.bf16.mxu0 0
      %7584 = vmatmul.mubr.bf16.gmra.mrb[0].mxu0 %v7549
      %v7585 = vpop.f32.mrb[0].mxu0
      %v7586 = vadd.f32 0.0, %v7585
      %v7587 = vpop.f32.mrb[0].mxu0
      %v7588 = vpop.f32.mrb[0].mxu0
      %v7589 = vpop.f32.mrb[0].mxu0
      %7590 = vdwg.mxu0
      %v7591 = vadd.f32 %v7509, %v7586
      %v7592 = vld [vmem:[%s8] sm:$0x1]
      %v7594 = vlaneseq
      %v7595 = vshrl.u32 %v7594, 7
      %v7596 = vsub.s32 0, %v7595
      %v7597 = vrot.slane %v7592, %v7596
      %v7599 = vadd.f32 %v7591, %v7597
      %v7601 = vrot.slane %v7599, 1
      %7602 = vrot.lane.b32.xlu0 %v7601, 64
      %v7603 = vpop.permute.xlu0 %7602
      %v7605 = vrot.slane %v7599, 4
      %v7607 = vrot.slane %v7599, 5
      %7608 = vrot.lane.b32.xlu0 %v7607, 64
      %v7609 = vpop.permute.xlu0 %7608
      %v7611 = vsel %vm3886, %v7599, %v7603
      %v7612 = vsel %vm3886, %v7605, %v7609
      %v7615 = vcombine.low %v7611, %v7612
      %v7617 = vunpack.c.l.s4 1966171168
      %v7618 = vunpack.c.0.s8 %v7617
      %v7619 = vlaneseq
      %v7620 = vshrl.u32 %v7619, 7
      %v7621 = vsub.s32 %v7618, %v7620
      %v7622 = vrot.slane %v7615, %v7621
      %v7624 = vunpack.c.l.s4 1966171168
      %v7625 = vunpack.c.0.s8 %v7624
      %v7626 = vlaneseq
      %v7627 = vshrl.u32 %v7626, 7
      %v7628 = vsub.s32 %v7625, %v7627
      %v7629 = vrot.slane %v7622, %v7628
      %v7631 = vlaneseq
      %vm7632 = vcmp.ge.s32.totalorder %v7631, 0
      %vm7633 = vcmp.lt.s32.totalorder %v7631, 256
      %vm7634 = vmand %vm7632, %vm7633
      %7635 = vst.msk [vmem:[%s330] sm:$0x3] %vm7634, %v7629
      %p7636 = scmp.lt.s32.totalorder %s20, 1
      %s7637 = scalar_select %p7636, %s20, 1
      %s7638 = smul.addr %s7637, 2
      %s7639 = scalar_lea.vmem %s9, %s7638
      // Predicated region
      $region57: #{backbone_forward.1} parent=55 // pred_check
        %p7640 = pneg %p232
      $region58: #{backbone_forward.1} parent=55 // pred_check_branch
        %7642 = sbr.rel (%p7640) target = $region60
      $region59: #{backbone_forward.1} parent=55 // pred_region
        _
      $region60: #{backbone_forward.1} parent=55 // pred_fallthru
        _
    $region56: #{backbone_forward.1} parent=5 // pred_fallthru
      _
    %p7643 = scmp.le.s32.totalorder 2, %s15
    // Predicated region
    $region61: #{backbone_forward.1} parent=5 // pred_check
      %p7644 = pneg %p7643
    $region62: #{backbone_forward.1} parent=5 // pred_check_branch
      %7646 = sbr.rel (%p7644) target = $region64
    $region63: #{backbone_forward.1} parent=5 // pred_region
      %s7647 = ssub.s32 %s15, 2
      // Predicated region
      $region65: #{backbone_forward.1} parent=63 // pred_check
        %p7648 = pneg %p238
      $region66: #{backbone_forward.1} parent=63 // pred_check_branch
        %7650 = sbr.rel (%p7648) target = $region68
      $region67: #{backbone_forward.1} parent=63 // pred_region
        %p7651 = scmp.lt.s32.totalorder %s21, 1
        %s7652 = scalar_select %p7651, %s21, 1
        %s7653 = smul.addr %s7652, 2
        %s7654 = scalar_lea.vmem %s9, %s7653
      $region68: #{backbone_forward.1} parent=63 // pred_fallthru
        _
    $region64: #{backbone_forward.1} parent=5 // pred_fallthru
      _
  $region6: #{backbone_forward.1} parent=0 // loop_footer
    %s19 = sadd.s32 1, %s15
  $region7: #{backbone_forward.1} parent=0 // loop_footer_branch
    %14 = sbr.rel target = $region3
  $region8: #{backbone_forward.1} parent=0 // loop_exit
    _

</llo_original>
